<compile_context>
chip_gen: v7x
topology: tpu7x:2x2x1
jax: 0.10.0
libtpu: 0.0.40
codegen_flags: <defaults>
</compile_context>

<pallas_src>
import functools

import jax
import jax.numpy as jnp
from jax.experimental import pallas as pl
from jax.experimental.pallas import tpu as pltpu

LANES = 128      # lane width / channel padding target
BN_EPS = 1e-5    # PyTorch BatchNorm2d default


# -----------------------------------------------------------------------------
# Fused forward kernel
# -----------------------------------------------------------------------------
def _mynet_fused_kernel(x_ref, mask_ref, w3_ref, b3_ref, w1_ref, b1_ref,
                        gamma_ref, beta_ref, out_ref, *,
                        n3, wp, pack_off, n_real, eps, cast_bf16):
    """Full MyNet forward on a VMEM-resident, spatially padded activation.

    Layout: rows = flattened (batch, padded_y, padded_x) pixels (sublanes),
            cols = channels zero-padded to 128 (lanes); real channels live in
            lanes [0, nChannel), all other lanes stay exactly zero.
    """
    rows = x_ref.shape[0]
    mask = mask_ref[...]                       # (rows, 128); 1 = real pixel row
    inv_n = 1.0 / float(n_real)

    def relu_bn(pre, layer, apply_relu):
        # (conv + bias) -> ReLU -> BatchNorm (training-mode batch stats,
        # biased variance, learnable affine).  One-pass sums; padding rows are
        # excluded from the stats and forced back to exactly 0 so they act as
        # the next layer's zero padding.
        y = jnp.maximum(pre, 0.0) if apply_relu else pre
        y = y * mask
        s1 = jnp.sum(y, axis=0, keepdims=True)
        s2 = jnp.sum(y * y, axis=0, keepdims=True)
        mean = s1 * inv_n
        var = jnp.maximum(s2 * inv_n - mean * mean, 0.0)     # biased variance
        scale = jax.lax.rsqrt(var + eps) * gamma_ref[layer]  # (1, 128)
        shift = beta_ref[layer] - mean * scale               # (1, 128)
        return (y * scale + shift) * mask

    def mm(lhs, rhs):
        if cast_bf16:
            lhs = lhs.astype(jnp.bfloat16)      # weights already packed in bf16
        return jnp.dot(lhs, rhs, preferred_element_type=jnp.float32)

    a = x_ref[...]                              # (rows, 128), f32

    # 3x3 layers (conv1, then the conv2 list).
    # TODO(synk): move to lax.fori_loop with dynamic w3_ref slicing for large
    #   n_conv (full unrolling is fine for n_conv = 2).
    for l in range(n3):
        # dx = +1 / -1 neighbours.  Wrap-around only touches padding rows,
        # which are re-masked to zero in relu_bn.
        a_xp = pltpu.roll(a, rows - 1, axis=0)      # a_xp[r] = a[r + 1]
        a_xm = pltpu.roll(a, 1, axis=0)             # a_xm[r] = a[r - 1]
        # K-dense pack: (center, x+1, x-1) channels at lane offsets
        # 0 / pack_off / 2*pack_off (lanes >= nChannel of `a` are zero).
        a_pack = (a
                  + pltpu.roll(a_xp, pack_off, axis=1)
                  + pltpu.roll(a_xm, 2 * pack_off, axis=1))
        # One (rows,128) x (128,384) matmul: N-slabs are ky = 0, 1, 2.
        s = mm(a_pack, w3_ref[l])
        pre = (s[:, LANES:2 * LANES]                               # dy =  0
               + pltpu.roll(s[:, :LANES], wp, axis=0)              # dy = -1
               + pltpu.roll(s[:, 2 * LANES:], rows - wp, axis=0)   # dy = +1
               + b3_ref[l])
        a = relu_bn(pre, l, apply_relu=True)

    # conv3: 1x1  ->  BN (no ReLU).
    z = mm(a, w1_ref[...]) + b1_ref[...]
    out_ref[...] = relu_bn(z, n3, apply_relu=False)


# -----------------------------------------------------------------------------
# Weight / BN packing (plain-JAX glue)
# -----------------------------------------------------------------------------
def _pack_conv3x3_grouped(w_oihw, b, pack_off, w_dtype):
    """(cout,cin,3,3) -> (128, 3*128): K packs the 3 dx taps at lane offsets
    0 / pack_off / 2*pack_off; N stacks the 3 ky taps as 128-lane slabs."""
    cout, cin = w_oihw.shape[0], w_oihw.shape[1]
    w = jnp.transpose(w_oihw, (2, 3, 1, 0)).astype(jnp.float32)   # (ky,kx,cin,cout)
    blocks = []
    for ky in range(3):
        blk = jnp.zeros((LANES, LANES), jnp.float32)
        blk = blk.at[:cin, :cout].set(w[ky, 1])                              # dx =  0
        blk = blk.at[pack_off:pack_off + cin, :cout].set(w[ky, 2])           # dx = +1
        blk = blk.at[2 * pack_off:2 * pack_off + cin, :cout].set(w[ky, 0])   # dx = -1
        blocks.append(blk)
    wt = jnp.concatenate(blocks, axis=1).astype(w_dtype)          # (128, 384)
    bp = jnp.pad(b.astype(jnp.float32), (0, LANES - cout)).reshape(1, LANES)
    return wt, bp


def _pack_conv1x1(w_oihw, b, w_dtype):
    cout, cin = w_oihw.shape[0], w_oihw.shape[1]
    wt = jnp.transpose(w_oihw.reshape(cout, cin), (1, 0)).astype(jnp.float32)
    wt = jnp.pad(wt, ((0, LANES - cin), (0, LANES - cout))).astype(w_dtype)
    bp = jnp.pad(b.astype(jnp.float32), (0, LANES - cout)).reshape(1, LANES)
    return wt, bp


def _pack_bn(gammas, betas):
    g = jnp.stack([jnp.pad(v.astype(jnp.float32), (0, LANES - v.shape[0]))
                   for v in gammas], 0).reshape(len(gammas), 1, LANES)
    b = jnp.stack([jnp.pad(v.astype(jnp.float32), (0, LANES - v.shape[0]))
                   for v in betas], 0).reshape(len(betas), 1, LANES)
    return g, b


# -----------------------------------------------------------------------------
# Parameters (PyTorch Conv2d default init; BatchNorm2d affine = identity init)
# -----------------------------------------------------------------------------
def init_params(key, input_dim, n_channel, n_conv):
    params = {}

    def conv_init(k, cout, cin, kh, kw):
        kw_, kb_ = jax.random.split(k)
        fan_in = cin * kh * kw
        bound = 1.0 / jnp.sqrt(fan_in)
        w = jax.random.uniform(kw_, (cout, cin, kh, kw), jnp.float32, -bound, bound)
        b = jax.random.uniform(kb_, (cout,), jnp.float32, -bound, bound)
        return w, b

    def bn_init(c):
        return jnp.ones((c,), jnp.float32), jnp.zeros((c,), jnp.float32)

    keys = jax.random.split(key, n_conv + 1)
    params["conv1_w"], params["conv1_b"] = conv_init(keys[0], n_channel, input_dim, 3, 3)
    params["bn1_g"], params["bn1_b"] = bn_init(n_channel)
    for i in range(n_conv - 1):
        params[f"conv2_{i}_w"], params[f"conv2_{i}_b"] = conv_init(
            keys[1 + i], n_channel, n_channel, 3, 3)
        params[f"bn2_{i}_g"], params[f"bn2_{i}_b"] = bn_init(n_channel)
    params["conv3_w"], params["conv3_b"] = conv_init(keys[n_conv], n_channel, n_channel, 1, 1)
    params["bn3_g"], params["bn3_b"] = bn_init(n_channel)
    return params


# -----------------------------------------------------------------------------
# Forward pass wrapper (NCHW in / NCHW out, matching the PyTorch module)
# -----------------------------------------------------------------------------
def _vmem_capacity_bytes():
    """Physical VMEM of the attached TPU generation (conservative fallback)."""
    try:
        return int(pltpu.get_tpu_info().vmem_capacity_bytes)
    except Exception:
        return 64 * 1024 * 1024        # v7x has the smallest VMEM (64 MiB)


def mynet_forward(params, x_nchw, n_conv, *, matmul_dtype=jnp.float32):
    """Training-mode forward (batch-stat BatchNorm, affine applied).

    matmul_dtype=jnp.float32 matches PyTorch numerics exactly; jnp.bfloat16
    gives ~2-3x MXU throughput on v6e/v7x (validate against the f32 reference
    before enabling — conv outputs feed the BN statistics)."""
    B, cin, H, W = x_nchw.shape
    n_channel = params["conv3_w"].shape[0]
    hp, wp = H + 2, W + 2
    bp_rows = B * hp * wp
    rows = (bp_rows + 7) // 8 * 8          # sublane-align the row count
    pad_tail = rows - bp_rows
    n_real = B * H * W

    # K-dense lane packing needs 3 channel groups inside 128 lanes.
    pack_off = max(cin, n_channel)
    if 3 * pack_off > LANES:
        # TODO(synk): fall back to per-tap matmuls / tile channels if nChannel > 42.
        raise ValueError("channel count too large for K-dense lane packing")

    cast_bf16 = jnp.dtype(matmul_dtype) == jnp.dtype(jnp.bfloat16)
    w_dtype = jnp.bfloat16 if cast_bf16 else jnp.float32

    # Generation-aware VMEM budget (whole fused working set must stay resident).
    vmem_cap = _vmem_capacity_bytes()
    vmem_limit = int(vmem_cap * 3 // 4)    # ~48 MiB on v7x, ~96 MiB on v5e/v6e
    act_bytes = rows * LANES * 4
    w_bytes = (n_conv * LANES * 3 * LANES + LANES * LANES) * jnp.dtype(w_dtype).itemsize
    est_bytes = 16 * act_bytes + w_bytes   # in/out/mask + ~12 live temporaries
    if est_bytes > vmem_limit:
        # TODO(synk): row-tiled two-pass-BN variant (also enables the v7x 2-TC split).
        raise ValueError("activation too large for the fused VMEM-resident kernel")

    # NCHW -> NHWC, zero-pad spatially (conv padding=1) and channels (-> 128
    # lanes), flatten pixels onto the sublane axis.
    x_nhwc = jnp.transpose(x_nchw, (0, 2, 3, 1)).astype(jnp.float32)
    x_pad = jnp.pad(x_nhwc, ((0, 0), (1, 1), (1, 1), (0, LANES - cin)))
    a0 = jnp.pad(x_pad.reshape(bp_rows, LANES), ((0, pad_tail), (0, 0)))

    # Lane-dense validity mask: 1 on real-pixel rows, 0 on padding rows
    # (spatial border + sublane-alignment tail).
    mask_rows = jnp.pad(jnp.ones((B, H, W), jnp.float32),
                        ((0, 0), (1, 1), (1, 1))).reshape(bp_rows, 1)
    mask = jnp.tile(jnp.pad(mask_rows, ((0, pad_tail), (0, 0))), (1, LANES))

    # Pack the 3x3 layers (conv1 followed by the conv2 list) and the BN params.
    w3_list, b3_list, gam_list, bet_list = [], [], [], []
    wt, bt = _pack_conv3x3_grouped(params["conv1_w"], params["conv1_b"], pack_off, w_dtype)
    w3_list.append(wt); b3_list.append(bt)
    gam_list.append(params["bn1_g"]); bet_list.append(params["bn1_b"])
    for i in range(n_conv - 1):
        wt, bt = _pack_conv3x3_grouped(params[f"conv2_{i}_w"], params[f"conv2_{i}_b"],
                                       pack_off, w_dtype)
        w3_list.append(wt); b3_list.append(bt)
        gam_list.append(params[f"bn2_{i}_g"]); bet_list.append(params[f"bn2_{i}_b"])
    gam_list.append(params["bn3_g"]); bet_list.append(params["bn3_b"])
    w3 = jnp.stack(w3_list, 0)                    # (n_conv, 128, 384)
    b3 = jnp.stack(b3_list, 0)                    # (n_conv, 1, 128)
    w1, b1 = _pack_conv1x1(params["conv3_w"], params["conv3_b"], w_dtype)
    gamma, beta = _pack_bn(gam_list, bet_list)    # (n_conv + 1, 1, 128) each

    kernel = functools.partial(_mynet_fused_kernel, n3=n_conv, wp=wp,
                               pack_off=pack_off, n_real=n_real, eps=BN_EPS,
                               cast_bf16=cast_bf16)
    out_flat = pl.pallas_call(
        kernel,
        out_shape=jax.ShapeDtypeStruct((rows, LANES), jnp.float32),
        compiler_params=pltpu.CompilerParams(vmem_limit_bytes=vmem_limit),
    )(a0, mask, w3, b3, w1, b1, gamma, beta)

    y = out_flat[:bp_rows].reshape(B, hp, wp, LANES)[:, 1:H + 1, 1:W + 1, :n_channel]
    return jnp.transpose(y, (0, 3, 1, 2))         # NHWC -> NCHW


# -----------------------------------------------------------------------------
if __name__ == "__main__":
    # args.nChannel = 32, args.nConv = 2, input_dim = 3 (RGB), 16x16 image, B=2.
    INPUT_DIM, N_CHANNEL, N_CONV = 3, 32, 2
    B, H, W = 2, 16, 16

    key = jax.random.PRNGKey(0)
    k_params, k_x = jax.random.split(key)
    params = init_params(k_params, INPUT_DIM, N_CHANNEL, N_CONV)
    x = jax.random.normal(k_x, (B, INPUT_DIM, H, W), dtype=jnp.float32)

    fwd = jax.jit(functools.partial(mynet_forward, n_conv=N_CONV))
    out = fwd(params, x)
    jax.block_until_ready(out)

    assert out.shape == (B, N_CHANNEL, H, W), out.shape
    assert bool(jnp.all(jnp.isfinite(out))), "non-finite output"
    print("KERNEL_OK")
</pallas_src>

<mosaic_0001>
module attributes {stable_mosaic.version = 11 : i64} {
  func.func @_mynet_fused_kernel(%arg0: memref<648x128xf32, #tpu.memory_space<vmem>>, %arg1: memref<648x128xf32, #tpu.memory_space<vmem>>, %arg2: memref<2x128x384xf32, #tpu.memory_space<vmem>>, %arg3: memref<2x1x128xf32, #tpu.memory_space<vmem>>, %arg4: memref<128x128xf32, #tpu.memory_space<vmem>>, %arg5: memref<1x128xf32, #tpu.memory_space<vmem>>, %arg6: memref<3x1x128xf32, #tpu.memory_space<vmem>>, %arg7: memref<3x1x128xf32, #tpu.memory_space<vmem>>, %arg8: memref<648x128xf32, #tpu.memory_space<vmem>>) attributes {dimension_semantics = [], scalar_prefetch = 0 : i64, scratch_operands = 0 : i64, tpu.core_type = #tpu.core_type<tc>} {
    %c0 = arith.constant 0 : index
    %c0_0 = arith.constant 0 : index
    %0 = vector.load %arg1[%c0, %c0_0] : memref<648x128xf32, #tpu.memory_space<vmem>>, vector<648x128xf32>
    %c0_1 = arith.constant 0 : index
    %c0_2 = arith.constant 0 : index
    %1 = vector.load %arg0[%c0_1, %c0_2] : memref<648x128xf32, #tpu.memory_space<vmem>>, vector<648x128xf32>
    %c647_i32 = arith.constant 647 : i32
    %2 = tpu.dynamic_rotate %1 by %c647_i32 dim 0 : vector<648x128xf32>, i32 -> vector<648x128xf32>
    %c1_i32 = arith.constant 1 : i32
    %3 = tpu.dynamic_rotate %1 by %c1_i32 dim 0 : vector<648x128xf32>, i32 -> vector<648x128xf32>
    %c32_i32 = arith.constant 32 : i32
    %4 = tpu.dynamic_rotate %2 by %c32_i32 dim 1 : vector<648x128xf32>, i32 -> vector<648x128xf32>
    %5 = arith.addf %1, %4 : vector<648x128xf32>
    %c64_i32 = arith.constant 64 : i32
    %6 = tpu.dynamic_rotate %3 by %c64_i32 dim 1 : vector<648x128xf32>, i32 -> vector<648x128xf32>
    %7 = arith.addf %5, %6 : vector<648x128xf32>
    %c0_3 = arith.constant 0 : index
    %c0_4 = arith.constant 0 : index
    %c0_5 = arith.constant 0 : index
    %8 = vector.load %arg2[%c0_3, %c0_4, %c0_5] : memref<2x128x384xf32, #tpu.memory_space<vmem>>, vector<1x128x384xf32>
    %9 = vector.shape_cast %8 : vector<1x128x384xf32> to vector<128x384xf32>
    %cst = arith.constant dense<0.000000e+00> : vector<648x384xf32>
    %10 = tpu.matmul %7, %9, %cst {dimension_numbers = #tpu.dot_dimension_numbers<[1], [0], [0], [1], [0, 0, 1, 1], [], []>} : vector<648x128xf32>, vector<128x384xf32>, vector<648x384xf32> -> vector<648x384xf32>
    %11 = vector.extract_strided_slice %10 {offsets = [0, 128], sizes = [648, 128], strides = [1, 1]} : vector<648x384xf32> to vector<648x128xf32>
    %12 = vector.extract_strided_slice %10 {offsets = [0, 0], sizes = [648, 128], strides = [1, 1]} : vector<648x384xf32> to vector<648x128xf32>
    %c18_i32 = arith.constant 18 : i32
    %13 = tpu.dynamic_rotate %12 by %c18_i32 dim 0 : vector<648x128xf32>, i32 -> vector<648x128xf32>
    %14 = arith.addf %11, %13 : vector<648x128xf32>
    %15 = vector.extract_strided_slice %10 {offsets = [0, 256], sizes = [648, 128], strides = [1, 1]} : vector<648x384xf32> to vector<648x128xf32>
    %c630_i32 = arith.constant 630 : i32
    %16 = tpu.dynamic_rotate %15 by %c630_i32 dim 0 : vector<648x128xf32>, i32 -> vector<648x128xf32>
    %17 = arith.addf %14, %16 : vector<648x128xf32>
    %c0_6 = arith.constant 0 : index
    %c0_7 = arith.constant 0 : index
    %c0_8 = arith.constant 0 : index
    %18 = vector.load %arg3[%c0_6, %c0_7, %c0_8] : memref<2x1x128xf32, #tpu.memory_space<vmem>>, vector<1x1x128xf32>
    %19 = vector.shape_cast %18 : vector<1x1x128xf32> to vector<1x128xf32>
    %20 = vector.broadcast %19 : vector<1x128xf32> to vector<648x128xf32>
    %21 = arith.addf %17, %20 : vector<648x128xf32>
    %cst_9 = arith.constant 0.000000e+00 : f32
    %22 = vector.broadcast %cst_9 : f32 to vector<648x128xf32>
    %23 = arith.maximumf %21, %22 : vector<648x128xf32>
    %24 = arith.mulf %23, %0 : vector<648x128xf32>
    %cst_10 = arith.constant dense<0.000000e+00> : vector<128xf32>
    %25 = vector.multi_reduction <add>, %24, %cst_10 [0] : vector<648x128xf32> to vector<128xf32>
    %26 = vector.shape_cast %25 : vector<128xf32> to vector<1x128xf32>
    %27 = arith.mulf %24, %24 : vector<648x128xf32>
    %cst_11 = arith.constant dense<0.000000e+00> : vector<128xf32>
    %28 = vector.multi_reduction <add>, %27, %cst_11 [0] : vector<648x128xf32> to vector<128xf32>
    %29 = vector.shape_cast %28 : vector<128xf32> to vector<1x128xf32>
    %cst_12 = arith.constant 0.001953125 : f32
    %30 = vector.broadcast %cst_12 : f32 to vector<1x128xf32>
    %31 = arith.mulf %26, %30 : vector<1x128xf32>
    %cst_13 = arith.constant 0.001953125 : f32
    %32 = vector.broadcast %cst_13 : f32 to vector<1x128xf32>
    %33 = arith.mulf %29, %32 : vector<1x128xf32>
    %34 = arith.mulf %31, %31 : vector<1x128xf32>
    %35 = arith.subf %33, %34 : vector<1x128xf32>
    %cst_14 = arith.constant 0.000000e+00 : f32
    %36 = vector.broadcast %cst_14 : f32 to vector<1x128xf32>
    %37 = arith.maximumf %35, %36 : vector<1x128xf32>
    %cst_15 = arith.constant 9.99999974E-6 : f32
    %38 = vector.broadcast %cst_15 : f32 to vector<1x128xf32>
    %39 = arith.addf %37, %38 : vector<1x128xf32>
    %40 = math.rsqrt %39 : vector<1x128xf32>
    %c0_16 = arith.constant 0 : index
    %c0_17 = arith.constant 0 : index
    %c0_18 = arith.constant 0 : index
    %41 = vector.load %arg6[%c0_16, %c0_17, %c0_18] : memref<3x1x128xf32, #tpu.memory_space<vmem>>, vector<1x1x128xf32>
    %42 = vector.shape_cast %41 : vector<1x1x128xf32> to vector<1x128xf32>
    %43 = arith.mulf %40, %42 : vector<1x128xf32>
    %c0_19 = arith.constant 0 : index
    %c0_20 = arith.constant 0 : index
    %c0_21 = arith.constant 0 : index
    %44 = vector.load %arg7[%c0_19, %c0_20, %c0_21] : memref<3x1x128xf32, #tpu.memory_space<vmem>>, vector<1x1x128xf32>
    %45 = vector.shape_cast %44 : vector<1x1x128xf32> to vector<1x128xf32>
    %46 = arith.mulf %31, %43 : vector<1x128xf32>
    %47 = arith.subf %45, %46 : vector<1x128xf32>
    %48 = vector.broadcast %43 : vector<1x128xf32> to vector<648x128xf32>
    %49 = arith.mulf %24, %48 : vector<648x128xf32>
    %50 = vector.broadcast %47 : vector<1x128xf32> to vector<648x128xf32>
    %51 = arith.addf %49, %50 : vector<648x128xf32>
    %52 = arith.mulf %51, %0 : vector<648x128xf32>
    %c647_i32_22 = arith.constant 647 : i32
    %53 = tpu.dynamic_rotate %52 by %c647_i32_22 dim 0 : vector<648x128xf32>, i32 -> vector<648x128xf32>
    %c1_i32_23 = arith.constant 1 : i32
    %54 = tpu.dynamic_rotate %52 by %c1_i32_23 dim 0 : vector<648x128xf32>, i32 -> vector<648x128xf32>
    %c32_i32_24 = arith.constant 32 : i32
    %55 = tpu.dynamic_rotate %53 by %c32_i32_24 dim 1 : vector<648x128xf32>, i32 -> vector<648x128xf32>
    %56 = arith.addf %52, %55 : vector<648x128xf32>
    %c64_i32_25 = arith.constant 64 : i32
    %57 = tpu.dynamic_rotate %54 by %c64_i32_25 dim 1 : vector<648x128xf32>, i32 -> vector<648x128xf32>
    %58 = arith.addf %56, %57 : vector<648x128xf32>
    %c1 = arith.constant 1 : index
    %c0_26 = arith.constant 0 : index
    %c0_27 = arith.constant 0 : index
    %59 = vector.load %arg2[%c1, %c0_26, %c0_27] : memref<2x128x384xf32, #tpu.memory_space<vmem>>, vector<1x128x384xf32>
    %60 = vector.shape_cast %59 : vector<1x128x384xf32> to vector<128x384xf32>
    %cst_28 = arith.constant dense<0.000000e+00> : vector<648x384xf32>
    %61 = tpu.matmul %58, %60, %cst_28 {dimension_numbers = #tpu.dot_dimension_numbers<[1], [0], [0], [1], [0, 0, 1, 1], [], []>} : vector<648x128xf32>, vector<128x384xf32>, vector<648x384xf32> -> vector<648x384xf32>
    %62 = vector.extract_strided_slice %61 {offsets = [0, 128], sizes = [648, 128], strides = [1, 1]} : vector<648x384xf32> to vector<648x128xf32>
    %63 = vector.extract_strided_slice %61 {offsets = [0, 0], sizes = [648, 128], strides = [1, 1]} : vector<648x384xf32> to vector<648x128xf32>
    %c18_i32_29 = arith.constant 18 : i32
    %64 = tpu.dynamic_rotate %63 by %c18_i32_29 dim 0 : vector<648x128xf32>, i32 -> vector<648x128xf32>
    %65 = arith.addf %62, %64 : vector<648x128xf32>
    %66 = vector.extract_strided_slice %61 {offsets = [0, 256], sizes = [648, 128], strides = [1, 1]} : vector<648x384xf32> to vector<648x128xf32>
    %c630_i32_30 = arith.constant 630 : i32
    %67 = tpu.dynamic_rotate %66 by %c630_i32_30 dim 0 : vector<648x128xf32>, i32 -> vector<648x128xf32>
    %68 = arith.addf %65, %67 : vector<648x128xf32>
    %c1_31 = arith.constant 1 : index
    %c0_32 = arith.constant 0 : index
    %c0_33 = arith.constant 0 : index
    %69 = vector.load %arg3[%c1_31, %c0_32, %c0_33] : memref<2x1x128xf32, #tpu.memory_space<vmem>>, vector<1x1x128xf32>
    %70 = vector.shape_cast %69 : vector<1x1x128xf32> to vector<1x128xf32>
    %71 = vector.broadcast %70 : vector<1x128xf32> to vector<648x128xf32>
    %72 = arith.addf %68, %71 : vector<648x128xf32>
    %cst_34 = arith.constant 0.000000e+00 : f32
    %73 = vector.broadcast %cst_34 : f32 to vector<648x128xf32>
    %74 = arith.maximumf %72, %73 : vector<648x128xf32>
    %75 = arith.mulf %74, %0 : vector<648x128xf32>
    %cst_35 = arith.constant dense<0.000000e+00> : vector<128xf32>
    %76 = vector.multi_reduction <add>, %75, %cst_35 [0] : vector<648x128xf32> to vector<128xf32>
    %77 = vector.shape_cast %76 : vector<128xf32> to vector<1x128xf32>
    %78 = arith.mulf %75, %75 : vector<648x128xf32>
    %cst_36 = arith.constant dense<0.000000e+00> : vector<128xf32>
    %79 = vector.multi_reduction <add>, %78, %cst_36 [0] : vector<648x128xf32> to vector<128xf32>
    %80 = vector.shape_cast %79 : vector<128xf32> to vector<1x128xf32>
    %cst_37 = arith.constant 0.001953125 : f32
    %81 = vector.broadcast %cst_37 : f32 to vector<1x128xf32>
    %82 = arith.mulf %77, %81 : vector<1x128xf32>
    %cst_38 = arith.constant 0.001953125 : f32
    %83 = vector.broadcast %cst_38 : f32 to vector<1x128xf32>
    %84 = arith.mulf %80, %83 : vector<1x128xf32>
    %85 = arith.mulf %82, %82 : vector<1x128xf32>
    %86 = arith.subf %84, %85 : vector<1x128xf32>
    %cst_39 = arith.constant 0.000000e+00 : f32
    %87 = vector.broadcast %cst_39 : f32 to vector<1x128xf32>
    %88 = arith.maximumf %86, %87 : vector<1x128xf32>
    %cst_40 = arith.constant 9.99999974E-6 : f32
    %89 = vector.broadcast %cst_40 : f32 to vector<1x128xf32>
    %90 = arith.addf %88, %89 : vector<1x128xf32>
    %91 = math.rsqrt %90 : vector<1x128xf32>
    %c1_41 = arith.constant 1 : index
    %c0_42 = arith.constant 0 : index
    %c0_43 = arith.constant 0 : index
    %92 = vector.load %arg6[%c1_41, %c0_42, %c0_43] : memref<3x1x128xf32, #tpu.memory_space<vmem>>, vector<1x1x128xf32>
    %93 = vector.shape_cast %92 : vector<1x1x128xf32> to vector<1x128xf32>
    %94 = arith.mulf %91, %93 : vector<1x128xf32>
    %c1_44 = arith.constant 1 : index
    %c0_45 = arith.constant 0 : index
    %c0_46 = arith.constant 0 : index
    %95 = vector.load %arg7[%c1_44, %c0_45, %c0_46] : memref<3x1x128xf32, #tpu.memory_space<vmem>>, vector<1x1x128xf32>
    %96 = vector.shape_cast %95 : vector<1x1x128xf32> to vector<1x128xf32>
    %97 = arith.mulf %82, %94 : vector<1x128xf32>
    %98 = arith.subf %96, %97 : vector<1x128xf32>
    %99 = vector.broadcast %94 : vector<1x128xf32> to vector<648x128xf32>
    %100 = arith.mulf %75, %99 : vector<648x128xf32>
    %101 = vector.broadcast %98 : vector<1x128xf32> to vector<648x128xf32>
    %102 = arith.addf %100, %101 : vector<648x128xf32>
    %103 = arith.mulf %102, %0 : vector<648x128xf32>
    %c0_47 = arith.constant 0 : index
    %c0_48 = arith.constant 0 : index
    %104 = vector.load %arg4[%c0_47, %c0_48] : memref<128x128xf32, #tpu.memory_space<vmem>>, vector<128x128xf32>
    %cst_49 = arith.constant dense<0.000000e+00> : vector<648x128xf32>
    %105 = tpu.matmul %103, %104, %cst_49 {dimension_numbers = #tpu.dot_dimension_numbers<[1], [0], [0], [1], [0, 0, 1, 1], [], []>} : vector<648x128xf32>, vector<128x128xf32>, vector<648x128xf32> -> vector<648x128xf32>
    %c0_50 = arith.constant 0 : index
    %c0_51 = arith.constant 0 : index
    %106 = vector.load %arg5[%c0_50, %c0_51] : memref<1x128xf32, #tpu.memory_space<vmem>>, vector<1x128xf32>
    %107 = vector.broadcast %106 : vector<1x128xf32> to vector<648x128xf32>
    %108 = arith.addf %105, %107 : vector<648x128xf32>
    %109 = arith.mulf %108, %0 : vector<648x128xf32>
    %cst_52 = arith.constant dense<0.000000e+00> : vector<128xf32>
    %110 = vector.multi_reduction <add>, %109, %cst_52 [0] : vector<648x128xf32> to vector<128xf32>
    %111 = vector.shape_cast %110 : vector<128xf32> to vector<1x128xf32>
    %112 = arith.mulf %109, %109 : vector<648x128xf32>
    %cst_53 = arith.constant dense<0.000000e+00> : vector<128xf32>
    %113 = vector.multi_reduction <add>, %112, %cst_53 [0] : vector<648x128xf32> to vector<128xf32>
    %114 = vector.shape_cast %113 : vector<128xf32> to vector<1x128xf32>
    %cst_54 = arith.constant 0.001953125 : f32
    %115 = vector.broadcast %cst_54 : f32 to vector<1x128xf32>
    %116 = arith.mulf %111, %115 : vector<1x128xf32>
    %cst_55 = arith.constant 0.001953125 : f32
    %117 = vector.broadcast %cst_55 : f32 to vector<1x128xf32>
    %118 = arith.mulf %114, %117 : vector<1x128xf32>
    %119 = arith.mulf %116, %116 : vector<1x128xf32>
    %120 = arith.subf %118, %119 : vector<1x128xf32>
    %cst_56 = arith.constant 0.000000e+00 : f32
    %121 = vector.broadcast %cst_56 : f32 to vector<1x128xf32>
    %122 = arith.maximumf %120, %121 : vector<1x128xf32>
    %cst_57 = arith.constant 9.99999974E-6 : f32
    %123 = vector.broadcast %cst_57 : f32 to vector<1x128xf32>
    %124 = arith.addf %122, %123 : vector<1x128xf32>
    %125 = math.rsqrt %124 : vector<1x128xf32>
    %c2 = arith.constant 2 : index
    %c0_58 = arith.constant 0 : index
    %c0_59 = arith.constant 0 : index
    %126 = vector.load %arg6[%c2, %c0_58, %c0_59] : memref<3x1x128xf32, #tpu.memory_space<vmem>>, vector<1x1x128xf32>
    %127 = vector.shape_cast %126 : vector<1x1x128xf32> to vector<1x128xf32>
    %128 = arith.mulf %125, %127 : vector<1x128xf32>
    %c2_60 = arith.constant 2 : index
    %c0_61 = arith.constant 0 : index
    %c0_62 = arith.constant 0 : index
    %129 = vector.load %arg7[%c2_60, %c0_61, %c0_62] : memref<3x1x128xf32, #tpu.memory_space<vmem>>, vector<1x1x128xf32>
    %130 = vector.shape_cast %129 : vector<1x1x128xf32> to vector<1x128xf32>
    %131 = arith.mulf %116, %128 : vector<1x128xf32>
    %132 = arith.subf %130, %131 : vector<1x128xf32>
    %133 = vector.broadcast %128 : vector<1x128xf32> to vector<648x128xf32>
    %134 = arith.mulf %109, %133 : vector<648x128xf32>
    %135 = vector.broadcast %132 : vector<1x128xf32> to vector<648x128xf32>
    %136 = arith.addf %134, %135 : vector<648x128xf32>
    %137 = arith.mulf %136, %0 : vector<648x128xf32>
    %c0_63 = arith.constant 0 : index
    %c0_64 = arith.constant 0 : index
    %138 = vector.load %arg8[%c0_63, %c0_64] : memref<648x128xf32, #tpu.memory_space<vmem>>, vector<648x128xf32>
    tpu.vector_store %arg8[%c0_63, %c0_64], %137 {strides = array<i32>} : memref<648x128xf32, #tpu.memory_space<vmem>>, vector<648x128xf32>,
    return
  }
}

</mosaic_0001>

<llo_original>
// kernel: mynet_forward.1
$region0: #{mynet_forward.1}
  #allocation0 [shape = 'u32[]', space=smem, size = 0x4, offset = 0x4, fixed_abs, tag = 'smem constant byte address 0x4 - core index']
  #allocation1 [shape = 'u32[144,128]{1,0:T(1,128)}', space=vmem, size = 0x12000, scoped, tag = 'internal scratch']
  %s0 = inlined_call_operand.vmem [shape: f32[648,128], index: 0, kind: input, shape index: {}]
  %s1 = inlined_call_operand.vmem [shape: f32[648,128], index: 1, kind: input, shape index: {}]
  %s2 = inlined_call_operand.vmem [shape: f32[2,128,384], index: 2, kind: input, shape index: {}]
  %s3 = inlined_call_operand.vmem [shape: f32[2,1,128], index: 3, kind: input, shape index: {}]
  %s4 = inlined_call_operand.vmem [shape: f32[128,128], index: 4, kind: input, shape index: {}]
  %s5 = inlined_call_operand.vmem [shape: f32[1,128], index: 5, kind: input, shape index: {}]
  %s6 = inlined_call_operand.vmem [shape: f32[3,1,128], index: 6, kind: input, shape index: {}]
  %s7 = inlined_call_operand.vmem [shape: f32[3,1,128], index: 7, kind: input, shape index: {}]
  %s8 = inlined_call_operand.vmem [shape: f32[648,128], index: 8, kind: output, shape index: {}]
  %s9 = sld [smem:[#allocation0]]
  $region42: #{mynet_forward.1} parent=0
    _
  %s11 = ssub.s32 1, %s9
  %s12 = scalar_select 0, %s11, %s9
  // Predicated region
  $region2: #{mynet_forward.1} parent=0 // pred_check
    _
  $region3: #{mynet_forward.1} parent=0 // pred_check_branch
    %14 = sbr.rel (0) target = $region5
  $region4: #{mynet_forward.1} parent=0 // pred_region
    _
  $region5: #{mynet_forward.1} parent=0 // pred_fallthru
    _
  // Predicated region
  $region6: #{mynet_forward.1} parent=0 // pred_check
    _
  $region7: #{mynet_forward.1} parent=0 // pred_check_branch
    %16 = sbr.rel (0) target = $region9
  $region8: #{mynet_forward.1} parent=0 // pred_region
    _
  $region9: #{mynet_forward.1} parent=0 // pred_fallthru
    _
  // Predicated region
  $region10: #{mynet_forward.1} parent=0 // pred_check
    _
  $region11: #{mynet_forward.1} parent=0 // pred_check_branch
    %18 = sbr.rel (0) target = $region13
  $region12: #{mynet_forward.1} parent=0 // pred_region
    _
  $region13: #{mynet_forward.1} parent=0 // pred_fallthru
    _
  // Predicated region
  $region14: #{mynet_forward.1} parent=0 // pred_check
    _
  $region15: #{mynet_forward.1} parent=0 // pred_check_branch
    %20 = sbr.rel (0) target = $region17
  $region16: #{mynet_forward.1} parent=0 // pred_region
    _
  $region17: #{mynet_forward.1} parent=0 // pred_fallthru
    _
  // Predicated region
  $region18: #{mynet_forward.1} parent=0 // pred_check
    _
  $region19: #{mynet_forward.1} parent=0 // pred_check_branch
    %22 = sbr.rel (0) target = $region21
  $region20: #{mynet_forward.1} parent=0 // pred_region
    _
  $region21: #{mynet_forward.1} parent=0 // pred_fallthru
    _
  // Predicated region
  $region22: #{mynet_forward.1} parent=0 // pred_check
    _
  $region23: #{mynet_forward.1} parent=0 // pred_check_branch
    %24 = sbr.rel (0) target = $region25
  $region24: #{mynet_forward.1} parent=0 // pred_region
    _
  $region25: #{mynet_forward.1} parent=0 // pred_fallthru
    _
  // Predicated region
  $region26: #{mynet_forward.1} parent=0 // pred_check
    _
  $region27: #{mynet_forward.1} parent=0 // pred_check_branch
    %26 = sbr.rel (0) target = $region29
  $region28: #{mynet_forward.1} parent=0 // pred_region
    _
  $region29: #{mynet_forward.1} parent=0 // pred_fallthru
    _
  // Predicated region
  $region30: #{mynet_forward.1} parent=0 // pred_check
    _
  $region31: #{mynet_forward.1} parent=0 // pred_check_branch
    %28 = sbr.rel (0) target = $region33
  $region32: #{mynet_forward.1} parent=0 // pred_region
    _
  $region33: #{mynet_forward.1} parent=0 // pred_fallthru
    _
  %v29 = vld [vmem:[%s1] sm:$0xff]
  %v30 = vld [vmem:[%s1 + $0x8] sm:$0xff]
  %v31 = vld [vmem:[%s1 + $0x10] sm:$0xff]
  %v32 = vld [vmem:[%s1 + $0x18] sm:$0xff]
  %v33 = vld [vmem:[%s1 + $0x20] sm:$0xff]
  %v34 = vld [vmem:[%s1 + $0x28] sm:$0xff]
  %v35 = vld [vmem:[%s1 + $0x30] sm:$0xff]
  %v36 = vld [vmem:[%s1 + $0x38] sm:$0xff]
  %v37 = vld [vmem:[%s1 + $0x40] sm:$0xff]
  %v38 = vld [vmem:[%s1 + $0x48] sm:$0xff]
  %v39 = vld [vmem:[%s1 + $0x50] sm:$0xff]
  %v40 = vld [vmem:[%s1 + $0x58] sm:$0xff]
  %v41 = vld [vmem:[%s1 + $0x60] sm:$0xff]
  %v42 = vld [vmem:[%s1 + $0x68] sm:$0xff]
  %v43 = vld [vmem:[%s1 + $0x70] sm:$0xff]
  %v44 = vld [vmem:[%s1 + $0x78] sm:$0xff]
  %v45 = vld [vmem:[%s1 + $0x80] sm:$0xff]
  %v46 = vld [vmem:[%s1 + $0x88] sm:$0xff]
  %v47 = vld [vmem:[%s1 + $0x90] sm:$0xff]
  %v48 = vld [vmem:[%s1 + $0x98] sm:$0xff]
  %v49 = vld [vmem:[%s1 + $0xa0] sm:$0xff]
  %v50 = vld [vmem:[%s1 + $0xa8] sm:$0xff]
  %v51 = vld [vmem:[%s1 + $0xb0] sm:$0xff]
  %v52 = vld [vmem:[%s1 + $0xb8] sm:$0xff]
  %v53 = vld [vmem:[%s1 + $0xc0] sm:$0xff]
  %v54 = vld [vmem:[%s1 + $0xc8] sm:$0xff]
  %v55 = vld [vmem:[%s1 + $0xd0] sm:$0xff]
  %v56 = vld [vmem:[%s1 + $0xd8] sm:$0xff]
  %v57 = vld [vmem:[%s1 + $0xe0] sm:$0xff]
  %v58 = vld [vmem:[%s1 + $0xe8] sm:$0xff]
  %v59 = vld [vmem:[%s1 + $0xf0] sm:$0xff]
  %v60 = vld [vmem:[%s1 + $0xf8] sm:$0xff]
  %v61 = vld [vmem:[%s1 + $0x100] sm:$0xff]
  %v62 = vld [vmem:[%s1 + $0x108] sm:$0xff]
  %v63 = vld [vmem:[%s1 + $0x110] sm:$0xff]
  %v64 = vld [vmem:[%s1 + $0x118] sm:$0xff]
  %v65 = vld [vmem:[%s1 + $0x120] sm:$0xff]
  %v66 = vld [vmem:[%s1 + $0x128] sm:$0xff]
  %v67 = vld [vmem:[%s1 + $0x130] sm:$0xff]
  %v68 = vld [vmem:[%s1 + $0x138] sm:$0xff]
  %v69 = vld [vmem:[%s1 + $0x140] sm:$0xff]
  %v70 = vld [vmem:[%s1 + $0x148] sm:$0xff]
  %v71 = vld [vmem:[%s1 + $0x150] sm:$0xff]
  %v72 = vld [vmem:[%s1 + $0x158] sm:$0xff]
  %v73 = vld [vmem:[%s1 + $0x160] sm:$0xff]
  %v74 = vld [vmem:[%s1 + $0x168] sm:$0xff]
  %v75 = vld [vmem:[%s1 + $0x170] sm:$0xff]
  %v76 = vld [vmem:[%s1 + $0x178] sm:$0xff]
  %v77 = vld [vmem:[%s1 + $0x180] sm:$0xff]
  %v78 = vld [vmem:[%s1 + $0x188] sm:$0xff]
  %v79 = vld [vmem:[%s1 + $0x190] sm:$0xff]
  %v80 = vld [vmem:[%s1 + $0x198] sm:$0xff]
  %v81 = vld [vmem:[%s1 + $0x1a0] sm:$0xff]
  %v82 = vld [vmem:[%s1 + $0x1a8] sm:$0xff]
  %v83 = vld [vmem:[%s1 + $0x1b0] sm:$0xff]
  %v84 = vld [vmem:[%s1 + $0x1b8] sm:$0xff]
  %v85 = vld [vmem:[%s1 + $0x1c0] sm:$0xff]
  %v86 = vld [vmem:[%s1 + $0x1c8] sm:$0xff]
  %v87 = vld [vmem:[%s1 + $0x1d0] sm:$0xff]
  %v88 = vld [vmem:[%s1 + $0x1d8] sm:$0xff]
  %v89 = vld [vmem:[%s1 + $0x1e0] sm:$0xff]
  %v90 = vld [vmem:[%s1 + $0x1e8] sm:$0xff]
  %v91 = vld [vmem:[%s1 + $0x1f0] sm:$0xff]
  %v92 = vld [vmem:[%s1 + $0x1f8] sm:$0xff]
  %v93 = vld [vmem:[%s1 + $0x200] sm:$0xff]
  %v94 = vld [vmem:[%s1 + $0x208] sm:$0xff]
  %v95 = vld [vmem:[%s1 + $0x210] sm:$0xff]
  %v96 = vld [vmem:[%s1 + $0x218] sm:$0xff]
  %v97 = vld [vmem:[%s1 + $0x220] sm:$0xff]
  %v98 = vld [vmem:[%s1 + $0x228] sm:$0xff]
  %v99 = vld [vmem:[%s1 + $0x230] sm:$0xff]
  %v100 = vld [vmem:[%s1 + $0x238] sm:$0xff]
  %v101 = vld [vmem:[%s1 + $0x240] sm:$0xff]
  %v102 = vld [vmem:[%s1 + $0x248] sm:$0xff]
  %v103 = vld [vmem:[%s1 + $0x250] sm:$0xff]
  %v104 = vld [vmem:[%s1 + $0x258] sm:$0xff]
  %v105 = vld [vmem:[%s1 + $0x260] sm:$0xff]
  %v106 = vld [vmem:[%s1 + $0x268] sm:$0xff]
  %v107 = vld [vmem:[%s1 + $0x270] sm:$0xff]
  %v108 = vld [vmem:[%s1 + $0x278] sm:$0xff]
  %v109 = vld [vmem:[%s1 + $0x280] sm:$0xff]
  %v110 = vld [vmem:[%s0] sm:$0xff]
  %v111 = vld [vmem:[%s0 + $0x8] sm:$0xff]
  %v112 = vld [vmem:[%s0 + $0x10] sm:$0xff]
  %v113 = vld [vmem:[%s0 + $0x18] sm:$0xff]
  %v114 = vld [vmem:[%s0 + $0x20] sm:$0xff]
  %v115 = vld [vmem:[%s0 + $0x28] sm:$0xff]
  %v116 = vld [vmem:[%s0 + $0x30] sm:$0xff]
  %v117 = vld [vmem:[%s0 + $0x38] sm:$0xff]
  %v118 = vld [vmem:[%s0 + $0x40] sm:$0xff]
  %v119 = vld [vmem:[%s0 + $0x48] sm:$0xff]
  %v120 = vld [vmem:[%s0 + $0x50] sm:$0xff]
  %v121 = vld [vmem:[%s0 + $0x58] sm:$0xff]
  %v122 = vld [vmem:[%s0 + $0x60] sm:$0xff]
  %v123 = vld [vmem:[%s0 + $0x68] sm:$0xff]
  %v124 = vld [vmem:[%s0 + $0x70] sm:$0xff]
  %v125 = vld [vmem:[%s0 + $0x78] sm:$0xff]
  %v126 = vld [vmem:[%s0 + $0x80] sm:$0xff]
  %v127 = vld [vmem:[%s0 + $0x88] sm:$0xff]
  %v128 = vld [vmem:[%s0 + $0x90] sm:$0xff]
  %v129 = vld [vmem:[%s0 + $0x98] sm:$0xff]
  %v130 = vld [vmem:[%s0 + $0xa0] sm:$0xff]
  %v131 = vld [vmem:[%s0 + $0xa8] sm:$0xff]
  %v132 = vld [vmem:[%s0 + $0xb0] sm:$0xff]
  %v133 = vld [vmem:[%s0 + $0xb8] sm:$0xff]
  %v134 = vld [vmem:[%s0 + $0xc0] sm:$0xff]
  %v135 = vld [vmem:[%s0 + $0xc8] sm:$0xff]
  %v136 = vld [vmem:[%s0 + $0xd0] sm:$0xff]
  %v137 = vld [vmem:[%s0 + $0xd8] sm:$0xff]
  %v138 = vld [vmem:[%s0 + $0xe0] sm:$0xff]
  %v139 = vld [vmem:[%s0 + $0xe8] sm:$0xff]
  %v140 = vld [vmem:[%s0 + $0xf0] sm:$0xff]
  %v141 = vld [vmem:[%s0 + $0xf8] sm:$0xff]
  %v142 = vld [vmem:[%s0 + $0x100] sm:$0xff]
  %v143 = vld [vmem:[%s0 + $0x108] sm:$0xff]
  %v144 = vld [vmem:[%s0 + $0x110] sm:$0xff]
  %v145 = vld [vmem:[%s0 + $0x118] sm:$0xff]
  %v146 = vld [vmem:[%s0 + $0x120] sm:$0xff]
  %v147 = vld [vmem:[%s0 + $0x128] sm:$0xff]
  %v148 = vld [vmem:[%s0 + $0x130] sm:$0xff]
  %v149 = vld [vmem:[%s0 + $0x138] sm:$0xff]
  %v150 = vld [vmem:[%s0 + $0x140] sm:$0xff]
  %v151 = vld [vmem:[%s0 + $0x148] sm:$0xff]
  %v152 = vld [vmem:[%s0 + $0x150] sm:$0xff]
  %v153 = vld [vmem:[%s0 + $0x158] sm:$0xff]
  %v154 = vld [vmem:[%s0 + $0x160] sm:$0xff]
  %v155 = vld [vmem:[%s0 + $0x168] sm:$0xff]
  %v156 = vld [vmem:[%s0 + $0x170] sm:$0xff]
  %v157 = vld [vmem:[%s0 + $0x178] sm:$0xff]
  %v158 = vld [vmem:[%s0 + $0x180] sm:$0xff]
  %v159 = vld [vmem:[%s0 + $0x188] sm:$0xff]
  %v160 = vld [vmem:[%s0 + $0x190] sm:$0xff]
  %v161 = vld [vmem:[%s0 + $0x198] sm:$0xff]
  %v162 = vld [vmem:[%s0 + $0x1a0] sm:$0xff]
  %v163 = vld [vmem:[%s0 + $0x1a8] sm:$0xff]
  %v164 = vld [vmem:[%s0 + $0x1b0] sm:$0xff]
  %v165 = vld [vmem:[%s0 + $0x1b8] sm:$0xff]
  %v166 = vld [vmem:[%s0 + $0x1c0] sm:$0xff]
  %v167 = vld [vmem:[%s0 + $0x1c8] sm:$0xff]
  %v168 = vld [vmem:[%s0 + $0x1d0] sm:$0xff]
  %v169 = vld [vmem:[%s0 + $0x1d8] sm:$0xff]
  %v170 = vld [vmem:[%s0 + $0x1e0] sm:$0xff]
  %v171 = vld [vmem:[%s0 + $0x1e8] sm:$0xff]
  %v172 = vld [vmem:[%s0 + $0x1f0] sm:$0xff]
  %v173 = vld [vmem:[%s0 + $0x1f8] sm:$0xff]
  %v174 = vld [vmem:[%s0 + $0x200] sm:$0xff]
  %v175 = vld [vmem:[%s0 + $0x208] sm:$0xff]
  %v176 = vld [vmem:[%s0 + $0x210] sm:$0xff]
  %v177 = vld [vmem:[%s0 + $0x218] sm:$0xff]
  %v178 = vld [vmem:[%s0 + $0x220] sm:$0xff]
  %v179 = vld [vmem:[%s0 + $0x228] sm:$0xff]
  %v180 = vld [vmem:[%s0 + $0x230] sm:$0xff]
  %v181 = vld [vmem:[%s0 + $0x238] sm:$0xff]
  %v182 = vld [vmem:[%s0 + $0x240] sm:$0xff]
  %v183 = vld [vmem:[%s0 + $0x248] sm:$0xff]
  %v184 = vld [vmem:[%s0 + $0x250] sm:$0xff]
  %v185 = vld [vmem:[%s0 + $0x258] sm:$0xff]
  %v186 = vld [vmem:[%s0 + $0x260] sm:$0xff]
  %v187 = vld [vmem:[%s0 + $0x268] sm:$0xff]
  %v188 = vld [vmem:[%s0 + $0x270] sm:$0xff]
  %v189 = vld [vmem:[%s0 + $0x278] sm:$0xff]
  %v190 = vld [vmem:[%s0 + $0x280] sm:$0xff]
  %v191 = vrot.slane %v110, 1
  %v192 = vrot.slane %v111, 1
  %v193 = vrot.slane %v112, 1
  %v194 = vrot.slane %v113, 1
  %v195 = vrot.slane %v114, 1
  %v196 = vrot.slane %v115, 1
  %v197 = vrot.slane %v116, 1
  %v198 = vrot.slane %v117, 1
  %v199 = vrot.slane %v118, 1
  %v200 = vrot.slane %v119, 1
  %v201 = vrot.slane %v120, 1
  %v202 = vrot.slane %v121, 1
  %v203 = vrot.slane %v122, 1
  %v204 = vrot.slane %v123, 1
  %v205 = vrot.slane %v124, 1
  %v206 = vrot.slane %v125, 1
  %v207 = vrot.slane %v126, 1
  %v208 = vrot.slane %v127, 1
  %v209 = vrot.slane %v128, 1
  %v210 = vrot.slane %v129, 1
  %v211 = vrot.slane %v130, 1
  %v212 = vrot.slane %v131, 1
  %v213 = vrot.slane %v132, 1
  %v214 = vrot.slane %v133, 1
  %v215 = vrot.slane %v134, 1
  %v216 = vrot.slane %v135, 1
  %v217 = vrot.slane %v136, 1
  %v218 = vrot.slane %v137, 1
  %v219 = vrot.slane %v138, 1
  %v220 = vrot.slane %v139, 1
  %v221 = vrot.slane %v140, 1
  %v222 = vrot.slane %v141, 1
  %v223 = vrot.slane %v142, 1
  %v224 = vrot.slane %v143, 1
  %v225 = vrot.slane %v144, 1
  %v226 = vrot.slane %v145, 1
  %v227 = vrot.slane %v146, 1
  %v228 = vrot.slane %v147, 1
  %v229 = vrot.slane %v148, 1
  %v230 = vrot.slane %v149, 1
  %v231 = vrot.slane %v150, 1
  %v232 = vrot.slane %v151, 1
  %v233 = vrot.slane %v152, 1
  %v234 = vrot.slane %v153, 1
  %v235 = vrot.slane %v154, 1
  %v236 = vrot.slane %v155, 1
  %v237 = vrot.slane %v156, 1
  %v238 = vrot.slane %v157, 1
  %v239 = vrot.slane %v158, 1
  %v240 = vrot.slane %v159, 1
  %v241 = vrot.slane %v160, 1
  %v242 = vrot.slane %v161, 1
  %v243 = vrot.slane %v162, 1
  %v244 = vrot.slane %v163, 1
  %v245 = vrot.slane %v164, 1
  %v246 = vrot.slane %v165, 1
  %v247 = vrot.slane %v166, 1
  %v248 = vrot.slane %v167, 1
  %v249 = vrot.slane %v168, 1
  %v250 = vrot.slane %v169, 1
  %v251 = vrot.slane %v170, 1
  %v252 = vrot.slane %v171, 1
  %v253 = vrot.slane %v172, 1
  %v254 = vrot.slane %v173, 1
  %v255 = vrot.slane %v174, 1
  %v256 = vrot.slane %v175, 1
  %v257 = vrot.slane %v176, 1
  %v258 = vrot.slane %v177, 1
  %v259 = vrot.slane %v178, 1
  %v260 = vrot.slane %v179, 1
  %v261 = vrot.slane %v180, 1
  %v262 = vrot.slane %v181, 1
  %v263 = vrot.slane %v182, 1
  %v264 = vrot.slane %v183, 1
  %v265 = vrot.slane %v184, 1
  %v266 = vrot.slane %v185, 1
  %v267 = vrot.slane %v186, 1
  %v268 = vrot.slane %v187, 1
  %v269 = vrot.slane %v188, 1
  %v270 = vrot.slane %v189, 1
  %v271 = vrot.slane %v190, 1
  %v272 = vlaneseq
  %v273 = vshrl.u32 %v272, 7
  %vm274 = vcmp.lt.s32.totalorder %v273, 7
  %v275 = vsel %vm274, %v270, %v271
  %v276 = vsel %vm274, %v269, %v270
  %v277 = vsel %vm274, %v268, %v269
  %v278 = vsel %vm274, %v267, %v268
  %v279 = vsel %vm274, %v266, %v267
  %v280 = vsel %vm274, %v265, %v266
  %v281 = vsel %vm274, %v264, %v265
  %v282 = vsel %vm274, %v263, %v264
  %v283 = vsel %vm274, %v262, %v263
  %v284 = vsel %vm274, %v261, %v262
  %v285 = vsel %vm274, %v260, %v261
  %v286 = vsel %vm274, %v259, %v260
  %v287 = vsel %vm274, %v258, %v259
  %v288 = vsel %vm274, %v257, %v258
  %v289 = vsel %vm274, %v256, %v257
  %v290 = vsel %vm274, %v255, %v256
  %v291 = vsel %vm274, %v254, %v255
  %v292 = vsel %vm274, %v253, %v254
  %v293 = vsel %vm274, %v252, %v253
  %v294 = vsel %vm274, %v251, %v252
  %v295 = vsel %vm274, %v250, %v251
  %v296 = vsel %vm274, %v249, %v250
  %v297 = vsel %vm274, %v248, %v249
  %v298 = vsel %vm274, %v247, %v248
  %v299 = vsel %vm274, %v246, %v247
  %v300 = vsel %vm274, %v245, %v246
  %v301 = vsel %vm274, %v244, %v245
  %v302 = vsel %vm274, %v243, %v244
  %v303 = vsel %vm274, %v242, %v243
  %v304 = vsel %vm274, %v241, %v242
  %v305 = vsel %vm274, %v240, %v241
  %v306 = vsel %vm274, %v239, %v240
  %v307 = vsel %vm274, %v238, %v239
  %v308 = vsel %vm274, %v237, %v238
  %v309 = vsel %vm274, %v236, %v237
  %v310 = vsel %vm274, %v235, %v236
  %v311 = vsel %vm274, %v234, %v235
  %v312 = vsel %vm274, %v233, %v234
  %v313 = vsel %vm274, %v232, %v233
  %v314 = vsel %vm274, %v231, %v232
  %v315 = vsel %vm274, %v230, %v231
  %v316 = vsel %vm274, %v229, %v230
  %v317 = vsel %vm274, %v228, %v229
  %v318 = vsel %vm274, %v227, %v228
  %v319 = vsel %vm274, %v226, %v227
  %v320 = vsel %vm274, %v225, %v226
  %v321 = vsel %vm274, %v224, %v225
  %v322 = vsel %vm274, %v223, %v224
  %v323 = vsel %vm274, %v222, %v223
  %v324 = vsel %vm274, %v221, %v222
  %v325 = vsel %vm274, %v220, %v221
  %v326 = vsel %vm274, %v219, %v220
  %v327 = vsel %vm274, %v218, %v219
  %v328 = vsel %vm274, %v217, %v218
  %v329 = vsel %vm274, %v216, %v217
  %v330 = vsel %vm274, %v215, %v216
  %v331 = vsel %vm274, %v214, %v215
  %v332 = vsel %vm274, %v213, %v214
  %v333 = vsel %vm274, %v212, %v213
  %v334 = vsel %vm274, %v211, %v212
  %v335 = vsel %vm274, %v210, %v211
  %v336 = vsel %vm274, %v209, %v210
  %v337 = vsel %vm274, %v208, %v209
  %v338 = vsel %vm274, %v207, %v208
  %v339 = vsel %vm274, %v206, %v207
  %v340 = vsel %vm274, %v205, %v206
  %v341 = vsel %vm274, %v204, %v205
  %v342 = vsel %vm274, %v203, %v204
  %v343 = vsel %vm274, %v202, %v203
  %v344 = vsel %vm274, %v201, %v202
  %v345 = vsel %vm274, %v200, %v201
  %v346 = vsel %vm274, %v199, %v200
  %v347 = vsel %vm274, %v198, %v199
  %v348 = vsel %vm274, %v197, %v198
  %v349 = vsel %vm274, %v196, %v197
  %v350 = vsel %vm274, %v195, %v196
  %v351 = vsel %vm274, %v194, %v195
  %v352 = vsel %vm274, %v193, %v194
  %v353 = vsel %vm274, %v192, %v193
  %v354 = vsel %vm274, %v191, %v192
  %v355 = vsel %vm274, %v271, %v191
  %v356 = vrot.slane %v110, 7
  %v357 = vrot.slane %v111, 7
  %v358 = vrot.slane %v112, 7
  %v359 = vrot.slane %v113, 7
  %v360 = vrot.slane %v114, 7
  %v361 = vrot.slane %v115, 7
  %v362 = vrot.slane %v116, 7
  %v363 = vrot.slane %v117, 7
  %v364 = vrot.slane %v118, 7
  %v365 = vrot.slane %v119, 7
  %v366 = vrot.slane %v120, 7
  %v367 = vrot.slane %v121, 7
  %v368 = vrot.slane %v122, 7
  %v369 = vrot.slane %v123, 7
  %v370 = vrot.slane %v124, 7
  %v371 = vrot.slane %v125, 7
  %v372 = vrot.slane %v126, 7
  %v373 = vrot.slane %v127, 7
  %v374 = vrot.slane %v128, 7
  %v375 = vrot.slane %v129, 7
  %v376 = vrot.slane %v130, 7
  %v377 = vrot.slane %v131, 7
  %v378 = vrot.slane %v132, 7
  %v379 = vrot.slane %v133, 7
  %v380 = vrot.slane %v134, 7
  %v381 = vrot.slane %v135, 7
  %v382 = vrot.slane %v136, 7
  %v383 = vrot.slane %v137, 7
  %v384 = vrot.slane %v138, 7
  %v385 = vrot.slane %v139, 7
  %v386 = vrot.slane %v140, 7
  %v387 = vrot.slane %v141, 7
  %v388 = vrot.slane %v142, 7
  %v389 = vrot.slane %v143, 7
  %v390 = vrot.slane %v144, 7
  %v391 = vrot.slane %v145, 7
  %v392 = vrot.slane %v146, 7
  %v393 = vrot.slane %v147, 7
  %v394 = vrot.slane %v148, 7
  %v395 = vrot.slane %v149, 7
  %v396 = vrot.slane %v150, 7
  %v397 = vrot.slane %v151, 7
  %v398 = vrot.slane %v152, 7
  %v399 = vrot.slane %v153, 7
  %v400 = vrot.slane %v154, 7
  %v401 = vrot.slane %v155, 7
  %v402 = vrot.slane %v156, 7
  %v403 = vrot.slane %v157, 7
  %v404 = vrot.slane %v158, 7
  %v405 = vrot.slane %v159, 7
  %v406 = vrot.slane %v160, 7
  %v407 = vrot.slane %v161, 7
  %v408 = vrot.slane %v162, 7
  %v409 = vrot.slane %v163, 7
  %v410 = vrot.slane %v164, 7
  %v411 = vrot.slane %v165, 7
  %v412 = vrot.slane %v166, 7
  %v413 = vrot.slane %v167, 7
  %v414 = vrot.slane %v168, 7
  %v415 = vrot.slane %v169, 7
  %v416 = vrot.slane %v170, 7
  %v417 = vrot.slane %v171, 7
  %v418 = vrot.slane %v172, 7
  %v419 = vrot.slane %v173, 7
  %v420 = vrot.slane %v174, 7
  %v421 = vrot.slane %v175, 7
  %v422 = vrot.slane %v176, 7
  %v423 = vrot.slane %v177, 7
  %v424 = vrot.slane %v178, 7
  %v425 = vrot.slane %v179, 7
  %v426 = vrot.slane %v180, 7
  %v427 = vrot.slane %v181, 7
  %v428 = vrot.slane %v182, 7
  %v429 = vrot.slane %v183, 7
  %v430 = vrot.slane %v184, 7
  %v431 = vrot.slane %v185, 7
  %v432 = vrot.slane %v186, 7
  %v433 = vrot.slane %v187, 7
  %v434 = vrot.slane %v188, 7
  %v435 = vrot.slane %v189, 7
  %v436 = vrot.slane %v190, 7
  %vm437 = vcmp.lt.s32.totalorder %v273, 1
  %v438 = vsel %vm437, %v435, %v436
  %v439 = vsel %vm437, %v434, %v435
  %v440 = vsel %vm437, %v433, %v434
  %v441 = vsel %vm437, %v432, %v433
  %v442 = vsel %vm437, %v431, %v432
  %v443 = vsel %vm437, %v430, %v431
  %v444 = vsel %vm437, %v429, %v430
  %v445 = vsel %vm437, %v428, %v429
  %v446 = vsel %vm437, %v427, %v428
  %v447 = vsel %vm437, %v426, %v427
  %v448 = vsel %vm437, %v425, %v426
  %v449 = vsel %vm437, %v424, %v425
  %v450 = vsel %vm437, %v423, %v424
  %v451 = vsel %vm437, %v422, %v423
  %v452 = vsel %vm437, %v421, %v422
  %v453 = vsel %vm437, %v420, %v421
  %v454 = vsel %vm437, %v419, %v420
  %v455 = vsel %vm437, %v418, %v419
  %v456 = vsel %vm437, %v417, %v418
  %v457 = vsel %vm437, %v416, %v417
  %v458 = vsel %vm437, %v415, %v416
  %v459 = vsel %vm437, %v414, %v415
  %v460 = vsel %vm437, %v413, %v414
  %v461 = vsel %vm437, %v412, %v413
  %v462 = vsel %vm437, %v411, %v412
  %v463 = vsel %vm437, %v410, %v411
  %v464 = vsel %vm437, %v409, %v410
  %v465 = vsel %vm437, %v408, %v409
  %v466 = vsel %vm437, %v407, %v408
  %v467 = vsel %vm437, %v406, %v407
  %v468 = vsel %vm437, %v405, %v406
  %v469 = vsel %vm437, %v404, %v405
  %v470 = vsel %vm437, %v403, %v404
  %v471 = vsel %vm437, %v402, %v403
  %v472 = vsel %vm437, %v401, %v402
  %v473 = vsel %vm437, %v400, %v401
  %v474 = vsel %vm437, %v399, %v400
  %v475 = vsel %vm437, %v398, %v399
  %v476 = vsel %vm437, %v397, %v398
  %v477 = vsel %vm437, %v396, %v397
  %v478 = vsel %vm437, %v395, %v396
  %v479 = vsel %vm437, %v394, %v395
  %v480 = vsel %vm437, %v393, %v394
  %v481 = vsel %vm437, %v392, %v393
  %v482 = vsel %vm437, %v391, %v392
  %v483 = vsel %vm437, %v390, %v391
  %v484 = vsel %vm437, %v389, %v390
  %v485 = vsel %vm437, %v388, %v389
  %v486 = vsel %vm437, %v387, %v388
  %v487 = vsel %vm437, %v386, %v387
  %v488 = vsel %vm437, %v385, %v386
  %v489 = vsel %vm437, %v384, %v385
  %v490 = vsel %vm437, %v383, %v384
  %v491 = vsel %vm437, %v382, %v383
  %v492 = vsel %vm437, %v381, %v382
  %v493 = vsel %vm437, %v380, %v381
  %v494 = vsel %vm437, %v379, %v380
  %v495 = vsel %vm437, %v378, %v379
  %v496 = vsel %vm437, %v377, %v378
  %v497 = vsel %vm437, %v376, %v377
  %v498 = vsel %vm437, %v375, %v376
  %v499 = vsel %vm437, %v374, %v375
  %v500 = vsel %vm437, %v373, %v374
  %v501 = vsel %vm437, %v372, %v373
  %v502 = vsel %vm437, %v371, %v372
  %v503 = vsel %vm437, %v370, %v371
  %v504 = vsel %vm437, %v369, %v370
  %v505 = vsel %vm437, %v368, %v369
  %v506 = vsel %vm437, %v367, %v368
  %v507 = vsel %vm437, %v366, %v367
  %v508 = vsel %vm437, %v365, %v366
  %v509 = vsel %vm437, %v364, %v365
  %v510 = vsel %vm437, %v363, %v364
  %v511 = vsel %vm437, %v362, %v363
  %v512 = vsel %vm437, %v361, %v362
  %v513 = vsel %vm437, %v360, %v361
  %v514 = vsel %vm437, %v359, %v360
  %v515 = vsel %vm437, %v358, %v359
  %v516 = vsel %vm437, %v357, %v358
  %v517 = vsel %vm437, %v356, %v357
  %v518 = vsel %vm437, %v436, %v356
  %519 = vrot.lane.b32.xlu0 %v354, 32
  %v520 = vpop.permute.xlu0 %519
  %521 = vrot.lane.b32.xlu0 %v353, 32
  %v522 = vpop.permute.xlu0 %521
  %523 = vrot.lane.b32.xlu0 %v352, 32
  %v524 = vpop.permute.xlu0 %523
  %525 = vrot.lane.b32.xlu0 %v351, 32
  %v526 = vpop.permute.xlu0 %525
  %527 = vrot.lane.b32.xlu0 %v350, 32
  %v528 = vpop.permute.xlu0 %527
  %529 = vrot.lane.b32.xlu0 %v349, 32
  %v530 = vpop.permute.xlu0 %529
  %531 = vrot.lane.b32.xlu0 %v348, 32
  %v532 = vpop.permute.xlu0 %531
  %533 = vrot.lane.b32.xlu0 %v347, 32
  %v534 = vpop.permute.xlu0 %533
  %535 = vrot.lane.b32.xlu0 %v346, 32
  %v536 = vpop.permute.xlu0 %535
  %537 = vrot.lane.b32.xlu0 %v345, 32
  %v538 = vpop.permute.xlu0 %537
  %539 = vrot.lane.b32.xlu0 %v344, 32
  %v540 = vpop.permute.xlu0 %539
  %541 = vrot.lane.b32.xlu0 %v343, 32
  %v542 = vpop.permute.xlu0 %541
  %543 = vrot.lane.b32.xlu0 %v342, 32
  %v544 = vpop.permute.xlu0 %543
  %545 = vrot.lane.b32.xlu0 %v341, 32
  %v546 = vpop.permute.xlu0 %545
  %547 = vrot.lane.b32.xlu0 %v340, 32
  %v548 = vpop.permute.xlu0 %547
  %549 = vrot.lane.b32.xlu0 %v339, 32
  %v550 = vpop.permute.xlu0 %549
  %551 = vrot.lane.b32.xlu0 %v338, 32
  %v552 = vpop.permute.xlu0 %551
  %553 = vrot.lane.b32.xlu0 %v337, 32
  %v554 = vpop.permute.xlu0 %553
  %555 = vrot.lane.b32.xlu0 %v336, 32
  %v556 = vpop.permute.xlu0 %555
  %557 = vrot.lane.b32.xlu0 %v335, 32
  %v558 = vpop.permute.xlu0 %557
  %559 = vrot.lane.b32.xlu0 %v334, 32
  %v560 = vpop.permute.xlu0 %559
  %561 = vrot.lane.b32.xlu0 %v333, 32
  %v562 = vpop.permute.xlu0 %561
  %563 = vrot.lane.b32.xlu0 %v332, 32
  %v564 = vpop.permute.xlu0 %563
  %565 = vrot.lane.b32.xlu0 %v331, 32
  %v566 = vpop.permute.xlu0 %565
  %567 = vrot.lane.b32.xlu0 %v330, 32
  %v568 = vpop.permute.xlu0 %567
  %569 = vrot.lane.b32.xlu0 %v329, 32
  %v570 = vpop.permute.xlu0 %569
  %571 = vrot.lane.b32.xlu0 %v328, 32
  %v572 = vpop.permute.xlu0 %571
  %573 = vrot.lane.b32.xlu0 %v327, 32
  %v574 = vpop.permute.xlu0 %573
  %575 = vrot.lane.b32.xlu0 %v326, 32
  %v576 = vpop.permute.xlu0 %575
  %577 = vrot.lane.b32.xlu0 %v325, 32
  %v578 = vpop.permute.xlu0 %577
  %579 = vrot.lane.b32.xlu0 %v324, 32
  %v580 = vpop.permute.xlu0 %579
  %581 = vrot.lane.b32.xlu0 %v323, 32
  %v582 = vpop.permute.xlu0 %581
  %583 = vrot.lane.b32.xlu0 %v322, 32
  %v584 = vpop.permute.xlu0 %583
  %585 = vrot.lane.b32.xlu0 %v321, 32
  %v586 = vpop.permute.xlu0 %585
  %587 = vrot.lane.b32.xlu0 %v320, 32
  %v588 = vpop.permute.xlu0 %587
  %589 = vrot.lane.b32.xlu0 %v319, 32
  %v590 = vpop.permute.xlu0 %589
  %591 = vrot.lane.b32.xlu0 %v318, 32
  %v592 = vpop.permute.xlu0 %591
  %593 = vrot.lane.b32.xlu0 %v317, 32
  %v594 = vpop.permute.xlu0 %593
  %595 = vrot.lane.b32.xlu0 %v316, 32
  %v596 = vpop.permute.xlu0 %595
  %597 = vrot.lane.b32.xlu0 %v315, 32
  %v598 = vpop.permute.xlu0 %597
  %599 = vrot.lane.b32.xlu0 %v314, 32
  %v600 = vpop.permute.xlu0 %599
  %601 = vrot.lane.b32.xlu0 %v313, 32
  %v602 = vpop.permute.xlu0 %601
  %603 = vrot.lane.b32.xlu0 %v312, 32
  %v604 = vpop.permute.xlu0 %603
  %605 = vrot.lane.b32.xlu0 %v311, 32
  %v606 = vpop.permute.xlu0 %605
  %607 = vrot.lane.b32.xlu0 %v310, 32
  %v608 = vpop.permute.xlu0 %607
  %609 = vrot.lane.b32.xlu0 %v309, 32
  %v610 = vpop.permute.xlu0 %609
  %611 = vrot.lane.b32.xlu0 %v308, 32
  %v612 = vpop.permute.xlu0 %611
  %613 = vrot.lane.b32.xlu0 %v307, 32
  %v614 = vpop.permute.xlu0 %613
  %615 = vrot.lane.b32.xlu0 %v306, 32
  %v616 = vpop.permute.xlu0 %615
  %617 = vrot.lane.b32.xlu0 %v305, 32
  %v618 = vpop.permute.xlu0 %617
  %619 = vrot.lane.b32.xlu0 %v304, 32
  %v620 = vpop.permute.xlu0 %619
  %621 = vrot.lane.b32.xlu0 %v303, 32
  %v622 = vpop.permute.xlu0 %621
  %623 = vrot.lane.b32.xlu0 %v302, 32
  %v624 = vpop.permute.xlu0 %623
  %625 = vrot.lane.b32.xlu0 %v301, 32
  %v626 = vpop.permute.xlu0 %625
  %627 = vrot.lane.b32.xlu0 %v300, 32
  %v628 = vpop.permute.xlu0 %627
  %629 = vrot.lane.b32.xlu0 %v299, 32
  %v630 = vpop.permute.xlu0 %629
  %631 = vrot.lane.b32.xlu0 %v298, 32
  %v632 = vpop.permute.xlu0 %631
  %633 = vrot.lane.b32.xlu0 %v297, 32
  %v634 = vpop.permute.xlu0 %633
  %635 = vrot.lane.b32.xlu0 %v296, 32
  %v636 = vpop.permute.xlu0 %635
  %637 = vrot.lane.b32.xlu0 %v295, 32
  %v638 = vpop.permute.xlu0 %637
  %639 = vrot.lane.b32.xlu0 %v294, 32
  %v640 = vpop.permute.xlu0 %639
  %641 = vrot.lane.b32.xlu0 %v293, 32
  %v642 = vpop.permute.xlu0 %641
  %643 = vrot.lane.b32.xlu0 %v292, 32
  %v644 = vpop.permute.xlu0 %643
  %645 = vrot.lane.b32.xlu0 %v291, 32
  %v646 = vpop.permute.xlu0 %645
  %647 = vrot.lane.b32.xlu0 %v290, 32
  %v648 = vpop.permute.xlu0 %647
  %649 = vrot.lane.b32.xlu0 %v289, 32
  %v650 = vpop.permute.xlu0 %649
  %651 = vrot.lane.b32.xlu0 %v288, 32
  %v652 = vpop.permute.xlu0 %651
  %653 = vrot.lane.b32.xlu0 %v287, 32
  %v654 = vpop.permute.xlu0 %653
  %655 = vrot.lane.b32.xlu0 %v286, 32
  %v656 = vpop.permute.xlu0 %655
  %657 = vrot.lane.b32.xlu0 %v285, 32
  %v658 = vpop.permute.xlu0 %657
  %659 = vrot.lane.b32.xlu0 %v284, 32
  %v660 = vpop.permute.xlu0 %659
  %661 = vrot.lane.b32.xlu0 %v283, 32
  %v662 = vpop.permute.xlu0 %661
  %663 = vrot.lane.b32.xlu0 %v282, 32
  %v664 = vpop.permute.xlu0 %663
  %665 = vrot.lane.b32.xlu0 %v281, 32
  %v666 = vpop.permute.xlu0 %665
  %667 = vrot.lane.b32.xlu0 %v280, 32
  %v668 = vpop.permute.xlu0 %667
  %669 = vrot.lane.b32.xlu0 %v279, 32
  %v670 = vpop.permute.xlu0 %669
  %671 = vrot.lane.b32.xlu0 %v278, 32
  %v672 = vpop.permute.xlu0 %671
  %673 = vrot.lane.b32.xlu0 %v277, 32
  %v674 = vpop.permute.xlu0 %673
  %675 = vrot.lane.b32.xlu0 %v276, 32
  %v676 = vpop.permute.xlu0 %675
  %677 = vrot.lane.b32.xlu0 %v275, 32
  %v678 = vpop.permute.xlu0 %677
  %679 = vrot.lane.b32.xlu0 %v355, 32
  %v680 = vpop.permute.xlu0 %679
  %v681 = vadd.f32 %v110, %v520
  %v682 = vadd.f32 %v111, %v522
  %v683 = vadd.f32 %v112, %v524
  %v684 = vadd.f32 %v113, %v526
  %v685 = vadd.f32 %v114, %v528
  %v686 = vadd.f32 %v115, %v530
  %v687 = vadd.f32 %v116, %v532
  %v688 = vadd.f32 %v117, %v534
  %v689 = vadd.f32 %v118, %v536
  %v690 = vadd.f32 %v119, %v538
  %v691 = vadd.f32 %v120, %v540
  %v692 = vadd.f32 %v121, %v542
  %v693 = vadd.f32 %v122, %v544
  %v694 = vadd.f32 %v123, %v546
  %v695 = vadd.f32 %v124, %v548
  %v696 = vadd.f32 %v125, %v550
  %v697 = vadd.f32 %v126, %v552
  %v698 = vadd.f32 %v127, %v554
  %v699 = vadd.f32 %v128, %v556
  %v700 = vadd.f32 %v129, %v558
  %v701 = vadd.f32 %v130, %v560
  %v702 = vadd.f32 %v131, %v562
  %v703 = vadd.f32 %v132, %v564
  %v704 = vadd.f32 %v133, %v566
  %v705 = vadd.f32 %v134, %v568
  %v706 = vadd.f32 %v135, %v570
  %v707 = vadd.f32 %v136, %v572
  %v708 = vadd.f32 %v137, %v574
  %v709 = vadd.f32 %v138, %v576
  %v710 = vadd.f32 %v139, %v578
  %v711 = vadd.f32 %v140, %v580
  %v712 = vadd.f32 %v141, %v582
  %v713 = vadd.f32 %v142, %v584
  %v714 = vadd.f32 %v143, %v586
  %v715 = vadd.f32 %v144, %v588
  %v716 = vadd.f32 %v145, %v590
  %v717 = vadd.f32 %v146, %v592
  %v718 = vadd.f32 %v147, %v594
  %v719 = vadd.f32 %v148, %v596
  %v720 = vadd.f32 %v149, %v598
  %v721 = vadd.f32 %v150, %v600
  %v722 = vadd.f32 %v151, %v602
  %v723 = vadd.f32 %v152, %v604
  %v724 = vadd.f32 %v153, %v606
  %v725 = vadd.f32 %v154, %v608
  %v726 = vadd.f32 %v155, %v610
  %v727 = vadd.f32 %v156, %v612
  %v728 = vadd.f32 %v157, %v614
  %v729 = vadd.f32 %v158, %v616
  %v730 = vadd.f32 %v159, %v618
  %v731 = vadd.f32 %v160, %v620
  %v732 = vadd.f32 %v161, %v622
  %v733 = vadd.f32 %v162, %v624
  %v734 = vadd.f32 %v163, %v626
  %v735 = vadd.f32 %v164, %v628
  %v736 = vadd.f32 %v165, %v630
  %v737 = vadd.f32 %v166, %v632
  %v738 = vadd.f32 %v167, %v634
  %v739 = vadd.f32 %v168, %v636
  %v740 = vadd.f32 %v169, %v638
  %v741 = vadd.f32 %v170, %v640
  %v742 = vadd.f32 %v171, %v642
  %v743 = vadd.f32 %v172, %v644
  %v744 = vadd.f32 %v173, %v646
  %v745 = vadd.f32 %v174, %v648
  %v746 = vadd.f32 %v175, %v650
  %v747 = vadd.f32 %v176, %v652
  %v748 = vadd.f32 %v177, %v654
  %v749 = vadd.f32 %v178, %v656
  %v750 = vadd.f32 %v179, %v658
  %v751 = vadd.f32 %v180, %v660
  %v752 = vadd.f32 %v181, %v662
  %v753 = vadd.f32 %v182, %v664
  %v754 = vadd.f32 %v183, %v666
  %v755 = vadd.f32 %v184, %v668
  %v756 = vadd.f32 %v185, %v670
  %v757 = vadd.f32 %v186, %v672
  %v758 = vadd.f32 %v187, %v674
  %v759 = vadd.f32 %v188, %v676
  %v760 = vadd.f32 %v189, %v678
  %v761 = vadd.f32 %v190, %v680
  %762 = vrot.lane.b32.xlu0 %v518, 64
  %v763 = vpop.permute.xlu0 %762
  %764 = vrot.lane.b32.xlu0 %v517, 64
  %v765 = vpop.permute.xlu0 %764
  %766 = vrot.lane.b32.xlu0 %v516, 64
  %v767 = vpop.permute.xlu0 %766
  %768 = vrot.lane.b32.xlu0 %v515, 64
  %v769 = vpop.permute.xlu0 %768
  %770 = vrot.lane.b32.xlu0 %v514, 64
  %v771 = vpop.permute.xlu0 %770
  %772 = vrot.lane.b32.xlu0 %v513, 64
  %v773 = vpop.permute.xlu0 %772
  %774 = vrot.lane.b32.xlu0 %v512, 64
  %v775 = vpop.permute.xlu0 %774
  %776 = vrot.lane.b32.xlu0 %v511, 64
  %v777 = vpop.permute.xlu0 %776
  %778 = vrot.lane.b32.xlu0 %v510, 64
  %v779 = vpop.permute.xlu0 %778
  %780 = vrot.lane.b32.xlu0 %v509, 64
  %v781 = vpop.permute.xlu0 %780
  %782 = vrot.lane.b32.xlu0 %v508, 64
  %v783 = vpop.permute.xlu0 %782
  %784 = vrot.lane.b32.xlu0 %v507, 64
  %v785 = vpop.permute.xlu0 %784
  %786 = vrot.lane.b32.xlu0 %v506, 64
  %v787 = vpop.permute.xlu0 %786
  %788 = vrot.lane.b32.xlu0 %v505, 64
  %v789 = vpop.permute.xlu0 %788
  %790 = vrot.lane.b32.xlu0 %v504, 64
  %v791 = vpop.permute.xlu0 %790
  %792 = vrot.lane.b32.xlu0 %v503, 64
  %v793 = vpop.permute.xlu0 %792
  %794 = vrot.lane.b32.xlu0 %v502, 64
  %v795 = vpop.permute.xlu0 %794
  %796 = vrot.lane.b32.xlu0 %v501, 64
  %v797 = vpop.permute.xlu0 %796
  %798 = vrot.lane.b32.xlu0 %v500, 64
  %v799 = vpop.permute.xlu0 %798
  %800 = vrot.lane.b32.xlu0 %v499, 64
  %v801 = vpop.permute.xlu0 %800
  %802 = vrot.lane.b32.xlu0 %v498, 64
  %v803 = vpop.permute.xlu0 %802
  %804 = vrot.lane.b32.xlu0 %v497, 64
  %v805 = vpop.permute.xlu0 %804
  %806 = vrot.lane.b32.xlu0 %v496, 64
  %v807 = vpop.permute.xlu0 %806
  %808 = vrot.lane.b32.xlu0 %v495, 64
  %v809 = vpop.permute.xlu0 %808
  %810 = vrot.lane.b32.xlu0 %v494, 64
  %v811 = vpop.permute.xlu0 %810
  %812 = vrot.lane.b32.xlu0 %v493, 64
  %v813 = vpop.permute.xlu0 %812
  %814 = vrot.lane.b32.xlu0 %v492, 64
  %v815 = vpop.permute.xlu0 %814
  %816 = vrot.lane.b32.xlu0 %v491, 64
  %v817 = vpop.permute.xlu0 %816
  %818 = vrot.lane.b32.xlu0 %v490, 64
  %v819 = vpop.permute.xlu0 %818
  %820 = vrot.lane.b32.xlu0 %v489, 64
  %v821 = vpop.permute.xlu0 %820
  %822 = vrot.lane.b32.xlu0 %v488, 64
  %v823 = vpop.permute.xlu0 %822
  %824 = vrot.lane.b32.xlu0 %v487, 64
  %v825 = vpop.permute.xlu0 %824
  %826 = vrot.lane.b32.xlu0 %v486, 64
  %v827 = vpop.permute.xlu0 %826
  %828 = vrot.lane.b32.xlu0 %v485, 64
  %v829 = vpop.permute.xlu0 %828
  %830 = vrot.lane.b32.xlu0 %v484, 64
  %v831 = vpop.permute.xlu0 %830
  %832 = vrot.lane.b32.xlu0 %v483, 64
  %v833 = vpop.permute.xlu0 %832
  %834 = vrot.lane.b32.xlu0 %v482, 64
  %v835 = vpop.permute.xlu0 %834
  %836 = vrot.lane.b32.xlu0 %v481, 64
  %v837 = vpop.permute.xlu0 %836
  %838 = vrot.lane.b32.xlu0 %v480, 64
  %v839 = vpop.permute.xlu0 %838
  %840 = vrot.lane.b32.xlu0 %v479, 64
  %v841 = vpop.permute.xlu0 %840
  %842 = vrot.lane.b32.xlu0 %v478, 64
  %v843 = vpop.permute.xlu0 %842
  %844 = vrot.lane.b32.xlu0 %v477, 64
  %v845 = vpop.permute.xlu0 %844
  %846 = vrot.lane.b32.xlu0 %v476, 64
  %v847 = vpop.permute.xlu0 %846
  %848 = vrot.lane.b32.xlu0 %v475, 64
  %v849 = vpop.permute.xlu0 %848
  %850 = vrot.lane.b32.xlu0 %v474, 64
  %v851 = vpop.permute.xlu0 %850
  %852 = vrot.lane.b32.xlu0 %v473, 64
  %v853 = vpop.permute.xlu0 %852
  %854 = vrot.lane.b32.xlu0 %v472, 64
  %v855 = vpop.permute.xlu0 %854
  %856 = vrot.lane.b32.xlu0 %v471, 64
  %v857 = vpop.permute.xlu0 %856
  %858 = vrot.lane.b32.xlu0 %v470, 64
  %v859 = vpop.permute.xlu0 %858
  %860 = vrot.lane.b32.xlu0 %v469, 64
  %v861 = vpop.permute.xlu0 %860
  %862 = vrot.lane.b32.xlu0 %v468, 64
  %v863 = vpop.permute.xlu0 %862
  %864 = vrot.lane.b32.xlu0 %v467, 64
  %v865 = vpop.permute.xlu0 %864
  %866 = vrot.lane.b32.xlu0 %v466, 64
  %v867 = vpop.permute.xlu0 %866
  %868 = vrot.lane.b32.xlu0 %v465, 64
  %v869 = vpop.permute.xlu0 %868
  %870 = vrot.lane.b32.xlu0 %v464, 64
  %v871 = vpop.permute.xlu0 %870
  %872 = vrot.lane.b32.xlu0 %v463, 64
  %v873 = vpop.permute.xlu0 %872
  %874 = vrot.lane.b32.xlu0 %v462, 64
  %v875 = vpop.permute.xlu0 %874
  %876 = vrot.lane.b32.xlu0 %v461, 64
  %v877 = vpop.permute.xlu0 %876
  %878 = vrot.lane.b32.xlu0 %v460, 64
  %v879 = vpop.permute.xlu0 %878
  %880 = vrot.lane.b32.xlu0 %v459, 64
  %v881 = vpop.permute.xlu0 %880
  %882 = vrot.lane.b32.xlu0 %v458, 64
  %v883 = vpop.permute.xlu0 %882
  %884 = vrot.lane.b32.xlu0 %v457, 64
  %v885 = vpop.permute.xlu0 %884
  %886 = vrot.lane.b32.xlu0 %v456, 64
  %v887 = vpop.permute.xlu0 %886
  %888 = vrot.lane.b32.xlu0 %v455, 64
  %v889 = vpop.permute.xlu0 %888
  %890 = vrot.lane.b32.xlu0 %v454, 64
  %v891 = vpop.permute.xlu0 %890
  %892 = vrot.lane.b32.xlu0 %v453, 64
  %v893 = vpop.permute.xlu0 %892
  %894 = vrot.lane.b32.xlu0 %v452, 64
  %v895 = vpop.permute.xlu0 %894
  %896 = vrot.lane.b32.xlu0 %v451, 64
  %v897 = vpop.permute.xlu0 %896
  %898 = vrot.lane.b32.xlu0 %v450, 64
  %v899 = vpop.permute.xlu0 %898
  %900 = vrot.lane.b32.xlu0 %v449, 64
  %v901 = vpop.permute.xlu0 %900
  %902 = vrot.lane.b32.xlu0 %v448, 64
  %v903 = vpop.permute.xlu0 %902
  %904 = vrot.lane.b32.xlu0 %v447, 64
  %v905 = vpop.permute.xlu0 %904
  %906 = vrot.lane.b32.xlu0 %v446, 64
  %v907 = vpop.permute.xlu0 %906
  %908 = vrot.lane.b32.xlu0 %v445, 64
  %v909 = vpop.permute.xlu0 %908
  %910 = vrot.lane.b32.xlu0 %v444, 64
  %v911 = vpop.permute.xlu0 %910
  %912 = vrot.lane.b32.xlu0 %v443, 64
  %v913 = vpop.permute.xlu0 %912
  %914 = vrot.lane.b32.xlu0 %v442, 64
  %v915 = vpop.permute.xlu0 %914
  %916 = vrot.lane.b32.xlu0 %v441, 64
  %v917 = vpop.permute.xlu0 %916
  %918 = vrot.lane.b32.xlu0 %v440, 64
  %v919 = vpop.permute.xlu0 %918
  %920 = vrot.lane.b32.xlu0 %v439, 64
  %v921 = vpop.permute.xlu0 %920
  %922 = vrot.lane.b32.xlu0 %v438, 64
  %v923 = vpop.permute.xlu0 %922
  %v924 = vadd.f32 %v681, %v763
  %v925 = vadd.f32 %v682, %v765
  %v926 = vadd.f32 %v683, %v767
  %v927 = vadd.f32 %v684, %v769
  %v928 = vadd.f32 %v685, %v771
  %v929 = vadd.f32 %v686, %v773
  %v930 = vadd.f32 %v687, %v775
  %v931 = vadd.f32 %v688, %v777
  %v932 = vadd.f32 %v689, %v779
  %v933 = vadd.f32 %v690, %v781
  %v934 = vadd.f32 %v691, %v783
  %v935 = vadd.f32 %v692, %v785
  %v936 = vadd.f32 %v693, %v787
  %v937 = vadd.f32 %v694, %v789
  %v938 = vadd.f32 %v695, %v791
  %v939 = vadd.f32 %v696, %v793
  %v940 = vadd.f32 %v697, %v795
  %v941 = vadd.f32 %v698, %v797
  %v942 = vadd.f32 %v699, %v799
  %v943 = vadd.f32 %v700, %v801
  %v944 = vadd.f32 %v701, %v803
  %v945 = vadd.f32 %v702, %v805
  %v946 = vadd.f32 %v703, %v807
  %v947 = vadd.f32 %v704, %v809
  %v948 = vadd.f32 %v705, %v811
  %v949 = vadd.f32 %v706, %v813
  %v950 = vadd.f32 %v707, %v815
  %v951 = vadd.f32 %v708, %v817
  %v952 = vadd.f32 %v709, %v819
  %v953 = vadd.f32 %v710, %v821
  %v954 = vadd.f32 %v711, %v823
  %v955 = vadd.f32 %v712, %v825
  %v956 = vadd.f32 %v713, %v827
  %v957 = vadd.f32 %v714, %v829
  %v958 = vadd.f32 %v715, %v831
  %v959 = vadd.f32 %v716, %v833
  %v960 = vadd.f32 %v717, %v835
  %v961 = vadd.f32 %v718, %v837
  %v962 = vadd.f32 %v719, %v839
  %v963 = vadd.f32 %v720, %v841
  %v964 = vadd.f32 %v721, %v843
  %v965 = vadd.f32 %v722, %v845
  %v966 = vadd.f32 %v723, %v847
  %v967 = vadd.f32 %v724, %v849
  %v968 = vadd.f32 %v725, %v851
  %v969 = vadd.f32 %v726, %v853
  %v970 = vadd.f32 %v727, %v855
  %v971 = vadd.f32 %v728, %v857
  %v972 = vadd.f32 %v729, %v859
  %v973 = vadd.f32 %v730, %v861
  %v974 = vadd.f32 %v731, %v863
  %v975 = vadd.f32 %v732, %v865
  %v976 = vadd.f32 %v733, %v867
  %v977 = vadd.f32 %v734, %v869
  %v978 = vadd.f32 %v735, %v871
  %v979 = vadd.f32 %v736, %v873
  %v980 = vadd.f32 %v737, %v875
  %v981 = vadd.f32 %v738, %v877
  %v982 = vadd.f32 %v739, %v879
  %v983 = vadd.f32 %v740, %v881
  %v984 = vadd.f32 %v741, %v883
  %v985 = vadd.f32 %v742, %v885
  %v986 = vadd.f32 %v743, %v887
  %v987 = vadd.f32 %v744, %v889
  %v988 = vadd.f32 %v745, %v891
  %v989 = vadd.f32 %v746, %v893
  %v990 = vadd.f32 %v747, %v895
  %v991 = vadd.f32 %v748, %v897
  %v992 = vadd.f32 %v749, %v899
  %v993 = vadd.f32 %v750, %v901
  %v994 = vadd.f32 %v751, %v903
  %v995 = vadd.f32 %v752, %v905
  %v996 = vadd.f32 %v753, %v907
  %v997 = vadd.f32 %v754, %v909
  %v998 = vadd.f32 %v755, %v911
  %v999 = vadd.f32 %v756, %v913
  %v1000 = vadd.f32 %v757, %v915
  %v1001 = vadd.f32 %v758, %v917
  %v1002 = vadd.f32 %v759, %v919
  %v1003 = vadd.f32 %v760, %v921
  %v1004 = vadd.f32 %v761, %v923
  %v1005 = vld [vmem:[%s2] sm:$0xff]
  %v1006 = vld [vmem:[%s2 + $0x8] sm:$0xff]
  %v1007 = vld [vmem:[%s2 + $0x10] sm:$0xff]
  %v1008 = vld [vmem:[%s2 + $0x18] sm:$0xff]
  %v1009 = vld [vmem:[%s2 + $0x20] sm:$0xff]
  %v1010 = vld [vmem:[%s2 + $0x28] sm:$0xff]
  %v1011 = vld [vmem:[%s2 + $0x30] sm:$0xff]
  %v1012 = vld [vmem:[%s2 + $0x38] sm:$0xff]
  %v1013 = vld [vmem:[%s2 + $0x40] sm:$0xff]
  %v1014 = vld [vmem:[%s2 + $0x48] sm:$0xff]
  %v1015 = vld [vmem:[%s2 + $0x50] sm:$0xff]
  %v1016 = vld [vmem:[%s2 + $0x58] sm:$0xff]
  %v1017 = vld [vmem:[%s2 + $0x60] sm:$0xff]
  %v1018 = vld [vmem:[%s2 + $0x68] sm:$0xff]
  %v1019 = vld [vmem:[%s2 + $0x70] sm:$0xff]
  %v1020 = vld [vmem:[%s2 + $0x78] sm:$0xff]
  %v1021 = vld [vmem:[%s2 + $0x80] sm:$0xff]
  %v1022 = vld [vmem:[%s2 + $0x88] sm:$0xff]
  %v1023 = vld [vmem:[%s2 + $0x90] sm:$0xff]
  %v1024 = vld [vmem:[%s2 + $0x98] sm:$0xff]
  %v1025 = vld [vmem:[%s2 + $0xa0] sm:$0xff]
  %v1026 = vld [vmem:[%s2 + $0xa8] sm:$0xff]
  %v1027 = vld [vmem:[%s2 + $0xb0] sm:$0xff]
  %v1028 = vld [vmem:[%s2 + $0xb8] sm:$0xff]
  %v1029 = vld [vmem:[%s2 + $0xc0] sm:$0xff]
  %v1030 = vld [vmem:[%s2 + $0xc8] sm:$0xff]
  %v1031 = vld [vmem:[%s2 + $0xd0] sm:$0xff]
  %v1032 = vld [vmem:[%s2 + $0xd8] sm:$0xff]
  %v1033 = vld [vmem:[%s2 + $0xe0] sm:$0xff]
  %v1034 = vld [vmem:[%s2 + $0xe8] sm:$0xff]
  %v1035 = vld [vmem:[%s2 + $0xf0] sm:$0xff]
  %v1036 = vld [vmem:[%s2 + $0xf8] sm:$0xff]
  %v1037 = vld [vmem:[%s2 + $0x100] sm:$0xff]
  %v1038 = vld [vmem:[%s2 + $0x108] sm:$0xff]
  %v1039 = vld [vmem:[%s2 + $0x110] sm:$0xff]
  %v1040 = vld [vmem:[%s2 + $0x118] sm:$0xff]
  %v1041 = vld [vmem:[%s2 + $0x120] sm:$0xff]
  %v1042 = vld [vmem:[%s2 + $0x128] sm:$0xff]
  %v1043 = vld [vmem:[%s2 + $0x130] sm:$0xff]
  %v1044 = vld [vmem:[%s2 + $0x138] sm:$0xff]
  %v1045 = vld [vmem:[%s2 + $0x140] sm:$0xff]
  %v1046 = vld [vmem:[%s2 + $0x148] sm:$0xff]
  %v1047 = vld [vmem:[%s2 + $0x150] sm:$0xff]
  %v1048 = vld [vmem:[%s2 + $0x158] sm:$0xff]
  %v1049 = vld [vmem:[%s2 + $0x160] sm:$0xff]
  %v1050 = vld [vmem:[%s2 + $0x168] sm:$0xff]
  %v1051 = vld [vmem:[%s2 + $0x170] sm:$0xff]
  %v1052 = vld [vmem:[%s2 + $0x178] sm:$0xff]
  %1053 = vmatprep.subr.mxu0 %v1006
  %1054 = vmatpush1.msra.mxu0 %v1005
  %1055 = vmatprep.subr.mxu0 %v1009
  %1056 = vmatpush1.msra.mxu0 %v1008
  %1057 = vmatprep.subr.mxu0 %v1012
  %1058 = vmatpush1.msra.mxu0 %v1011
  %1059 = vmatprep.subr.mxu0 %v1015
  %1060 = vmatpush1.msra.mxu0 %v1014
  %1061 = vmatprep.subr.mxu0 %v1018
  %1062 = vmatpush1.msra.mxu0 %v1017
  %1063 = vmatprep.subr.mxu0 %v1021
  %1064 = vmatpush1.msra.mxu0 %v1020
  %1065 = vmatprep.subr.mxu0 %v1024
  %1066 = vmatpush1.msra.mxu0 %v1023
  %1067 = vmatprep.subr.mxu0 %v1027
  %1068 = vmatpush1.msra.mxu0 %v1026
  %1069 = vmatprep.subr.mxu0 %v1030
  %1070 = vmatpush1.msra.mxu0 %v1029
  %1071 = vmatprep.subr.mxu0 %v1033
  %1072 = vmatpush1.msra.mxu0 %v1032
  %1073 = vmatprep.subr.mxu0 %v1036
  %1074 = vmatpush1.msra.mxu0 %v1035
  %1075 = vmatprep.subr.mxu0 %v1039
  %1076 = vmatpush1.msra.mxu0 %v1038
  %1077 = vmatprep.subr.mxu0 %v1042
  %1078 = vmatpush1.msra.mxu0 %v1041
  %1079 = vmatprep.subr.mxu0 %v1045
  %1080 = vmatpush1.msra.mxu0 %v1044
  %1081 = vmatprep.subr.mxu0 %v1048
  %1082 = vmatpush1.msra.mxu0 %v1047
  %1083 = vmatprep.subr.mxu0 %v1051
  %1084 = vmatpush1.msra.mxu0 %v1050
  %1085 = vmatprep.subr.mxu0 0.0
  %1086 = vmatpush1.msra.mxu0 0.0
  %1087 = vmatprep.subr.mxu0 0.0
  %1088 = vmatpush1.msra.mxu0 0.0
  %1089 = vmatprep.subr.mxu0 0.0
  %1090 = vmatpush1.msra.mxu0 0.0
  %1091 = vmatprep.subr.mxu0 0.0
  %1092 = vmatpush1.msra.mxu0 0.0
  %1093 = vmatprep.subr.mxu0 0.0
  %1094 = vmatpush1.msra.mxu0 0.0
  %1095 = vmatprep.subr.mxu0 0.0
  %1096 = vmatpush1.msra.mxu0 0.0
  %1097 = vmatprep.subr.mxu0 0.0
  %1098 = vmatpush1.msra.mxu0 0.0
  %1099 = vmatprep.subr.mxu0 0.0
  %1100 = vmatpush1.msra.mxu0 0.0
  %1101 = vmatprep.subr.mxu0 0.0
  %1102 = vmatpush1.msra.mxu0 0.0
  %1103 = vmatprep.subr.mxu0 0.0
  %1104 = vmatpush1.msra.mxu0 0.0
  %1105 = vmatprep.subr.mxu0 0.0
  %1106 = vmatpush1.msra.mxu0 0.0
  %1107 = vmatprep.subr.mxu0 0.0
  %1108 = vmatpush1.msra.mxu0 0.0
  %1109 = vmatprep.subr.mxu0 0.0
  %1110 = vmatpush1.msra.mxu0 0.0
  %1111 = vmatprep.subr.mxu0 0.0
  %1112 = vmatpush1.msra.mxu0 0.0
  %1113 = vmatprep.subr.mxu0 0.0
  %1114 = vmatpush1.msra.mxu0 0.0
  %1115 = vmatprep.subr.mxu0 0.0
  %1116 = vmatpush1.msra.mxu0 0.0
  %1117 = vmatprep.mubr.f32.mxu0 0.0
  %1118 = vmatmul.mubr.f32.gmra.mrb[0].mxu0 %v924
  %v1119 = vpop.f32.mrb[0].mxu0
  %v1120 = vadd.f32 0.0, %v1119
  %v1121 = vpop.f32.mrb[0].mxu0
  %v1122 = vadd.f32 0.0, %v1121
  %1123 = vmatprep.mubr.f32.mxu0 0.0
  %1124 = vmatmul.mubr.f32.gmra.mrb[0].mxu0 %v925
  %v1125 = vpop.f32.mrb[0].mxu0
  %v1126 = vadd.f32 0.0, %v1125
  %v1127 = vpop.f32.mrb[0].mxu0
  %v1128 = vadd.f32 0.0, %v1127
  %1129 = vmatprep.mubr.f32.mxu0 0.0
  %1130 = vmatmul.mubr.f32.gmra.mrb[0].mxu0 %v926
  %v1131 = vpop.f32.mrb[0].mxu0
  %v1132 = vadd.f32 0.0, %v1131
  %v1133 = vpop.f32.mrb[0].mxu0
  %v1134 = vadd.f32 0.0, %v1133
  %1135 = vmatprep.mubr.f32.mxu0 0.0
  %1136 = vmatmul.mubr.f32.gmra.mrb[0].mxu0 %v927
  %v1137 = vpop.f32.mrb[0].mxu0
  %v1138 = vadd.f32 0.0, %v1137
  %v1139 = vpop.f32.mrb[0].mxu0
  %v1140 = vadd.f32 0.0, %v1139
  %1141 = vmatprep.mubr.f32.mxu0 0.0
  %1142 = vmatmul.mubr.f32.gmra.mrb[0].mxu0 %v928
  %v1143 = vpop.f32.mrb[0].mxu0
  %v1144 = vadd.f32 0.0, %v1143
  %v1145 = vpop.f32.mrb[0].mxu0
  %v1146 = vadd.f32 0.0, %v1145
  %1147 = vmatprep.mubr.f32.mxu0 0.0
  %1148 = vmatmul.mubr.f32.gmra.mrb[0].mxu0 %v929
  %v1149 = vpop.f32.mrb[0].mxu0
  %v1150 = vadd.f32 0.0, %v1149
  %v1151 = vpop.f32.mrb[0].mxu0
  %v1152 = vadd.f32 0.0, %v1151
  %1153 = vmatprep.mubr.f32.mxu0 0.0
  %1154 = vmatmul.mubr.f32.gmra.mrb[0].mxu0 %v930
  %v1155 = vpop.f32.mrb[0].mxu0
  %v1156 = vadd.f32 0.0, %v1155
  %v1157 = vpop.f32.mrb[0].mxu0
  %v1158 = vadd.f32 0.0, %v1157
  %1159 = vmatprep.mubr.f32.mxu0 0.0
  %1160 = vmatmul.mubr.f32.gmra.mrb[0].mxu0 %v931
  %v1161 = vpop.f32.mrb[0].mxu0
  %v1162 = vadd.f32 0.0, %v1161
  %v1163 = vpop.f32.mrb[0].mxu0
  %v1164 = vadd.f32 0.0, %v1163
  %1165 = vmatprep.mubr.f32.mxu0 0.0
  %1166 = vmatmul.mubr.f32.gmra.mrb[0].mxu0 %v932
  %v1167 = vpop.f32.mrb[0].mxu0
  %v1168 = vadd.f32 0.0, %v1167
  %v1169 = vpop.f32.mrb[0].mxu0
  %v1170 = vadd.f32 0.0, %v1169
  %1171 = vmatprep.mubr.f32.mxu0 0.0
  %1172 = vmatmul.mubr.f32.gmra.mrb[0].mxu0 %v933
  %v1173 = vpop.f32.mrb[0].mxu0
  %v1174 = vadd.f32 0.0, %v1173
  %v1175 = vpop.f32.mrb[0].mxu0
  %v1176 = vadd.f32 0.0, %v1175
  %1177 = vmatprep.mubr.f32.mxu0 0.0
  %1178 = vmatmul.mubr.f32.gmra.mrb[0].mxu0 %v934
  %v1179 = vpop.f32.mrb[0].mxu0
  %v1180 = vadd.f32 0.0, %v1179
  %v1181 = vpop.f32.mrb[0].mxu0
  %v1182 = vadd.f32 0.0, %v1181
  %1183 = vmatprep.mubr.f32.mxu0 0.0
  %1184 = vmatmul.mubr.f32.gmra.mrb[0].mxu0 %v935
  %v1185 = vpop.f32.mrb[0].mxu0
  %v1186 = vadd.f32 0.0, %v1185
  %v1187 = vpop.f32.mrb[0].mxu0
  %v1188 = vadd.f32 0.0, %v1187
  %1189 = vmatprep.mubr.f32.mxu0 0.0
  %1190 = vmatmul.mubr.f32.gmra.mrb[0].mxu0 %v936
  %v1191 = vpop.f32.mrb[0].mxu0
  %v1192 = vadd.f32 0.0, %v1191
  %v1193 = vpop.f32.mrb[0].mxu0
  %v1194 = vadd.f32 0.0, %v1193
  %1195 = vmatprep.mubr.f32.mxu0 0.0
  %1196 = vmatmul.mubr.f32.gmra.mrb[0].mxu0 %v937
  %v1197 = vpop.f32.mrb[0].mxu0
  %v1198 = vadd.f32 0.0, %v1197
  %v1199 = vpop.f32.mrb[0].mxu0
  %v1200 = vadd.f32 0.0, %v1199
  %1201 = vmatprep.mubr.f32.mxu0 0.0
  %1202 = vmatmul.mubr.f32.gmra.mrb[0].mxu0 %v938
  %v1203 = vpop.f32.mrb[0].mxu0
  %v1204 = vadd.f32 0.0, %v1203
  %v1205 = vpop.f32.mrb[0].mxu0
  %v1206 = vadd.f32 0.0, %v1205
  %1207 = vmatprep.mubr.f32.mxu0 0.0
  %1208 = vmatmul.mubr.f32.gmra.mrb[0].mxu0 %v939
  %v1209 = vpop.f32.mrb[0].mxu0
  %v1210 = vadd.f32 0.0, %v1209
  %v1211 = vpop.f32.mrb[0].mxu0
  %v1212 = vadd.f32 0.0, %v1211
  %1213 = vmatprep.mubr.f32.mxu0 0.0
  %1214 = vmatmul.mubr.f32.gmra.mrb[0].mxu0 %v940
  %v1215 = vpop.f32.mrb[0].mxu0
  %v1216 = vadd.f32 0.0, %v1215
  %v1217 = vpop.f32.mrb[0].mxu0
  %v1218 = vadd.f32 0.0, %v1217
  %1219 = vmatprep.mubr.f32.mxu0 0.0
  %1220 = vmatmul.mubr.f32.gmra.mrb[0].mxu0 %v941
  %v1221 = vpop.f32.mrb[0].mxu0
  %v1222 = vadd.f32 0.0, %v1221
  %v1223 = vpop.f32.mrb[0].mxu0
  %v1224 = vadd.f32 0.0, %v1223
  %1225 = vmatprep.mubr.f32.mxu0 0.0
  %1226 = vmatmul.mubr.f32.gmra.mrb[0].mxu0 %v942
  %v1227 = vpop.f32.mrb[0].mxu0
  %v1228 = vadd.f32 0.0, %v1227
  %v1229 = vpop.f32.mrb[0].mxu0
  %v1230 = vadd.f32 0.0, %v1229
  %1231 = vmatprep.mubr.f32.mxu0 0.0
  %1232 = vmatmul.mubr.f32.gmra.mrb[0].mxu0 %v943
  %v1233 = vpop.f32.mrb[0].mxu0
  %v1234 = vadd.f32 0.0, %v1233
  %v1235 = vpop.f32.mrb[0].mxu0
  %v1236 = vadd.f32 0.0, %v1235
  %1237 = vmatprep.mubr.f32.mxu0 0.0
  %1238 = vmatmul.mubr.f32.gmra.mrb[0].mxu0 %v944
  %v1239 = vpop.f32.mrb[0].mxu0
  %v1240 = vadd.f32 0.0, %v1239
  %v1241 = vpop.f32.mrb[0].mxu0
  %v1242 = vadd.f32 0.0, %v1241
  %1243 = vmatprep.mubr.f32.mxu0 0.0
  %1244 = vmatmul.mubr.f32.gmra.mrb[0].mxu0 %v945
  %v1245 = vpop.f32.mrb[0].mxu0
  %v1246 = vadd.f32 0.0, %v1245
  %v1247 = vpop.f32.mrb[0].mxu0
  %v1248 = vadd.f32 0.0, %v1247
  %1249 = vmatprep.mubr.f32.mxu0 0.0
  %1250 = vmatmul.mubr.f32.gmra.mrb[0].mxu0 %v946
  %v1251 = vpop.f32.mrb[0].mxu0
  %v1252 = vadd.f32 0.0, %v1251
  %v1253 = vpop.f32.mrb[0].mxu0
  %v1254 = vadd.f32 0.0, %v1253
  %1255 = vmatprep.mubr.f32.mxu0 0.0
  %1256 = vmatmul.mubr.f32.gmra.mrb[0].mxu0 %v947
  %v1257 = vpop.f32.mrb[0].mxu0
  %v1258 = vadd.f32 0.0, %v1257
  %v1259 = vpop.f32.mrb[0].mxu0
  %v1260 = vadd.f32 0.0, %v1259
  %1261 = vmatprep.mubr.f32.mxu0 0.0
  %1262 = vmatmul.mubr.f32.gmra.mrb[0].mxu0 %v948
  %v1263 = vpop.f32.mrb[0].mxu0
  %v1264 = vadd.f32 0.0, %v1263
  %v1265 = vpop.f32.mrb[0].mxu0
  %v1266 = vadd.f32 0.0, %v1265
  %1267 = vmatprep.mubr.f32.mxu0 0.0
  %1268 = vmatmul.mubr.f32.gmra.mrb[0].mxu0 %v949
  %v1269 = vpop.f32.mrb[0].mxu0
  %v1270 = vadd.f32 0.0, %v1269
  %v1271 = vpop.f32.mrb[0].mxu0
  %v1272 = vadd.f32 0.0, %v1271
  %1273 = vmatprep.mubr.f32.mxu0 0.0
  %1274 = vmatmul.mubr.f32.gmra.mrb[0].mxu0 %v950
  %v1275 = vpop.f32.mrb[0].mxu0
  %v1276 = vadd.f32 0.0, %v1275
  %v1277 = vpop.f32.mrb[0].mxu0
  %v1278 = vadd.f32 0.0, %v1277
  %1279 = vmatprep.mubr.f32.mxu0 0.0
  %1280 = vmatmul.mubr.f32.gmra.mrb[0].mxu0 %v951
  %v1281 = vpop.f32.mrb[0].mxu0
  %v1282 = vadd.f32 0.0, %v1281
  %v1283 = vpop.f32.mrb[0].mxu0
  %v1284 = vadd.f32 0.0, %v1283
  %1285 = vmatprep.mubr.f32.mxu0 0.0
  %1286 = vmatmul.mubr.f32.gmra.mrb[0].mxu0 %v952
  %v1287 = vpop.f32.mrb[0].mxu0
  %v1288 = vadd.f32 0.0, %v1287
  %v1289 = vpop.f32.mrb[0].mxu0
  %v1290 = vadd.f32 0.0, %v1289
  %1291 = vmatprep.mubr.f32.mxu0 0.0
  %1292 = vmatmul.mubr.f32.gmra.mrb[0].mxu0 %v953
  %v1293 = vpop.f32.mrb[0].mxu0
  %v1294 = vadd.f32 0.0, %v1293
  %v1295 = vpop.f32.mrb[0].mxu0
  %v1296 = vadd.f32 0.0, %v1295
  %1297 = vmatprep.mubr.f32.mxu0 0.0
  %1298 = vmatmul.mubr.f32.gmra.mrb[0].mxu0 %v954
  %v1299 = vpop.f32.mrb[0].mxu0
  %v1300 = vadd.f32 0.0, %v1299
  %v1301 = vpop.f32.mrb[0].mxu0
  %v1302 = vadd.f32 0.0, %v1301
  %1303 = vmatprep.mubr.f32.mxu0 0.0
  %1304 = vmatmul.mubr.f32.gmra.mrb[0].mxu0 %v955
  %v1305 = vpop.f32.mrb[0].mxu0
  %v1306 = vadd.f32 0.0, %v1305
  %v1307 = vpop.f32.mrb[0].mxu0
  %v1308 = vadd.f32 0.0, %v1307
  %1309 = vmatprep.mubr.f32.mxu0 0.0
  %1310 = vmatmul.mubr.f32.gmra.mrb[0].mxu0 %v956
  %v1311 = vpop.f32.mrb[0].mxu0
  %v1312 = vadd.f32 0.0, %v1311
  %v1313 = vpop.f32.mrb[0].mxu0
  %v1314 = vadd.f32 0.0, %v1313
  %1315 = vmatprep.mubr.f32.mxu0 0.0
  %1316 = vmatmul.mubr.f32.gmra.mrb[0].mxu0 %v957
  %v1317 = vpop.f32.mrb[0].mxu0
  %v1318 = vadd.f32 0.0, %v1317
  %v1319 = vpop.f32.mrb[0].mxu0
  %v1320 = vadd.f32 0.0, %v1319
  %1321 = vmatprep.mubr.f32.mxu0 0.0
  %1322 = vmatmul.mubr.f32.gmra.mrb[0].mxu0 %v958
  %v1323 = vpop.f32.mrb[0].mxu0
  %v1324 = vadd.f32 0.0, %v1323
  %v1325 = vpop.f32.mrb[0].mxu0
  %v1326 = vadd.f32 0.0, %v1325
  %1327 = vmatprep.mubr.f32.mxu0 0.0
  %1328 = vmatmul.mubr.f32.gmra.mrb[0].mxu0 %v959
  %v1329 = vpop.f32.mrb[0].mxu0
  %v1330 = vadd.f32 0.0, %v1329
  %v1331 = vpop.f32.mrb[0].mxu0
  %v1332 = vadd.f32 0.0, %v1331
  %1333 = vmatprep.mubr.f32.mxu0 0.0
  %1334 = vmatmul.mubr.f32.gmra.mrb[0].mxu0 %v960
  %v1335 = vpop.f32.mrb[0].mxu0
  %v1336 = vadd.f32 0.0, %v1335
  %v1337 = vpop.f32.mrb[0].mxu0
  %v1338 = vadd.f32 0.0, %v1337
  %1339 = vmatprep.mubr.f32.mxu0 0.0
  %1340 = vmatmul.mubr.f32.gmra.mrb[0].mxu0 %v961
  %v1341 = vpop.f32.mrb[0].mxu0
  %v1342 = vadd.f32 0.0, %v1341
  %v1343 = vpop.f32.mrb[0].mxu0
  %v1344 = vadd.f32 0.0, %v1343
  %1345 = vmatprep.mubr.f32.mxu0 0.0
  %1346 = vmatmul.mubr.f32.gmra.mrb[0].mxu0 %v962
  %v1347 = vpop.f32.mrb[0].mxu0
  %v1348 = vadd.f32 0.0, %v1347
  %v1349 = vpop.f32.mrb[0].mxu0
  %v1350 = vadd.f32 0.0, %v1349
  %1351 = vmatprep.mubr.f32.mxu0 0.0
  %1352 = vmatmul.mubr.f32.gmra.mrb[0].mxu0 %v963
  %v1353 = vpop.f32.mrb[0].mxu0
  %v1354 = vadd.f32 0.0, %v1353
  %v1355 = vpop.f32.mrb[0].mxu0
  %v1356 = vadd.f32 0.0, %v1355
  %1357 = vmatprep.mubr.f32.mxu0 0.0
  %1358 = vmatmul.mubr.f32.gmra.mrb[0].mxu0 %v964
  %v1359 = vpop.f32.mrb[0].mxu0
  %v1360 = vadd.f32 0.0, %v1359
  %v1361 = vpop.f32.mrb[0].mxu0
  %v1362 = vadd.f32 0.0, %v1361
  %1363 = vmatprep.mubr.f32.mxu0 0.0
  %1364 = vmatmul.mubr.f32.gmra.mrb[0].mxu0 %v965
  %v1365 = vpop.f32.mrb[0].mxu0
  %v1366 = vadd.f32 0.0, %v1365
  %v1367 = vpop.f32.mrb[0].mxu0
  %v1368 = vadd.f32 0.0, %v1367
  %1369 = vmatprep.mubr.f32.mxu0 0.0
  %1370 = vmatmul.mubr.f32.gmra.mrb[0].mxu0 %v966
  %v1371 = vpop.f32.mrb[0].mxu0
  %v1372 = vadd.f32 0.0, %v1371
  %v1373 = vpop.f32.mrb[0].mxu0
  %v1374 = vadd.f32 0.0, %v1373
  %1375 = vmatprep.mubr.f32.mxu0 0.0
  %1376 = vmatmul.mubr.f32.gmra.mrb[0].mxu0 %v967
  %v1377 = vpop.f32.mrb[0].mxu0
  %v1378 = vadd.f32 0.0, %v1377
  %v1379 = vpop.f32.mrb[0].mxu0
  %v1380 = vadd.f32 0.0, %v1379
  %1381 = vmatprep.mubr.f32.mxu0 0.0
  %1382 = vmatmul.mubr.f32.gmra.mrb[0].mxu0 %v968
  %v1383 = vpop.f32.mrb[0].mxu0
  %v1384 = vadd.f32 0.0, %v1383
  %v1385 = vpop.f32.mrb[0].mxu0
  %v1386 = vadd.f32 0.0, %v1385
  %1387 = vmatprep.mubr.f32.mxu0 0.0
  %1388 = vmatmul.mubr.f32.gmra.mrb[0].mxu0 %v969
  %v1389 = vpop.f32.mrb[0].mxu0
  %v1390 = vadd.f32 0.0, %v1389
  %v1391 = vpop.f32.mrb[0].mxu0
  %v1392 = vadd.f32 0.0, %v1391
  %1393 = vmatprep.mubr.f32.mxu0 0.0
  %1394 = vmatmul.mubr.f32.gmra.mrb[0].mxu0 %v970
  %v1395 = vpop.f32.mrb[0].mxu0
  %v1396 = vadd.f32 0.0, %v1395
  %v1397 = vpop.f32.mrb[0].mxu0
  %v1398 = vadd.f32 0.0, %v1397
  %1399 = vmatprep.mubr.f32.mxu0 0.0
  %1400 = vmatmul.mubr.f32.gmra.mrb[0].mxu0 %v971
  %v1401 = vpop.f32.mrb[0].mxu0
  %v1402 = vadd.f32 0.0, %v1401
  %v1403 = vpop.f32.mrb[0].mxu0
  %v1404 = vadd.f32 0.0, %v1403
  %1405 = vmatprep.mubr.f32.mxu0 0.0
  %1406 = vmatmul.mubr.f32.gmra.mrb[0].mxu0 %v972
  %v1407 = vpop.f32.mrb[0].mxu0
  %v1408 = vadd.f32 0.0, %v1407
  %v1409 = vpop.f32.mrb[0].mxu0
  %v1410 = vadd.f32 0.0, %v1409
  %1411 = vmatprep.mubr.f32.mxu0 0.0
  %1412 = vmatmul.mubr.f32.gmra.mrb[0].mxu0 %v973
  %v1413 = vpop.f32.mrb[0].mxu0
  %v1414 = vadd.f32 0.0, %v1413
  %v1415 = vpop.f32.mrb[0].mxu0
  %v1416 = vadd.f32 0.0, %v1415
  %1417 = vmatprep.mubr.f32.mxu0 0.0
  %1418 = vmatmul.mubr.f32.gmra.mrb[0].mxu0 %v974
  %v1419 = vpop.f32.mrb[0].mxu0
  %v1420 = vadd.f32 0.0, %v1419
  %v1421 = vpop.f32.mrb[0].mxu0
  %v1422 = vadd.f32 0.0, %v1421
  %1423 = vmatprep.mubr.f32.mxu0 0.0
  %1424 = vmatmul.mubr.f32.gmra.mrb[0].mxu0 %v975
  %v1425 = vpop.f32.mrb[0].mxu0
  %v1426 = vadd.f32 0.0, %v1425
  %v1427 = vpop.f32.mrb[0].mxu0
  %v1428 = vadd.f32 0.0, %v1427
  %1429 = vmatprep.mubr.f32.mxu0 0.0
  %1430 = vmatmul.mubr.f32.gmra.mrb[0].mxu0 %v976
  %v1431 = vpop.f32.mrb[0].mxu0
  %v1432 = vadd.f32 0.0, %v1431
  %v1433 = vpop.f32.mrb[0].mxu0
  %v1434 = vadd.f32 0.0, %v1433
  %1435 = vmatprep.mubr.f32.mxu0 0.0
  %1436 = vmatmul.mubr.f32.gmra.mrb[0].mxu0 %v977
  %v1437 = vpop.f32.mrb[0].mxu0
  %v1438 = vadd.f32 0.0, %v1437
  %v1439 = vpop.f32.mrb[0].mxu0
  %v1440 = vadd.f32 0.0, %v1439
  %1441 = vmatprep.mubr.f32.mxu0 0.0
  %1442 = vmatmul.mubr.f32.gmra.mrb[0].mxu0 %v978
  %v1443 = vpop.f32.mrb[0].mxu0
  %v1444 = vadd.f32 0.0, %v1443
  %v1445 = vpop.f32.mrb[0].mxu0
  %v1446 = vadd.f32 0.0, %v1445
  %1447 = vmatprep.mubr.f32.mxu0 0.0
  %1448 = vmatmul.mubr.f32.gmra.mrb[0].mxu0 %v979
  %v1449 = vpop.f32.mrb[0].mxu0
  %v1450 = vadd.f32 0.0, %v1449
  %v1451 = vpop.f32.mrb[0].mxu0
  %v1452 = vadd.f32 0.0, %v1451
  %1453 = vmatprep.mubr.f32.mxu0 0.0
  %1454 = vmatmul.mubr.f32.gmra.mrb[0].mxu0 %v980
  %v1455 = vpop.f32.mrb[0].mxu0
  %v1456 = vadd.f32 0.0, %v1455
  %v1457 = vpop.f32.mrb[0].mxu0
  %v1458 = vadd.f32 0.0, %v1457
  %1459 = vmatprep.mubr.f32.mxu0 0.0
  %1460 = vmatmul.mubr.f32.gmra.mrb[0].mxu0 %v981
  %v1461 = vpop.f32.mrb[0].mxu0
  %v1462 = vadd.f32 0.0, %v1461
  %v1463 = vpop.f32.mrb[0].mxu0
  %v1464 = vadd.f32 0.0, %v1463
  %1465 = vmatprep.mubr.f32.mxu0 0.0
  %1466 = vmatmul.mubr.f32.gmra.mrb[0].mxu0 %v982
  %v1467 = vpop.f32.mrb[0].mxu0
  %v1468 = vadd.f32 0.0, %v1467
  %v1469 = vpop.f32.mrb[0].mxu0
  %v1470 = vadd.f32 0.0, %v1469
  %1471 = vmatprep.mubr.f32.mxu0 0.0
  %1472 = vmatmul.mubr.f32.gmra.mrb[0].mxu0 %v983
  %v1473 = vpop.f32.mrb[0].mxu0
  %v1474 = vadd.f32 0.0, %v1473
  %v1475 = vpop.f32.mrb[0].mxu0
  %v1476 = vadd.f32 0.0, %v1475
  %1477 = vmatprep.mubr.f32.mxu0 0.0
  %1478 = vmatmul.mubr.f32.gmra.mrb[0].mxu0 %v984
  %v1479 = vpop.f32.mrb[0].mxu0
  %v1480 = vadd.f32 0.0, %v1479
  %v1481 = vpop.f32.mrb[0].mxu0
  %v1482 = vadd.f32 0.0, %v1481
  %1483 = vmatprep.mubr.f32.mxu0 0.0
  %1484 = vmatmul.mubr.f32.gmra.mrb[0].mxu0 %v985
  %v1485 = vpop.f32.mrb[0].mxu0
  %v1486 = vadd.f32 0.0, %v1485
  %v1487 = vpop.f32.mrb[0].mxu0
  %v1488 = vadd.f32 0.0, %v1487
  %1489 = vmatprep.mubr.f32.mxu0 0.0
  %1490 = vmatmul.mubr.f32.gmra.mrb[0].mxu0 %v986
  %v1491 = vpop.f32.mrb[0].mxu0
  %v1492 = vadd.f32 0.0, %v1491
  %v1493 = vpop.f32.mrb[0].mxu0
  %v1494 = vadd.f32 0.0, %v1493
  %1495 = vmatprep.mubr.f32.mxu0 0.0
  %1496 = vmatmul.mubr.f32.gmra.mrb[0].mxu0 %v987
  %v1497 = vpop.f32.mrb[0].mxu0
  %v1498 = vadd.f32 0.0, %v1497
  %v1499 = vpop.f32.mrb[0].mxu0
  %v1500 = vadd.f32 0.0, %v1499
  %1501 = vmatprep.mubr.f32.mxu0 0.0
  %1502 = vmatmul.mubr.f32.gmra.mrb[0].mxu0 %v988
  %v1503 = vpop.f32.mrb[0].mxu0
  %v1504 = vadd.f32 0.0, %v1503
  %v1505 = vpop.f32.mrb[0].mxu0
  %v1506 = vadd.f32 0.0, %v1505
  %1507 = vmatprep.mubr.f32.mxu0 0.0
  %1508 = vmatmul.mubr.f32.gmra.mrb[0].mxu0 %v989
  %v1509 = vpop.f32.mrb[0].mxu0
  %v1510 = vadd.f32 0.0, %v1509
  %v1511 = vpop.f32.mrb[0].mxu0
  %v1512 = vadd.f32 0.0, %v1511
  %1513 = vmatprep.mubr.f32.mxu0 0.0
  %1514 = vmatmul.mubr.f32.gmra.mrb[0].mxu0 %v990
  %v1515 = vpop.f32.mrb[0].mxu0
  %v1516 = vadd.f32 0.0, %v1515
  %v1517 = vpop.f32.mrb[0].mxu0
  %v1518 = vadd.f32 0.0, %v1517
  %1519 = vmatprep.mubr.f32.mxu0 0.0
  %1520 = vmatmul.mubr.f32.gmra.mrb[0].mxu0 %v991
  %v1521 = vpop.f32.mrb[0].mxu0
  %v1522 = vadd.f32 0.0, %v1521
  %v1523 = vpop.f32.mrb[0].mxu0
  %v1524 = vadd.f32 0.0, %v1523
  %1525 = vmatprep.mubr.f32.mxu0 0.0
  %1526 = vmatmul.mubr.f32.gmra.mrb[0].mxu0 %v992
  %v1527 = vpop.f32.mrb[0].mxu0
  %v1528 = vadd.f32 0.0, %v1527
  %v1529 = vpop.f32.mrb[0].mxu0
  %v1530 = vadd.f32 0.0, %v1529
  %1531 = vmatprep.mubr.f32.mxu0 0.0
  %1532 = vmatmul.mubr.f32.gmra.mrb[0].mxu0 %v993
  %v1533 = vpop.f32.mrb[0].mxu0
  %v1534 = vadd.f32 0.0, %v1533
  %v1535 = vpop.f32.mrb[0].mxu0
  %v1536 = vadd.f32 0.0, %v1535
  %1537 = vmatprep.mubr.f32.mxu0 0.0
  %1538 = vmatmul.mubr.f32.gmra.mrb[0].mxu0 %v994
  %v1539 = vpop.f32.mrb[0].mxu0
  %v1540 = vadd.f32 0.0, %v1539
  %v1541 = vpop.f32.mrb[0].mxu0
  %v1542 = vadd.f32 0.0, %v1541
  %1543 = vmatprep.mubr.f32.mxu0 0.0
  %1544 = vmatmul.mubr.f32.gmra.mrb[0].mxu0 %v995
  %v1545 = vpop.f32.mrb[0].mxu0
  %v1546 = vadd.f32 0.0, %v1545
  %v1547 = vpop.f32.mrb[0].mxu0
  %v1548 = vadd.f32 0.0, %v1547
  %1549 = vmatprep.mubr.f32.mxu0 0.0
  %1550 = vmatmul.mubr.f32.gmra.mrb[0].mxu0 %v996
  %v1551 = vpop.f32.mrb[0].mxu0
  %v1552 = vadd.f32 0.0, %v1551
  %v1553 = vpop.f32.mrb[0].mxu0
  %v1554 = vadd.f32 0.0, %v1553
  %1555 = vmatprep.mubr.f32.mxu0 0.0
  %1556 = vmatmul.mubr.f32.gmra.mrb[0].mxu0 %v997
  %v1557 = vpop.f32.mrb[0].mxu0
  %v1558 = vadd.f32 0.0, %v1557
  %v1559 = vpop.f32.mrb[0].mxu0
  %v1560 = vadd.f32 0.0, %v1559
  %1561 = vmatprep.mubr.f32.mxu0 0.0
  %1562 = vmatmul.mubr.f32.gmra.mrb[0].mxu0 %v998
  %v1563 = vpop.f32.mrb[0].mxu0
  %v1564 = vadd.f32 0.0, %v1563
  %v1565 = vpop.f32.mrb[0].mxu0
  %v1566 = vadd.f32 0.0, %v1565
  %1567 = vmatprep.mubr.f32.mxu0 0.0
  %1568 = vmatmul.mubr.f32.gmra.mrb[0].mxu0 %v999
  %v1569 = vpop.f32.mrb[0].mxu0
  %v1570 = vadd.f32 0.0, %v1569
  %v1571 = vpop.f32.mrb[0].mxu0
  %v1572 = vadd.f32 0.0, %v1571
  %1573 = vmatprep.mubr.f32.mxu0 0.0
  %1574 = vmatmul.mubr.f32.gmra.mrb[0].mxu0 %v1000
  %v1575 = vpop.f32.mrb[0].mxu0
  %v1576 = vadd.f32 0.0, %v1575
  %v1577 = vpop.f32.mrb[0].mxu0
  %v1578 = vadd.f32 0.0, %v1577
  %1579 = vmatprep.mubr.f32.mxu0 0.0
  %1580 = vmatmul.mubr.f32.gmra.mrb[0].mxu0 %v1001
  %v1581 = vpop.f32.mrb[0].mxu0
  %v1582 = vadd.f32 0.0, %v1581
  %v1583 = vpop.f32.mrb[0].mxu0
  %v1584 = vadd.f32 0.0, %v1583
  %1585 = vmatprep.mubr.f32.mxu0 0.0
  %1586 = vmatmul.mubr.f32.gmra.mrb[0].mxu0 %v1002
  %v1587 = vpop.f32.mrb[0].mxu0
  %v1588 = vadd.f32 0.0, %v1587
  %v1589 = vpop.f32.mrb[0].mxu0
  %v1590 = vadd.f32 0.0, %v1589
  %1591 = vmatprep.mubr.f32.mxu0 0.0
  %1592 = vmatmul.mubr.f32.gmra.mrb[0].mxu0 %v1003
  %v1593 = vpop.f32.mrb[0].mxu0
  %v1594 = vadd.f32 0.0, %v1593
  %v1595 = vpop.f32.mrb[0].mxu0
  %v1596 = vadd.f32 0.0, %v1595
  %1597 = vmatprep.mubr.f32.mxu0 0.0
  %1598 = vmatmul.mubr.f32.gmra.mrb[0].mxu0 %v1004
  %v1599 = vpop.f32.mrb[0].mxu0
  %v1600 = vadd.f32 0.0, %v1599
  %v1601 = vpop.f32.mrb[0].mxu0
  %v1602 = vadd.f32 0.0, %v1601
  %1603 = vdwg.mxu0
  %1604 = vmatprep.subr.mxu0 0.0
  %1605 = vmatpush1.msra.mxu0 %v1007
  %1606 = vmatprep.subr.mxu0 0.0
  %1607 = vmatpush1.msra.mxu0 %v1010
  %1608 = vmatprep.subr.mxu0 0.0
  %1609 = vmatpush1.msra.mxu0 %v1013
  %1610 = vmatprep.subr.mxu0 0.0
  %1611 = vmatpush1.msra.mxu0 %v1016
  %1612 = vmatprep.subr.mxu0 0.0
  %1613 = vmatpush1.msra.mxu0 %v1019
  %1614 = vmatprep.subr.mxu0 0.0
  %1615 = vmatpush1.msra.mxu0 %v1022
  %1616 = vmatprep.subr.mxu0 0.0
  %1617 = vmatpush1.msra.mxu0 %v1025
  %1618 = vmatprep.subr.mxu0 0.0
  %1619 = vmatpush1.msra.mxu0 %v1028
  %1620 = vmatprep.subr.mxu0 0.0
  %1621 = vmatpush1.msra.mxu0 %v1031
  %1622 = vmatprep.subr.mxu0 0.0
  %1623 = vmatpush1.msra.mxu0 %v1034
  %1624 = vmatprep.subr.mxu0 0.0
  %1625 = vmatpush1.msra.mxu0 %v1037
  %1626 = vmatprep.subr.mxu0 0.0
  %1627 = vmatpush1.msra.mxu0 %v1040
  %1628 = vmatprep.subr.mxu0 0.0
  %1629 = vmatpush1.msra.mxu0 %v1043
  %1630 = vmatprep.subr.mxu0 0.0
  %1631 = vmatpush1.msra.mxu0 %v1046
  %1632 = vmatprep.subr.mxu0 0.0
  %1633 = vmatpush1.msra.mxu0 %v1049
  %1634 = vmatprep.subr.mxu0 0.0
  %1635 = vmatpush1.msra.mxu0 %v1052
  %1636 = vmatprep.subr.mxu0 0.0
  %1637 = vmatpush1.msra.mxu0 0.0
  %1638 = vmatprep.subr.mxu0 0.0
  %1639 = vmatpush1.msra.mxu0 0.0
  %1640 = vmatprep.subr.mxu0 0.0
  %1641 = vmatpush1.msra.mxu0 0.0
  %1642 = vmatprep.subr.mxu0 0.0
  %1643 = vmatpush1.msra.mxu0 0.0
  %1644 = vmatprep.subr.mxu0 0.0
  %1645 = vmatpush1.msra.mxu0 0.0
  %1646 = vmatprep.subr.mxu0 0.0
  %1647 = vmatpush1.msra.mxu0 0.0
  %1648 = vmatprep.subr.mxu0 0.0
  %1649 = vmatpush1.msra.mxu0 0.0
  %1650 = vmatprep.subr.mxu0 0.0
  %1651 = vmatpush1.msra.mxu0 0.0
  %1652 = vmatprep.subr.mxu0 0.0
  %1653 = vmatpush1.msra.mxu0 0.0
  %1654 = vmatprep.subr.mxu0 0.0
  %1655 = vmatpush1.msra.mxu0 0.0
  %1656 = vmatprep.subr.mxu0 0.0
  %1657 = vmatpush1.msra.mxu0 0.0
  %1658 = vmatprep.subr.mxu0 0.0
  %1659 = vmatpush1.msra.mxu0 0.0
  %1660 = vmatprep.subr.mxu0 0.0
  %1661 = vmatpush1.msra.mxu0 0.0
  %1662 = vmatprep.subr.mxu0 0.0
  %1663 = vmatpush1.msra.mxu0 0.0
  %1664 = vmatprep.subr.mxu0 0.0
  %1665 = vmatpush1.msra.mxu0 0.0
  %1666 = vmatprep.subr.mxu0 0.0
  %1667 = vmatpush1.msra.mxu0 0.0
  %1668 = vmatprep.mubr.f32.mxu0 0.0
  %1669 = vmatmul.mubr.f32.gmra.mrb[0].mxu0 %v924
  %v1670 = vpop.f32.mrb[0].mxu0
  %v1671 = vadd.f32 0.0, %v1670
  %v1672 = vpop.f32.mrb[0].mxu0
  %1673 = vmatprep.mubr.f32.mxu0 0.0
  %1674 = vmatmul.mubr.f32.gmra.mrb[0].mxu0 %v925
  %v1675 = vpop.f32.mrb[0].mxu0
  %v1676 = vadd.f32 0.0, %v1675
  %v1677 = vpop.f32.mrb[0].mxu0
  %1678 = vmatprep.mubr.f32.mxu0 0.0
  %1679 = vmatmul.mubr.f32.gmra.mrb[0].mxu0 %v926
  %v1680 = vpop.f32.mrb[0].mxu0
  %v1681 = vadd.f32 0.0, %v1680
  %v1682 = vpop.f32.mrb[0].mxu0
  %1683 = vmatprep.mubr.f32.mxu0 0.0
  %1684 = vmatmul.mubr.f32.gmra.mrb[0].mxu0 %v927
  %v1685 = vpop.f32.mrb[0].mxu0
  %v1686 = vadd.f32 0.0, %v1685
  %v1687 = vpop.f32.mrb[0].mxu0
  %1688 = vmatprep.mubr.f32.mxu0 0.0
  %1689 = vmatmul.mubr.f32.gmra.mrb[0].mxu0 %v928
  %v1690 = vpop.f32.mrb[0].mxu0
  %v1691 = vadd.f32 0.0, %v1690
  %v1692 = vpop.f32.mrb[0].mxu0
  %1693 = vmatprep.mubr.f32.mxu0 0.0
  %1694 = vmatmul.mubr.f32.gmra.mrb[0].mxu0 %v929
  %v1695 = vpop.f32.mrb[0].mxu0
  %v1696 = vadd.f32 0.0, %v1695
  %v1697 = vpop.f32.mrb[0].mxu0
  %1698 = vmatprep.mubr.f32.mxu0 0.0
  %1699 = vmatmul.mubr.f32.gmra.mrb[0].mxu0 %v930
  %v1700 = vpop.f32.mrb[0].mxu0
  %v1701 = vadd.f32 0.0, %v1700
  %v1702 = vpop.f32.mrb[0].mxu0
  %1703 = vmatprep.mubr.f32.mxu0 0.0
  %1704 = vmatmul.mubr.f32.gmra.mrb[0].mxu0 %v931
  %v1705 = vpop.f32.mrb[0].mxu0
  %v1706 = vadd.f32 0.0, %v1705
  %v1707 = vpop.f32.mrb[0].mxu0
  %1708 = vmatprep.mubr.f32.mxu0 0.0
  %1709 = vmatmul.mubr.f32.gmra.mrb[0].mxu0 %v932
  %v1710 = vpop.f32.mrb[0].mxu0
  %v1711 = vadd.f32 0.0, %v1710
  %v1712 = vpop.f32.mrb[0].mxu0
  %1713 = vmatprep.mubr.f32.mxu0 0.0
  %1714 = vmatmul.mubr.f32.gmra.mrb[0].mxu0 %v933
  %v1715 = vpop.f32.mrb[0].mxu0
  %v1716 = vadd.f32 0.0, %v1715
  %v1717 = vpop.f32.mrb[0].mxu0
  %1718 = vmatprep.mubr.f32.mxu0 0.0
  %1719 = vmatmul.mubr.f32.gmra.mrb[0].mxu0 %v934
  %v1720 = vpop.f32.mrb[0].mxu0
  %v1721 = vadd.f32 0.0, %v1720
  %v1722 = vpop.f32.mrb[0].mxu0
  %1723 = vmatprep.mubr.f32.mxu0 0.0
  %1724 = vmatmul.mubr.f32.gmra.mrb[0].mxu0 %v935
  %v1725 = vpop.f32.mrb[0].mxu0
  %v1726 = vadd.f32 0.0, %v1725
  %v1727 = vpop.f32.mrb[0].mxu0
  %1728 = vmatprep.mubr.f32.mxu0 0.0
  %1729 = vmatmul.mubr.f32.gmra.mrb[0].mxu0 %v936
  %v1730 = vpop.f32.mrb[0].mxu0
  %v1731 = vadd.f32 0.0, %v1730
  %v1732 = vpop.f32.mrb[0].mxu0
  %1733 = vmatprep.mubr.f32.mxu0 0.0
  %1734 = vmatmul.mubr.f32.gmra.mrb[0].mxu0 %v937
  %v1735 = vpop.f32.mrb[0].mxu0
  %v1736 = vadd.f32 0.0, %v1735
  %v1737 = vpop.f32.mrb[0].mxu0
  %1738 = vmatprep.mubr.f32.mxu0 0.0
  %1739 = vmatmul.mubr.f32.gmra.mrb[0].mxu0 %v938
  %v1740 = vpop.f32.mrb[0].mxu0
  %v1741 = vadd.f32 0.0, %v1740
  %v1742 = vpop.f32.mrb[0].mxu0
  %1743 = vmatprep.mubr.f32.mxu0 0.0
  %1744 = vmatmul.mubr.f32.gmra.mrb[0].mxu0 %v939
  %v1745 = vpop.f32.mrb[0].mxu0
  %v1746 = vadd.f32 0.0, %v1745
  %v1747 = vpop.f32.mrb[0].mxu0
  %1748 = vmatprep.mubr.f32.mxu0 0.0
  %1749 = vmatmul.mubr.f32.gmra.mrb[0].mxu0 %v940
  %v1750 = vpop.f32.mrb[0].mxu0
  %v1751 = vadd.f32 0.0, %v1750
  %v1752 = vpop.f32.mrb[0].mxu0
  %1753 = vmatprep.mubr.f32.mxu0 0.0
  %1754 = vmatmul.mubr.f32.gmra.mrb[0].mxu0 %v941
  %v1755 = vpop.f32.mrb[0].mxu0
  %v1756 = vadd.f32 0.0, %v1755
  %v1757 = vpop.f32.mrb[0].mxu0
  %1758 = vmatprep.mubr.f32.mxu0 0.0
  %1759 = vmatmul.mubr.f32.gmra.mrb[0].mxu0 %v942
  %v1760 = vpop.f32.mrb[0].mxu0
  %v1761 = vadd.f32 0.0, %v1760
  %v1762 = vpop.f32.mrb[0].mxu0
  %1763 = vmatprep.mubr.f32.mxu0 0.0
  %1764 = vmatmul.mubr.f32.gmra.mrb[0].mxu0 %v943
  %v1765 = vpop.f32.mrb[0].mxu0
  %v1766 = vadd.f32 0.0, %v1765
  %v1767 = vpop.f32.mrb[0].mxu0
  %1768 = vmatprep.mubr.f32.mxu0 0.0
  %1769 = vmatmul.mubr.f32.gmra.mrb[0].mxu0 %v944
  %v1770 = vpop.f32.mrb[0].mxu0
  %v1771 = vadd.f32 0.0, %v1770
  %v1772 = vpop.f32.mrb[0].mxu0
  %1773 = vmatprep.mubr.f32.mxu0 0.0
  %1774 = vmatmul.mubr.f32.gmra.mrb[0].mxu0 %v945
  %v1775 = vpop.f32.mrb[0].mxu0
  %v1776 = vadd.f32 0.0, %v1775
  %v1777 = vpop.f32.mrb[0].mxu0
  %1778 = vmatprep.mubr.f32.mxu0 0.0
  %1779 = vmatmul.mubr.f32.gmra.mrb[0].mxu0 %v946
  %v1780 = vpop.f32.mrb[0].mxu0
  %v1781 = vadd.f32 0.0, %v1780
  %v1782 = vpop.f32.mrb[0].mxu0
  %1783 = vmatprep.mubr.f32.mxu0 0.0
  %1784 = vmatmul.mubr.f32.gmra.mrb[0].mxu0 %v947
  %v1785 = vpop.f32.mrb[0].mxu0
  %v1786 = vadd.f32 0.0, %v1785
  %v1787 = vpop.f32.mrb[0].mxu0
  %1788 = vmatprep.mubr.f32.mxu0 0.0
  %1789 = vmatmul.mubr.f32.gmra.mrb[0].mxu0 %v948
  %v1790 = vpop.f32.mrb[0].mxu0
  %v1791 = vadd.f32 0.0, %v1790
  %v1792 = vpop.f32.mrb[0].mxu0
  %1793 = vmatprep.mubr.f32.mxu0 0.0
  %1794 = vmatmul.mubr.f32.gmra.mrb[0].mxu0 %v949
  %v1795 = vpop.f32.mrb[0].mxu0
  %v1796 = vadd.f32 0.0, %v1795
  %v1797 = vpop.f32.mrb[0].mxu0
  %1798 = vmatprep.mubr.f32.mxu0 0.0
  %1799 = vmatmul.mubr.f32.gmra.mrb[0].mxu0 %v950
  %v1800 = vpop.f32.mrb[0].mxu0
  %v1801 = vadd.f32 0.0, %v1800
  %v1802 = vpop.f32.mrb[0].mxu0
  %1803 = vmatprep.mubr.f32.mxu0 0.0
  %1804 = vmatmul.mubr.f32.gmra.mrb[0].mxu0 %v951
  %v1805 = vpop.f32.mrb[0].mxu0
  %v1806 = vadd.f32 0.0, %v1805
  %v1807 = vpop.f32.mrb[0].mxu0
  %1808 = vmatprep.mubr.f32.mxu0 0.0
  %1809 = vmatmul.mubr.f32.gmra.mrb[0].mxu0 %v952
  %v1810 = vpop.f32.mrb[0].mxu0
  %v1811 = vadd.f32 0.0, %v1810
  %v1812 = vpop.f32.mrb[0].mxu0
  %1813 = vmatprep.mubr.f32.mxu0 0.0
  %1814 = vmatmul.mubr.f32.gmra.mrb[0].mxu0 %v953
  %v1815 = vpop.f32.mrb[0].mxu0
  %v1816 = vadd.f32 0.0, %v1815
  %v1817 = vpop.f32.mrb[0].mxu0
  %1818 = vmatprep.mubr.f32.mxu0 0.0
  %1819 = vmatmul.mubr.f32.gmra.mrb[0].mxu0 %v954
  %v1820 = vpop.f32.mrb[0].mxu0
  %v1821 = vadd.f32 0.0, %v1820
  %v1822 = vpop.f32.mrb[0].mxu0
  %1823 = vmatprep.mubr.f32.mxu0 0.0
  %1824 = vmatmul.mubr.f32.gmra.mrb[0].mxu0 %v955
  %v1825 = vpop.f32.mrb[0].mxu0
  %v1826 = vadd.f32 0.0, %v1825
  %v1827 = vpop.f32.mrb[0].mxu0
  %1828 = vmatprep.mubr.f32.mxu0 0.0
  %1829 = vmatmul.mubr.f32.gmra.mrb[0].mxu0 %v956
  %v1830 = vpop.f32.mrb[0].mxu0
  %v1831 = vadd.f32 0.0, %v1830
  %v1832 = vpop.f32.mrb[0].mxu0
  %1833 = vmatprep.mubr.f32.mxu0 0.0
  %1834 = vmatmul.mubr.f32.gmra.mrb[0].mxu0 %v957
  %v1835 = vpop.f32.mrb[0].mxu0
  %v1836 = vadd.f32 0.0, %v1835
  %v1837 = vpop.f32.mrb[0].mxu0
  %1838 = vmatprep.mubr.f32.mxu0 0.0
  %1839 = vmatmul.mubr.f32.gmra.mrb[0].mxu0 %v958
  %v1840 = vpop.f32.mrb[0].mxu0
  %v1841 = vadd.f32 0.0, %v1840
  %v1842 = vpop.f32.mrb[0].mxu0
  %1843 = vmatprep.mubr.f32.mxu0 0.0
  %1844 = vmatmul.mubr.f32.gmra.mrb[0].mxu0 %v959
  %v1845 = vpop.f32.mrb[0].mxu0
  %v1846 = vadd.f32 0.0, %v1845
  %v1847 = vpop.f32.mrb[0].mxu0
  %1848 = vmatprep.mubr.f32.mxu0 0.0
  %1849 = vmatmul.mubr.f32.gmra.mrb[0].mxu0 %v960
  %v1850 = vpop.f32.mrb[0].mxu0
  %v1851 = vadd.f32 0.0, %v1850
  %v1852 = vpop.f32.mrb[0].mxu0
  %1853 = vmatprep.mubr.f32.mxu0 0.0
  %1854 = vmatmul.mubr.f32.gmra.mrb[0].mxu0 %v961
  %v1855 = vpop.f32.mrb[0].mxu0
  %v1856 = vadd.f32 0.0, %v1855
  %v1857 = vpop.f32.mrb[0].mxu0
  %1858 = vmatprep.mubr.f32.mxu0 0.0
  %1859 = vmatmul.mubr.f32.gmra.mrb[0].mxu0 %v962
  %v1860 = vpop.f32.mrb[0].mxu0
  %v1861 = vadd.f32 0.0, %v1860
  %v1862 = vpop.f32.mrb[0].mxu0
  %1863 = vmatprep.mubr.f32.mxu0 0.0
  %1864 = vmatmul.mubr.f32.gmra.mrb[0].mxu0 %v963
  %v1865 = vpop.f32.mrb[0].mxu0
  %v1866 = vadd.f32 0.0, %v1865
  %v1867 = vpop.f32.mrb[0].mxu0
  %1868 = vmatprep.mubr.f32.mxu0 0.0
  %1869 = vmatmul.mubr.f32.gmra.mrb[0].mxu0 %v964
  %v1870 = vpop.f32.mrb[0].mxu0
  %v1871 = vadd.f32 0.0, %v1870
  %v1872 = vpop.f32.mrb[0].mxu0
  %1873 = vmatprep.mubr.f32.mxu0 0.0
  %1874 = vmatmul.mubr.f32.gmra.mrb[0].mxu0 %v965
  %v1875 = vpop.f32.mrb[0].mxu0
  %v1876 = vadd.f32 0.0, %v1875
  %v1877 = vpop.f32.mrb[0].mxu0
  %1878 = vmatprep.mubr.f32.mxu0 0.0
  %1879 = vmatmul.mubr.f32.gmra.mrb[0].mxu0 %v966
  %v1880 = vpop.f32.mrb[0].mxu0
  %v1881 = vadd.f32 0.0, %v1880
  %v1882 = vpop.f32.mrb[0].mxu0
  %1883 = vmatprep.mubr.f32.mxu0 0.0
  %1884 = vmatmul.mubr.f32.gmra.mrb[0].mxu0 %v967
  %v1885 = vpop.f32.mrb[0].mxu0
  %v1886 = vadd.f32 0.0, %v1885
  %v1887 = vpop.f32.mrb[0].mxu0
  %1888 = vmatprep.mubr.f32.mxu0 0.0
  %1889 = vmatmul.mubr.f32.gmra.mrb[0].mxu0 %v968
  %v1890 = vpop.f32.mrb[0].mxu0
  %v1891 = vadd.f32 0.0, %v1890
  %v1892 = vpop.f32.mrb[0].mxu0
  %1893 = vmatprep.mubr.f32.mxu0 0.0
  %1894 = vmatmul.mubr.f32.gmra.mrb[0].mxu0 %v969
  %v1895 = vpop.f32.mrb[0].mxu0
  %v1896 = vadd.f32 0.0, %v1895
  %v1897 = vpop.f32.mrb[0].mxu0
  %1898 = vmatprep.mubr.f32.mxu0 0.0
  %1899 = vmatmul.mubr.f32.gmra.mrb[0].mxu0 %v970
  %v1900 = vpop.f32.mrb[0].mxu0
  %v1901 = vadd.f32 0.0, %v1900
  %v1902 = vpop.f32.mrb[0].mxu0
  %1903 = vmatprep.mubr.f32.mxu0 0.0
  %1904 = vmatmul.mubr.f32.gmra.mrb[0].mxu0 %v971
  %v1905 = vpop.f32.mrb[0].mxu0
  %v1906 = vadd.f32 0.0, %v1905
  %v1907 = vpop.f32.mrb[0].mxu0
  %1908 = vmatprep.mubr.f32.mxu0 0.0
  %1909 = vmatmul.mubr.f32.gmra.mrb[0].mxu0 %v972
  %v1910 = vpop.f32.mrb[0].mxu0
  %v1911 = vadd.f32 0.0, %v1910
  %v1912 = vpop.f32.mrb[0].mxu0
  %1913 = vmatprep.mubr.f32.mxu0 0.0
  %1914 = vmatmul.mubr.f32.gmra.mrb[0].mxu0 %v973
  %v1915 = vpop.f32.mrb[0].mxu0
  %v1916 = vadd.f32 0.0, %v1915
  %v1917 = vpop.f32.mrb[0].mxu0
  %1918 = vmatprep.mubr.f32.mxu0 0.0
  %1919 = vmatmul.mubr.f32.gmra.mrb[0].mxu0 %v974
  %v1920 = vpop.f32.mrb[0].mxu0
  %v1921 = vadd.f32 0.0, %v1920
  %v1922 = vpop.f32.mrb[0].mxu0
  %1923 = vmatprep.mubr.f32.mxu0 0.0
  %1924 = vmatmul.mubr.f32.gmra.mrb[0].mxu0 %v975
  %v1925 = vpop.f32.mrb[0].mxu0
  %v1926 = vadd.f32 0.0, %v1925
  %v1927 = vpop.f32.mrb[0].mxu0
  %1928 = vmatprep.mubr.f32.mxu0 0.0
  %1929 = vmatmul.mubr.f32.gmra.mrb[0].mxu0 %v976
  %v1930 = vpop.f32.mrb[0].mxu0
  %v1931 = vadd.f32 0.0, %v1930
  %v1932 = vpop.f32.mrb[0].mxu0
  %1933 = vmatprep.mubr.f32.mxu0 0.0
  %1934 = vmatmul.mubr.f32.gmra.mrb[0].mxu0 %v977
  %v1935 = vpop.f32.mrb[0].mxu0
  %v1936 = vadd.f32 0.0, %v1935
  %v1937 = vpop.f32.mrb[0].mxu0
  %1938 = vmatprep.mubr.f32.mxu0 0.0
  %1939 = vmatmul.mubr.f32.gmra.mrb[0].mxu0 %v978
  %v1940 = vpop.f32.mrb[0].mxu0
  %v1941 = vadd.f32 0.0, %v1940
  %v1942 = vpop.f32.mrb[0].mxu0
  %1943 = vmatprep.mubr.f32.mxu0 0.0
  %1944 = vmatmul.mubr.f32.gmra.mrb[0].mxu0 %v979
  %v1945 = vpop.f32.mrb[0].mxu0
  %v1946 = vadd.f32 0.0, %v1945
  %v1947 = vpop.f32.mrb[0].mxu0
  %1948 = vmatprep.mubr.f32.mxu0 0.0
  %1949 = vmatmul.mubr.f32.gmra.mrb[0].mxu0 %v980
  %v1950 = vpop.f32.mrb[0].mxu0
  %v1951 = vadd.f32 0.0, %v1950
  %v1952 = vpop.f32.mrb[0].mxu0
  %1953 = vmatprep.mubr.f32.mxu0 0.0
  %1954 = vmatmul.mubr.f32.gmra.mrb[0].mxu0 %v981
  %v1955 = vpop.f32.mrb[0].mxu0
  %v1956 = vadd.f32 0.0, %v1955
  %v1957 = vpop.f32.mrb[0].mxu0
  %1958 = vmatprep.mubr.f32.mxu0 0.0
  %1959 = vmatmul.mubr.f32.gmra.mrb[0].mxu0 %v982
  %v1960 = vpop.f32.mrb[0].mxu0
  %v1961 = vadd.f32 0.0, %v1960
  %v1962 = vpop.f32.mrb[0].mxu0
  %1963 = vmatprep.mubr.f32.mxu0 0.0
  %1964 = vmatmul.mubr.f32.gmra.mrb[0].mxu0 %v983
  %v1965 = vpop.f32.mrb[0].mxu0
  %v1966 = vadd.f32 0.0, %v1965
  %v1967 = vpop.f32.mrb[0].mxu0
  %1968 = vmatprep.mubr.f32.mxu0 0.0
  %1969 = vmatmul.mubr.f32.gmra.mrb[0].mxu0 %v984
  %v1970 = vpop.f32.mrb[0].mxu0
  %v1971 = vadd.f32 0.0, %v1970
  %v1972 = vpop.f32.mrb[0].mxu0
  %1973 = vmatprep.mubr.f32.mxu0 0.0
  %1974 = vmatmul.mubr.f32.gmra.mrb[0].mxu0 %v985
  %v1975 = vpop.f32.mrb[0].mxu0
  %v1976 = vadd.f32 0.0, %v1975
  %v1977 = vpop.f32.mrb[0].mxu0
  %1978 = vmatprep.mubr.f32.mxu0 0.0
  %1979 = vmatmul.mubr.f32.gmra.mrb[0].mxu0 %v986
  %v1980 = vpop.f32.mrb[0].mxu0
  %v1981 = vadd.f32 0.0, %v1980
  %v1982 = vpop.f32.mrb[0].mxu0
  %1983 = vmatprep.mubr.f32.mxu0 0.0
  %1984 = vmatmul.mubr.f32.gmra.mrb[0].mxu0 %v987
  %v1985 = vpop.f32.mrb[0].mxu0
  %v1986 = vadd.f32 0.0, %v1985
  %v1987 = vpop.f32.mrb[0].mxu0
  %1988 = vmatprep.mubr.f32.mxu0 0.0
  %1989 = vmatmul.mubr.f32.gmra.mrb[0].mxu0 %v988
  %v1990 = vpop.f32.mrb[0].mxu0
  %v1991 = vadd.f32 0.0, %v1990
  %v1992 = vpop.f32.mrb[0].mxu0
  %1993 = vmatprep.mubr.f32.mxu0 0.0
  %1994 = vmatmul.mubr.f32.gmra.mrb[0].mxu0 %v989
  %v1995 = vpop.f32.mrb[0].mxu0
  %v1996 = vadd.f32 0.0, %v1995
  %v1997 = vpop.f32.mrb[0].mxu0
  %1998 = vmatprep.mubr.f32.mxu0 0.0
  %1999 = vmatmul.mubr.f32.gmra.mrb[0].mxu0 %v990
  %v2000 = vpop.f32.mrb[0].mxu0
  %v2001 = vadd.f32 0.0, %v2000
  %v2002 = vpop.f32.mrb[0].mxu0
  %2003 = vmatprep.mubr.f32.mxu0 0.0
  %2004 = vmatmul.mubr.f32.gmra.mrb[0].mxu0 %v991
  %v2005 = vpop.f32.mrb[0].mxu0
  %v2006 = vadd.f32 0.0, %v2005
  %v2007 = vpop.f32.mrb[0].mxu0
  %2008 = vmatprep.mubr.f32.mxu0 0.0
  %2009 = vmatmul.mubr.f32.gmra.mrb[0].mxu0 %v992
  %v2010 = vpop.f32.mrb[0].mxu0
  %v2011 = vadd.f32 0.0, %v2010
  %v2012 = vpop.f32.mrb[0].mxu0
  %2013 = vmatprep.mubr.f32.mxu0 0.0
  %2014 = vmatmul.mubr.f32.gmra.mrb[0].mxu0 %v993
  %v2015 = vpop.f32.mrb[0].mxu0
  %v2016 = vadd.f32 0.0, %v2015
  %v2017 = vpop.f32.mrb[0].mxu0
  %2018 = vmatprep.mubr.f32.mxu0 0.0
  %2019 = vmatmul.mubr.f32.gmra.mrb[0].mxu0 %v994
  %v2020 = vpop.f32.mrb[0].mxu0
  %v2021 = vadd.f32 0.0, %v2020
  %v2022 = vpop.f32.mrb[0].mxu0
  %2023 = vmatprep.mubr.f32.mxu0 0.0
  %2024 = vmatmul.mubr.f32.gmra.mrb[0].mxu0 %v995
  %v2025 = vpop.f32.mrb[0].mxu0
  %v2026 = vadd.f32 0.0, %v2025
  %v2027 = vpop.f32.mrb[0].mxu0
  %2028 = vmatprep.mubr.f32.mxu0 0.0
  %2029 = vmatmul.mubr.f32.gmra.mrb[0].mxu0 %v996
  %v2030 = vpop.f32.mrb[0].mxu0
  %v2031 = vadd.f32 0.0, %v2030
  %v2032 = vpop.f32.mrb[0].mxu0
  %2033 = vmatprep.mubr.f32.mxu0 0.0
  %2034 = vmatmul.mubr.f32.gmra.mrb[0].mxu0 %v997
  %v2035 = vpop.f32.mrb[0].mxu0
  %v2036 = vadd.f32 0.0, %v2035
  %v2037 = vpop.f32.mrb[0].mxu0
  %2038 = vmatprep.mubr.f32.mxu0 0.0
  %2039 = vmatmul.mubr.f32.gmra.mrb[0].mxu0 %v998
  %v2040 = vpop.f32.mrb[0].mxu0
  %v2041 = vadd.f32 0.0, %v2040
  %v2042 = vpop.f32.mrb[0].mxu0
  %2043 = vmatprep.mubr.f32.mxu0 0.0
  %2044 = vmatmul.mubr.f32.gmra.mrb[0].mxu0 %v999
  %v2045 = vpop.f32.mrb[0].mxu0
  %v2046 = vadd.f32 0.0, %v2045
  %v2047 = vpop.f32.mrb[0].mxu0
  %2048 = vmatprep.mubr.f32.mxu0 0.0
  %2049 = vmatmul.mubr.f32.gmra.mrb[0].mxu0 %v1000
  %v2050 = vpop.f32.mrb[0].mxu0
  %v2051 = vadd.f32 0.0, %v2050
  %v2052 = vpop.f32.mrb[0].mxu0
  %2053 = vmatprep.mubr.f32.mxu0 0.0
  %2054 = vmatmul.mubr.f32.gmra.mrb[0].mxu0 %v1001
  %v2055 = vpop.f32.mrb[0].mxu0
  %v2056 = vadd.f32 0.0, %v2055
  %v2057 = vpop.f32.mrb[0].mxu0
  %2058 = vmatprep.mubr.f32.mxu0 0.0
  %2059 = vmatmul.mubr.f32.gmra.mrb[0].mxu0 %v1002
  %v2060 = vpop.f32.mrb[0].mxu0
  %v2061 = vadd.f32 0.0, %v2060
  %v2062 = vpop.f32.mrb[0].mxu0
  %2063 = vmatprep.mubr.f32.mxu0 0.0
  %2064 = vmatmul.mubr.f32.gmra.mrb[0].mxu0 %v1003
  %v2065 = vpop.f32.mrb[0].mxu0
  %v2066 = vadd.f32 0.0, %v2065
  %v2067 = vpop.f32.mrb[0].mxu0
  %2068 = vmatprep.mubr.f32.mxu0 0.0
  %2069 = vmatmul.mubr.f32.gmra.mrb[0].mxu0 %v1004
  %v2070 = vpop.f32.mrb[0].mxu0
  %v2071 = vadd.f32 0.0, %v2070
  %v2072 = vpop.f32.mrb[0].mxu0
  %2073 = vdwg.mxu0
  %v2074 = vrot.slane %v1120, 6
  %v2075 = vrot.slane %v1126, 6
  %v2076 = vrot.slane %v1132, 6
  %v2077 = vrot.slane %v1138, 6
  %v2078 = vrot.slane %v1144, 6
  %v2079 = vrot.slane %v1150, 6
  %v2080 = vrot.slane %v1156, 6
  %v2081 = vrot.slane %v1162, 6
  %v2082 = vrot.slane %v1168, 6
  %v2083 = vrot.slane %v1174, 6
  %v2084 = vrot.slane %v1180, 6
  %v2085 = vrot.slane %v1186, 6
  %v2086 = vrot.slane %v1192, 6
  %v2087 = vrot.slane %v1198, 6
  %v2088 = vrot.slane %v1204, 6
  %v2089 = vrot.slane %v1210, 6
  %v2090 = vrot.slane %v1216, 6
  %v2091 = vrot.slane %v1222, 6
  %v2092 = vrot.slane %v1228, 6
  %v2093 = vrot.slane %v1234, 6
  %v2094 = vrot.slane %v1240, 6
  %v2095 = vrot.slane %v1246, 6
  %v2096 = vrot.slane %v1252, 6
  %v2097 = vrot.slane %v1258, 6
  %v2098 = vrot.slane %v1264, 6
  %v2099 = vrot.slane %v1270, 6
  %v2100 = vrot.slane %v1276, 6
  %v2101 = vrot.slane %v1282, 6
  %v2102 = vrot.slane %v1288, 6
  %v2103 = vrot.slane %v1294, 6
  %v2104 = vrot.slane %v1300, 6
  %v2105 = vrot.slane %v1306, 6
  %v2106 = vrot.slane %v1312, 6
  %v2107 = vrot.slane %v1318, 6
  %v2108 = vrot.slane %v1324, 6
  %v2109 = vrot.slane %v1330, 6
  %v2110 = vrot.slane %v1336, 6
  %v2111 = vrot.slane %v1342, 6
  %v2112 = vrot.slane %v1348, 6
  %v2113 = vrot.slane %v1354, 6
  %v2114 = vrot.slane %v1360, 6
  %v2115 = vrot.slane %v1366, 6
  %v2116 = vrot.slane %v1372, 6
  %v2117 = vrot.slane %v1378, 6
  %v2118 = vrot.slane %v1384, 6
  %v2119 = vrot.slane %v1390, 6
  %v2120 = vrot.slane %v1396, 6
  %v2121 = vrot.slane %v1402, 6
  %v2122 = vrot.slane %v1408, 6
  %v2123 = vrot.slane %v1414, 6
  %v2124 = vrot.slane %v1420, 6
  %v2125 = vrot.slane %v1426, 6
  %v2126 = vrot.slane %v1432, 6
  %v2127 = vrot.slane %v1438, 6
  %v2128 = vrot.slane %v1444, 6
  %v2129 = vrot.slane %v1450, 6
  %v2130 = vrot.slane %v1456, 6
  %v2131 = vrot.slane %v1462, 6
  %v2132 = vrot.slane %v1468, 6
  %v2133 = vrot.slane %v1474, 6
  %v2134 = vrot.slane %v1480, 6
  %v2135 = vrot.slane %v1486, 6
  %v2136 = vrot.slane %v1492, 6
  %v2137 = vrot.slane %v1498, 6
  %v2138 = vrot.slane %v1504, 6
  %v2139 = vrot.slane %v1510, 6
  %v2140 = vrot.slane %v1516, 6
  %v2141 = vrot.slane %v1522, 6
  %v2142 = vrot.slane %v1528, 6
  %v2143 = vrot.slane %v1534, 6
  %v2144 = vrot.slane %v1540, 6
  %v2145 = vrot.slane %v1546, 6
  %v2146 = vrot.slane %v1552, 6
  %v2147 = vrot.slane %v1558, 6
  %v2148 = vrot.slane %v1564, 6
  %v2149 = vrot.slane %v1570, 6
  %v2150 = vrot.slane %v1576, 6
  %v2151 = vrot.slane %v1582, 6
  %v2152 = vrot.slane %v1588, 6
  %v2153 = vrot.slane %v1594, 6
  %v2154 = vrot.slane %v1600, 6
  %vm2155 = vcmp.lt.s32.totalorder %v273, 2
  %v2156 = vsel %vm2155, %v2153, %v2154
  %v2157 = vsel %vm2155, %v2152, %v2153
  %v2158 = vsel %vm2155, %v2151, %v2152
  %v2159 = vsel %vm2155, %v2150, %v2151
  %v2160 = vsel %vm2155, %v2149, %v2150
  %v2161 = vsel %vm2155, %v2148, %v2149
  %v2162 = vsel %vm2155, %v2147, %v2148
  %v2163 = vsel %vm2155, %v2146, %v2147
  %v2164 = vsel %vm2155, %v2145, %v2146
  %v2165 = vsel %vm2155, %v2144, %v2145
  %v2166 = vsel %vm2155, %v2143, %v2144
  %v2167 = vsel %vm2155, %v2142, %v2143
  %v2168 = vsel %vm2155, %v2141, %v2142
  %v2169 = vsel %vm2155, %v2140, %v2141
  %v2170 = vsel %vm2155, %v2139, %v2140
  %v2171 = vsel %vm2155, %v2138, %v2139
  %v2172 = vsel %vm2155, %v2137, %v2138
  %v2173 = vsel %vm2155, %v2136, %v2137
  %v2174 = vsel %vm2155, %v2135, %v2136
  %v2175 = vsel %vm2155, %v2134, %v2135
  %v2176 = vsel %vm2155, %v2133, %v2134
  %v2177 = vsel %vm2155, %v2132, %v2133
  %v2178 = vsel %vm2155, %v2131, %v2132
  %v2179 = vsel %vm2155, %v2130, %v2131
  %v2180 = vsel %vm2155, %v2129, %v2130
  %v2181 = vsel %vm2155, %v2128, %v2129
  %v2182 = vsel %vm2155, %v2127, %v2128
  %v2183 = vsel %vm2155, %v2126, %v2127
  %v2184 = vsel %vm2155, %v2125, %v2126
  %v2185 = vsel %vm2155, %v2124, %v2125
  %v2186 = vsel %vm2155, %v2123, %v2124
  %v2187 = vsel %vm2155, %v2122, %v2123
  %v2188 = vsel %vm2155, %v2121, %v2122
  %v2189 = vsel %vm2155, %v2120, %v2121
  %v2190 = vsel %vm2155, %v2119, %v2120
  %v2191 = vsel %vm2155, %v2118, %v2119
  %v2192 = vsel %vm2155, %v2117, %v2118
  %v2193 = vsel %vm2155, %v2116, %v2117
  %v2194 = vsel %vm2155, %v2115, %v2116
  %v2195 = vsel %vm2155, %v2114, %v2115
  %v2196 = vsel %vm2155, %v2113, %v2114
  %v2197 = vsel %vm2155, %v2112, %v2113
  %v2198 = vsel %vm2155, %v2111, %v2112
  %v2199 = vsel %vm2155, %v2110, %v2111
  %v2200 = vsel %vm2155, %v2109, %v2110
  %v2201 = vsel %vm2155, %v2108, %v2109
  %v2202 = vsel %vm2155, %v2107, %v2108
  %v2203 = vsel %vm2155, %v2106, %v2107
  %v2204 = vsel %vm2155, %v2105, %v2106
  %v2205 = vsel %vm2155, %v2104, %v2105
  %v2206 = vsel %vm2155, %v2103, %v2104
  %v2207 = vsel %vm2155, %v2102, %v2103
  %v2208 = vsel %vm2155, %v2101, %v2102
  %v2209 = vsel %vm2155, %v2100, %v2101
  %v2210 = vsel %vm2155, %v2099, %v2100
  %v2211 = vsel %vm2155, %v2098, %v2099
  %v2212 = vsel %vm2155, %v2097, %v2098
  %v2213 = vsel %vm2155, %v2096, %v2097
  %v2214 = vsel %vm2155, %v2095, %v2096
  %v2215 = vsel %vm2155, %v2094, %v2095
  %v2216 = vsel %vm2155, %v2093, %v2094
  %v2217 = vsel %vm2155, %v2092, %v2093
  %v2218 = vsel %vm2155, %v2091, %v2092
  %v2219 = vsel %vm2155, %v2090, %v2091
  %v2220 = vsel %vm2155, %v2089, %v2090
  %v2221 = vsel %vm2155, %v2088, %v2089
  %v2222 = vsel %vm2155, %v2087, %v2088
  %v2223 = vsel %vm2155, %v2086, %v2087
  %v2224 = vsel %vm2155, %v2085, %v2086
  %v2225 = vsel %vm2155, %v2084, %v2085
  %v2226 = vsel %vm2155, %v2083, %v2084
  %v2227 = vsel %vm2155, %v2082, %v2083
  %v2228 = vsel %vm2155, %v2081, %v2082
  %v2229 = vsel %vm2155, %v2080, %v2081
  %v2230 = vsel %vm2155, %v2079, %v2080
  %v2231 = vsel %vm2155, %v2078, %v2079
  %v2232 = vsel %vm2155, %v2077, %v2078
  %v2233 = vsel %vm2155, %v2076, %v2077
  %v2234 = vsel %vm2155, %v2075, %v2076
  %v2235 = vsel %vm2155, %v2074, %v2075
  %v2236 = vsel %vm2155, %v2154, %v2074
  %v2237 = vadd.f32 %v1122, %v2157
  %v2238 = vadd.f32 %v1128, %v2156
  %v2239 = vadd.f32 %v1134, %v2236
  %v2240 = vadd.f32 %v1140, %v2235
  %v2241 = vadd.f32 %v1146, %v2234
  %v2242 = vadd.f32 %v1152, %v2233
  %v2243 = vadd.f32 %v1158, %v2232
  %v2244 = vadd.f32 %v1164, %v2231
  %v2245 = vadd.f32 %v1170, %v2230
  %v2246 = vadd.f32 %v1176, %v2229
  %v2247 = vadd.f32 %v1182, %v2228
  %v2248 = vadd.f32 %v1188, %v2227
  %v2249 = vadd.f32 %v1194, %v2226
  %v2250 = vadd.f32 %v1200, %v2225
  %v2251 = vadd.f32 %v1206, %v2224
  %v2252 = vadd.f32 %v1212, %v2223
  %v2253 = vadd.f32 %v1218, %v2222
  %v2254 = vadd.f32 %v1224, %v2221
  %v2255 = vadd.f32 %v1230, %v2220
  %v2256 = vadd.f32 %v1236, %v2219
  %v2257 = vadd.f32 %v1242, %v2218
  %v2258 = vadd.f32 %v1248, %v2217
  %v2259 = vadd.f32 %v1254, %v2216
  %v2260 = vadd.f32 %v1260, %v2215
  %v2261 = vadd.f32 %v1266, %v2214
  %v2262 = vadd.f32 %v1272, %v2213
  %v2263 = vadd.f32 %v1278, %v2212
  %v2264 = vadd.f32 %v1284, %v2211
  %v2265 = vadd.f32 %v1290, %v2210
  %v2266 = vadd.f32 %v1296, %v2209
  %v2267 = vadd.f32 %v1302, %v2208
  %v2268 = vadd.f32 %v1308, %v2207
  %v2269 = vadd.f32 %v1314, %v2206
  %v2270 = vadd.f32 %v1320, %v2205
  %v2271 = vadd.f32 %v1326, %v2204
  %v2272 = vadd.f32 %v1332, %v2203
  %v2273 = vadd.f32 %v1338, %v2202
  %v2274 = vadd.f32 %v1344, %v2201
  %v2275 = vadd.f32 %v1350, %v2200
  %v2276 = vadd.f32 %v1356, %v2199
  %v2277 = vadd.f32 %v1362, %v2198
  %v2278 = vadd.f32 %v1368, %v2197
  %v2279 = vadd.f32 %v1374, %v2196
  %v2280 = vadd.f32 %v1380, %v2195
  %v2281 = vadd.f32 %v1386, %v2194
  %v2282 = vadd.f32 %v1392, %v2193
  %v2283 = vadd.f32 %v1398, %v2192
  %v2284 = vadd.f32 %v1404, %v2191
  %v2285 = vadd.f32 %v1410, %v2190
  %v2286 = vadd.f32 %v1416, %v2189
  %v2287 = vadd.f32 %v1422, %v2188
  %v2288 = vadd.f32 %v1428, %v2187
  %v2289 = vadd.f32 %v1434, %v2186
  %v2290 = vadd.f32 %v1440, %v2185
  %v2291 = vadd.f32 %v1446, %v2184
  %v2292 = vadd.f32 %v1452, %v2183
  %v2293 = vadd.f32 %v1458, %v2182
  %v2294 = vadd.f32 %v1464, %v2181
  %v2295 = vadd.f32 %v1470, %v2180
  %v2296 = vadd.f32 %v1476, %v2179
  %v2297 = vadd.f32 %v1482, %v2178
  %v2298 = vadd.f32 %v1488, %v2177
  %v2299 = vadd.f32 %v1494, %v2176
  %v2300 = vadd.f32 %v1500, %v2175
  %v2301 = vadd.f32 %v1506, %v2174
  %v2302 = vadd.f32 %v1512, %v2173
  %v2303 = vadd.f32 %v1518, %v2172
  %v2304 = vadd.f32 %v1524, %v2171
  %v2305 = vadd.f32 %v1530, %v2170
  %v2306 = vadd.f32 %v1536, %v2169
  %v2307 = vadd.f32 %v1542, %v2168
  %v2308 = vadd.f32 %v1548, %v2167
  %v2309 = vadd.f32 %v1554, %v2166
  %v2310 = vadd.f32 %v1560, %v2165
  %v2311 = vadd.f32 %v1566, %v2164
  %v2312 = vadd.f32 %v1572, %v2163
  %v2313 = vadd.f32 %v1578, %v2162
  %v2314 = vadd.f32 %v1584, %v2161
  %v2315 = vadd.f32 %v1590, %v2160
  %v2316 = vadd.f32 %v1596, %v2159
  %v2317 = vadd.f32 %v1602, %v2158
  %v2318 = vrot.slane %v1671, 2
  %v2319 = vrot.slane %v1676, 2
  %v2320 = vrot.slane %v1681, 2
  %v2321 = vrot.slane %v1686, 2
  %v2322 = vrot.slane %v1691, 2
  %v2323 = vrot.slane %v1696, 2
  %v2324 = vrot.slane %v1701, 2
  %v2325 = vrot.slane %v1706, 2
  %v2326 = vrot.slane %v1711, 2
  %v2327 = vrot.slane %v1716, 2
  %v2328 = vrot.slane %v1721, 2
  %v2329 = vrot.slane %v1726, 2
  %v2330 = vrot.slane %v1731, 2
  %v2331 = vrot.slane %v1736, 2
  %v2332 = vrot.slane %v1741, 2
  %v2333 = vrot.slane %v1746, 2
  %v2334 = vrot.slane %v1751, 2
  %v2335 = vrot.slane %v1756, 2
  %v2336 = vrot.slane %v1761, 2
  %v2337 = vrot.slane %v1766, 2
  %v2338 = vrot.slane %v1771, 2
  %v2339 = vrot.slane %v1776, 2
  %v2340 = vrot.slane %v1781, 2
  %v2341 = vrot.slane %v1786, 2
  %v2342 = vrot.slane %v1791, 2
  %v2343 = vrot.slane %v1796, 2
  %v2344 = vrot.slane %v1801, 2
  %v2345 = vrot.slane %v1806, 2
  %v2346 = vrot.slane %v1811, 2
  %v2347 = vrot.slane %v1816, 2
  %v2348 = vrot.slane %v1821, 2
  %v2349 = vrot.slane %v1826, 2
  %v2350 = vrot.slane %v1831, 2
  %v2351 = vrot.slane %v1836, 2
  %v2352 = vrot.slane %v1841, 2
  %v2353 = vrot.slane %v1846, 2
  %v2354 = vrot.slane %v1851, 2
  %v2355 = vrot.slane %v1856, 2
  %v2356 = vrot.slane %v1861, 2
  %v2357 = vrot.slane %v1866, 2
  %v2358 = vrot.slane %v1871, 2
  %v2359 = vrot.slane %v1876, 2
  %v2360 = vrot.slane %v1881, 2
  %v2361 = vrot.slane %v1886, 2
  %v2362 = vrot.slane %v1891, 2
  %v2363 = vrot.slane %v1896, 2
  %v2364 = vrot.slane %v1901, 2
  %v2365 = vrot.slane %v1906, 2
  %v2366 = vrot.slane %v1911, 2
  %v2367 = vrot.slane %v1916, 2
  %v2368 = vrot.slane %v1921, 2
  %v2369 = vrot.slane %v1926, 2
  %v2370 = vrot.slane %v1931, 2
  %v2371 = vrot.slane %v1936, 2
  %v2372 = vrot.slane %v1941, 2
  %v2373 = vrot.slane %v1946, 2
  %v2374 = vrot.slane %v1951, 2
  %v2375 = vrot.slane %v1956, 2
  %v2376 = vrot.slane %v1961, 2
  %v2377 = vrot.slane %v1966, 2
  %v2378 = vrot.slane %v1971, 2
  %v2379 = vrot.slane %v1976, 2
  %v2380 = vrot.slane %v1981, 2
  %v2381 = vrot.slane %v1986, 2
  %v2382 = vrot.slane %v1991, 2
  %v2383 = vrot.slane %v1996, 2
  %v2384 = vrot.slane %v2001, 2
  %v2385 = vrot.slane %v2006, 2
  %v2386 = vrot.slane %v2011, 2
  %v2387 = vrot.slane %v2016, 2
  %v2388 = vrot.slane %v2021, 2
  %v2389 = vrot.slane %v2026, 2
  %v2390 = vrot.slane %v2031, 2
  %v2391 = vrot.slane %v2036, 2
  %v2392 = vrot.slane %v2041, 2
  %v2393 = vrot.slane %v2046, 2
  %v2394 = vrot.slane %v2051, 2
  %v2395 = vrot.slane %v2056, 2
  %v2396 = vrot.slane %v2061, 2
  %v2397 = vrot.slane %v2066, 2
  %v2398 = vrot.slane %v2071, 2
  %vm2399 = vcmp.lt.s32.totalorder %v273, 6
  %v2400 = vsel %vm2399, %v2397, %v2398
  %v2401 = vsel %vm2399, %v2396, %v2397
  %v2402 = vsel %vm2399, %v2395, %v2396
  %v2403 = vsel %vm2399, %v2394, %v2395
  %v2404 = vsel %vm2399, %v2393, %v2394
  %v2405 = vsel %vm2399, %v2392, %v2393
  %v2406 = vsel %vm2399, %v2391, %v2392
  %v2407 = vsel %vm2399, %v2390, %v2391
  %v2408 = vsel %vm2399, %v2389, %v2390
  %v2409 = vsel %vm2399, %v2388, %v2389
  %v2410 = vsel %vm2399, %v2387, %v2388
  %v2411 = vsel %vm2399, %v2386, %v2387
  %v2412 = vsel %vm2399, %v2385, %v2386
  %v2413 = vsel %vm2399, %v2384, %v2385
  %v2414 = vsel %vm2399, %v2383, %v2384
  %v2415 = vsel %vm2399, %v2382, %v2383
  %v2416 = vsel %vm2399, %v2381, %v2382
  %v2417 = vsel %vm2399, %v2380, %v2381
  %v2418 = vsel %vm2399, %v2379, %v2380
  %v2419 = vsel %vm2399, %v2378, %v2379
  %v2420 = vsel %vm2399, %v2377, %v2378
  %v2421 = vsel %vm2399, %v2376, %v2377
  %v2422 = vsel %vm2399, %v2375, %v2376
  %v2423 = vsel %vm2399, %v2374, %v2375
  %v2424 = vsel %vm2399, %v2373, %v2374
  %v2425 = vsel %vm2399, %v2372, %v2373
  %v2426 = vsel %vm2399, %v2371, %v2372
  %v2427 = vsel %vm2399, %v2370, %v2371
  %v2428 = vsel %vm2399, %v2369, %v2370
  %v2429 = vsel %vm2399, %v2368, %v2369
  %v2430 = vsel %vm2399, %v2367, %v2368
  %v2431 = vsel %vm2399, %v2366, %v2367
  %v2432 = vsel %vm2399, %v2365, %v2366
  %v2433 = vsel %vm2399, %v2364, %v2365
  %v2434 = vsel %vm2399, %v2363, %v2364
  %v2435 = vsel %vm2399, %v2362, %v2363
  %v2436 = vsel %vm2399, %v2361, %v2362
  %v2437 = vsel %vm2399, %v2360, %v2361
  %v2438 = vsel %vm2399, %v2359, %v2360
  %v2439 = vsel %vm2399, %v2358, %v2359
  %v2440 = vsel %vm2399, %v2357, %v2358
  %v2441 = vsel %vm2399, %v2356, %v2357
  %v2442 = vsel %vm2399, %v2355, %v2356
  %v2443 = vsel %vm2399, %v2354, %v2355
  %v2444 = vsel %vm2399, %v2353, %v2354
  %v2445 = vsel %vm2399, %v2352, %v2353
  %v2446 = vsel %vm2399, %v2351, %v2352
  %v2447 = vsel %vm2399, %v2350, %v2351
  %v2448 = vsel %vm2399, %v2349, %v2350
  %v2449 = vsel %vm2399, %v2348, %v2349
  %v2450 = vsel %vm2399, %v2347, %v2348
  %v2451 = vsel %vm2399, %v2346, %v2347
  %v2452 = vsel %vm2399, %v2345, %v2346
  %v2453 = vsel %vm2399, %v2344, %v2345
  %v2454 = vsel %vm2399, %v2343, %v2344
  %v2455 = vsel %vm2399, %v2342, %v2343
  %v2456 = vsel %vm2399, %v2341, %v2342
  %v2457 = vsel %vm2399, %v2340, %v2341
  %v2458 = vsel %vm2399, %v2339, %v2340
  %v2459 = vsel %vm2399, %v2338, %v2339
  %v2460 = vsel %vm2399, %v2337, %v2338
  %v2461 = vsel %vm2399, %v2336, %v2337
  %v2462 = vsel %vm2399, %v2335, %v2336
  %v2463 = vsel %vm2399, %v2334, %v2335
  %v2464 = vsel %vm2399, %v2333, %v2334
  %v2465 = vsel %vm2399, %v2332, %v2333
  %v2466 = vsel %vm2399, %v2331, %v2332
  %v2467 = vsel %vm2399, %v2330, %v2331
  %v2468 = vsel %vm2399, %v2329, %v2330
  %v2469 = vsel %vm2399, %v2328, %v2329
  %v2470 = vsel %vm2399, %v2327, %v2328
  %v2471 = vsel %vm2399, %v2326, %v2327
  %v2472 = vsel %vm2399, %v2325, %v2326
  %v2473 = vsel %vm2399, %v2324, %v2325
  %v2474 = vsel %vm2399, %v2323, %v2324
  %v2475 = vsel %vm2399, %v2322, %v2323
  %v2476 = vsel %vm2399, %v2321, %v2322
  %v2477 = vsel %vm2399, %v2320, %v2321
  %v2478 = vsel %vm2399, %v2319, %v2320
  %v2479 = vsel %vm2399, %v2318, %v2319
  %v2480 = vsel %vm2399, %v2398, %v2318
  %v2481 = vadd.f32 %v2237, %v2477
  %v2482 = vadd.f32 %v2238, %v2476
  %v2483 = vadd.f32 %v2239, %v2475
  %v2484 = vadd.f32 %v2240, %v2474
  %v2485 = vadd.f32 %v2241, %v2473
  %v2486 = vadd.f32 %v2242, %v2472
  %v2487 = vadd.f32 %v2243, %v2471
  %v2488 = vadd.f32 %v2244, %v2470
  %v2489 = vadd.f32 %v2245, %v2469
  %v2490 = vadd.f32 %v2246, %v2468
  %v2491 = vadd.f32 %v2247, %v2467
  %v2492 = vadd.f32 %v2248, %v2466
  %v2493 = vadd.f32 %v2249, %v2465
  %v2494 = vadd.f32 %v2250, %v2464
  %v2495 = vadd.f32 %v2251, %v2463
  %v2496 = vadd.f32 %v2252, %v2462
  %v2497 = vadd.f32 %v2253, %v2461
  %v2498 = vadd.f32 %v2254, %v2460
  %v2499 = vadd.f32 %v2255, %v2459
  %v2500 = vadd.f32 %v2256, %v2458
  %v2501 = vadd.f32 %v2257, %v2457
  %v2502 = vadd.f32 %v2258, %v2456
  %v2503 = vadd.f32 %v2259, %v2455
  %v2504 = vadd.f32 %v2260, %v2454
  %v2505 = vadd.f32 %v2261, %v2453
  %v2506 = vadd.f32 %v2262, %v2452
  %v2507 = vadd.f32 %v2263, %v2451
  %v2508 = vadd.f32 %v2264, %v2450
  %v2509 = vadd.f32 %v2265, %v2449
  %v2510 = vadd.f32 %v2266, %v2448
  %v2511 = vadd.f32 %v2267, %v2447
  %v2512 = vadd.f32 %v2268, %v2446
  %v2513 = vadd.f32 %v2269, %v2445
  %v2514 = vadd.f32 %v2270, %v2444
  %v2515 = vadd.f32 %v2271, %v2443
  %v2516 = vadd.f32 %v2272, %v2442
  %v2517 = vadd.f32 %v2273, %v2441
  %v2518 = vadd.f32 %v2274, %v2440
  %v2519 = vadd.f32 %v2275, %v2439
  %v2520 = vadd.f32 %v2276, %v2438
  %v2521 = vadd.f32 %v2277, %v2437
  %v2522 = vadd.f32 %v2278, %v2436
  %v2523 = vadd.f32 %v2279, %v2435
  %v2524 = vadd.f32 %v2280, %v2434
  %v2525 = vadd.f32 %v2281, %v2433
  %v2526 = vadd.f32 %v2282, %v2432
  %v2527 = vadd.f32 %v2283, %v2431
  %v2528 = vadd.f32 %v2284, %v2430
  %v2529 = vadd.f32 %v2285, %v2429
  %v2530 = vadd.f32 %v2286, %v2428
  %v2531 = vadd.f32 %v2287, %v2427
  %v2532 = vadd.f32 %v2288, %v2426
  %v2533 = vadd.f32 %v2289, %v2425
  %v2534 = vadd.f32 %v2290, %v2424
  %v2535 = vadd.f32 %v2291, %v2423
  %v2536 = vadd.f32 %v2292, %v2422
  %v2537 = vadd.f32 %v2293, %v2421
  %v2538 = vadd.f32 %v2294, %v2420
  %v2539 = vadd.f32 %v2295, %v2419
  %v2540 = vadd.f32 %v2296, %v2418
  %v2541 = vadd.f32 %v2297, %v2417
  %v2542 = vadd.f32 %v2298, %v2416
  %v2543 = vadd.f32 %v2299, %v2415
  %v2544 = vadd.f32 %v2300, %v2414
  %v2545 = vadd.f32 %v2301, %v2413
  %v2546 = vadd.f32 %v2302, %v2412
  %v2547 = vadd.f32 %v2303, %v2411
  %v2548 = vadd.f32 %v2304, %v2410
  %v2549 = vadd.f32 %v2305, %v2409
  %v2550 = vadd.f32 %v2306, %v2408
  %v2551 = vadd.f32 %v2307, %v2407
  %v2552 = vadd.f32 %v2308, %v2406
  %v2553 = vadd.f32 %v2309, %v2405
  %v2554 = vadd.f32 %v2310, %v2404
  %v2555 = vadd.f32 %v2311, %v2403
  %v2556 = vadd.f32 %v2312, %v2402
  %v2557 = vadd.f32 %v2313, %v2401
  %v2558 = vadd.f32 %v2314, %v2400
  %v2559 = vadd.f32 %v2315, %v2480
  %v2560 = vadd.f32 %v2316, %v2479
  %v2561 = vadd.f32 %v2317, %v2478
  %v2562 = vld [vmem:[%s3] sm:$0x1]
  %v2564 = vlaneseq
  %v2565 = vshrl.u32 %v2564, 7
  %v2566 = vsub.s32 0, %v2565
  %v2567 = vrot.slane %v2562, %v2566
  %v2569 = vadd.f32 %v2481, %v2567
  %v2570 = vadd.f32 %v2482, %v2567
  %v2571 = vadd.f32 %v2483, %v2567
  %v2572 = vadd.f32 %v2484, %v2567
  %v2573 = vadd.f32 %v2485, %v2567
  %v2574 = vadd.f32 %v2486, %v2567
  %v2575 = vadd.f32 %v2487, %v2567
  %v2576 = vadd.f32 %v2488, %v2567
  %v2577 = vadd.f32 %v2489, %v2567
  %v2578 = vadd.f32 %v2490, %v2567
  %v2579 = vadd.f32 %v2491, %v2567
  %v2580 = vadd.f32 %v2492, %v2567
  %v2581 = vadd.f32 %v2493, %v2567
  %v2582 = vadd.f32 %v2494, %v2567
  %v2583 = vadd.f32 %v2495, %v2567
  %v2584 = vadd.f32 %v2496, %v2567
  %v2585 = vadd.f32 %v2497, %v2567
  %v2586 = vadd.f32 %v2498, %v2567
  %v2587 = vadd.f32 %v2499, %v2567
  %v2588 = vadd.f32 %v2500, %v2567
  %v2589 = vadd.f32 %v2501, %v2567
  %v2590 = vadd.f32 %v2502, %v2567
  %v2591 = vadd.f32 %v2503, %v2567
  %v2592 = vadd.f32 %v2504, %v2567
  %v2593 = vadd.f32 %v2505, %v2567
  %v2594 = vadd.f32 %v2506, %v2567
  %v2595 = vadd.f32 %v2507, %v2567
  %v2596 = vadd.f32 %v2508, %v2567
  %v2597 = vadd.f32 %v2509, %v2567
  %v2598 = vadd.f32 %v2510, %v2567
  %v2599 = vadd.f32 %v2511, %v2567
  %v2600 = vadd.f32 %v2512, %v2567
  %v2601 = vadd.f32 %v2513, %v2567
  %v2602 = vadd.f32 %v2514, %v2567
  %v2603 = vadd.f32 %v2515, %v2567
  %v2604 = vadd.f32 %v2516, %v2567
  %v2605 = vadd.f32 %v2517, %v2567
  %v2606 = vadd.f32 %v2518, %v2567
  %v2607 = vadd.f32 %v2519, %v2567
  %v2608 = vadd.f32 %v2520, %v2567
  %v2609 = vadd.f32 %v2521, %v2567
  %v2610 = vadd.f32 %v2522, %v2567
  %v2611 = vadd.f32 %v2523, %v2567
  %v2612 = vadd.f32 %v2524, %v2567
  %v2613 = vadd.f32 %v2525, %v2567
  %v2614 = vadd.f32 %v2526, %v2567
  %v2615 = vadd.f32 %v2527, %v2567
  %v2616 = vadd.f32 %v2528, %v2567
  %v2617 = vadd.f32 %v2529, %v2567
  %v2618 = vadd.f32 %v2530, %v2567
  %v2619 = vadd.f32 %v2531, %v2567
  %v2620 = vadd.f32 %v2532, %v2567
  %v2621 = vadd.f32 %v2533, %v2567
  %v2622 = vadd.f32 %v2534, %v2567
  %v2623 = vadd.f32 %v2535, %v2567
  %v2624 = vadd.f32 %v2536, %v2567
  %v2625 = vadd.f32 %v2537, %v2567
  %v2626 = vadd.f32 %v2538, %v2567
  %v2627 = vadd.f32 %v2539, %v2567
  %v2628 = vadd.f32 %v2540, %v2567
  %v2629 = vadd.f32 %v2541, %v2567
  %v2630 = vadd.f32 %v2542, %v2567
  %v2631 = vadd.f32 %v2543, %v2567
  %v2632 = vadd.f32 %v2544, %v2567
  %v2633 = vadd.f32 %v2545, %v2567
  %v2634 = vadd.f32 %v2546, %v2567
  %v2635 = vadd.f32 %v2547, %v2567
  %v2636 = vadd.f32 %v2548, %v2567
  %v2637 = vadd.f32 %v2549, %v2567
  %v2638 = vadd.f32 %v2550, %v2567
  %v2639 = vadd.f32 %v2551, %v2567
  %v2640 = vadd.f32 %v2552, %v2567
  %v2641 = vadd.f32 %v2553, %v2567
  %v2642 = vadd.f32 %v2554, %v2567
  %v2643 = vadd.f32 %v2555, %v2567
  %v2644 = vadd.f32 %v2556, %v2567
  %v2645 = vadd.f32 %v2557, %v2567
  %v2646 = vadd.f32 %v2558, %v2567
  %v2647 = vadd.f32 %v2559, %v2567
  %v2648 = vadd.f32 %v2560, %v2567
  %v2649 = vadd.f32 %v2561, %v2567
  %v2650 = vmax.f32 %v2569, 0.0
  %v2651 = vmax.f32 %v2570, 0.0
  %v2652 = vmax.f32 %v2571, 0.0
  %v2653 = vmax.f32 %v2572, 0.0
  %v2654 = vmax.f32 %v2573, 0.0
  %v2655 = vmax.f32 %v2574, 0.0
  %v2656 = vmax.f32 %v2575, 0.0
  %v2657 = vmax.f32 %v2576, 0.0
  %v2658 = vmax.f32 %v2577, 0.0
  %v2659 = vmax.f32 %v2578, 0.0
  %v2660 = vmax.f32 %v2579, 0.0
  %v2661 = vmax.f32 %v2580, 0.0
  %v2662 = vmax.f32 %v2581, 0.0
  %v2663 = vmax.f32 %v2582, 0.0
  %v2664 = vmax.f32 %v2583, 0.0
  %v2665 = vmax.f32 %v2584, 0.0
  %v2666 = vmax.f32 %v2585, 0.0
  %v2667 = vmax.f32 %v2586, 0.0
  %v2668 = vmax.f32 %v2587, 0.0
  %v2669 = vmax.f32 %v2588, 0.0
  %v2670 = vmax.f32 %v2589, 0.0
  %v2671 = vmax.f32 %v2590, 0.0
  %v2672 = vmax.f32 %v2591, 0.0
  %v2673 = vmax.f32 %v2592, 0.0
  %v2674 = vmax.f32 %v2593, 0.0
  %v2675 = vmax.f32 %v2594, 0.0
  %v2676 = vmax.f32 %v2595, 0.0
  %v2677 = vmax.f32 %v2596, 0.0
  %v2678 = vmax.f32 %v2597, 0.0
  %v2679 = vmax.f32 %v2598, 0.0
  %v2680 = vmax.f32 %v2599, 0.0
  %v2681 = vmax.f32 %v2600, 0.0
  %v2682 = vmax.f32 %v2601, 0.0
  %v2683 = vmax.f32 %v2602, 0.0
  %v2684 = vmax.f32 %v2603, 0.0
  %v2685 = vmax.f32 %v2604, 0.0
  %v2686 = vmax.f32 %v2605, 0.0
  %v2687 = vmax.f32 %v2606, 0.0
  %v2688 = vmax.f32 %v2607, 0.0
  %v2689 = vmax.f32 %v2608, 0.0
  %v2690 = vmax.f32 %v2609, 0.0
  %v2691 = vmax.f32 %v2610, 0.0
  %v2692 = vmax.f32 %v2611, 0.0
  %v2693 = vmax.f32 %v2612, 0.0
  %v2694 = vmax.f32 %v2613, 0.0
  %v2695 = vmax.f32 %v2614, 0.0
  %v2696 = vmax.f32 %v2615, 0.0
  %v2697 = vmax.f32 %v2616, 0.0
  %v2698 = vmax.f32 %v2617, 0.0
  %v2699 = vmax.f32 %v2618, 0.0
  %v2700 = vmax.f32 %v2619, 0.0
  %v2701 = vmax.f32 %v2620, 0.0
  %v2702 = vmax.f32 %v2621, 0.0
  %v2703 = vmax.f32 %v2622, 0.0
  %v2704 = vmax.f32 %v2623, 0.0
  %v2705 = vmax.f32 %v2624, 0.0
  %v2706 = vmax.f32 %v2625, 0.0
  %v2707 = vmax.f32 %v2626, 0.0
  %v2708 = vmax.f32 %v2627, 0.0
  %v2709 = vmax.f32 %v2628, 0.0
  %v2710 = vmax.f32 %v2629, 0.0
  %v2711 = vmax.f32 %v2630, 0.0
  %v2712 = vmax.f32 %v2631, 0.0
  %v2713 = vmax.f32 %v2632, 0.0
  %v2714 = vmax.f32 %v2633, 0.0
  %v2715 = vmax.f32 %v2634, 0.0
  %v2716 = vmax.f32 %v2635, 0.0
  %v2717 = vmax.f32 %v2636, 0.0
  %v2718 = vmax.f32 %v2637, 0.0
  %v2719 = vmax.f32 %v2638, 0.0
  %v2720 = vmax.f32 %v2639, 0.0
  %v2721 = vmax.f32 %v2640, 0.0
  %v2722 = vmax.f32 %v2641, 0.0
  %v2723 = vmax.f32 %v2642, 0.0
  %v2724 = vmax.f32 %v2643, 0.0
  %v2725 = vmax.f32 %v2644, 0.0
  %v2726 = vmax.f32 %v2645, 0.0
  %v2727 = vmax.f32 %v2646, 0.0
  %v2728 = vmax.f32 %v2647, 0.0
  %v2729 = vmax.f32 %v2648, 0.0
  %v2730 = vmax.f32 %v2649, 0.0
  %v2731 = vmul.f32 %v2650, %v29
  %v2732 = vmul.f32 %v2651, %v30
  %v2733 = vmul.f32 %v2652, %v31
  %v2734 = vmul.f32 %v2653, %v32
  %v2735 = vmul.f32 %v2654, %v33
  %v2736 = vmul.f32 %v2655, %v34
  %v2737 = vmul.f32 %v2656, %v35
  %v2738 = vmul.f32 %v2657, %v36
  %v2739 = vmul.f32 %v2658, %v37
  %v2740 = vmul.f32 %v2659, %v38
  %v2741 = vmul.f32 %v2660, %v39
  %v2742 = vmul.f32 %v2661, %v40
  %v2743 = vmul.f32 %v2662, %v41
  %v2744 = vmul.f32 %v2663, %v42
  %v2745 = vmul.f32 %v2664, %v43
  %v2746 = vmul.f32 %v2665, %v44
  %v2747 = vmul.f32 %v2666, %v45
  %v2748 = vmul.f32 %v2667, %v46
  %v2749 = vmul.f32 %v2668, %v47
  %v2750 = vmul.f32 %v2669, %v48
  %v2751 = vmul.f32 %v2670, %v49
  %v2752 = vmul.f32 %v2671, %v50
  %v2753 = vmul.f32 %v2672, %v51
  %v2754 = vmul.f32 %v2673, %v52
  %v2755 = vmul.f32 %v2674, %v53
  %v2756 = vmul.f32 %v2675, %v54
  %v2757 = vmul.f32 %v2676, %v55
  %v2758 = vmul.f32 %v2677, %v56
  %v2759 = vmul.f32 %v2678, %v57
  %v2760 = vmul.f32 %v2679, %v58
  %v2761 = vmul.f32 %v2680, %v59
  %v2762 = vmul.f32 %v2681, %v60
  %v2763 = vmul.f32 %v2682, %v61
  %v2764 = vmul.f32 %v2683, %v62
  %v2765 = vmul.f32 %v2684, %v63
  %v2766 = vmul.f32 %v2685, %v64
  %v2767 = vmul.f32 %v2686, %v65
  %v2768 = vmul.f32 %v2687, %v66
  %v2769 = vmul.f32 %v2688, %v67
  %v2770 = vmul.f32 %v2689, %v68
  %v2771 = vmul.f32 %v2690, %v69
  %v2772 = vmul.f32 %v2691, %v70
  %v2773 = vmul.f32 %v2692, %v71
  %v2774 = vmul.f32 %v2693, %v72
  %v2775 = vmul.f32 %v2694, %v73
  %v2776 = vmul.f32 %v2695, %v74
  %v2777 = vmul.f32 %v2696, %v75
  %v2778 = vmul.f32 %v2697, %v76
  %v2779 = vmul.f32 %v2698, %v77
  %v2780 = vmul.f32 %v2699, %v78
  %v2781 = vmul.f32 %v2700, %v79
  %v2782 = vmul.f32 %v2701, %v80
  %v2783 = vmul.f32 %v2702, %v81
  %v2784 = vmul.f32 %v2703, %v82
  %v2785 = vmul.f32 %v2704, %v83
  %v2786 = vmul.f32 %v2705, %v84
  %v2787 = vmul.f32 %v2706, %v85
  %v2788 = vmul.f32 %v2707, %v86
  %v2789 = vmul.f32 %v2708, %v87
  %v2790 = vmul.f32 %v2709, %v88
  %v2791 = vmul.f32 %v2710, %v89
  %v2792 = vmul.f32 %v2711, %v90
  %v2793 = vmul.f32 %v2712, %v91
  %v2794 = vmul.f32 %v2713, %v92
  %v2795 = vmul.f32 %v2714, %v93
  %v2796 = vmul.f32 %v2715, %v94
  %v2797 = vmul.f32 %v2716, %v95
  %v2798 = vmul.f32 %v2717, %v96
  %v2799 = vmul.f32 %v2718, %v97
  %v2800 = vmul.f32 %v2719, %v98
  %v2801 = vmul.f32 %v2720, %v99
  %v2802 = vmul.f32 %v2721, %v100
  %v2803 = vmul.f32 %v2722, %v101
  %v2804 = vmul.f32 %v2723, %v102
  %v2805 = vmul.f32 %v2724, %v103
  %v2806 = vmul.f32 %v2725, %v104
  %v2807 = vmul.f32 %v2726, %v105
  %v2808 = vmul.f32 %v2727, %v106
  %v2809 = vmul.f32 %v2728, %v107
  %v2810 = vmul.f32 %v2729, %v108
  %v2811 = vmul.f32 %v2730, %v109
  %v2812 = vadd.f32 %v2731, %v2732
  %v2813 = vadd.f32 %v2812, %v2733
  %v2814 = vadd.f32 %v2813, %v2734
  %v2815 = vadd.f32 %v2814, %v2735
  %v2816 = vadd.f32 %v2815, %v2736
  %v2817 = vadd.f32 %v2816, %v2737
  %v2818 = vadd.f32 %v2817, %v2738
  %v2819 = vadd.f32 %v2818, %v2739
  %v2820 = vadd.f32 %v2819, %v2740
  %v2821 = vadd.f32 %v2820, %v2741
  %v2822 = vadd.f32 %v2821, %v2742
  %v2823 = vadd.f32 %v2822, %v2743
  %v2824 = vadd.f32 %v2823, %v2744
  %v2825 = vadd.f32 %v2824, %v2745
  %v2826 = vadd.f32 %v2825, %v2746
  %v2827 = vadd.f32 %v2826, %v2747
  %v2828 = vadd.f32 %v2827, %v2748
  %v2829 = vadd.f32 %v2828, %v2749
  %v2830 = vadd.f32 %v2829, %v2750
  %v2831 = vadd.f32 %v2830, %v2751
  %v2832 = vadd.f32 %v2831, %v2752
  %v2833 = vadd.f32 %v2832, %v2753
  %v2834 = vadd.f32 %v2833, %v2754
  %v2835 = vadd.f32 %v2834, %v2755
  %v2836 = vadd.f32 %v2835, %v2756
  %v2837 = vadd.f32 %v2836, %v2757
  %v2838 = vadd.f32 %v2837, %v2758
  %v2839 = vadd.f32 %v2838, %v2759
  %v2840 = vadd.f32 %v2839, %v2760
  %v2841 = vadd.f32 %v2840, %v2761
  %v2842 = vadd.f32 %v2841, %v2762
  %v2843 = vadd.f32 %v2842, %v2763
  %v2844 = vadd.f32 %v2843, %v2764
  %v2845 = vadd.f32 %v2844, %v2765
  %v2846 = vadd.f32 %v2845, %v2766
  %v2847 = vadd.f32 %v2846, %v2767
  %v2848 = vadd.f32 %v2847, %v2768
  %v2849 = vadd.f32 %v2848, %v2769
  %v2850 = vadd.f32 %v2849, %v2770
  %v2851 = vadd.f32 %v2850, %v2771
  %v2852 = vadd.f32 %v2851, %v2772
  %v2853 = vadd.f32 %v2852, %v2773
  %v2854 = vadd.f32 %v2853, %v2774
  %v2855 = vadd.f32 %v2854, %v2775
  %v2856 = vadd.f32 %v2855, %v2776
  %v2857 = vadd.f32 %v2856, %v2777
  %v2858 = vadd.f32 %v2857, %v2778
  %v2859 = vadd.f32 %v2858, %v2779
  %v2860 = vadd.f32 %v2859, %v2780
  %v2861 = vadd.f32 %v2860, %v2781
  %v2862 = vadd.f32 %v2861, %v2782
  %v2863 = vadd.f32 %v2862, %v2783
  %v2864 = vadd.f32 %v2863, %v2784
  %v2865 = vadd.f32 %v2864, %v2785
  %v2866 = vadd.f32 %v2865, %v2786
  %v2867 = vadd.f32 %v2866, %v2787
  %v2868 = vadd.f32 %v2867, %v2788
  %v2869 = vadd.f32 %v2868, %v2789
  %v2870 = vadd.f32 %v2869, %v2790
  %v2871 = vadd.f32 %v2870, %v2791
  %v2872 = vadd.f32 %v2871, %v2792
  %v2873 = vadd.f32 %v2872, %v2793
  %v2874 = vadd.f32 %v2873, %v2794
  %v2875 = vadd.f32 %v2874, %v2795
  %v2876 = vadd.f32 %v2875, %v2796
  %v2877 = vadd.f32 %v2876, %v2797
  %v2878 = vadd.f32 %v2877, %v2798
  %v2879 = vadd.f32 %v2878, %v2799
  %v2880 = vadd.f32 %v2879, %v2800
  %v2881 = vadd.f32 %v2880, %v2801
  %v2882 = vadd.f32 %v2881, %v2802
  %v2883 = vadd.f32 %v2882, %v2803
  %v2884 = vadd.f32 %v2883, %v2804
  %v2885 = vadd.f32 %v2884, %v2805
  %v2886 = vadd.f32 %v2885, %v2806
  %v2887 = vadd.f32 %v2886, %v2807
  %v2888 = vadd.f32 %v2887, %v2808
  %v2889 = vadd.f32 %v2888, %v2809
  %v2890 = vadd.f32 %v2889, %v2810
  %v2891 = vadd.f32 %v2890, %v2811
  %v2892 = vrot.slane %v2891, 4
  %v2893 = vadd.f32 %v2891, %v2892
  %v2894 = vrot.slane %v2893, 2
  %v2895 = vadd.f32 %v2893, %v2894
  %v2896 = vrot.slane %v2895, 1
  %v2897 = vadd.f32 %v2895, %v2896
  %v2898 = vmul.f32 %v2731, %v2731
  %v2899 = vmul.f32 %v2732, %v2732
  %v2900 = vmul.f32 %v2733, %v2733
  %v2901 = vmul.f32 %v2734, %v2734
  %v2902 = vmul.f32 %v2735, %v2735
  %v2903 = vmul.f32 %v2736, %v2736
  %v2904 = vmul.f32 %v2737, %v2737
  %v2905 = vmul.f32 %v2738, %v2738
  %v2906 = vmul.f32 %v2739, %v2739
  %v2907 = vmul.f32 %v2740, %v2740
  %v2908 = vmul.f32 %v2741, %v2741
  %v2909 = vmul.f32 %v2742, %v2742
  %v2910 = vmul.f32 %v2743, %v2743
  %v2911 = vmul.f32 %v2744, %v2744
  %v2912 = vmul.f32 %v2745, %v2745
  %v2913 = vmul.f32 %v2746, %v2746
  %v2914 = vmul.f32 %v2747, %v2747
  %v2915 = vmul.f32 %v2748, %v2748
  %v2916 = vmul.f32 %v2749, %v2749
  %v2917 = vmul.f32 %v2750, %v2750
  %v2918 = vmul.f32 %v2751, %v2751
  %v2919 = vmul.f32 %v2752, %v2752
  %v2920 = vmul.f32 %v2753, %v2753
  %v2921 = vmul.f32 %v2754, %v2754
  %v2922 = vmul.f32 %v2755, %v2755
  %v2923 = vmul.f32 %v2756, %v2756
  %v2924 = vmul.f32 %v2757, %v2757
  %v2925 = vmul.f32 %v2758, %v2758
  %v2926 = vmul.f32 %v2759, %v2759
  %v2927 = vmul.f32 %v2760, %v2760
  %v2928 = vmul.f32 %v2761, %v2761
  %v2929 = vmul.f32 %v2762, %v2762
  %v2930 = vmul.f32 %v2763, %v2763
  %v2931 = vmul.f32 %v2764, %v2764
  %v2932 = vmul.f32 %v2765, %v2765
  %v2933 = vmul.f32 %v2766, %v2766
  %v2934 = vmul.f32 %v2767, %v2767
  %v2935 = vmul.f32 %v2768, %v2768
  %v2936 = vmul.f32 %v2769, %v2769
  %v2937 = vmul.f32 %v2770, %v2770
  %v2938 = vmul.f32 %v2771, %v2771
  %v2939 = vmul.f32 %v2772, %v2772
  %v2940 = vmul.f32 %v2773, %v2773
  %v2941 = vmul.f32 %v2774, %v2774
  %v2942 = vmul.f32 %v2775, %v2775
  %v2943 = vmul.f32 %v2776, %v2776
  %v2944 = vmul.f32 %v2777, %v2777
  %v2945 = vmul.f32 %v2778, %v2778
  %v2946 = vmul.f32 %v2779, %v2779
  %v2947 = vmul.f32 %v2780, %v2780
  %v2948 = vmul.f32 %v2781, %v2781
  %v2949 = vmul.f32 %v2782, %v2782
  %v2950 = vmul.f32 %v2783, %v2783
  %v2951 = vmul.f32 %v2784, %v2784
  %v2952 = vmul.f32 %v2785, %v2785
  %v2953 = vmul.f32 %v2786, %v2786
  %v2954 = vmul.f32 %v2787, %v2787
  %v2955 = vmul.f32 %v2788, %v2788
  %v2956 = vmul.f32 %v2789, %v2789
  %v2957 = vmul.f32 %v2790, %v2790
  %v2958 = vmul.f32 %v2791, %v2791
  %v2959 = vmul.f32 %v2792, %v2792
  %v2960 = vmul.f32 %v2793, %v2793
  %v2961 = vmul.f32 %v2794, %v2794
  %v2962 = vmul.f32 %v2795, %v2795
  %v2963 = vmul.f32 %v2796, %v2796
  %v2964 = vmul.f32 %v2797, %v2797
  %v2965 = vmul.f32 %v2798, %v2798
  %v2966 = vmul.f32 %v2799, %v2799
  %v2967 = vmul.f32 %v2800, %v2800
  %v2968 = vmul.f32 %v2801, %v2801
  %v2969 = vmul.f32 %v2802, %v2802
  %v2970 = vmul.f32 %v2803, %v2803
  %v2971 = vmul.f32 %v2804, %v2804
  %v2972 = vmul.f32 %v2805, %v2805
  %v2973 = vmul.f32 %v2806, %v2806
  %v2974 = vmul.f32 %v2807, %v2807
  %v2975 = vmul.f32 %v2808, %v2808
  %v2976 = vmul.f32 %v2809, %v2809
  %v2977 = vmul.f32 %v2810, %v2810
  %v2978 = vmul.f32 %v2811, %v2811
  %v2979 = vadd.f32 %v2898, %v2899
  %v2980 = vadd.f32 %v2979, %v2900
  %v2981 = vadd.f32 %v2980, %v2901
  %v2982 = vadd.f32 %v2981, %v2902
  %v2983 = vadd.f32 %v2982, %v2903
  %v2984 = vadd.f32 %v2983, %v2904
  %v2985 = vadd.f32 %v2984, %v2905
  %v2986 = vadd.f32 %v2985, %v2906
  %v2987 = vadd.f32 %v2986, %v2907
  %v2988 = vadd.f32 %v2987, %v2908
  %v2989 = vadd.f32 %v2988, %v2909
  %v2990 = vadd.f32 %v2989, %v2910
  %v2991 = vadd.f32 %v2990, %v2911
  %v2992 = vadd.f32 %v2991, %v2912
  %v2993 = vadd.f32 %v2992, %v2913
  %v2994 = vadd.f32 %v2993, %v2914
  %v2995 = vadd.f32 %v2994, %v2915
  %v2996 = vadd.f32 %v2995, %v2916
  %v2997 = vadd.f32 %v2996, %v2917
  %v2998 = vadd.f32 %v2997, %v2918
  %v2999 = vadd.f32 %v2998, %v2919
  %v3000 = vadd.f32 %v2999, %v2920
  %v3001 = vadd.f32 %v3000, %v2921
  %v3002 = vadd.f32 %v3001, %v2922
  %v3003 = vadd.f32 %v3002, %v2923
  %v3004 = vadd.f32 %v3003, %v2924
  %v3005 = vadd.f32 %v3004, %v2925
  %v3006 = vadd.f32 %v3005, %v2926
  %v3007 = vadd.f32 %v3006, %v2927
  %v3008 = vadd.f32 %v3007, %v2928
  %v3009 = vadd.f32 %v3008, %v2929
  %v3010 = vadd.f32 %v3009, %v2930
  %v3011 = vadd.f32 %v3010, %v2931
  %v3012 = vadd.f32 %v3011, %v2932
  %v3013 = vadd.f32 %v3012, %v2933
  %v3014 = vadd.f32 %v3013, %v2934
  %v3015 = vadd.f32 %v3014, %v2935
  %v3016 = vadd.f32 %v3015, %v2936
  %v3017 = vadd.f32 %v3016, %v2937
  %v3018 = vadd.f32 %v3017, %v2938
  %v3019 = vadd.f32 %v3018, %v2939
  %v3020 = vadd.f32 %v3019, %v2940
  %v3021 = vadd.f32 %v3020, %v2941
  %v3022 = vadd.f32 %v3021, %v2942
  %v3023 = vadd.f32 %v3022, %v2943
  %v3024 = vadd.f32 %v3023, %v2944
  %v3025 = vadd.f32 %v3024, %v2945
  %v3026 = vadd.f32 %v3025, %v2946
  %v3027 = vadd.f32 %v3026, %v2947
  %v3028 = vadd.f32 %v3027, %v2948
  %v3029 = vadd.f32 %v3028, %v2949
  %v3030 = vadd.f32 %v3029, %v2950
  %v3031 = vadd.f32 %v3030, %v2951
  %v3032 = vadd.f32 %v3031, %v2952
  %v3033 = vadd.f32 %v3032, %v2953
  %v3034 = vadd.f32 %v3033, %v2954
  %v3035 = vadd.f32 %v3034, %v2955
  %v3036 = vadd.f32 %v3035, %v2956
  %v3037 = vadd.f32 %v3036, %v2957
  %v3038 = vadd.f32 %v3037, %v2958
  %v3039 = vadd.f32 %v3038, %v2959
  %v3040 = vadd.f32 %v3039, %v2960
  %v3041 = vadd.f32 %v3040, %v2961
  %v3042 = vadd.f32 %v3041, %v2962
  %v3043 = vadd.f32 %v3042, %v2963
  %v3044 = vadd.f32 %v3043, %v2964
  %v3045 = vadd.f32 %v3044, %v2965
  %v3046 = vadd.f32 %v3045, %v2966
  %v3047 = vadd.f32 %v3046, %v2967
  %v3048 = vadd.f32 %v3047, %v2968
  %v3049 = vadd.f32 %v3048, %v2969
  %v3050 = vadd.f32 %v3049, %v2970
  %v3051 = vadd.f32 %v3050, %v2971
  %v3052 = vadd.f32 %v3051, %v2972
  %v3053 = vadd.f32 %v3052, %v2973
  %v3054 = vadd.f32 %v3053, %v2974
  %v3055 = vadd.f32 %v3054, %v2975
  %v3056 = vadd.f32 %v3055, %v2976
  %v3057 = vadd.f32 %v3056, %v2977
  %v3058 = vadd.f32 %v3057, %v2978
  %v3059 = vrot.slane %v3058, 4
  %v3060 = vadd.f32 %v3058, %v3059
  %v3061 = vrot.slane %v3060, 2
  %v3062 = vadd.f32 %v3060, %v3061
  %v3063 = vrot.slane %v3062, 1
  %v3064 = vadd.f32 %v3062, %v3063
  %v3065 = vmul.f32 %v2897, 0.001953125
  %v3066 = vmul.f32 %v3064, 0.001953125
  %v3067 = vmul.f32 %v3065, %v3065
  %v3068 = vsub.f32 %v3066, %v3067
  %v3069 = vmax.f32 %v3068, 0.0
  %v3070 = vadd.f32 %v3069, 1e-05
  %v3071 = vrsqrt.pop %v3070
  %v3072 = vld [vmem:[%s6] sm:$0x1]
  %v3073 = vmul.f32 %v3071, %v3072
  %v3074 = vld [vmem:[%s7] sm:$0x1]
  %v3075 = vmul.f32 %v3065, %v3073
  %v3076 = vsub.f32 %v3074, %v3075
  %v3077 = vlaneseq
  %v3078 = vshrl.u32 %v3077, 7
  %v3079 = vsub.s32 0, %v3078
  %v3080 = vrot.slane %v3073, %v3079
  %v3081 = vmul.f32 %v2731, %v3080
  %v3082 = vmul.f32 %v2732, %v3080
  %v3083 = vmul.f32 %v2733, %v3080
  %v3084 = vmul.f32 %v2734, %v3080
  %v3085 = vmul.f32 %v2735, %v3080
  %v3086 = vmul.f32 %v2736, %v3080
  %v3087 = vmul.f32 %v2737, %v3080
  %v3088 = vmul.f32 %v2738, %v3080
  %v3089 = vmul.f32 %v2739, %v3080
  %v3090 = vmul.f32 %v2740, %v3080
  %v3091 = vmul.f32 %v2741, %v3080
  %v3092 = vmul.f32 %v2742, %v3080
  %v3093 = vmul.f32 %v2743, %v3080
  %v3094 = vmul.f32 %v2744, %v3080
  %v3095 = vmul.f32 %v2745, %v3080
  %v3096 = vmul.f32 %v2746, %v3080
  %v3097 = vmul.f32 %v2747, %v3080
  %v3098 = vmul.f32 %v2748, %v3080
  %v3099 = vmul.f32 %v2749, %v3080
  %v3100 = vmul.f32 %v2750, %v3080
  %v3101 = vmul.f32 %v2751, %v3080
  %v3102 = vmul.f32 %v2752, %v3080
  %v3103 = vmul.f32 %v2753, %v3080
  %v3104 = vmul.f32 %v2754, %v3080
  %v3105 = vmul.f32 %v2755, %v3080
  %v3106 = vmul.f32 %v2756, %v3080
  %v3107 = vmul.f32 %v2757, %v3080
  %v3108 = vmul.f32 %v2758, %v3080
  %v3109 = vmul.f32 %v2759, %v3080
  %v3110 = vmul.f32 %v2760, %v3080
  %v3111 = vmul.f32 %v2761, %v3080
  %v3112 = vmul.f32 %v2762, %v3080
  %v3113 = vmul.f32 %v2763, %v3080
  %v3114 = vmul.f32 %v2764, %v3080
  %v3115 = vmul.f32 %v2765, %v3080
  %v3116 = vmul.f32 %v2766, %v3080
  %v3117 = vmul.f32 %v2767, %v3080
  %v3118 = vmul.f32 %v2768, %v3080
  %v3119 = vmul.f32 %v2769, %v3080
  %v3120 = vmul.f32 %v2770, %v3080
  %v3121 = vmul.f32 %v2771, %v3080
  %v3122 = vmul.f32 %v2772, %v3080
  %v3123 = vmul.f32 %v2773, %v3080
  %v3124 = vmul.f32 %v2774, %v3080
  %v3125 = vmul.f32 %v2775, %v3080
  %v3126 = vmul.f32 %v2776, %v3080
  %v3127 = vmul.f32 %v2777, %v3080
  %v3128 = vmul.f32 %v2778, %v3080
  %v3129 = vmul.f32 %v2779, %v3080
  %v3130 = vmul.f32 %v2780, %v3080
  %v3131 = vmul.f32 %v2781, %v3080
  %v3132 = vmul.f32 %v2782, %v3080
  %v3133 = vmul.f32 %v2783, %v3080
  %v3134 = vmul.f32 %v2784, %v3080
  %v3135 = vmul.f32 %v2785, %v3080
  %v3136 = vmul.f32 %v2786, %v3080
  %v3137 = vmul.f32 %v2787, %v3080
  %v3138 = vmul.f32 %v2788, %v3080
  %v3139 = vmul.f32 %v2789, %v3080
  %v3140 = vmul.f32 %v2790, %v3080
  %v3141 = vmul.f32 %v2791, %v3080
  %v3142 = vmul.f32 %v2792, %v3080
  %v3143 = vmul.f32 %v2793, %v3080
  %v3144 = vmul.f32 %v2794, %v3080
  %v3145 = vmul.f32 %v2795, %v3080
  %v3146 = vmul.f32 %v2796, %v3080
  %v3147 = vmul.f32 %v2797, %v3080
  %v3148 = vmul.f32 %v2798, %v3080
  %v3149 = vmul.f32 %v2799, %v3080
  %v3150 = vmul.f32 %v2800, %v3080
  %v3151 = vmul.f32 %v2801, %v3080
  %v3152 = vmul.f32 %v2802, %v3080
  %v3153 = vmul.f32 %v2803, %v3080
  %v3154 = vmul.f32 %v2804, %v3080
  %v3155 = vmul.f32 %v2805, %v3080
  %v3156 = vmul.f32 %v2806, %v3080
  %v3157 = vmul.f32 %v2807, %v3080
  %v3158 = vmul.f32 %v2808, %v3080
  %v3159 = vmul.f32 %v2809, %v3080
  %v3160 = vmul.f32 %v2810, %v3080
  %v3161 = vmul.f32 %v2811, %v3080
  %v3163 = vlaneseq
  %v3164 = vshrl.u32 %v3163, 7
  %v3165 = vsub.s32 0, %v3164
  %v3166 = vrot.slane %v3076, %v3165
  %v3168 = vadd.f32 %v3081, %v3166
  %v3169 = vadd.f32 %v3082, %v3166
  %v3170 = vadd.f32 %v3083, %v3166
  %v3171 = vadd.f32 %v3084, %v3166
  %v3172 = vadd.f32 %v3085, %v3166
  %v3173 = vadd.f32 %v3086, %v3166
  %v3174 = vadd.f32 %v3087, %v3166
  %v3175 = vadd.f32 %v3088, %v3166
  %v3176 = vadd.f32 %v3089, %v3166
  %v3177 = vadd.f32 %v3090, %v3166
  %v3178 = vadd.f32 %v3091, %v3166
  %v3179 = vadd.f32 %v3092, %v3166
  %v3180 = vadd.f32 %v3093, %v3166
  %v3181 = vadd.f32 %v3094, %v3166
  %v3182 = vadd.f32 %v3095, %v3166
  %v3183 = vadd.f32 %v3096, %v3166
  %v3184 = vadd.f32 %v3097, %v3166
  %v3185 = vadd.f32 %v3098, %v3166
  %v3186 = vadd.f32 %v3099, %v3166
  %v3187 = vadd.f32 %v3100, %v3166
  %v3188 = vadd.f32 %v3101, %v3166
  %v3189 = vadd.f32 %v3102, %v3166
  %v3190 = vadd.f32 %v3103, %v3166
  %v3191 = vadd.f32 %v3104, %v3166
  %v3192 = vadd.f32 %v3105, %v3166
  %v3193 = vadd.f32 %v3106, %v3166
  %v3194 = vadd.f32 %v3107, %v3166
  %v3195 = vadd.f32 %v3108, %v3166
  %v3196 = vadd.f32 %v3109, %v3166
  %v3197 = vadd.f32 %v3110, %v3166
  %v3198 = vadd.f32 %v3111, %v3166
  %v3199 = vadd.f32 %v3112, %v3166
  %v3200 = vadd.f32 %v3113, %v3166
  %v3201 = vadd.f32 %v3114, %v3166
  %v3202 = vadd.f32 %v3115, %v3166
  %v3203 = vadd.f32 %v3116, %v3166
  %v3204 = vadd.f32 %v3117, %v3166
  %v3205 = vadd.f32 %v3118, %v3166
  %v3206 = vadd.f32 %v3119, %v3166
  %v3207 = vadd.f32 %v3120, %v3166
  %v3208 = vadd.f32 %v3121, %v3166
  %v3209 = vadd.f32 %v3122, %v3166
  %v3210 = vadd.f32 %v3123, %v3166
  %v3211 = vadd.f32 %v3124, %v3166
  %v3212 = vadd.f32 %v3125, %v3166
  %v3213 = vadd.f32 %v3126, %v3166
  %v3214 = vadd.f32 %v3127, %v3166
  %v3215 = vadd.f32 %v3128, %v3166
  %v3216 = vadd.f32 %v3129, %v3166
  %v3217 = vadd.f32 %v3130, %v3166
  %v3218 = vadd.f32 %v3131, %v3166
  %v3219 = vadd.f32 %v3132, %v3166
  %v3220 = vadd.f32 %v3133, %v3166
  %v3221 = vadd.f32 %v3134, %v3166
  %v3222 = vadd.f32 %v3135, %v3166
  %v3223 = vadd.f32 %v3136, %v3166
  %v3224 = vadd.f32 %v3137, %v3166
  %v3225 = vadd.f32 %v3138, %v3166
  %v3226 = vadd.f32 %v3139, %v3166
  %v3227 = vadd.f32 %v3140, %v3166
  %v3228 = vadd.f32 %v3141, %v3166
  %v3229 = vadd.f32 %v3142, %v3166
  %v3230 = vadd.f32 %v3143, %v3166
  %v3231 = vadd.f32 %v3144, %v3166
  %v3232 = vadd.f32 %v3145, %v3166
  %v3233 = vadd.f32 %v3146, %v3166
  %v3234 = vadd.f32 %v3147, %v3166
  %v3235 = vadd.f32 %v3148, %v3166
  %v3236 = vadd.f32 %v3149, %v3166
  %v3237 = vadd.f32 %v3150, %v3166
  %v3238 = vadd.f32 %v3151, %v3166
  %v3239 = vadd.f32 %v3152, %v3166
  %v3240 = vadd.f32 %v3153, %v3166
  %v3241 = vadd.f32 %v3154, %v3166
  %v3242 = vadd.f32 %v3155, %v3166
  %v3243 = vadd.f32 %v3156, %v3166
  %v3244 = vadd.f32 %v3157, %v3166
  %v3245 = vadd.f32 %v3158, %v3166
  %v3246 = vadd.f32 %v3159, %v3166
  %v3247 = vadd.f32 %v3160, %v3166
  %v3248 = vadd.f32 %v3161, %v3166
  %v3249 = vmul.f32 %v3168, %v29
  %v3250 = vmul.f32 %v3169, %v30
  %v3251 = vmul.f32 %v3170, %v31
  %v3252 = vmul.f32 %v3171, %v32
  %v3253 = vmul.f32 %v3172, %v33
  %v3254 = vmul.f32 %v3173, %v34
  %v3255 = vmul.f32 %v3174, %v35
  %v3256 = vmul.f32 %v3175, %v36
  %v3257 = vmul.f32 %v3176, %v37
  %v3258 = vmul.f32 %v3177, %v38
  %v3259 = vmul.f32 %v3178, %v39
  %v3260 = vmul.f32 %v3179, %v40
  %v3261 = vmul.f32 %v3180, %v41
  %v3262 = vmul.f32 %v3181, %v42
  %v3263 = vmul.f32 %v3182, %v43
  %v3264 = vmul.f32 %v3183, %v44
  %v3265 = vmul.f32 %v3184, %v45
  %v3266 = vmul.f32 %v3185, %v46
  %v3267 = vmul.f32 %v3186, %v47
  %v3268 = vmul.f32 %v3187, %v48
  %v3269 = vmul.f32 %v3188, %v49
  %v3270 = vmul.f32 %v3189, %v50
  %v3271 = vmul.f32 %v3190, %v51
  %v3272 = vmul.f32 %v3191, %v52
  %v3273 = vmul.f32 %v3192, %v53
  %v3274 = vmul.f32 %v3193, %v54
  %v3275 = vmul.f32 %v3194, %v55
  %v3276 = vmul.f32 %v3195, %v56
  %v3277 = vmul.f32 %v3196, %v57
  %v3278 = vmul.f32 %v3197, %v58
  %v3279 = vmul.f32 %v3198, %v59
  %v3280 = vmul.f32 %v3199, %v60
  %v3281 = vmul.f32 %v3200, %v61
  %v3282 = vmul.f32 %v3201, %v62
  %v3283 = vmul.f32 %v3202, %v63
  %v3284 = vmul.f32 %v3203, %v64
  %v3285 = vmul.f32 %v3204, %v65
  %v3286 = vmul.f32 %v3205, %v66
  %v3287 = vmul.f32 %v3206, %v67
  %v3288 = vmul.f32 %v3207, %v68
  %v3289 = vmul.f32 %v3208, %v69
  %v3290 = vmul.f32 %v3209, %v70
  %v3291 = vmul.f32 %v3210, %v71
  %v3292 = vmul.f32 %v3211, %v72
  %v3293 = vmul.f32 %v3212, %v73
  %v3294 = vmul.f32 %v3213, %v74
  %v3295 = vmul.f32 %v3214, %v75
  %v3296 = vmul.f32 %v3215, %v76
  %v3297 = vmul.f32 %v3216, %v77
  %v3298 = vmul.f32 %v3217, %v78
  %v3299 = vmul.f32 %v3218, %v79
  %v3300 = vmul.f32 %v3219, %v80
  %v3301 = vmul.f32 %v3220, %v81
  %v3302 = vmul.f32 %v3221, %v82
  %v3303 = vmul.f32 %v3222, %v83
  %v3304 = vmul.f32 %v3223, %v84
  %v3305 = vmul.f32 %v3224, %v85
  %v3306 = vmul.f32 %v3225, %v86
  %v3307 = vmul.f32 %v3226, %v87
  %v3308 = vmul.f32 %v3227, %v88
  %v3309 = vmul.f32 %v3228, %v89
  %v3310 = vmul.f32 %v3229, %v90
  %v3311 = vmul.f32 %v3230, %v91
  %v3312 = vmul.f32 %v3231, %v92
  %v3313 = vmul.f32 %v3232, %v93
  %v3314 = vmul.f32 %v3233, %v94
  %v3315 = vmul.f32 %v3234, %v95
  %v3316 = vmul.f32 %v3235, %v96
  %v3317 = vmul.f32 %v3236, %v97
  %v3318 = vmul.f32 %v3237, %v98
  %v3319 = vmul.f32 %v3238, %v99
  %v3320 = vmul.f32 %v3239, %v100
  %v3321 = vmul.f32 %v3240, %v101
  %v3322 = vmul.f32 %v3241, %v102
  %v3323 = vmul.f32 %v3242, %v103
  %v3324 = vmul.f32 %v3243, %v104
  %v3325 = vmul.f32 %v3244, %v105
  %v3326 = vmul.f32 %v3245, %v106
  %v3327 = vmul.f32 %v3246, %v107
  %v3328 = vmul.f32 %v3247, %v108
  %v3329 = vmul.f32 %v3248, %v109
  %v3330 = vrot.slane %v3249, 1
  %v3331 = vrot.slane %v3250, 1
  %v3332 = vrot.slane %v3251, 1
  %v3333 = vrot.slane %v3252, 1
  %v3334 = vrot.slane %v3253, 1
  %v3335 = vrot.slane %v3254, 1
  %v3336 = vrot.slane %v3255, 1
  %v3337 = vrot.slane %v3256, 1
  %v3338 = vrot.slane %v3257, 1
  %v3339 = vrot.slane %v3258, 1
  %v3340 = vrot.slane %v3259, 1
  %v3341 = vrot.slane %v3260, 1
  %v3342 = vrot.slane %v3261, 1
  %v3343 = vrot.slane %v3262, 1
  %v3344 = vrot.slane %v3263, 1
  %v3345 = vrot.slane %v3264, 1
  %v3346 = vrot.slane %v3265, 1
  %v3347 = vrot.slane %v3266, 1
  %v3348 = vrot.slane %v3267, 1
  %v3349 = vrot.slane %v3268, 1
  %v3350 = vrot.slane %v3269, 1
  %v3351 = vrot.slane %v3270, 1
  %v3352 = vrot.slane %v3271, 1
  %v3353 = vrot.slane %v3272, 1
  %v3354 = vrot.slane %v3273, 1
  %v3355 = vrot.slane %v3274, 1
  %v3356 = vrot.slane %v3275, 1
  %v3357 = vrot.slane %v3276, 1
  %v3358 = vrot.slane %v3277, 1
  %v3359 = vrot.slane %v3278, 1
  %v3360 = vrot.slane %v3279, 1
  %v3361 = vrot.slane %v3280, 1
  %v3362 = vrot.slane %v3281, 1
  %v3363 = vrot.slane %v3282, 1
  %v3364 = vrot.slane %v3283, 1
  %v3365 = vrot.slane %v3284, 1
  %v3366 = vrot.slane %v3285, 1
  %v3367 = vrot.slane %v3286, 1
  %v3368 = vrot.slane %v3287, 1
  %v3369 = vrot.slane %v3288, 1
  %v3370 = vrot.slane %v3289, 1
  %v3371 = vrot.slane %v3290, 1
  %v3372 = vrot.slane %v3291, 1
  %v3373 = vrot.slane %v3292, 1
  %v3374 = vrot.slane %v3293, 1
  %v3375 = vrot.slane %v3294, 1
  %v3376 = vrot.slane %v3295, 1
  %v3377 = vrot.slane %v3296, 1
  %v3378 = vrot.slane %v3297, 1
  %v3379 = vrot.slane %v3298, 1
  %v3380 = vrot.slane %v3299, 1
  %v3381 = vrot.slane %v3300, 1
  %v3382 = vrot.slane %v3301, 1
  %v3383 = vrot.slane %v3302, 1
  %v3384 = vrot.slane %v3303, 1
  %v3385 = vrot.slane %v3304, 1
  %v3386 = vrot.slane %v3305, 1
  %v3387 = vrot.slane %v3306, 1
  %v3388 = vrot.slane %v3307, 1
  %v3389 = vrot.slane %v3308, 1
  %v3390 = vrot.slane %v3309, 1
  %v3391 = vrot.slane %v3310, 1
  %v3392 = vrot.slane %v3311, 1
  %v3393 = vrot.slane %v3312, 1
  %v3394 = vrot.slane %v3313, 1
  %v3395 = vrot.slane %v3314, 1
  %v3396 = vrot.slane %v3315, 1
  %v3397 = vrot.slane %v3316, 1
  %v3398 = vrot.slane %v3317, 1
  %v3399 = vrot.slane %v3318, 1
  %v3400 = vrot.slane %v3319, 1
  %v3401 = vrot.slane %v3320, 1
  %v3402 = vrot.slane %v3321, 1
  %v3403 = vrot.slane %v3322, 1
  %v3404 = vrot.slane %v3323, 1
  %v3405 = vrot.slane %v3324, 1
  %v3406 = vrot.slane %v3325, 1
  %v3407 = vrot.slane %v3326, 1
  %v3408 = vrot.slane %v3327, 1
  %v3409 = vrot.slane %v3328, 1
  %v3410 = vrot.slane %v3329, 1
  %v3411 = vsel %vm274, %v3409, %v3410
  %v3412 = vsel %vm274, %v3408, %v3409
  %v3413 = vsel %vm274, %v3407, %v3408
  %v3414 = vsel %vm274, %v3406, %v3407
  %v3415 = vsel %vm274, %v3405, %v3406
  %v3416 = vsel %vm274, %v3404, %v3405
  %v3417 = vsel %vm274, %v3403, %v3404
  %v3418 = vsel %vm274, %v3402, %v3403
  %v3419 = vsel %vm274, %v3401, %v3402
  %v3420 = vsel %vm274, %v3400, %v3401
  %v3421 = vsel %vm274, %v3399, %v3400
  %v3422 = vsel %vm274, %v3398, %v3399
  %v3423 = vsel %vm274, %v3397, %v3398
  %v3424 = vsel %vm274, %v3396, %v3397
  %v3425 = vsel %vm274, %v3395, %v3396
  %v3426 = vsel %vm274, %v3394, %v3395
  %v3427 = vsel %vm274, %v3393, %v3394
  %v3428 = vsel %vm274, %v3392, %v3393
  %v3429 = vsel %vm274, %v3391, %v3392
  %v3430 = vsel %vm274, %v3390, %v3391
  %v3431 = vsel %vm274, %v3389, %v3390
  %v3432 = vsel %vm274, %v3388, %v3389
  %v3433 = vsel %vm274, %v3387, %v3388
  %v3434 = vsel %vm274, %v3386, %v3387
  %v3435 = vsel %vm274, %v3385, %v3386
  %v3436 = vsel %vm274, %v3384, %v3385
  %v3437 = vsel %vm274, %v3383, %v3384
  %v3438 = vsel %vm274, %v3382, %v3383
  %v3439 = vsel %vm274, %v3381, %v3382
  %v3440 = vsel %vm274, %v3380, %v3381
  %v3441 = vsel %vm274, %v3379, %v3380
  %v3442 = vsel %vm274, %v3378, %v3379
  %v3443 = vsel %vm274, %v3377, %v3378
  %v3444 = vsel %vm274, %v3376, %v3377
  %v3445 = vsel %vm274, %v3375, %v3376
  %v3446 = vsel %vm274, %v3374, %v3375
  %v3447 = vsel %vm274, %v3373, %v3374
  %v3448 = vsel %vm274, %v3372, %v3373
  %v3449 = vsel %vm274, %v3371, %v3372
  %v3450 = vsel %vm274, %v3370, %v3371
  %v3451 = vsel %vm274, %v3369, %v3370
  %v3452 = vsel %vm274, %v3368, %v3369
  %v3453 = vsel %vm274, %v3367, %v3368
  %v3454 = vsel %vm274, %v3366, %v3367
  %v3455 = vsel %vm274, %v3365, %v3366
  %v3456 = vsel %vm274, %v3364, %v3365
  %v3457 = vsel %vm274, %v3363, %v3364
  %v3458 = vsel %vm274, %v3362, %v3363
  %v3459 = vsel %vm274, %v3361, %v3362
  %v3460 = vsel %vm274, %v3360, %v3361
  %v3461 = vsel %vm274, %v3359, %v3360
  %v3462 = vsel %vm274, %v3358, %v3359
  %v3463 = vsel %vm274, %v3357, %v3358
  %v3464 = vsel %vm274, %v3356, %v3357
  %v3465 = vsel %vm274, %v3355, %v3356
  %v3466 = vsel %vm274, %v3354, %v3355
  %v3467 = vsel %vm274, %v3353, %v3354
  %v3468 = vsel %vm274, %v3352, %v3353
  %v3469 = vsel %vm274, %v3351, %v3352
  %v3470 = vsel %vm274, %v3350, %v3351
  %v3471 = vsel %vm274, %v3349, %v3350
  %v3472 = vsel %vm274, %v3348, %v3349
  %v3473 = vsel %vm274, %v3347, %v3348
  %v3474 = vsel %vm274, %v3346, %v3347
  %v3475 = vsel %vm274, %v3345, %v3346
  %v3476 = vsel %vm274, %v3344, %v3345
  %v3477 = vsel %vm274, %v3343, %v3344
  %v3478 = vsel %vm274, %v3342, %v3343
  %v3479 = vsel %vm274, %v3341, %v3342
  %v3480 = vsel %vm274, %v3340, %v3341
  %v3481 = vsel %vm274, %v3339, %v3340
  %v3482 = vsel %vm274, %v3338, %v3339
  %v3483 = vsel %vm274, %v3337, %v3338
  %v3484 = vsel %vm274, %v3336, %v3337
  %v3485 = vsel %vm274, %v3335, %v3336
  %v3486 = vsel %vm274, %v3334, %v3335
  %v3487 = vsel %vm274, %v3333, %v3334
  %v3488 = vsel %vm274, %v3332, %v3333
  %v3489 = vsel %vm274, %v3331, %v3332
  %v3490 = vsel %vm274, %v3330, %v3331
  %v3491 = vsel %vm274, %v3410, %v3330
  %v3492 = vrot.slane %v3249, 7
  %v3493 = vrot.slane %v3250, 7
  %v3494 = vrot.slane %v3251, 7
  %v3495 = vrot.slane %v3252, 7
  %v3496 = vrot.slane %v3253, 7
  %v3497 = vrot.slane %v3254, 7
  %v3498 = vrot.slane %v3255, 7
  %v3499 = vrot.slane %v3256, 7
  %v3500 = vrot.slane %v3257, 7
  %v3501 = vrot.slane %v3258, 7
  %v3502 = vrot.slane %v3259, 7
  %v3503 = vrot.slane %v3260, 7
  %v3504 = vrot.slane %v3261, 7
  %v3505 = vrot.slane %v3262, 7
  %v3506 = vrot.slane %v3263, 7
  %v3507 = vrot.slane %v3264, 7
  %v3508 = vrot.slane %v3265, 7
  %v3509 = vrot.slane %v3266, 7
  %v3510 = vrot.slane %v3267, 7
  %v3511 = vrot.slane %v3268, 7
  %v3512 = vrot.slane %v3269, 7
  %v3513 = vrot.slane %v3270, 7
  %v3514 = vrot.slane %v3271, 7
  %v3515 = vrot.slane %v3272, 7
  %v3516 = vrot.slane %v3273, 7
  %v3517 = vrot.slane %v3274, 7
  %v3518 = vrot.slane %v3275, 7
  %v3519 = vrot.slane %v3276, 7
  %v3520 = vrot.slane %v3277, 7
  %v3521 = vrot.slane %v3278, 7
  %v3522 = vrot.slane %v3279, 7
  %v3523 = vrot.slane %v3280, 7
  %v3524 = vrot.slane %v3281, 7
  %v3525 = vrot.slane %v3282, 7
  %v3526 = vrot.slane %v3283, 7
  %v3527 = vrot.slane %v3284, 7
  %v3528 = vrot.slane %v3285, 7
  %v3529 = vrot.slane %v3286, 7
  %v3530 = vrot.slane %v3287, 7
  %v3531 = vrot.slane %v3288, 7
  %v3532 = vrot.slane %v3289, 7
  %v3533 = vrot.slane %v3290, 7
  %v3534 = vrot.slane %v3291, 7
  %v3535 = vrot.slane %v3292, 7
  %v3536 = vrot.slane %v3293, 7
  %v3537 = vrot.slane %v3294, 7
  %v3538 = vrot.slane %v3295, 7
  %v3539 = vrot.slane %v3296, 7
  %v3540 = vrot.slane %v3297, 7
  %v3541 = vrot.slane %v3298, 7
  %v3542 = vrot.slane %v3299, 7
  %v3543 = vrot.slane %v3300, 7
  %v3544 = vrot.slane %v3301, 7
  %v3545 = vrot.slane %v3302, 7
  %v3546 = vrot.slane %v3303, 7
  %v3547 = vrot.slane %v3304, 7
  %v3548 = vrot.slane %v3305, 7
  %v3549 = vrot.slane %v3306, 7
  %v3550 = vrot.slane %v3307, 7
  %v3551 = vrot.slane %v3308, 7
  %v3552 = vrot.slane %v3309, 7
  %v3553 = vrot.slane %v3310, 7
  %v3554 = vrot.slane %v3311, 7
  %v3555 = vrot.slane %v3312, 7
  %v3556 = vrot.slane %v3313, 7
  %v3557 = vrot.slane %v3314, 7
  %v3558 = vrot.slane %v3315, 7
  %v3559 = vrot.slane %v3316, 7
  %v3560 = vrot.slane %v3317, 7
  %v3561 = vrot.slane %v3318, 7
  %v3562 = vrot.slane %v3319, 7
  %v3563 = vrot.slane %v3320, 7
  %v3564 = vrot.slane %v3321, 7
  %v3565 = vrot.slane %v3322, 7
  %v3566 = vrot.slane %v3323, 7
  %v3567 = vrot.slane %v3324, 7
  %v3568 = vrot.slane %v3325, 7
  %v3569 = vrot.slane %v3326, 7
  %v3570 = vrot.slane %v3327, 7
  %v3571 = vrot.slane %v3328, 7
  %v3572 = vrot.slane %v3329, 7
  %v3573 = vsel %vm437, %v3571, %v3572
  %v3574 = vsel %vm437, %v3570, %v3571
  %v3575 = vsel %vm437, %v3569, %v3570
  %v3576 = vsel %vm437, %v3568, %v3569
  %v3577 = vsel %vm437, %v3567, %v3568
  %v3578 = vsel %vm437, %v3566, %v3567
  %v3579 = vsel %vm437, %v3565, %v3566
  %v3580 = vsel %vm437, %v3564, %v3565
  %v3581 = vsel %vm437, %v3563, %v3564
  %v3582 = vsel %vm437, %v3562, %v3563
  %v3583 = vsel %vm437, %v3561, %v3562
  %v3584 = vsel %vm437, %v3560, %v3561
  %v3585 = vsel %vm437, %v3559, %v3560
  %v3586 = vsel %vm437, %v3558, %v3559
  %v3587 = vsel %vm437, %v3557, %v3558
  %v3588 = vsel %vm437, %v3556, %v3557
  %v3589 = vsel %vm437, %v3555, %v3556
  %v3590 = vsel %vm437, %v3554, %v3555
  %v3591 = vsel %vm437, %v3553, %v3554
  %v3592 = vsel %vm437, %v3552, %v3553
  %v3593 = vsel %vm437, %v3551, %v3552
  %v3594 = vsel %vm437, %v3550, %v3551
  %v3595 = vsel %vm437, %v3549, %v3550
  %v3596 = vsel %vm437, %v3548, %v3549
  %v3597 = vsel %vm437, %v3547, %v3548
  %v3598 = vsel %vm437, %v3546, %v3547
  %v3599 = vsel %vm437, %v3545, %v3546
  %v3600 = vsel %vm437, %v3544, %v3545
  %v3601 = vsel %vm437, %v3543, %v3544
  %v3602 = vsel %vm437, %v3542, %v3543
  %v3603 = vsel %vm437, %v3541, %v3542
  %v3604 = vsel %vm437, %v3540, %v3541
  %v3605 = vsel %vm437, %v3539, %v3540
  %v3606 = vsel %vm437, %v3538, %v3539
  %v3607 = vsel %vm437, %v3537, %v3538
  %v3608 = vsel %vm437, %v3536, %v3537
  %v3609 = vsel %vm437, %v3535, %v3536
  %v3610 = vsel %vm437, %v3534, %v3535
  %v3611 = vsel %vm437, %v3533, %v3534
  %v3612 = vsel %vm437, %v3532, %v3533
  %v3613 = vsel %vm437, %v3531, %v3532
  %v3614 = vsel %vm437, %v3530, %v3531
  %v3615 = vsel %vm437, %v3529, %v3530
  %v3616 = vsel %vm437, %v3528, %v3529
  %v3617 = vsel %vm437, %v3527, %v3528
  %v3618 = vsel %vm437, %v3526, %v3527
  %v3619 = vsel %vm437, %v3525, %v3526
  %v3620 = vsel %vm437, %v3524, %v3525
  %v3621 = vsel %vm437, %v3523, %v3524
  %v3622 = vsel %vm437, %v3522, %v3523
  %v3623 = vsel %vm437, %v3521, %v3522
  %v3624 = vsel %vm437, %v3520, %v3521
  %v3625 = vsel %vm437, %v3519, %v3520
  %v3626 = vsel %vm437, %v3518, %v3519
  %v3627 = vsel %vm437, %v3517, %v3518
  %v3628 = vsel %vm437, %v3516, %v3517
  %v3629 = vsel %vm437, %v3515, %v3516
  %v3630 = vsel %vm437, %v3514, %v3515
  %v3631 = vsel %vm437, %v3513, %v3514
  %v3632 = vsel %vm437, %v3512, %v3513
  %v3633 = vsel %vm437, %v3511, %v3512
  %v3634 = vsel %vm437, %v3510, %v3511
  %v3635 = vsel %vm437, %v3509, %v3510
  %v3636 = vsel %vm437, %v3508, %v3509
  %v3637 = vsel %vm437, %v3507, %v3508
  %v3638 = vsel %vm437, %v3506, %v3507
  %v3639 = vsel %vm437, %v3505, %v3506
  %v3640 = vsel %vm437, %v3504, %v3505
  %v3641 = vsel %vm437, %v3503, %v3504
  %v3642 = vsel %vm437, %v3502, %v3503
  %v3643 = vsel %vm437, %v3501, %v3502
  %v3644 = vsel %vm437, %v3500, %v3501
  %v3645 = vsel %vm437, %v3499, %v3500
  %v3646 = vsel %vm437, %v3498, %v3499
  %v3647 = vsel %vm437, %v3497, %v3498
  %v3648 = vsel %vm437, %v3496, %v3497
  %v3649 = vsel %vm437, %v3495, %v3496
  %v3650 = vsel %vm437, %v3494, %v3495
  %v3651 = vsel %vm437, %v3493, %v3494
  %v3652 = vsel %vm437, %v3492, %v3493
  %v3653 = vsel %vm437, %v3572, %v3492
  %3654 = vrot.lane.b32.xlu0 %v3490, 32
  %v3655 = vpop.permute.xlu0 %3654
  %3656 = vrot.lane.b32.xlu0 %v3489, 32
  %v3657 = vpop.permute.xlu0 %3656
  %3658 = vrot.lane.b32.xlu0 %v3488, 32
  %v3659 = vpop.permute.xlu0 %3658
  %3660 = vrot.lane.b32.xlu0 %v3487, 32
  %v3661 = vpop.permute.xlu0 %3660
  %3662 = vrot.lane.b32.xlu0 %v3486, 32
  %v3663 = vpop.permute.xlu0 %3662
  %3664 = vrot.lane.b32.xlu0 %v3485, 32
  %v3665 = vpop.permute.xlu0 %3664
  %3666 = vrot.lane.b32.xlu0 %v3484, 32
  %v3667 = vpop.permute.xlu0 %3666
  %3668 = vrot.lane.b32.xlu0 %v3483, 32
  %v3669 = vpop.permute.xlu0 %3668
  %3670 = vrot.lane.b32.xlu0 %v3482, 32
  %v3671 = vpop.permute.xlu0 %3670
  %3672 = vrot.lane.b32.xlu0 %v3481, 32
  %v3673 = vpop.permute.xlu0 %3672
  %3674 = vrot.lane.b32.xlu0 %v3480, 32
  %v3675 = vpop.permute.xlu0 %3674
  %3676 = vrot.lane.b32.xlu0 %v3479, 32
  %v3677 = vpop.permute.xlu0 %3676
  %3678 = vrot.lane.b32.xlu0 %v3478, 32
  %v3679 = vpop.permute.xlu0 %3678
  %3680 = vrot.lane.b32.xlu0 %v3477, 32
  %v3681 = vpop.permute.xlu0 %3680
  %3682 = vrot.lane.b32.xlu0 %v3476, 32
  %v3683 = vpop.permute.xlu0 %3682
  %3684 = vrot.lane.b32.xlu0 %v3475, 32
  %v3685 = vpop.permute.xlu0 %3684
  %3686 = vrot.lane.b32.xlu0 %v3474, 32
  %v3687 = vpop.permute.xlu0 %3686
  %3688 = vrot.lane.b32.xlu0 %v3473, 32
  %v3689 = vpop.permute.xlu0 %3688
  %3690 = vrot.lane.b32.xlu0 %v3472, 32
  %v3691 = vpop.permute.xlu0 %3690
  %3692 = vrot.lane.b32.xlu0 %v3471, 32
  %v3693 = vpop.permute.xlu0 %3692
  %3694 = vrot.lane.b32.xlu0 %v3470, 32
  %v3695 = vpop.permute.xlu0 %3694
  %3696 = vrot.lane.b32.xlu0 %v3469, 32
  %v3697 = vpop.permute.xlu0 %3696
  %3698 = vrot.lane.b32.xlu0 %v3468, 32
  %v3699 = vpop.permute.xlu0 %3698
  %3700 = vrot.lane.b32.xlu0 %v3467, 32
  %v3701 = vpop.permute.xlu0 %3700
  %3702 = vrot.lane.b32.xlu0 %v3466, 32
  %v3703 = vpop.permute.xlu0 %3702
  %3704 = vrot.lane.b32.xlu0 %v3465, 32
  %v3705 = vpop.permute.xlu0 %3704
  %3706 = vrot.lane.b32.xlu0 %v3464, 32
  %v3707 = vpop.permute.xlu0 %3706
  %3708 = vrot.lane.b32.xlu0 %v3463, 32
  %v3709 = vpop.permute.xlu0 %3708
  %3710 = vrot.lane.b32.xlu0 %v3462, 32
  %v3711 = vpop.permute.xlu0 %3710
  %3712 = vrot.lane.b32.xlu0 %v3461, 32
  %v3713 = vpop.permute.xlu0 %3712
  %3714 = vrot.lane.b32.xlu0 %v3460, 32
  %v3715 = vpop.permute.xlu0 %3714
  %3716 = vrot.lane.b32.xlu0 %v3459, 32
  %v3717 = vpop.permute.xlu0 %3716
  %3718 = vrot.lane.b32.xlu0 %v3458, 32
  %v3719 = vpop.permute.xlu0 %3718
  %3720 = vrot.lane.b32.xlu0 %v3457, 32
  %v3721 = vpop.permute.xlu0 %3720
  %3722 = vrot.lane.b32.xlu0 %v3456, 32
  %v3723 = vpop.permute.xlu0 %3722
  %3724 = vrot.lane.b32.xlu0 %v3455, 32
  %v3725 = vpop.permute.xlu0 %3724
  %3726 = vrot.lane.b32.xlu0 %v3454, 32
  %v3727 = vpop.permute.xlu0 %3726
  %3728 = vrot.lane.b32.xlu0 %v3453, 32
  %v3729 = vpop.permute.xlu0 %3728
  %3730 = vrot.lane.b32.xlu0 %v3452, 32
  %v3731 = vpop.permute.xlu0 %3730
  %3732 = vrot.lane.b32.xlu0 %v3451, 32
  %v3733 = vpop.permute.xlu0 %3732
  %3734 = vrot.lane.b32.xlu0 %v3450, 32
  %v3735 = vpop.permute.xlu0 %3734
  %3736 = vrot.lane.b32.xlu0 %v3449, 32
  %v3737 = vpop.permute.xlu0 %3736
  %3738 = vrot.lane.b32.xlu0 %v3448, 32
  %v3739 = vpop.permute.xlu0 %3738
  %3740 = vrot.lane.b32.xlu0 %v3447, 32
  %v3741 = vpop.permute.xlu0 %3740
  %3742 = vrot.lane.b32.xlu0 %v3446, 32
  %v3743 = vpop.permute.xlu0 %3742
  %3744 = vrot.lane.b32.xlu0 %v3445, 32
  %v3745 = vpop.permute.xlu0 %3744
  %3746 = vrot.lane.b32.xlu0 %v3444, 32
  %v3747 = vpop.permute.xlu0 %3746
  %3748 = vrot.lane.b32.xlu0 %v3443, 32
  %v3749 = vpop.permute.xlu0 %3748
  %3750 = vrot.lane.b32.xlu0 %v3442, 32
  %v3751 = vpop.permute.xlu0 %3750
  %3752 = vrot.lane.b32.xlu0 %v3441, 32
  %v3753 = vpop.permute.xlu0 %3752
  %3754 = vrot.lane.b32.xlu0 %v3440, 32
  %v3755 = vpop.permute.xlu0 %3754
  %3756 = vrot.lane.b32.xlu0 %v3439, 32
  %v3757 = vpop.permute.xlu0 %3756
  %3758 = vrot.lane.b32.xlu0 %v3438, 32
  %v3759 = vpop.permute.xlu0 %3758
  %3760 = vrot.lane.b32.xlu0 %v3437, 32
  %v3761 = vpop.permute.xlu0 %3760
  %3762 = vrot.lane.b32.xlu0 %v3436, 32
  %v3763 = vpop.permute.xlu0 %3762
  %3764 = vrot.lane.b32.xlu0 %v3435, 32
  %v3765 = vpop.permute.xlu0 %3764
  %3766 = vrot.lane.b32.xlu0 %v3434, 32
  %v3767 = vpop.permute.xlu0 %3766
  %3768 = vrot.lane.b32.xlu0 %v3433, 32
  %v3769 = vpop.permute.xlu0 %3768
  %3770 = vrot.lane.b32.xlu0 %v3432, 32
  %v3771 = vpop.permute.xlu0 %3770
  %3772 = vrot.lane.b32.xlu0 %v3431, 32
  %v3773 = vpop.permute.xlu0 %3772
  %3774 = vrot.lane.b32.xlu0 %v3430, 32
  %v3775 = vpop.permute.xlu0 %3774
  %3776 = vrot.lane.b32.xlu0 %v3429, 32
  %v3777 = vpop.permute.xlu0 %3776
  %3778 = vrot.lane.b32.xlu0 %v3428, 32
  %v3779 = vpop.permute.xlu0 %3778
  %3780 = vrot.lane.b32.xlu0 %v3427, 32
  %v3781 = vpop.permute.xlu0 %3780
  %3782 = vrot.lane.b32.xlu0 %v3426, 32
  %v3783 = vpop.permute.xlu0 %3782
  %3784 = vrot.lane.b32.xlu0 %v3425, 32
  %v3785 = vpop.permute.xlu0 %3784
  %3786 = vrot.lane.b32.xlu0 %v3424, 32
  %v3787 = vpop.permute.xlu0 %3786
  %3788 = vrot.lane.b32.xlu0 %v3423, 32
  %v3789 = vpop.permute.xlu0 %3788
  %3790 = vrot.lane.b32.xlu0 %v3422, 32
  %v3791 = vpop.permute.xlu0 %3790
  %3792 = vrot.lane.b32.xlu0 %v3421, 32
  %v3793 = vpop.permute.xlu0 %3792
  %3794 = vrot.lane.b32.xlu0 %v3420, 32
  %v3795 = vpop.permute.xlu0 %3794
  %3796 = vrot.lane.b32.xlu0 %v3419, 32
  %v3797 = vpop.permute.xlu0 %3796
  %3798 = vrot.lane.b32.xlu0 %v3418, 32
  %v3799 = vpop.permute.xlu0 %3798
  %3800 = vrot.lane.b32.xlu0 %v3417, 32
  %v3801 = vpop.permute.xlu0 %3800
  %3802 = vrot.lane.b32.xlu0 %v3416, 32
  %v3803 = vpop.permute.xlu0 %3802
  %3804 = vrot.lane.b32.xlu0 %v3415, 32
  %v3805 = vpop.permute.xlu0 %3804
  %3806 = vrot.lane.b32.xlu0 %v3414, 32
  %v3807 = vpop.permute.xlu0 %3806
  %3808 = vrot.lane.b32.xlu0 %v3413, 32
  %v3809 = vpop.permute.xlu0 %3808
  %3810 = vrot.lane.b32.xlu0 %v3412, 32
  %v3811 = vpop.permute.xlu0 %3810
  %3812 = vrot.lane.b32.xlu0 %v3411, 32
  %v3813 = vpop.permute.xlu0 %3812
  %3814 = vrot.lane.b32.xlu0 %v3491, 32
  %v3815 = vpop.permute.xlu0 %3814
  %v3816 = vadd.f32 %v3249, %v3655
  %v3817 = vadd.f32 %v3250, %v3657
  %v3818 = vadd.f32 %v3251, %v3659
  %v3819 = vadd.f32 %v3252, %v3661
  %v3820 = vadd.f32 %v3253, %v3663
  %v3821 = vadd.f32 %v3254, %v3665
  %v3822 = vadd.f32 %v3255, %v3667
  %v3823 = vadd.f32 %v3256, %v3669
  %v3824 = vadd.f32 %v3257, %v3671
  %v3825 = vadd.f32 %v3258, %v3673
  %v3826 = vadd.f32 %v3259, %v3675
  %v3827 = vadd.f32 %v3260, %v3677
  %v3828 = vadd.f32 %v3261, %v3679
  %v3829 = vadd.f32 %v3262, %v3681
  %v3830 = vadd.f32 %v3263, %v3683
  %v3831 = vadd.f32 %v3264, %v3685
  %v3832 = vadd.f32 %v3265, %v3687
  %v3833 = vadd.f32 %v3266, %v3689
  %v3834 = vadd.f32 %v3267, %v3691
  %v3835 = vadd.f32 %v3268, %v3693
  %v3836 = vadd.f32 %v3269, %v3695
  %v3837 = vadd.f32 %v3270, %v3697
  %v3838 = vadd.f32 %v3271, %v3699
  %v3839 = vadd.f32 %v3272, %v3701
  %v3840 = vadd.f32 %v3273, %v3703
  %v3841 = vadd.f32 %v3274, %v3705
  %v3842 = vadd.f32 %v3275, %v3707
  %v3843 = vadd.f32 %v3276, %v3709
  %v3844 = vadd.f32 %v3277, %v3711
  %v3845 = vadd.f32 %v3278, %v3713
  %v3846 = vadd.f32 %v3279, %v3715
  %v3847 = vadd.f32 %v3280, %v3717
  %v3848 = vadd.f32 %v3281, %v3719
  %v3849 = vadd.f32 %v3282, %v3721
  %v3850 = vadd.f32 %v3283, %v3723
  %v3851 = vadd.f32 %v3284, %v3725
  %v3852 = vadd.f32 %v3285, %v3727
  %v3853 = vadd.f32 %v3286, %v3729
  %v3854 = vadd.f32 %v3287, %v3731
  %v3855 = vadd.f32 %v3288, %v3733
  %v3856 = vadd.f32 %v3289, %v3735
  %v3857 = vadd.f32 %v3290, %v3737
  %v3858 = vadd.f32 %v3291, %v3739
  %v3859 = vadd.f32 %v3292, %v3741
  %v3860 = vadd.f32 %v3293, %v3743
  %v3861 = vadd.f32 %v3294, %v3745
  %v3862 = vadd.f32 %v3295, %v3747
  %v3863 = vadd.f32 %v3296, %v3749
  %v3864 = vadd.f32 %v3297, %v3751
  %v3865 = vadd.f32 %v3298, %v3753
  %v3866 = vadd.f32 %v3299, %v3755
  %v3867 = vadd.f32 %v3300, %v3757
  %v3868 = vadd.f32 %v3301, %v3759
  %v3869 = vadd.f32 %v3302, %v3761
  %v3870 = vadd.f32 %v3303, %v3763
  %v3871 = vadd.f32 %v3304, %v3765
  %v3872 = vadd.f32 %v3305, %v3767
  %v3873 = vadd.f32 %v3306, %v3769
  %v3874 = vadd.f32 %v3307, %v3771
  %v3875 = vadd.f32 %v3308, %v3773
  %v3876 = vadd.f32 %v3309, %v3775
  %v3877 = vadd.f32 %v3310, %v3777
  %v3878 = vadd.f32 %v3311, %v3779
  %v3879 = vadd.f32 %v3312, %v3781
  %v3880 = vadd.f32 %v3313, %v3783
  %v3881 = vadd.f32 %v3314, %v3785
  %v3882 = vadd.f32 %v3315, %v3787
  %v3883 = vadd.f32 %v3316, %v3789
  %v3884 = vadd.f32 %v3317, %v3791
  %v3885 = vadd.f32 %v3318, %v3793
  %v3886 = vadd.f32 %v3319, %v3795
  %v3887 = vadd.f32 %v3320, %v3797
  %v3888 = vadd.f32 %v3321, %v3799
  %v3889 = vadd.f32 %v3322, %v3801
  %v3890 = vadd.f32 %v3323, %v3803
  %v3891 = vadd.f32 %v3324, %v3805
  %v3892 = vadd.f32 %v3325, %v3807
  %v3893 = vadd.f32 %v3326, %v3809
  %v3894 = vadd.f32 %v3327, %v3811
  %v3895 = vadd.f32 %v3328, %v3813
  %v3896 = vadd.f32 %v3329, %v3815
  %3897 = vrot.lane.b32.xlu0 %v3653, 64
  %v3898 = vpop.permute.xlu0 %3897
  %3899 = vrot.lane.b32.xlu0 %v3652, 64
  %v3900 = vpop.permute.xlu0 %3899
  %3901 = vrot.lane.b32.xlu0 %v3651, 64
  %v3902 = vpop.permute.xlu0 %3901
  %3903 = vrot.lane.b32.xlu0 %v3650, 64
  %v3904 = vpop.permute.xlu0 %3903
  %3905 = vrot.lane.b32.xlu0 %v3649, 64
  %v3906 = vpop.permute.xlu0 %3905
  %3907 = vrot.lane.b32.xlu0 %v3648, 64
  %v3908 = vpop.permute.xlu0 %3907
  %3909 = vrot.lane.b32.xlu0 %v3647, 64
  %v3910 = vpop.permute.xlu0 %3909
  %3911 = vrot.lane.b32.xlu0 %v3646, 64
  %v3912 = vpop.permute.xlu0 %3911
  %3913 = vrot.lane.b32.xlu0 %v3645, 64
  %v3914 = vpop.permute.xlu0 %3913
  %3915 = vrot.lane.b32.xlu0 %v3644, 64
  %v3916 = vpop.permute.xlu0 %3915
  %3917 = vrot.lane.b32.xlu0 %v3643, 64
  %v3918 = vpop.permute.xlu0 %3917
  %3919 = vrot.lane.b32.xlu0 %v3642, 64
  %v3920 = vpop.permute.xlu0 %3919
  %3921 = vrot.lane.b32.xlu0 %v3641, 64
  %v3922 = vpop.permute.xlu0 %3921
  %3923 = vrot.lane.b32.xlu0 %v3640, 64
  %v3924 = vpop.permute.xlu0 %3923
  %3925 = vrot.lane.b32.xlu0 %v3639, 64
  %v3926 = vpop.permute.xlu0 %3925
  %3927 = vrot.lane.b32.xlu0 %v3638, 64
  %v3928 = vpop.permute.xlu0 %3927
  %3929 = vrot.lane.b32.xlu0 %v3637, 64
  %v3930 = vpop.permute.xlu0 %3929
  %3931 = vrot.lane.b32.xlu0 %v3636, 64
  %v3932 = vpop.permute.xlu0 %3931
  %3933 = vrot.lane.b32.xlu0 %v3635, 64
  %v3934 = vpop.permute.xlu0 %3933
  %3935 = vrot.lane.b32.xlu0 %v3634, 64
  %v3936 = vpop.permute.xlu0 %3935
  %3937 = vrot.lane.b32.xlu0 %v3633, 64
  %v3938 = vpop.permute.xlu0 %3937
  %3939 = vrot.lane.b32.xlu0 %v3632, 64
  %v3940 = vpop.permute.xlu0 %3939
  %3941 = vrot.lane.b32.xlu0 %v3631, 64
  %v3942 = vpop.permute.xlu0 %3941
  %3943 = vrot.lane.b32.xlu0 %v3630, 64
  %v3944 = vpop.permute.xlu0 %3943
  %3945 = vrot.lane.b32.xlu0 %v3629, 64
  %v3946 = vpop.permute.xlu0 %3945
  %3947 = vrot.lane.b32.xlu0 %v3628, 64
  %v3948 = vpop.permute.xlu0 %3947
  %3949 = vrot.lane.b32.xlu0 %v3627, 64
  %v3950 = vpop.permute.xlu0 %3949
  %3951 = vrot.lane.b32.xlu0 %v3626, 64
  %v3952 = vpop.permute.xlu0 %3951
  %3953 = vrot.lane.b32.xlu0 %v3625, 64
  %v3954 = vpop.permute.xlu0 %3953
  %3955 = vrot.lane.b32.xlu0 %v3624, 64
  %v3956 = vpop.permute.xlu0 %3955
  %3957 = vrot.lane.b32.xlu0 %v3623, 64
  %v3958 = vpop.permute.xlu0 %3957
  %3959 = vrot.lane.b32.xlu0 %v3622, 64
  %v3960 = vpop.permute.xlu0 %3959
  %3961 = vrot.lane.b32.xlu0 %v3621, 64
  %v3962 = vpop.permute.xlu0 %3961
  %3963 = vrot.lane.b32.xlu0 %v3620, 64
  %v3964 = vpop.permute.xlu0 %3963
  %3965 = vrot.lane.b32.xlu0 %v3619, 64
  %v3966 = vpop.permute.xlu0 %3965
  %3967 = vrot.lane.b32.xlu0 %v3618, 64
  %v3968 = vpop.permute.xlu0 %3967
  %3969 = vrot.lane.b32.xlu0 %v3617, 64
  %v3970 = vpop.permute.xlu0 %3969
  %3971 = vrot.lane.b32.xlu0 %v3616, 64
  %v3972 = vpop.permute.xlu0 %3971
  %3973 = vrot.lane.b32.xlu0 %v3615, 64
  %v3974 = vpop.permute.xlu0 %3973
  %3975 = vrot.lane.b32.xlu0 %v3614, 64
  %v3976 = vpop.permute.xlu0 %3975
  %3977 = vrot.lane.b32.xlu0 %v3613, 64
  %v3978 = vpop.permute.xlu0 %3977
  %3979 = vrot.lane.b32.xlu0 %v3612, 64
  %v3980 = vpop.permute.xlu0 %3979
  %3981 = vrot.lane.b32.xlu0 %v3611, 64
  %v3982 = vpop.permute.xlu0 %3981
  %3983 = vrot.lane.b32.xlu0 %v3610, 64
  %v3984 = vpop.permute.xlu0 %3983
  %3985 = vrot.lane.b32.xlu0 %v3609, 64
  %v3986 = vpop.permute.xlu0 %3985
  %3987 = vrot.lane.b32.xlu0 %v3608, 64
  %v3988 = vpop.permute.xlu0 %3987
  %3989 = vrot.lane.b32.xlu0 %v3607, 64
  %v3990 = vpop.permute.xlu0 %3989
  %3991 = vrot.lane.b32.xlu0 %v3606, 64
  %v3992 = vpop.permute.xlu0 %3991
  %3993 = vrot.lane.b32.xlu0 %v3605, 64
  %v3994 = vpop.permute.xlu0 %3993
  %3995 = vrot.lane.b32.xlu0 %v3604, 64
  %v3996 = vpop.permute.xlu0 %3995
  %3997 = vrot.lane.b32.xlu0 %v3603, 64
  %v3998 = vpop.permute.xlu0 %3997
  %3999 = vrot.lane.b32.xlu0 %v3602, 64
  %v4000 = vpop.permute.xlu0 %3999
  %4001 = vrot.lane.b32.xlu0 %v3601, 64
  %v4002 = vpop.permute.xlu0 %4001
  %4003 = vrot.lane.b32.xlu0 %v3600, 64
  %v4004 = vpop.permute.xlu0 %4003
  %4005 = vrot.lane.b32.xlu0 %v3599, 64
  %v4006 = vpop.permute.xlu0 %4005
  %4007 = vrot.lane.b32.xlu0 %v3598, 64
  %v4008 = vpop.permute.xlu0 %4007
  %4009 = vrot.lane.b32.xlu0 %v3597, 64
  %v4010 = vpop.permute.xlu0 %4009
  %4011 = vrot.lane.b32.xlu0 %v3596, 64
  %v4012 = vpop.permute.xlu0 %4011
  %4013 = vrot.lane.b32.xlu0 %v3595, 64
  %v4014 = vpop.permute.xlu0 %4013
  %4015 = vrot.lane.b32.xlu0 %v3594, 64
  %v4016 = vpop.permute.xlu0 %4015
  %4017 = vrot.lane.b32.xlu0 %v3593, 64
  %v4018 = vpop.permute.xlu0 %4017
  %4019 = vrot.lane.b32.xlu0 %v3592, 64
  %v4020 = vpop.permute.xlu0 %4019
  %4021 = vrot.lane.b32.xlu0 %v3591, 64
  %v4022 = vpop.permute.xlu0 %4021
  %4023 = vrot.lane.b32.xlu0 %v3590, 64
  %v4024 = vpop.permute.xlu0 %4023
  %4025 = vrot.lane.b32.xlu0 %v3589, 64
  %v4026 = vpop.permute.xlu0 %4025
  %4027 = vrot.lane.b32.xlu0 %v3588, 64
  %v4028 = vpop.permute.xlu0 %4027
  %4029 = vrot.lane.b32.xlu0 %v3587, 64
  %v4030 = vpop.permute.xlu0 %4029
  %4031 = vrot.lane.b32.xlu0 %v3586, 64
  %v4032 = vpop.permute.xlu0 %4031
  %4033 = vrot.lane.b32.xlu0 %v3585, 64
  %v4034 = vpop.permute.xlu0 %4033
  %4035 = vrot.lane.b32.xlu0 %v3584, 64
  %v4036 = vpop.permute.xlu0 %4035
  %4037 = vrot.lane.b32.xlu0 %v3583, 64
  %v4038 = vpop.permute.xlu0 %4037
  %4039 = vrot.lane.b32.xlu0 %v3582, 64
  %v4040 = vpop.permute.xlu0 %4039
  %4041 = vrot.lane.b32.xlu0 %v3581, 64
  %v4042 = vpop.permute.xlu0 %4041
  %4043 = vrot.lane.b32.xlu0 %v3580, 64
  %v4044 = vpop.permute.xlu0 %4043
  %4045 = vrot.lane.b32.xlu0 %v3579, 64
  %v4046 = vpop.permute.xlu0 %4045
  %4047 = vrot.lane.b32.xlu0 %v3578, 64
  %v4048 = vpop.permute.xlu0 %4047
  %4049 = vrot.lane.b32.xlu0 %v3577, 64
  %v4050 = vpop.permute.xlu0 %4049
  %4051 = vrot.lane.b32.xlu0 %v3576, 64
  %v4052 = vpop.permute.xlu0 %4051
  %4053 = vrot.lane.b32.xlu0 %v3575, 64
  %v4054 = vpop.permute.xlu0 %4053
  %4055 = vrot.lane.b32.xlu0 %v3574, 64
  %v4056 = vpop.permute.xlu0 %4055
  %4057 = vrot.lane.b32.xlu0 %v3573, 64
  %v4058 = vpop.permute.xlu0 %4057
  %v4059 = vadd.f32 %v3816, %v3898
  %v4060 = vadd.f32 %v3817, %v3900
  %v4061 = vadd.f32 %v3818, %v3902
  %v4062 = vadd.f32 %v3819, %v3904
  %v4063 = vadd.f32 %v3820, %v3906
  %v4064 = vadd.f32 %v3821, %v3908
  %v4065 = vadd.f32 %v3822, %v3910
  %v4066 = vadd.f32 %v3823, %v3912
  %v4067 = vadd.f32 %v3824, %v3914
  %v4068 = vadd.f32 %v3825, %v3916
  %v4069 = vadd.f32 %v3826, %v3918
  %v4070 = vadd.f32 %v3827, %v3920
  %v4071 = vadd.f32 %v3828, %v3922
  %v4072 = vadd.f32 %v3829, %v3924
  %v4073 = vadd.f32 %v3830, %v3926
  %v4074 = vadd.f32 %v3831, %v3928
  %v4075 = vadd.f32 %v3832, %v3930
  %v4076 = vadd.f32 %v3833, %v3932
  %v4077 = vadd.f32 %v3834, %v3934
  %v4078 = vadd.f32 %v3835, %v3936
  %v4079 = vadd.f32 %v3836, %v3938
  %v4080 = vadd.f32 %v3837, %v3940
  %v4081 = vadd.f32 %v3838, %v3942
  %v4082 = vadd.f32 %v3839, %v3944
  %v4083 = vadd.f32 %v3840, %v3946
  %v4084 = vadd.f32 %v3841, %v3948
  %v4085 = vadd.f32 %v3842, %v3950
  %v4086 = vadd.f32 %v3843, %v3952
  %v4087 = vadd.f32 %v3844, %v3954
  %v4088 = vadd.f32 %v3845, %v3956
  %v4089 = vadd.f32 %v3846, %v3958
  %v4090 = vadd.f32 %v3847, %v3960
  %v4091 = vadd.f32 %v3848, %v3962
  %v4092 = vadd.f32 %v3849, %v3964
  %v4093 = vadd.f32 %v3850, %v3966
  %v4094 = vadd.f32 %v3851, %v3968
  %v4095 = vadd.f32 %v3852, %v3970
  %v4096 = vadd.f32 %v3853, %v3972
  %v4097 = vadd.f32 %v3854, %v3974
  %v4098 = vadd.f32 %v3855, %v3976
  %v4099 = vadd.f32 %v3856, %v3978
  %v4100 = vadd.f32 %v3857, %v3980
  %v4101 = vadd.f32 %v3858, %v3982
  %v4102 = vadd.f32 %v3859, %v3984
  %v4103 = vadd.f32 %v3860, %v3986
  %v4104 = vadd.f32 %v3861, %v3988
  %v4105 = vadd.f32 %v3862, %v3990
  %v4106 = vadd.f32 %v3863, %v3992
  %v4107 = vadd.f32 %v3864, %v3994
  %v4108 = vadd.f32 %v3865, %v3996
  %v4109 = vadd.f32 %v3866, %v3998
  %v4110 = vadd.f32 %v3867, %v4000
  %v4111 = vadd.f32 %v3868, %v4002
  %v4112 = vadd.f32 %v3869, %v4004
  %v4113 = vadd.f32 %v3870, %v4006
  %v4114 = vadd.f32 %v3871, %v4008
  %v4115 = vadd.f32 %v3872, %v4010
  %v4116 = vadd.f32 %v3873, %v4012
  %v4117 = vadd.f32 %v3874, %v4014
  %v4118 = vadd.f32 %v3875, %v4016
  %v4119 = vadd.f32 %v3876, %v4018
  %v4120 = vadd.f32 %v3877, %v4020
  %v4121 = vadd.f32 %v3878, %v4022
  %v4122 = vadd.f32 %v3879, %v4024
  %v4123 = vadd.f32 %v3880, %v4026
  %v4124 = vadd.f32 %v3881, %v4028
  %v4125 = vadd.f32 %v3882, %v4030
  %v4126 = vadd.f32 %v3883, %v4032
  %v4127 = vadd.f32 %v3884, %v4034
  %v4128 = vadd.f32 %v3885, %v4036
  %v4129 = vadd.f32 %v3886, %v4038
  %v4130 = vadd.f32 %v3887, %v4040
  %v4131 = vadd.f32 %v3888, %v4042
  %v4132 = vadd.f32 %v3889, %v4044
  %v4133 = vadd.f32 %v3890, %v4046
  %v4134 = vadd.f32 %v3891, %v4048
  %v4135 = vadd.f32 %v3892, %v4050
  %v4136 = vadd.f32 %v3893, %v4052
  %v4137 = vadd.f32 %v3894, %v4054
  %v4138 = vadd.f32 %v3895, %v4056
  %v4139 = vadd.f32 %v3896, %v4058
  %s4140 = scalar_lea.vmem %s2, 384
  %v4141 = vld [vmem:[%s4140] sm:$0xff]
  %v4142 = vld [vmem:[%s4140 + $0x8] sm:$0xff]
  %v4143 = vld [vmem:[%s4140 + $0x10] sm:$0xff]
  %v4144 = vld [vmem:[%s4140 + $0x18] sm:$0xff]
  %v4145 = vld [vmem:[%s4140 + $0x20] sm:$0xff]
  %v4146 = vld [vmem:[%s4140 + $0x28] sm:$0xff]
  %v4147 = vld [vmem:[%s4140 + $0x30] sm:$0xff]
  %v4148 = vld [vmem:[%s4140 + $0x38] sm:$0xff]
  %v4149 = vld [vmem:[%s4140 + $0x40] sm:$0xff]
  %v4150 = vld [vmem:[%s4140 + $0x48] sm:$0xff]
  %v4151 = vld [vmem:[%s4140 + $0x50] sm:$0xff]
  %v4152 = vld [vmem:[%s4140 + $0x58] sm:$0xff]
  %v4153 = vld [vmem:[%s4140 + $0x60] sm:$0xff]
  %v4154 = vld [vmem:[%s4140 + $0x68] sm:$0xff]
  %v4155 = vld [vmem:[%s4140 + $0x70] sm:$0xff]
  %v4156 = vld [vmem:[%s4140 + $0x78] sm:$0xff]
  %v4157 = vld [vmem:[%s4140 + $0x80] sm:$0xff]
  %v4158 = vld [vmem:[%s4140 + $0x88] sm:$0xff]
  %v4159 = vld [vmem:[%s4140 + $0x90] sm:$0xff]
  %v4160 = vld [vmem:[%s4140 + $0x98] sm:$0xff]
  %v4161 = vld [vmem:[%s4140 + $0xa0] sm:$0xff]
  %v4162 = vld [vmem:[%s4140 + $0xa8] sm:$0xff]
  %v4163 = vld [vmem:[%s4140 + $0xb0] sm:$0xff]
  %v4164 = vld [vmem:[%s4140 + $0xb8] sm:$0xff]
  %v4165 = vld [vmem:[%s4140 + $0xc0] sm:$0xff]
  %v4166 = vld [vmem:[%s4140 + $0xc8] sm:$0xff]
  %v4167 = vld [vmem:[%s4140 + $0xd0] sm:$0xff]
  %v4168 = vld [vmem:[%s4140 + $0xd8] sm:$0xff]
  %v4169 = vld [vmem:[%s4140 + $0xe0] sm:$0xff]
  %v4170 = vld [vmem:[%s4140 + $0xe8] sm:$0xff]
  %v4171 = vld [vmem:[%s4140 + $0xf0] sm:$0xff]
  %v4172 = vld [vmem:[%s4140 + $0xf8] sm:$0xff]
  %v4173 = vld [vmem:[%s4140 + $0x100] sm:$0xff]
  %v4174 = vld [vmem:[%s4140 + $0x108] sm:$0xff]
  %v4175 = vld [vmem:[%s4140 + $0x110] sm:$0xff]
  %v4176 = vld [vmem:[%s4140 + $0x118] sm:$0xff]
  %v4177 = vld [vmem:[%s4140 + $0x120] sm:$0xff]
  %v4178 = vld [vmem:[%s4140 + $0x128] sm:$0xff]
  %v4179 = vld [vmem:[%s4140 + $0x130] sm:$0xff]
  %v4180 = vld [vmem:[%s4140 + $0x138] sm:$0xff]
  %v4181 = vld [vmem:[%s4140 + $0x140] sm:$0xff]
  %v4182 = vld [vmem:[%s4140 + $0x148] sm:$0xff]
  %v4183 = vld [vmem:[%s4140 + $0x150] sm:$0xff]
  %v4184 = vld [vmem:[%s4140 + $0x158] sm:$0xff]
  %v4185 = vld [vmem:[%s4140 + $0x160] sm:$0xff]
  %v4186 = vld [vmem:[%s4140 + $0x168] sm:$0xff]
  %v4187 = vld [vmem:[%s4140 + $0x170] sm:$0xff]
  %v4188 = vld [vmem:[%s4140 + $0x178] sm:$0xff]
  %4189 = vmatprep.subr.mxu0 %v4142
  %4190 = vmatpush1.msra.mxu0 %v4141
  %4191 = vmatprep.subr.mxu0 %v4145
  %4192 = vmatpush1.msra.mxu0 %v4144
  %4193 = vmatprep.subr.mxu0 %v4148
  %4194 = vmatpush1.msra.mxu0 %v4147
  %4195 = vmatprep.subr.mxu0 %v4151
  %4196 = vmatpush1.msra.mxu0 %v4150
  %4197 = vmatprep.subr.mxu0 %v4154
  %4198 = vmatpush1.msra.mxu0 %v4153
  %4199 = vmatprep.subr.mxu0 %v4157
  %4200 = vmatpush1.msra.mxu0 %v4156
  %4201 = vmatprep.subr.mxu0 %v4160
  %4202 = vmatpush1.msra.mxu0 %v4159
  %4203 = vmatprep.subr.mxu0 %v4163
  %4204 = vmatpush1.msra.mxu0 %v4162
  %4205 = vmatprep.subr.mxu0 %v4166
  %4206 = vmatpush1.msra.mxu0 %v4165
  %4207 = vmatprep.subr.mxu0 %v4169
  %4208 = vmatpush1.msra.mxu0 %v4168
  %4209 = vmatprep.subr.mxu0 %v4172
  %4210 = vmatpush1.msra.mxu0 %v4171
  %4211 = vmatprep.subr.mxu0 %v4175
  %4212 = vmatpush1.msra.mxu0 %v4174
  %4213 = vmatprep.subr.mxu0 %v4178
  %4214 = vmatpush1.msra.mxu0 %v4177
  %4215 = vmatprep.subr.mxu0 %v4181
  %4216 = vmatpush1.msra.mxu0 %v4180
  %4217 = vmatprep.subr.mxu0 %v4184
  %4218 = vmatpush1.msra.mxu0 %v4183
  %4219 = vmatprep.subr.mxu0 %v4187
  %4220 = vmatpush1.msra.mxu0 %v4186
  %4221 = vmatprep.subr.mxu0 0.0
  %4222 = vmatpush1.msra.mxu0 0.0
  %4223 = vmatprep.subr.mxu0 0.0
  %4224 = vmatpush1.msra.mxu0 0.0
  %4225 = vmatprep.subr.mxu0 0.0
  %4226 = vmatpush1.msra.mxu0 0.0
  %4227 = vmatprep.subr.mxu0 0.0
  %4228 = vmatpush1.msra.mxu0 0.0
  %4229 = vmatprep.subr.mxu0 0.0
  %4230 = vmatpush1.msra.mxu0 0.0
  %4231 = vmatprep.subr.mxu0 0.0
  %4232 = vmatpush1.msra.mxu0 0.0
  %4233 = vmatprep.subr.mxu0 0.0
  %4234 = vmatpush1.msra.mxu0 0.0
  %4235 = vmatprep.subr.mxu0 0.0
  %4236 = vmatpush1.msra.mxu0 0.0
  %4237 = vmatprep.subr.mxu0 0.0
  %4238 = vmatpush1.msra.mxu0 0.0
  %4239 = vmatprep.subr.mxu0 0.0
  %4240 = vmatpush1.msra.mxu0 0.0
  %4241 = vmatprep.subr.mxu0 0.0
  %4242 = vmatpush1.msra.mxu0 0.0
  %4243 = vmatprep.subr.mxu0 0.0
  %4244 = vmatpush1.msra.mxu0 0.0
  %4245 = vmatprep.subr.mxu0 0.0
  %4246 = vmatpush1.msra.mxu0 0.0
  %4247 = vmatprep.subr.mxu0 0.0
  %4248 = vmatpush1.msra.mxu0 0.0
  %4249 = vmatprep.subr.mxu0 0.0
  %4250 = vmatpush1.msra.mxu0 0.0
  %4251 = vmatprep.subr.mxu0 0.0
  %4252 = vmatpush1.msra.mxu0 0.0
  %4253 = vmatprep.mubr.f32.mxu0 0.0
  %4254 = vmatmul.mubr.f32.gmra.mrb[0].mxu0 %v4059
  %v4255 = vpop.f32.mrb[0].mxu0
  %v4256 = vadd.f32 0.0, %v4255
  %v4257 = vpop.f32.mrb[0].mxu0
  %v4258 = vadd.f32 0.0, %v4257
  %4259 = vmatprep.mubr.f32.mxu0 0.0
  %4260 = vmatmul.mubr.f32.gmra.mrb[0].mxu0 %v4060
  %v4261 = vpop.f32.mrb[0].mxu0
  %v4262 = vadd.f32 0.0, %v4261
  %v4263 = vpop.f32.mrb[0].mxu0
  %v4264 = vadd.f32 0.0, %v4263
  %4265 = vmatprep.mubr.f32.mxu0 0.0
  %4266 = vmatmul.mubr.f32.gmra.mrb[0].mxu0 %v4061
  %v4267 = vpop.f32.mrb[0].mxu0
  %v4268 = vadd.f32 0.0, %v4267
  %v4269 = vpop.f32.mrb[0].mxu0
  %v4270 = vadd.f32 0.0, %v4269
  %4271 = vmatprep.mubr.f32.mxu0 0.0
  %4272 = vmatmul.mubr.f32.gmra.mrb[0].mxu0 %v4062
  %v4273 = vpop.f32.mrb[0].mxu0
  %v4274 = vadd.f32 0.0, %v4273
  %v4275 = vpop.f32.mrb[0].mxu0
  %v4276 = vadd.f32 0.0, %v4275
  %4277 = vmatprep.mubr.f32.mxu0 0.0
  %4278 = vmatmul.mubr.f32.gmra.mrb[0].mxu0 %v4063
  %v4279 = vpop.f32.mrb[0].mxu0
  %v4280 = vadd.f32 0.0, %v4279
  %v4281 = vpop.f32.mrb[0].mxu0
  %v4282 = vadd.f32 0.0, %v4281
  %4283 = vmatprep.mubr.f32.mxu0 0.0
  %4284 = vmatmul.mubr.f32.gmra.mrb[0].mxu0 %v4064
  %v4285 = vpop.f32.mrb[0].mxu0
  %v4286 = vadd.f32 0.0, %v4285
  %v4287 = vpop.f32.mrb[0].mxu0
  %v4288 = vadd.f32 0.0, %v4287
  %4289 = vmatprep.mubr.f32.mxu0 0.0
  %4290 = vmatmul.mubr.f32.gmra.mrb[0].mxu0 %v4065
  %v4291 = vpop.f32.mrb[0].mxu0
  %v4292 = vadd.f32 0.0, %v4291
  %v4293 = vpop.f32.mrb[0].mxu0
  %v4294 = vadd.f32 0.0, %v4293
  %4295 = vmatprep.mubr.f32.mxu0 0.0
  %4296 = vmatmul.mubr.f32.gmra.mrb[0].mxu0 %v4066
  %v4297 = vpop.f32.mrb[0].mxu0
  %v4298 = vadd.f32 0.0, %v4297
  %v4299 = vpop.f32.mrb[0].mxu0
  %v4300 = vadd.f32 0.0, %v4299
  %4301 = vmatprep.mubr.f32.mxu0 0.0
  %4302 = vmatmul.mubr.f32.gmra.mrb[0].mxu0 %v4067
  %v4303 = vpop.f32.mrb[0].mxu0
  %v4304 = vadd.f32 0.0, %v4303
  %v4305 = vpop.f32.mrb[0].mxu0
  %v4306 = vadd.f32 0.0, %v4305
  %4307 = vmatprep.mubr.f32.mxu0 0.0
  %4308 = vmatmul.mubr.f32.gmra.mrb[0].mxu0 %v4068
  %v4309 = vpop.f32.mrb[0].mxu0
  %v4310 = vadd.f32 0.0, %v4309
  %v4311 = vpop.f32.mrb[0].mxu0
  %v4312 = vadd.f32 0.0, %v4311
  %4313 = vmatprep.mubr.f32.mxu0 0.0
  %4314 = vmatmul.mubr.f32.gmra.mrb[0].mxu0 %v4069
  %v4315 = vpop.f32.mrb[0].mxu0
  %v4316 = vadd.f32 0.0, %v4315
  %v4317 = vpop.f32.mrb[0].mxu0
  %v4318 = vadd.f32 0.0, %v4317
  %4319 = vmatprep.mubr.f32.mxu0 0.0
  %4320 = vmatmul.mubr.f32.gmra.mrb[0].mxu0 %v4070
  %v4321 = vpop.f32.mrb[0].mxu0
  %v4322 = vadd.f32 0.0, %v4321
  %v4323 = vpop.f32.mrb[0].mxu0
  %v4324 = vadd.f32 0.0, %v4323
  %4325 = vmatprep.mubr.f32.mxu0 0.0
  %4326 = vmatmul.mubr.f32.gmra.mrb[0].mxu0 %v4071
  %v4327 = vpop.f32.mrb[0].mxu0
  %v4328 = vadd.f32 0.0, %v4327
  %v4329 = vpop.f32.mrb[0].mxu0
  %v4330 = vadd.f32 0.0, %v4329
  %4331 = vmatprep.mubr.f32.mxu0 0.0
  %4332 = vmatmul.mubr.f32.gmra.mrb[0].mxu0 %v4072
  %v4333 = vpop.f32.mrb[0].mxu0
  %v4334 = vadd.f32 0.0, %v4333
  %v4335 = vpop.f32.mrb[0].mxu0
  %v4336 = vadd.f32 0.0, %v4335
  %4337 = vmatprep.mubr.f32.mxu0 0.0
  %4338 = vmatmul.mubr.f32.gmra.mrb[0].mxu0 %v4073
  %v4339 = vpop.f32.mrb[0].mxu0
  %v4340 = vadd.f32 0.0, %v4339
  %v4341 = vpop.f32.mrb[0].mxu0
  %v4342 = vadd.f32 0.0, %v4341
  %4343 = vmatprep.mubr.f32.mxu0 0.0
  %4344 = vmatmul.mubr.f32.gmra.mrb[0].mxu0 %v4074
  %v4345 = vpop.f32.mrb[0].mxu0
  %v4346 = vadd.f32 0.0, %v4345
  %v4347 = vpop.f32.mrb[0].mxu0
  %v4348 = vadd.f32 0.0, %v4347
  %4349 = vmatprep.mubr.f32.mxu0 0.0
  %4350 = vmatmul.mubr.f32.gmra.mrb[0].mxu0 %v4075
  %v4351 = vpop.f32.mrb[0].mxu0
  %v4352 = vadd.f32 0.0, %v4351
  %v4353 = vpop.f32.mrb[0].mxu0
  %v4354 = vadd.f32 0.0, %v4353
  %4355 = vmatprep.mubr.f32.mxu0 0.0
  %4356 = vmatmul.mubr.f32.gmra.mrb[0].mxu0 %v4076
  %v4357 = vpop.f32.mrb[0].mxu0
  %v4358 = vadd.f32 0.0, %v4357
  %v4359 = vpop.f32.mrb[0].mxu0
  %v4360 = vadd.f32 0.0, %v4359
  %4361 = vmatprep.mubr.f32.mxu0 0.0
  %4362 = vmatmul.mubr.f32.gmra.mrb[0].mxu0 %v4077
  %v4363 = vpop.f32.mrb[0].mxu0
  %v4364 = vadd.f32 0.0, %v4363
  %v4365 = vpop.f32.mrb[0].mxu0
  %v4366 = vadd.f32 0.0, %v4365
  %4367 = vmatprep.mubr.f32.mxu0 0.0
  %4368 = vmatmul.mubr.f32.gmra.mrb[0].mxu0 %v4078
  %v4369 = vpop.f32.mrb[0].mxu0
  %v4370 = vadd.f32 0.0, %v4369
  %v4371 = vpop.f32.mrb[0].mxu0
  %v4372 = vadd.f32 0.0, %v4371
  %4373 = vmatprep.mubr.f32.mxu0 0.0
  %4374 = vmatmul.mubr.f32.gmra.mrb[0].mxu0 %v4079
  %v4375 = vpop.f32.mrb[0].mxu0
  %v4376 = vadd.f32 0.0, %v4375
  %v4377 = vpop.f32.mrb[0].mxu0
  %v4378 = vadd.f32 0.0, %v4377
  %4379 = vmatprep.mubr.f32.mxu0 0.0
  %4380 = vmatmul.mubr.f32.gmra.mrb[0].mxu0 %v4080
  %v4381 = vpop.f32.mrb[0].mxu0
  %v4382 = vadd.f32 0.0, %v4381
  %v4383 = vpop.f32.mrb[0].mxu0
  %v4384 = vadd.f32 0.0, %v4383
  %4385 = vmatprep.mubr.f32.mxu0 0.0
  %4386 = vmatmul.mubr.f32.gmra.mrb[0].mxu0 %v4081
  %v4387 = vpop.f32.mrb[0].mxu0
  %v4388 = vadd.f32 0.0, %v4387
  %v4389 = vpop.f32.mrb[0].mxu0
  %v4390 = vadd.f32 0.0, %v4389
  %4391 = vmatprep.mubr.f32.mxu0 0.0
  %4392 = vmatmul.mubr.f32.gmra.mrb[0].mxu0 %v4082
  %v4393 = vpop.f32.mrb[0].mxu0
  %v4394 = vadd.f32 0.0, %v4393
  %v4395 = vpop.f32.mrb[0].mxu0
  %v4396 = vadd.f32 0.0, %v4395
  %4397 = vmatprep.mubr.f32.mxu0 0.0
  %4398 = vmatmul.mubr.f32.gmra.mrb[0].mxu0 %v4083
  %v4399 = vpop.f32.mrb[0].mxu0
  %v4400 = vadd.f32 0.0, %v4399
  %v4401 = vpop.f32.mrb[0].mxu0
  %v4402 = vadd.f32 0.0, %v4401
  %4403 = vmatprep.mubr.f32.mxu0 0.0
  %4404 = vmatmul.mubr.f32.gmra.mrb[0].mxu0 %v4084
  %v4405 = vpop.f32.mrb[0].mxu0
  %v4406 = vadd.f32 0.0, %v4405
  %v4407 = vpop.f32.mrb[0].mxu0
  %v4408 = vadd.f32 0.0, %v4407
  %4409 = vmatprep.mubr.f32.mxu0 0.0
  %4410 = vmatmul.mubr.f32.gmra.mrb[0].mxu0 %v4085
  %v4411 = vpop.f32.mrb[0].mxu0
  %v4412 = vadd.f32 0.0, %v4411
  %v4413 = vpop.f32.mrb[0].mxu0
  %v4414 = vadd.f32 0.0, %v4413
  %4415 = vmatprep.mubr.f32.mxu0 0.0
  %4416 = vmatmul.mubr.f32.gmra.mrb[0].mxu0 %v4086
  %v4417 = vpop.f32.mrb[0].mxu0
  %v4418 = vadd.f32 0.0, %v4417
  %v4419 = vpop.f32.mrb[0].mxu0
  %v4420 = vadd.f32 0.0, %v4419
  %4421 = vmatprep.mubr.f32.mxu0 0.0
  %4422 = vmatmul.mubr.f32.gmra.mrb[0].mxu0 %v4087
  %v4423 = vpop.f32.mrb[0].mxu0
  %v4424 = vadd.f32 0.0, %v4423
  %v4425 = vpop.f32.mrb[0].mxu0
  %v4426 = vadd.f32 0.0, %v4425
  %4427 = vmatprep.mubr.f32.mxu0 0.0
  %4428 = vmatmul.mubr.f32.gmra.mrb[0].mxu0 %v4088
  %v4429 = vpop.f32.mrb[0].mxu0
  %v4430 = vadd.f32 0.0, %v4429
  %v4431 = vpop.f32.mrb[0].mxu0
  %v4432 = vadd.f32 0.0, %v4431
  %4433 = vmatprep.mubr.f32.mxu0 0.0
  %4434 = vmatmul.mubr.f32.gmra.mrb[0].mxu0 %v4089
  %v4435 = vpop.f32.mrb[0].mxu0
  %v4436 = vadd.f32 0.0, %v4435
  %v4437 = vpop.f32.mrb[0].mxu0
  %v4438 = vadd.f32 0.0, %v4437
  %4439 = vmatprep.mubr.f32.mxu0 0.0
  %4440 = vmatmul.mubr.f32.gmra.mrb[0].mxu0 %v4090
  %v4441 = vpop.f32.mrb[0].mxu0
  %v4442 = vadd.f32 0.0, %v4441
  %v4443 = vpop.f32.mrb[0].mxu0
  %v4444 = vadd.f32 0.0, %v4443
  %4445 = vmatprep.mubr.f32.mxu0 0.0
  %4446 = vmatmul.mubr.f32.gmra.mrb[0].mxu0 %v4091
  %v4447 = vpop.f32.mrb[0].mxu0
  %v4448 = vadd.f32 0.0, %v4447
  %v4449 = vpop.f32.mrb[0].mxu0
  %v4450 = vadd.f32 0.0, %v4449
  %4451 = vmatprep.mubr.f32.mxu0 0.0
  %4452 = vmatmul.mubr.f32.gmra.mrb[0].mxu0 %v4092
  %v4453 = vpop.f32.mrb[0].mxu0
  %v4454 = vadd.f32 0.0, %v4453
  %v4455 = vpop.f32.mrb[0].mxu0
  %v4456 = vadd.f32 0.0, %v4455
  %4457 = vmatprep.mubr.f32.mxu0 0.0
  %4458 = vmatmul.mubr.f32.gmra.mrb[0].mxu0 %v4093
  %v4459 = vpop.f32.mrb[0].mxu0
  %v4460 = vadd.f32 0.0, %v4459
  %v4461 = vpop.f32.mrb[0].mxu0
  %v4462 = vadd.f32 0.0, %v4461
  %4463 = vmatprep.mubr.f32.mxu0 0.0
  %4464 = vmatmul.mubr.f32.gmra.mrb[0].mxu0 %v4094
  %v4465 = vpop.f32.mrb[0].mxu0
  %v4466 = vadd.f32 0.0, %v4465
  %v4467 = vpop.f32.mrb[0].mxu0
  %v4468 = vadd.f32 0.0, %v4467
  %4469 = vmatprep.mubr.f32.mxu0 0.0
  %4470 = vmatmul.mubr.f32.gmra.mrb[0].mxu0 %v4095
  %v4471 = vpop.f32.mrb[0].mxu0
  %v4472 = vadd.f32 0.0, %v4471
  %v4473 = vpop.f32.mrb[0].mxu0
  %v4474 = vadd.f32 0.0, %v4473
  %4475 = vmatprep.mubr.f32.mxu0 0.0
  %4476 = vmatmul.mubr.f32.gmra.mrb[0].mxu0 %v4096
  %v4477 = vpop.f32.mrb[0].mxu0
  %v4478 = vadd.f32 0.0, %v4477
  %v4479 = vpop.f32.mrb[0].mxu0
  %v4480 = vadd.f32 0.0, %v4479
  %4481 = vmatprep.mubr.f32.mxu0 0.0
  %4482 = vmatmul.mubr.f32.gmra.mrb[0].mxu0 %v4097
  %v4483 = vpop.f32.mrb[0].mxu0
  %v4484 = vadd.f32 0.0, %v4483
  %v4485 = vpop.f32.mrb[0].mxu0
  %v4486 = vadd.f32 0.0, %v4485
  %4487 = vmatprep.mubr.f32.mxu0 0.0
  %4488 = vmatmul.mubr.f32.gmra.mrb[0].mxu0 %v4098
  %v4489 = vpop.f32.mrb[0].mxu0
  %v4490 = vadd.f32 0.0, %v4489
  %v4491 = vpop.f32.mrb[0].mxu0
  %v4492 = vadd.f32 0.0, %v4491
  %4493 = vmatprep.mubr.f32.mxu0 0.0
  %4494 = vmatmul.mubr.f32.gmra.mrb[0].mxu0 %v4099
  %v4495 = vpop.f32.mrb[0].mxu0
  %v4496 = vadd.f32 0.0, %v4495
  %v4497 = vpop.f32.mrb[0].mxu0
  %v4498 = vadd.f32 0.0, %v4497
  %4499 = vmatprep.mubr.f32.mxu0 0.0
  %4500 = vmatmul.mubr.f32.gmra.mrb[0].mxu0 %v4100
  %v4501 = vpop.f32.mrb[0].mxu0
  %v4502 = vadd.f32 0.0, %v4501
  %v4503 = vpop.f32.mrb[0].mxu0
  %v4504 = vadd.f32 0.0, %v4503
  %4505 = vmatprep.mubr.f32.mxu0 0.0
  %4506 = vmatmul.mubr.f32.gmra.mrb[0].mxu0 %v4101
  %v4507 = vpop.f32.mrb[0].mxu0
  %v4508 = vadd.f32 0.0, %v4507
  %v4509 = vpop.f32.mrb[0].mxu0
  %v4510 = vadd.f32 0.0, %v4509
  %4511 = vmatprep.mubr.f32.mxu0 0.0
  %4512 = vmatmul.mubr.f32.gmra.mrb[0].mxu0 %v4102
  %v4513 = vpop.f32.mrb[0].mxu0
  %v4514 = vadd.f32 0.0, %v4513
  %v4515 = vpop.f32.mrb[0].mxu0
  %v4516 = vadd.f32 0.0, %v4515
  %4517 = vmatprep.mubr.f32.mxu0 0.0
  %4518 = vmatmul.mubr.f32.gmra.mrb[0].mxu0 %v4103
  %v4519 = vpop.f32.mrb[0].mxu0
  %v4520 = vadd.f32 0.0, %v4519
  %v4521 = vpop.f32.mrb[0].mxu0
  %v4522 = vadd.f32 0.0, %v4521
  %4523 = vmatprep.mubr.f32.mxu0 0.0
  %4524 = vmatmul.mubr.f32.gmra.mrb[0].mxu0 %v4104
  %v4525 = vpop.f32.mrb[0].mxu0
  %v4526 = vadd.f32 0.0, %v4525
  %v4527 = vpop.f32.mrb[0].mxu0
  %v4528 = vadd.f32 0.0, %v4527
  %4529 = vmatprep.mubr.f32.mxu0 0.0
  %4530 = vmatmul.mubr.f32.gmra.mrb[0].mxu0 %v4105
  %v4531 = vpop.f32.mrb[0].mxu0
  %v4532 = vadd.f32 0.0, %v4531
  %v4533 = vpop.f32.mrb[0].mxu0
  %v4534 = vadd.f32 0.0, %v4533
  %4535 = vmatprep.mubr.f32.mxu0 0.0
  %4536 = vmatmul.mubr.f32.gmra.mrb[0].mxu0 %v4106
  %v4537 = vpop.f32.mrb[0].mxu0
  %v4538 = vadd.f32 0.0, %v4537
  %v4539 = vpop.f32.mrb[0].mxu0
  %v4540 = vadd.f32 0.0, %v4539
  %4541 = vmatprep.mubr.f32.mxu0 0.0
  %4542 = vmatmul.mubr.f32.gmra.mrb[0].mxu0 %v4107
  %v4543 = vpop.f32.mrb[0].mxu0
  %v4544 = vadd.f32 0.0, %v4543
  %v4545 = vpop.f32.mrb[0].mxu0
  %v4546 = vadd.f32 0.0, %v4545
  %4547 = vmatprep.mubr.f32.mxu0 0.0
  %4548 = vmatmul.mubr.f32.gmra.mrb[0].mxu0 %v4108
  %v4549 = vpop.f32.mrb[0].mxu0
  %v4550 = vadd.f32 0.0, %v4549
  %v4551 = vpop.f32.mrb[0].mxu0
  %v4552 = vadd.f32 0.0, %v4551
  %4553 = vmatprep.mubr.f32.mxu0 0.0
  %4554 = vmatmul.mubr.f32.gmra.mrb[0].mxu0 %v4109
  %v4555 = vpop.f32.mrb[0].mxu0
  %v4556 = vadd.f32 0.0, %v4555
  %v4557 = vpop.f32.mrb[0].mxu0
  %v4558 = vadd.f32 0.0, %v4557
  %4559 = vmatprep.mubr.f32.mxu0 0.0
  %4560 = vmatmul.mubr.f32.gmra.mrb[0].mxu0 %v4110
  %v4561 = vpop.f32.mrb[0].mxu0
  %v4562 = vadd.f32 0.0, %v4561
  %v4563 = vpop.f32.mrb[0].mxu0
  %v4564 = vadd.f32 0.0, %v4563
  %4565 = vmatprep.mubr.f32.mxu0 0.0
  %4566 = vmatmul.mubr.f32.gmra.mrb[0].mxu0 %v4111
  %v4567 = vpop.f32.mrb[0].mxu0
  %v4568 = vadd.f32 0.0, %v4567
  %v4569 = vpop.f32.mrb[0].mxu0
  %v4570 = vadd.f32 0.0, %v4569
  %4571 = vmatprep.mubr.f32.mxu0 0.0
  %4572 = vmatmul.mubr.f32.gmra.mrb[0].mxu0 %v4112
  %v4573 = vpop.f32.mrb[0].mxu0
  %v4574 = vadd.f32 0.0, %v4573
  %v4575 = vpop.f32.mrb[0].mxu0
  %v4576 = vadd.f32 0.0, %v4575
  %4577 = vmatprep.mubr.f32.mxu0 0.0
  %4578 = vmatmul.mubr.f32.gmra.mrb[0].mxu0 %v4113
  %v4579 = vpop.f32.mrb[0].mxu0
  %v4580 = vadd.f32 0.0, %v4579
  %v4581 = vpop.f32.mrb[0].mxu0
  %v4582 = vadd.f32 0.0, %v4581
  %4583 = vmatprep.mubr.f32.mxu0 0.0
  %4584 = vmatmul.mubr.f32.gmra.mrb[0].mxu0 %v4114
  %v4585 = vpop.f32.mrb[0].mxu0
  %v4586 = vadd.f32 0.0, %v4585
  %v4587 = vpop.f32.mrb[0].mxu0
  %v4588 = vadd.f32 0.0, %v4587
  %4589 = vmatprep.mubr.f32.mxu0 0.0
  %4590 = vmatmul.mubr.f32.gmra.mrb[0].mxu0 %v4115
  %v4591 = vpop.f32.mrb[0].mxu0
  %v4592 = vadd.f32 0.0, %v4591
  %v4593 = vpop.f32.mrb[0].mxu0
  %v4594 = vadd.f32 0.0, %v4593
  %4595 = vmatprep.mubr.f32.mxu0 0.0
  %4596 = vmatmul.mubr.f32.gmra.mrb[0].mxu0 %v4116
  %v4597 = vpop.f32.mrb[0].mxu0
  %v4598 = vadd.f32 0.0, %v4597
  %v4599 = vpop.f32.mrb[0].mxu0
  %v4600 = vadd.f32 0.0, %v4599
  %4601 = vmatprep.mubr.f32.mxu0 0.0
  %4602 = vmatmul.mubr.f32.gmra.mrb[0].mxu0 %v4117
  %v4603 = vpop.f32.mrb[0].mxu0
  %v4604 = vadd.f32 0.0, %v4603
  %v4605 = vpop.f32.mrb[0].mxu0
  %v4606 = vadd.f32 0.0, %v4605
  %4607 = vmatprep.mubr.f32.mxu0 0.0
  %4608 = vmatmul.mubr.f32.gmra.mrb[0].mxu0 %v4118
  %v4609 = vpop.f32.mrb[0].mxu0
  %v4610 = vadd.f32 0.0, %v4609
  %v4611 = vpop.f32.mrb[0].mxu0
  %v4612 = vadd.f32 0.0, %v4611
  %4613 = vmatprep.mubr.f32.mxu0 0.0
  %4614 = vmatmul.mubr.f32.gmra.mrb[0].mxu0 %v4119
  %v4615 = vpop.f32.mrb[0].mxu0
  %v4616 = vadd.f32 0.0, %v4615
  %v4617 = vpop.f32.mrb[0].mxu0
  %v4618 = vadd.f32 0.0, %v4617
  %4619 = vmatprep.mubr.f32.mxu0 0.0
  %4620 = vmatmul.mubr.f32.gmra.mrb[0].mxu0 %v4120
  %v4621 = vpop.f32.mrb[0].mxu0
  %v4622 = vadd.f32 0.0, %v4621
  %v4623 = vpop.f32.mrb[0].mxu0
  %v4624 = vadd.f32 0.0, %v4623
  %4625 = vmatprep.mubr.f32.mxu0 0.0
  %4626 = vmatmul.mubr.f32.gmra.mrb[0].mxu0 %v4121
  %v4627 = vpop.f32.mrb[0].mxu0
  %v4628 = vadd.f32 0.0, %v4627
  %v4629 = vpop.f32.mrb[0].mxu0
  %v4630 = vadd.f32 0.0, %v4629
  %4631 = vmatprep.mubr.f32.mxu0 0.0
  %4632 = vmatmul.mubr.f32.gmra.mrb[0].mxu0 %v4122
  %v4633 = vpop.f32.mrb[0].mxu0
  %v4634 = vadd.f32 0.0, %v4633
  %v4635 = vpop.f32.mrb[0].mxu0
  %v4636 = vadd.f32 0.0, %v4635
  %4637 = vmatprep.mubr.f32.mxu0 0.0
  %4638 = vmatmul.mubr.f32.gmra.mrb[0].mxu0 %v4123
  %v4639 = vpop.f32.mrb[0].mxu0
  %v4640 = vadd.f32 0.0, %v4639
  %v4641 = vpop.f32.mrb[0].mxu0
  %v4642 = vadd.f32 0.0, %v4641
  %4643 = vmatprep.mubr.f32.mxu0 0.0
  %4644 = vmatmul.mubr.f32.gmra.mrb[0].mxu0 %v4124
  %v4645 = vpop.f32.mrb[0].mxu0
  %v4646 = vadd.f32 0.0, %v4645
  %v4647 = vpop.f32.mrb[0].mxu0
  %v4648 = vadd.f32 0.0, %v4647
  %4649 = vmatprep.mubr.f32.mxu0 0.0
  %4650 = vmatmul.mubr.f32.gmra.mrb[0].mxu0 %v4125
  %v4651 = vpop.f32.mrb[0].mxu0
  %v4652 = vadd.f32 0.0, %v4651
  %v4653 = vpop.f32.mrb[0].mxu0
  %v4654 = vadd.f32 0.0, %v4653
  %4655 = vmatprep.mubr.f32.mxu0 0.0
  %4656 = vmatmul.mubr.f32.gmra.mrb[0].mxu0 %v4126
  %v4657 = vpop.f32.mrb[0].mxu0
  %v4658 = vadd.f32 0.0, %v4657
  %v4659 = vpop.f32.mrb[0].mxu0
  %v4660 = vadd.f32 0.0, %v4659
  %4661 = vmatprep.mubr.f32.mxu0 0.0
  %4662 = vmatmul.mubr.f32.gmra.mrb[0].mxu0 %v4127
  %v4663 = vpop.f32.mrb[0].mxu0
  %v4664 = vadd.f32 0.0, %v4663
  %v4665 = vpop.f32.mrb[0].mxu0
  %v4666 = vadd.f32 0.0, %v4665
  %4667 = vmatprep.mubr.f32.mxu0 0.0
  %4668 = vmatmul.mubr.f32.gmra.mrb[0].mxu0 %v4128
  %v4669 = vpop.f32.mrb[0].mxu0
  %v4670 = vadd.f32 0.0, %v4669
  %v4671 = vpop.f32.mrb[0].mxu0
  %v4672 = vadd.f32 0.0, %v4671
  %4673 = vmatprep.mubr.f32.mxu0 0.0
  %4674 = vmatmul.mubr.f32.gmra.mrb[0].mxu0 %v4129
  %v4675 = vpop.f32.mrb[0].mxu0
  %v4676 = vadd.f32 0.0, %v4675
  %v4677 = vpop.f32.mrb[0].mxu0
  %v4678 = vadd.f32 0.0, %v4677
  %4679 = vmatprep.mubr.f32.mxu0 0.0
  %4680 = vmatmul.mubr.f32.gmra.mrb[0].mxu0 %v4130
  %v4681 = vpop.f32.mrb[0].mxu0
  %v4682 = vadd.f32 0.0, %v4681
  %v4683 = vpop.f32.mrb[0].mxu0
  %v4684 = vadd.f32 0.0, %v4683
  %4685 = vmatprep.mubr.f32.mxu0 0.0
  %4686 = vmatmul.mubr.f32.gmra.mrb[0].mxu0 %v4131
  %v4687 = vpop.f32.mrb[0].mxu0
  %v4688 = vadd.f32 0.0, %v4687
  %v4689 = vpop.f32.mrb[0].mxu0
  %v4690 = vadd.f32 0.0, %v4689
  %4691 = vmatprep.mubr.f32.mxu0 0.0
  %4692 = vmatmul.mubr.f32.gmra.mrb[0].mxu0 %v4132
  %v4693 = vpop.f32.mrb[0].mxu0
  %v4694 = vadd.f32 0.0, %v4693
  %v4695 = vpop.f32.mrb[0].mxu0
  %v4696 = vadd.f32 0.0, %v4695
  %4697 = vmatprep.mubr.f32.mxu0 0.0
  %4698 = vmatmul.mubr.f32.gmra.mrb[0].mxu0 %v4133
  %v4699 = vpop.f32.mrb[0].mxu0
  %v4700 = vadd.f32 0.0, %v4699
  %v4701 = vpop.f32.mrb[0].mxu0
  %v4702 = vadd.f32 0.0, %v4701
  %4703 = vmatprep.mubr.f32.mxu0 0.0
  %4704 = vmatmul.mubr.f32.gmra.mrb[0].mxu0 %v4134
  %v4705 = vpop.f32.mrb[0].mxu0
  %v4706 = vadd.f32 0.0, %v4705
  %v4707 = vpop.f32.mrb[0].mxu0
  %v4708 = vadd.f32 0.0, %v4707
  %4709 = vmatprep.mubr.f32.mxu0 0.0
  %4710 = vmatmul.mubr.f32.gmra.mrb[0].mxu0 %v4135
  %v4711 = vpop.f32.mrb[0].mxu0
  %v4712 = vadd.f32 0.0, %v4711
  %v4713 = vpop.f32.mrb[0].mxu0
  %v4714 = vadd.f32 0.0, %v4713
  %4715 = vmatprep.mubr.f32.mxu0 0.0
  %4716 = vmatmul.mubr.f32.gmra.mrb[0].mxu0 %v4136
  %v4717 = vpop.f32.mrb[0].mxu0
  %v4718 = vadd.f32 0.0, %v4717
  %v4719 = vpop.f32.mrb[0].mxu0
  %v4720 = vadd.f32 0.0, %v4719
  %4721 = vmatprep.mubr.f32.mxu0 0.0
  %4722 = vmatmul.mubr.f32.gmra.mrb[0].mxu0 %v4137
  %v4723 = vpop.f32.mrb[0].mxu0
  %v4724 = vadd.f32 0.0, %v4723
  %v4725 = vpop.f32.mrb[0].mxu0
  %v4726 = vadd.f32 0.0, %v4725
  %4727 = vmatprep.mubr.f32.mxu0 0.0
  %4728 = vmatmul.mubr.f32.gmra.mrb[0].mxu0 %v4138
  %v4729 = vpop.f32.mrb[0].mxu0
  %v4730 = vadd.f32 0.0, %v4729
  %v4731 = vpop.f32.mrb[0].mxu0
  %v4732 = vadd.f32 0.0, %v4731
  %4733 = vmatprep.mubr.f32.mxu0 0.0
  %4734 = vmatmul.mubr.f32.gmra.mrb[0].mxu0 %v4139
  %v4735 = vpop.f32.mrb[0].mxu0
  %v4736 = vadd.f32 0.0, %v4735
  %v4737 = vpop.f32.mrb[0].mxu0
  %v4738 = vadd.f32 0.0, %v4737
  %4739 = vdwg.mxu0
  %4740 = vmatprep.subr.mxu0 0.0
  %4741 = vmatpush1.msra.mxu0 %v4143
  %4742 = vmatprep.subr.mxu0 0.0
  %4743 = vmatpush1.msra.mxu0 %v4146
  %4744 = vmatprep.subr.mxu0 0.0
  %4745 = vmatpush1.msra.mxu0 %v4149
  %4746 = vmatprep.subr.mxu0 0.0
  %4747 = vmatpush1.msra.mxu0 %v4152
  %4748 = vmatprep.subr.mxu0 0.0
  %4749 = vmatpush1.msra.mxu0 %v4155
  %4750 = vmatprep.subr.mxu0 0.0
  %4751 = vmatpush1.msra.mxu0 %v4158
  %4752 = vmatprep.subr.mxu0 0.0
  %4753 = vmatpush1.msra.mxu0 %v4161
  %4754 = vmatprep.subr.mxu0 0.0
  %4755 = vmatpush1.msra.mxu0 %v4164
  %4756 = vmatprep.subr.mxu0 0.0
  %4757 = vmatpush1.msra.mxu0 %v4167
  %4758 = vmatprep.subr.mxu0 0.0
  %4759 = vmatpush1.msra.mxu0 %v4170
  %4760 = vmatprep.subr.mxu0 0.0
  %4761 = vmatpush1.msra.mxu0 %v4173
  %4762 = vmatprep.subr.mxu0 0.0
  %4763 = vmatpush1.msra.mxu0 %v4176
  %4764 = vmatprep.subr.mxu0 0.0
  %4765 = vmatpush1.msra.mxu0 %v4179
  %4766 = vmatprep.subr.mxu0 0.0
  %4767 = vmatpush1.msra.mxu0 %v4182
  %4768 = vmatprep.subr.mxu0 0.0
  %4769 = vmatpush1.msra.mxu0 %v4185
  %4770 = vmatprep.subr.mxu0 0.0
  %4771 = vmatpush1.msra.mxu0 %v4188
  %4772 = vmatprep.subr.mxu0 0.0
  %4773 = vmatpush1.msra.mxu0 0.0
  %4774 = vmatprep.subr.mxu0 0.0
  %4775 = vmatpush1.msra.mxu0 0.0
  %4776 = vmatprep.subr.mxu0 0.0
  %4777 = vmatpush1.msra.mxu0 0.0
  %4778 = vmatprep.subr.mxu0 0.0
  %4779 = vmatpush1.msra.mxu0 0.0
  %4780 = vmatprep.subr.mxu0 0.0
  %4781 = vmatpush1.msra.mxu0 0.0
  %4782 = vmatprep.subr.mxu0 0.0
  %4783 = vmatpush1.msra.mxu0 0.0
  %4784 = vmatprep.subr.mxu0 0.0
  %4785 = vmatpush1.msra.mxu0 0.0
  %4786 = vmatprep.subr.mxu0 0.0
  %4787 = vmatpush1.msra.mxu0 0.0
  %4788 = vmatprep.subr.mxu0 0.0
  %4789 = vmatpush1.msra.mxu0 0.0
  %4790 = vmatprep.subr.mxu0 0.0
  %4791 = vmatpush1.msra.mxu0 0.0
  %4792 = vmatprep.subr.mxu0 0.0
  %4793 = vmatpush1.msra.mxu0 0.0
  %4794 = vmatprep.subr.mxu0 0.0
  %4795 = vmatpush1.msra.mxu0 0.0
  %4796 = vmatprep.subr.mxu0 0.0
  %4797 = vmatpush1.msra.mxu0 0.0
  %4798 = vmatprep.subr.mxu0 0.0
  %4799 = vmatpush1.msra.mxu0 0.0
  %4800 = vmatprep.subr.mxu0 0.0
  %4801 = vmatpush1.msra.mxu0 0.0
  %4802 = vmatprep.subr.mxu0 0.0
  %4803 = vmatpush1.msra.mxu0 0.0
  %4804 = vmatprep.mubr.f32.mxu0 0.0
  %4805 = vmatmul.mubr.f32.gmra.mrb[0].mxu0 %v4059
  %v4806 = vpop.f32.mrb[0].mxu0
  %v4807 = vadd.f32 0.0, %v4806
  %v4808 = vpop.f32.mrb[0].mxu0
  %4809 = vmatprep.mubr.f32.mxu0 0.0
  %4810 = vmatmul.mubr.f32.gmra.mrb[0].mxu0 %v4060
  %v4811 = vpop.f32.mrb[0].mxu0
  %v4812 = vadd.f32 0.0, %v4811
  %v4813 = vpop.f32.mrb[0].mxu0
  %4814 = vmatprep.mubr.f32.mxu0 0.0
  %4815 = vmatmul.mubr.f32.gmra.mrb[0].mxu0 %v4061
  %v4816 = vpop.f32.mrb[0].mxu0
  %v4817 = vadd.f32 0.0, %v4816
  %v4818 = vpop.f32.mrb[0].mxu0
  %4819 = vmatprep.mubr.f32.mxu0 0.0
  %4820 = vmatmul.mubr.f32.gmra.mrb[0].mxu0 %v4062
  %v4821 = vpop.f32.mrb[0].mxu0
  %v4822 = vadd.f32 0.0, %v4821
  %v4823 = vpop.f32.mrb[0].mxu0
  %4824 = vmatprep.mubr.f32.mxu0 0.0
  %4825 = vmatmul.mubr.f32.gmra.mrb[0].mxu0 %v4063
  %v4826 = vpop.f32.mrb[0].mxu0
  %v4827 = vadd.f32 0.0, %v4826
  %v4828 = vpop.f32.mrb[0].mxu0
  %4829 = vmatprep.mubr.f32.mxu0 0.0
  %4830 = vmatmul.mubr.f32.gmra.mrb[0].mxu0 %v4064
  %v4831 = vpop.f32.mrb[0].mxu0
  %v4832 = vadd.f32 0.0, %v4831
  %v4833 = vpop.f32.mrb[0].mxu0
  %4834 = vmatprep.mubr.f32.mxu0 0.0
  %4835 = vmatmul.mubr.f32.gmra.mrb[0].mxu0 %v4065
  %v4836 = vpop.f32.mrb[0].mxu0
  %v4837 = vadd.f32 0.0, %v4836
  %v4838 = vpop.f32.mrb[0].mxu0
  %4839 = vmatprep.mubr.f32.mxu0 0.0
  %4840 = vmatmul.mubr.f32.gmra.mrb[0].mxu0 %v4066
  %v4841 = vpop.f32.mrb[0].mxu0
  %v4842 = vadd.f32 0.0, %v4841
  %v4843 = vpop.f32.mrb[0].mxu0
  %4844 = vmatprep.mubr.f32.mxu0 0.0
  %4845 = vmatmul.mubr.f32.gmra.mrb[0].mxu0 %v4067
  %v4846 = vpop.f32.mrb[0].mxu0
  %v4847 = vadd.f32 0.0, %v4846
  %v4848 = vpop.f32.mrb[0].mxu0
  %4849 = vmatprep.mubr.f32.mxu0 0.0
  %4850 = vmatmul.mubr.f32.gmra.mrb[0].mxu0 %v4068
  %v4851 = vpop.f32.mrb[0].mxu0
  %v4852 = vadd.f32 0.0, %v4851
  %v4853 = vpop.f32.mrb[0].mxu0
  %4854 = vmatprep.mubr.f32.mxu0 0.0
  %4855 = vmatmul.mubr.f32.gmra.mrb[0].mxu0 %v4069
  %v4856 = vpop.f32.mrb[0].mxu0
  %v4857 = vadd.f32 0.0, %v4856
  %v4858 = vpop.f32.mrb[0].mxu0
  %4859 = vmatprep.mubr.f32.mxu0 0.0
  %4860 = vmatmul.mubr.f32.gmra.mrb[0].mxu0 %v4070
  %v4861 = vpop.f32.mrb[0].mxu0
  %v4862 = vadd.f32 0.0, %v4861
  %v4863 = vpop.f32.mrb[0].mxu0
  %4864 = vmatprep.mubr.f32.mxu0 0.0
  %4865 = vmatmul.mubr.f32.gmra.mrb[0].mxu0 %v4071
  %v4866 = vpop.f32.mrb[0].mxu0
  %v4867 = vadd.f32 0.0, %v4866
  %v4868 = vpop.f32.mrb[0].mxu0
  %4869 = vmatprep.mubr.f32.mxu0 0.0
  %4870 = vmatmul.mubr.f32.gmra.mrb[0].mxu0 %v4072
  %v4871 = vpop.f32.mrb[0].mxu0
  %v4872 = vadd.f32 0.0, %v4871
  %v4873 = vpop.f32.mrb[0].mxu0
  %4874 = vmatprep.mubr.f32.mxu0 0.0
  %4875 = vmatmul.mubr.f32.gmra.mrb[0].mxu0 %v4073
  %v4876 = vpop.f32.mrb[0].mxu0
  %v4877 = vadd.f32 0.0, %v4876
  %v4878 = vpop.f32.mrb[0].mxu0
  %4879 = vmatprep.mubr.f32.mxu0 0.0
  %4880 = vmatmul.mubr.f32.gmra.mrb[0].mxu0 %v4074
  %v4881 = vpop.f32.mrb[0].mxu0
  %v4882 = vadd.f32 0.0, %v4881
  %v4883 = vpop.f32.mrb[0].mxu0
  %4884 = vmatprep.mubr.f32.mxu0 0.0
  %4885 = vmatmul.mubr.f32.gmra.mrb[0].mxu0 %v4075
  %v4886 = vpop.f32.mrb[0].mxu0
  %v4887 = vadd.f32 0.0, %v4886
  %v4888 = vpop.f32.mrb[0].mxu0
  %4889 = vmatprep.mubr.f32.mxu0 0.0
  %4890 = vmatmul.mubr.f32.gmra.mrb[0].mxu0 %v4076
  %v4891 = vpop.f32.mrb[0].mxu0
  %v4892 = vadd.f32 0.0, %v4891
  %v4893 = vpop.f32.mrb[0].mxu0
  %4894 = vmatprep.mubr.f32.mxu0 0.0
  %4895 = vmatmul.mubr.f32.gmra.mrb[0].mxu0 %v4077
  %v4896 = vpop.f32.mrb[0].mxu0
  %v4897 = vadd.f32 0.0, %v4896
  %v4898 = vpop.f32.mrb[0].mxu0
  %4899 = vmatprep.mubr.f32.mxu0 0.0
  %4900 = vmatmul.mubr.f32.gmra.mrb[0].mxu0 %v4078
  %v4901 = vpop.f32.mrb[0].mxu0
  %v4902 = vadd.f32 0.0, %v4901
  %v4903 = vpop.f32.mrb[0].mxu0
  %4904 = vmatprep.mubr.f32.mxu0 0.0
  %4905 = vmatmul.mubr.f32.gmra.mrb[0].mxu0 %v4079
  %v4906 = vpop.f32.mrb[0].mxu0
  %v4907 = vadd.f32 0.0, %v4906
  %v4908 = vpop.f32.mrb[0].mxu0
  %4909 = vmatprep.mubr.f32.mxu0 0.0
  %4910 = vmatmul.mubr.f32.gmra.mrb[0].mxu0 %v4080
  %v4911 = vpop.f32.mrb[0].mxu0
  %v4912 = vadd.f32 0.0, %v4911
  %v4913 = vpop.f32.mrb[0].mxu0
  %4914 = vmatprep.mubr.f32.mxu0 0.0
  %4915 = vmatmul.mubr.f32.gmra.mrb[0].mxu0 %v4081
  %v4916 = vpop.f32.mrb[0].mxu0
  %v4917 = vadd.f32 0.0, %v4916
  %v4918 = vpop.f32.mrb[0].mxu0
  %4919 = vmatprep.mubr.f32.mxu0 0.0
  %4920 = vmatmul.mubr.f32.gmra.mrb[0].mxu0 %v4082
  %v4921 = vpop.f32.mrb[0].mxu0
  %v4922 = vadd.f32 0.0, %v4921
  %v4923 = vpop.f32.mrb[0].mxu0
  %4924 = vmatprep.mubr.f32.mxu0 0.0
  %4925 = vmatmul.mubr.f32.gmra.mrb[0].mxu0 %v4083
  %v4926 = vpop.f32.mrb[0].mxu0
  %v4927 = vadd.f32 0.0, %v4926
  %v4928 = vpop.f32.mrb[0].mxu0
  %4929 = vmatprep.mubr.f32.mxu0 0.0
  %4930 = vmatmul.mubr.f32.gmra.mrb[0].mxu0 %v4084
  %v4931 = vpop.f32.mrb[0].mxu0
  %v4932 = vadd.f32 0.0, %v4931
  %v4933 = vpop.f32.mrb[0].mxu0
  %4934 = vmatprep.mubr.f32.mxu0 0.0
  %4935 = vmatmul.mubr.f32.gmra.mrb[0].mxu0 %v4085
  %v4936 = vpop.f32.mrb[0].mxu0
  %v4937 = vadd.f32 0.0, %v4936
  %v4938 = vpop.f32.mrb[0].mxu0
  %4939 = vmatprep.mubr.f32.mxu0 0.0
  %4940 = vmatmul.mubr.f32.gmra.mrb[0].mxu0 %v4086
  %v4941 = vpop.f32.mrb[0].mxu0
  %v4942 = vadd.f32 0.0, %v4941
  %v4943 = vpop.f32.mrb[0].mxu0
  %4944 = vmatprep.mubr.f32.mxu0 0.0
  %4945 = vmatmul.mubr.f32.gmra.mrb[0].mxu0 %v4087
  %v4946 = vpop.f32.mrb[0].mxu0
  %v4947 = vadd.f32 0.0, %v4946
  %v4948 = vpop.f32.mrb[0].mxu0
  %4949 = vmatprep.mubr.f32.mxu0 0.0
  %4950 = vmatmul.mubr.f32.gmra.mrb[0].mxu0 %v4088
  %v4951 = vpop.f32.mrb[0].mxu0
  %v4952 = vadd.f32 0.0, %v4951
  %v4953 = vpop.f32.mrb[0].mxu0
  %4954 = vmatprep.mubr.f32.mxu0 0.0
  %4955 = vmatmul.mubr.f32.gmra.mrb[0].mxu0 %v4089
  %v4956 = vpop.f32.mrb[0].mxu0
  %v4957 = vadd.f32 0.0, %v4956
  %v4958 = vpop.f32.mrb[0].mxu0
  %4959 = vmatprep.mubr.f32.mxu0 0.0
  %4960 = vmatmul.mubr.f32.gmra.mrb[0].mxu0 %v4090
  %v4961 = vpop.f32.mrb[0].mxu0
  %v4962 = vadd.f32 0.0, %v4961
  %v4963 = vpop.f32.mrb[0].mxu0
  %4964 = vmatprep.mubr.f32.mxu0 0.0
  %4965 = vmatmul.mubr.f32.gmra.mrb[0].mxu0 %v4091
  %v4966 = vpop.f32.mrb[0].mxu0
  %v4967 = vadd.f32 0.0, %v4966
  %v4968 = vpop.f32.mrb[0].mxu0
  %4969 = vmatprep.mubr.f32.mxu0 0.0
  %4970 = vmatmul.mubr.f32.gmra.mrb[0].mxu0 %v4092
  %v4971 = vpop.f32.mrb[0].mxu0
  %v4972 = vadd.f32 0.0, %v4971
  %v4973 = vpop.f32.mrb[0].mxu0
  %4974 = vmatprep.mubr.f32.mxu0 0.0
  %4975 = vmatmul.mubr.f32.gmra.mrb[0].mxu0 %v4093
  %v4976 = vpop.f32.mrb[0].mxu0
  %v4977 = vadd.f32 0.0, %v4976
  %v4978 = vpop.f32.mrb[0].mxu0
  %4979 = vmatprep.mubr.f32.mxu0 0.0
  %4980 = vmatmul.mubr.f32.gmra.mrb[0].mxu0 %v4094
  %v4981 = vpop.f32.mrb[0].mxu0
  %v4982 = vadd.f32 0.0, %v4981
  %v4983 = vpop.f32.mrb[0].mxu0
  %4984 = vmatprep.mubr.f32.mxu0 0.0
  %4985 = vmatmul.mubr.f32.gmra.mrb[0].mxu0 %v4095
  %v4986 = vpop.f32.mrb[0].mxu0
  %v4987 = vadd.f32 0.0, %v4986
  %v4988 = vpop.f32.mrb[0].mxu0
  %4989 = vmatprep.mubr.f32.mxu0 0.0
  %4990 = vmatmul.mubr.f32.gmra.mrb[0].mxu0 %v4096
  %v4991 = vpop.f32.mrb[0].mxu0
  %v4992 = vadd.f32 0.0, %v4991
  %v4993 = vpop.f32.mrb[0].mxu0
  %4994 = vmatprep.mubr.f32.mxu0 0.0
  %4995 = vmatmul.mubr.f32.gmra.mrb[0].mxu0 %v4097
  %v4996 = vpop.f32.mrb[0].mxu0
  %v4997 = vadd.f32 0.0, %v4996
  %v4998 = vpop.f32.mrb[0].mxu0
  %4999 = vmatprep.mubr.f32.mxu0 0.0
  %5000 = vmatmul.mubr.f32.gmra.mrb[0].mxu0 %v4098
  %v5001 = vpop.f32.mrb[0].mxu0
  %v5002 = vadd.f32 0.0, %v5001
  %v5003 = vpop.f32.mrb[0].mxu0
  %5004 = vmatprep.mubr.f32.mxu0 0.0
  %5005 = vmatmul.mubr.f32.gmra.mrb[0].mxu0 %v4099
  %v5006 = vpop.f32.mrb[0].mxu0
  %v5007 = vadd.f32 0.0, %v5006
  %v5008 = vpop.f32.mrb[0].mxu0
  %5009 = vmatprep.mubr.f32.mxu0 0.0
  %5010 = vmatmul.mubr.f32.gmra.mrb[0].mxu0 %v4100
  %v5011 = vpop.f32.mrb[0].mxu0
  %v5012 = vadd.f32 0.0, %v5011
  %v5013 = vpop.f32.mrb[0].mxu0
  %5014 = vmatprep.mubr.f32.mxu0 0.0
  %5015 = vmatmul.mubr.f32.gmra.mrb[0].mxu0 %v4101
  %v5016 = vpop.f32.mrb[0].mxu0
  %v5017 = vadd.f32 0.0, %v5016
  %v5018 = vpop.f32.mrb[0].mxu0
  %5019 = vmatprep.mubr.f32.mxu0 0.0
  %5020 = vmatmul.mubr.f32.gmra.mrb[0].mxu0 %v4102
  %v5021 = vpop.f32.mrb[0].mxu0
  %v5022 = vadd.f32 0.0, %v5021
  %v5023 = vpop.f32.mrb[0].mxu0
  %5024 = vmatprep.mubr.f32.mxu0 0.0
  %5025 = vmatmul.mubr.f32.gmra.mrb[0].mxu0 %v4103
  %v5026 = vpop.f32.mrb[0].mxu0
  %v5027 = vadd.f32 0.0, %v5026
  %v5028 = vpop.f32.mrb[0].mxu0
  %5029 = vmatprep.mubr.f32.mxu0 0.0
  %5030 = vmatmul.mubr.f32.gmra.mrb[0].mxu0 %v4104
  %v5031 = vpop.f32.mrb[0].mxu0
  %v5032 = vadd.f32 0.0, %v5031
  %v5033 = vpop.f32.mrb[0].mxu0
  %5034 = vmatprep.mubr.f32.mxu0 0.0
  %5035 = vmatmul.mubr.f32.gmra.mrb[0].mxu0 %v4105
  %v5036 = vpop.f32.mrb[0].mxu0
  %v5037 = vadd.f32 0.0, %v5036
  %v5038 = vpop.f32.mrb[0].mxu0
  %5039 = vmatprep.mubr.f32.mxu0 0.0
  %5040 = vmatmul.mubr.f32.gmra.mrb[0].mxu0 %v4106
  %v5041 = vpop.f32.mrb[0].mxu0
  %v5042 = vadd.f32 0.0, %v5041
  %v5043 = vpop.f32.mrb[0].mxu0
  %5044 = vmatprep.mubr.f32.mxu0 0.0
  %5045 = vmatmul.mubr.f32.gmra.mrb[0].mxu0 %v4107
  %v5046 = vpop.f32.mrb[0].mxu0
  %v5047 = vadd.f32 0.0, %v5046
  %v5048 = vpop.f32.mrb[0].mxu0
  %5049 = vmatprep.mubr.f32.mxu0 0.0
  %5050 = vmatmul.mubr.f32.gmra.mrb[0].mxu0 %v4108
  %v5051 = vpop.f32.mrb[0].mxu0
  %v5052 = vadd.f32 0.0, %v5051
  %v5053 = vpop.f32.mrb[0].mxu0
  %5054 = vmatprep.mubr.f32.mxu0 0.0
  %5055 = vmatmul.mubr.f32.gmra.mrb[0].mxu0 %v4109
  %v5056 = vpop.f32.mrb[0].mxu0
  %v5057 = vadd.f32 0.0, %v5056
  %v5058 = vpop.f32.mrb[0].mxu0
  %5059 = vmatprep.mubr.f32.mxu0 0.0
  %5060 = vmatmul.mubr.f32.gmra.mrb[0].mxu0 %v4110
  %v5061 = vpop.f32.mrb[0].mxu0
  %v5062 = vadd.f32 0.0, %v5061
  %v5063 = vpop.f32.mrb[0].mxu0
  %5064 = vmatprep.mubr.f32.mxu0 0.0
  %5065 = vmatmul.mubr.f32.gmra.mrb[0].mxu0 %v4111
  %v5066 = vpop.f32.mrb[0].mxu0
  %v5067 = vadd.f32 0.0, %v5066
  %v5068 = vpop.f32.mrb[0].mxu0
  %5069 = vmatprep.mubr.f32.mxu0 0.0
  %5070 = vmatmul.mubr.f32.gmra.mrb[0].mxu0 %v4112
  %v5071 = vpop.f32.mrb[0].mxu0
  %v5072 = vadd.f32 0.0, %v5071
  %v5073 = vpop.f32.mrb[0].mxu0
  %5074 = vmatprep.mubr.f32.mxu0 0.0
  %5075 = vmatmul.mubr.f32.gmra.mrb[0].mxu0 %v4113
  %v5076 = vpop.f32.mrb[0].mxu0
  %v5077 = vadd.f32 0.0, %v5076
  %v5078 = vpop.f32.mrb[0].mxu0
  %5079 = vmatprep.mubr.f32.mxu0 0.0
  %5080 = vmatmul.mubr.f32.gmra.mrb[0].mxu0 %v4114
  %v5081 = vpop.f32.mrb[0].mxu0
  %v5082 = vadd.f32 0.0, %v5081
  %v5083 = vpop.f32.mrb[0].mxu0
  %5084 = vmatprep.mubr.f32.mxu0 0.0
  %5085 = vmatmul.mubr.f32.gmra.mrb[0].mxu0 %v4115
  %v5086 = vpop.f32.mrb[0].mxu0
  %v5087 = vadd.f32 0.0, %v5086
  %v5088 = vpop.f32.mrb[0].mxu0
  %5089 = vmatprep.mubr.f32.mxu0 0.0
  %5090 = vmatmul.mubr.f32.gmra.mrb[0].mxu0 %v4116
  %v5091 = vpop.f32.mrb[0].mxu0
  %v5092 = vadd.f32 0.0, %v5091
  %v5093 = vpop.f32.mrb[0].mxu0
  %5094 = vmatprep.mubr.f32.mxu0 0.0
  %5095 = vmatmul.mubr.f32.gmra.mrb[0].mxu0 %v4117
  %v5096 = vpop.f32.mrb[0].mxu0
  %v5097 = vadd.f32 0.0, %v5096
  %v5098 = vpop.f32.mrb[0].mxu0
  %5099 = vmatprep.mubr.f32.mxu0 0.0
  %5100 = vmatmul.mubr.f32.gmra.mrb[0].mxu0 %v4118
  %v5101 = vpop.f32.mrb[0].mxu0
  %v5102 = vadd.f32 0.0, %v5101
  %v5103 = vpop.f32.mrb[0].mxu0
  %5104 = vmatprep.mubr.f32.mxu0 0.0
  %5105 = vmatmul.mubr.f32.gmra.mrb[0].mxu0 %v4119
  %v5106 = vpop.f32.mrb[0].mxu0
  %v5107 = vadd.f32 0.0, %v5106
  %v5108 = vpop.f32.mrb[0].mxu0
  %5109 = vmatprep.mubr.f32.mxu0 0.0
  %5110 = vmatmul.mubr.f32.gmra.mrb[0].mxu0 %v4120
  %v5111 = vpop.f32.mrb[0].mxu0
  %v5112 = vadd.f32 0.0, %v5111
  %v5113 = vpop.f32.mrb[0].mxu0
  %5114 = vmatprep.mubr.f32.mxu0 0.0
  %5115 = vmatmul.mubr.f32.gmra.mrb[0].mxu0 %v4121
  %v5116 = vpop.f32.mrb[0].mxu0
  %v5117 = vadd.f32 0.0, %v5116
  %v5118 = vpop.f32.mrb[0].mxu0
  %5119 = vmatprep.mubr.f32.mxu0 0.0
  %5120 = vmatmul.mubr.f32.gmra.mrb[0].mxu0 %v4122
  %v5121 = vpop.f32.mrb[0].mxu0
  %v5122 = vadd.f32 0.0, %v5121
  %v5123 = vpop.f32.mrb[0].mxu0
  %5124 = vmatprep.mubr.f32.mxu0 0.0
  %5125 = vmatmul.mubr.f32.gmra.mrb[0].mxu0 %v4123
  %v5126 = vpop.f32.mrb[0].mxu0
  %v5127 = vadd.f32 0.0, %v5126
  %v5128 = vpop.f32.mrb[0].mxu0
  %5129 = vmatprep.mubr.f32.mxu0 0.0
  %5130 = vmatmul.mubr.f32.gmra.mrb[0].mxu0 %v4124
  %v5131 = vpop.f32.mrb[0].mxu0
  %v5132 = vadd.f32 0.0, %v5131
  %v5133 = vpop.f32.mrb[0].mxu0
  %5134 = vmatprep.mubr.f32.mxu0 0.0
  %5135 = vmatmul.mubr.f32.gmra.mrb[0].mxu0 %v4125
  %v5136 = vpop.f32.mrb[0].mxu0
  %v5137 = vadd.f32 0.0, %v5136
  %v5138 = vpop.f32.mrb[0].mxu0
  %5139 = vmatprep.mubr.f32.mxu0 0.0
  %5140 = vmatmul.mubr.f32.gmra.mrb[0].mxu0 %v4126
  %v5141 = vpop.f32.mrb[0].mxu0
  %v5142 = vadd.f32 0.0, %v5141
  %v5143 = vpop.f32.mrb[0].mxu0
  %5144 = vmatprep.mubr.f32.mxu0 0.0
  %5145 = vmatmul.mubr.f32.gmra.mrb[0].mxu0 %v4127
  %v5146 = vpop.f32.mrb[0].mxu0
  %v5147 = vadd.f32 0.0, %v5146
  %v5148 = vpop.f32.mrb[0].mxu0
  %5149 = vmatprep.mubr.f32.mxu0 0.0
  %5150 = vmatmul.mubr.f32.gmra.mrb[0].mxu0 %v4128
  %v5151 = vpop.f32.mrb[0].mxu0
  %v5152 = vadd.f32 0.0, %v5151
  %v5153 = vpop.f32.mrb[0].mxu0
  %5154 = vmatprep.mubr.f32.mxu0 0.0
  %5155 = vmatmul.mubr.f32.gmra.mrb[0].mxu0 %v4129
  %v5156 = vpop.f32.mrb[0].mxu0
  %v5157 = vadd.f32 0.0, %v5156
  %v5158 = vpop.f32.mrb[0].mxu0
  %5159 = vmatprep.mubr.f32.mxu0 0.0
  %5160 = vmatmul.mubr.f32.gmra.mrb[0].mxu0 %v4130
  %v5161 = vpop.f32.mrb[0].mxu0
  %v5162 = vadd.f32 0.0, %v5161
  %v5163 = vpop.f32.mrb[0].mxu0
  %5164 = vmatprep.mubr.f32.mxu0 0.0
  %5165 = vmatmul.mubr.f32.gmra.mrb[0].mxu0 %v4131
  %v5166 = vpop.f32.mrb[0].mxu0
  %v5167 = vadd.f32 0.0, %v5166
  %v5168 = vpop.f32.mrb[0].mxu0
  %5169 = vmatprep.mubr.f32.mxu0 0.0
  %5170 = vmatmul.mubr.f32.gmra.mrb[0].mxu0 %v4132
  %v5171 = vpop.f32.mrb[0].mxu0
  %v5172 = vadd.f32 0.0, %v5171
  %v5173 = vpop.f32.mrb[0].mxu0
  %5174 = vmatprep.mubr.f32.mxu0 0.0
  %5175 = vmatmul.mubr.f32.gmra.mrb[0].mxu0 %v4133
  %v5176 = vpop.f32.mrb[0].mxu0
  %v5177 = vadd.f32 0.0, %v5176
  %v5178 = vpop.f32.mrb[0].mxu0
  %5179 = vmatprep.mubr.f32.mxu0 0.0
  %5180 = vmatmul.mubr.f32.gmra.mrb[0].mxu0 %v4134
  %v5181 = vpop.f32.mrb[0].mxu0
  %v5182 = vadd.f32 0.0, %v5181
  %v5183 = vpop.f32.mrb[0].mxu0
  %5184 = vmatprep.mubr.f32.mxu0 0.0
  %5185 = vmatmul.mubr.f32.gmra.mrb[0].mxu0 %v4135
  %v5186 = vpop.f32.mrb[0].mxu0
  %v5187 = vadd.f32 0.0, %v5186
  %v5188 = vpop.f32.mrb[0].mxu0
  %5189 = vmatprep.mubr.f32.mxu0 0.0
  %5190 = vmatmul.mubr.f32.gmra.mrb[0].mxu0 %v4136
  %v5191 = vpop.f32.mrb[0].mxu0
  %v5192 = vadd.f32 0.0, %v5191
  %v5193 = vpop.f32.mrb[0].mxu0
  %5194 = vmatprep.mubr.f32.mxu0 0.0
  %5195 = vmatmul.mubr.f32.gmra.mrb[0].mxu0 %v4137
  %v5196 = vpop.f32.mrb[0].mxu0
  %v5197 = vadd.f32 0.0, %v5196
  %v5198 = vpop.f32.mrb[0].mxu0
  %5199 = vmatprep.mubr.f32.mxu0 0.0
  %5200 = vmatmul.mubr.f32.gmra.mrb[0].mxu0 %v4138
  %v5201 = vpop.f32.mrb[0].mxu0
  %v5202 = vadd.f32 0.0, %v5201
  %v5203 = vpop.f32.mrb[0].mxu0
  %5204 = vmatprep.mubr.f32.mxu0 0.0
  %5205 = vmatmul.mubr.f32.gmra.mrb[0].mxu0 %v4139
  %v5206 = vpop.f32.mrb[0].mxu0
  %v5207 = vadd.f32 0.0, %v5206
  %v5208 = vpop.f32.mrb[0].mxu0
  %5209 = vdwg.mxu0
  %v5210 = vrot.slane %v4256, 6
  %v5211 = vrot.slane %v4262, 6
  %v5212 = vrot.slane %v4268, 6
  %v5213 = vrot.slane %v4274, 6
  %v5214 = vrot.slane %v4280, 6
  %v5215 = vrot.slane %v4286, 6
  %v5216 = vrot.slane %v4292, 6
  %v5217 = vrot.slane %v4298, 6
  %v5218 = vrot.slane %v4304, 6
  %v5219 = vrot.slane %v4310, 6
  %v5220 = vrot.slane %v4316, 6
  %v5221 = vrot.slane %v4322, 6
  %v5222 = vrot.slane %v4328, 6
  %v5223 = vrot.slane %v4334, 6
  %v5224 = vrot.slane %v4340, 6
  %v5225 = vrot.slane %v4346, 6
  %v5226 = vrot.slane %v4352, 6
  %v5227 = vrot.slane %v4358, 6
  %v5228 = vrot.slane %v4364, 6
  %v5229 = vrot.slane %v4370, 6
  %v5230 = vrot.slane %v4376, 6
  %v5231 = vrot.slane %v4382, 6
  %v5232 = vrot.slane %v4388, 6
  %v5233 = vrot.slane %v4394, 6
  %v5234 = vrot.slane %v4400, 6
  %v5235 = vrot.slane %v4406, 6
  %v5236 = vrot.slane %v4412, 6
  %v5237 = vrot.slane %v4418, 6
  %v5238 = vrot.slane %v4424, 6
  %v5239 = vrot.slane %v4430, 6
  %v5240 = vrot.slane %v4436, 6
  %v5241 = vrot.slane %v4442, 6
  %v5242 = vrot.slane %v4448, 6
  %v5243 = vrot.slane %v4454, 6
  %v5244 = vrot.slane %v4460, 6
  %v5245 = vrot.slane %v4466, 6
  %v5246 = vrot.slane %v4472, 6
  %v5247 = vrot.slane %v4478, 6
  %v5248 = vrot.slane %v4484, 6
  %v5249 = vrot.slane %v4490, 6
  %v5250 = vrot.slane %v4496, 6
  %v5251 = vrot.slane %v4502, 6
  %v5252 = vrot.slane %v4508, 6
  %v5253 = vrot.slane %v4514, 6
  %v5254 = vrot.slane %v4520, 6
  %v5255 = vrot.slane %v4526, 6
  %v5256 = vrot.slane %v4532, 6
  %v5257 = vrot.slane %v4538, 6
  %v5258 = vrot.slane %v4544, 6
  %v5259 = vrot.slane %v4550, 6
  %v5260 = vrot.slane %v4556, 6
  %v5261 = vrot.slane %v4562, 6
  %v5262 = vrot.slane %v4568, 6
  %v5263 = vrot.slane %v4574, 6
  %v5264 = vrot.slane %v4580, 6
  %v5265 = vrot.slane %v4586, 6
  %v5266 = vrot.slane %v4592, 6
  %v5267 = vrot.slane %v4598, 6
  %v5268 = vrot.slane %v4604, 6
  %v5269 = vrot.slane %v4610, 6
  %v5270 = vrot.slane %v4616, 6
  %v5271 = vrot.slane %v4622, 6
  %v5272 = vrot.slane %v4628, 6
  %v5273 = vrot.slane %v4634, 6
  %v5274 = vrot.slane %v4640, 6
  %v5275 = vrot.slane %v4646, 6
  %v5276 = vrot.slane %v4652, 6
  %v5277 = vrot.slane %v4658, 6
  %v5278 = vrot.slane %v4664, 6
  %v5279 = vrot.slane %v4670, 6
  %v5280 = vrot.slane %v4676, 6
  %v5281 = vrot.slane %v4682, 6
  %v5282 = vrot.slane %v4688, 6
  %v5283 = vrot.slane %v4694, 6
  %v5284 = vrot.slane %v4700, 6
  %v5285 = vrot.slane %v4706, 6
  %v5286 = vrot.slane %v4712, 6
  %v5287 = vrot.slane %v4718, 6
  %v5288 = vrot.slane %v4724, 6
  %v5289 = vrot.slane %v4730, 6
  %v5290 = vrot.slane %v4736, 6
  %v5291 = vsel %vm2155, %v5289, %v5290
  %v5292 = vsel %vm2155, %v5288, %v5289
  %v5293 = vsel %vm2155, %v5287, %v5288
  %v5294 = vsel %vm2155, %v5286, %v5287
  %v5295 = vsel %vm2155, %v5285, %v5286
  %v5296 = vsel %vm2155, %v5284, %v5285
  %v5297 = vsel %vm2155, %v5283, %v5284
  %v5298 = vsel %vm2155, %v5282, %v5283
  %v5299 = vsel %vm2155, %v5281, %v5282
  %v5300 = vsel %vm2155, %v5280, %v5281
  %v5301 = vsel %vm2155, %v5279, %v5280
  %v5302 = vsel %vm2155, %v5278, %v5279
  %v5303 = vsel %vm2155, %v5277, %v5278
  %v5304 = vsel %vm2155, %v5276, %v5277
  %v5305 = vsel %vm2155, %v5275, %v5276
  %v5306 = vsel %vm2155, %v5274, %v5275
  %v5307 = vsel %vm2155, %v5273, %v5274
  %v5308 = vsel %vm2155, %v5272, %v5273
  %v5309 = vsel %vm2155, %v5271, %v5272
  %v5310 = vsel %vm2155, %v5270, %v5271
  %v5311 = vsel %vm2155, %v5269, %v5270
  %v5312 = vsel %vm2155, %v5268, %v5269
  %v5313 = vsel %vm2155, %v5267, %v5268
  %v5314 = vsel %vm2155, %v5266, %v5267
  %v5315 = vsel %vm2155, %v5265, %v5266
  %v5316 = vsel %vm2155, %v5264, %v5265
  %v5317 = vsel %vm2155, %v5263, %v5264
  %v5318 = vsel %vm2155, %v5262, %v5263
  %v5319 = vsel %vm2155, %v5261, %v5262
  %v5320 = vsel %vm2155, %v5260, %v5261
  %v5321 = vsel %vm2155, %v5259, %v5260
  %v5322 = vsel %vm2155, %v5258, %v5259
  %v5323 = vsel %vm2155, %v5257, %v5258
  %v5324 = vsel %vm2155, %v5256, %v5257
  %v5325 = vsel %vm2155, %v5255, %v5256
  %v5326 = vsel %vm2155, %v5254, %v5255
  %v5327 = vsel %vm2155, %v5253, %v5254
  %v5328 = vsel %vm2155, %v5252, %v5253
  %v5329 = vsel %vm2155, %v5251, %v5252
  %v5330 = vsel %vm2155, %v5250, %v5251
  %v5331 = vsel %vm2155, %v5249, %v5250
  %v5332 = vsel %vm2155, %v5248, %v5249
  %v5333 = vsel %vm2155, %v5247, %v5248
  %v5334 = vsel %vm2155, %v5246, %v5247
  %v5335 = vsel %vm2155, %v5245, %v5246
  %v5336 = vsel %vm2155, %v5244, %v5245
  %v5337 = vsel %vm2155, %v5243, %v5244
  %v5338 = vsel %vm2155, %v5242, %v5243
  %v5339 = vsel %vm2155, %v5241, %v5242
  %v5340 = vsel %vm2155, %v5240, %v5241
  %v5341 = vsel %vm2155, %v5239, %v5240
  %v5342 = vsel %vm2155, %v5238, %v5239
  %v5343 = vsel %vm2155, %v5237, %v5238
  %v5344 = vsel %vm2155, %v5236, %v5237
  %v5345 = vsel %vm2155, %v5235, %v5236
  %v5346 = vsel %vm2155, %v5234, %v5235
  %v5347 = vsel %vm2155, %v5233, %v5234
  %v5348 = vsel %vm2155, %v5232, %v5233
  %v5349 = vsel %vm2155, %v5231, %v5232
  %v5350 = vsel %vm2155, %v5230, %v5231
  %v5351 = vsel %vm2155, %v5229, %v5230
  %v5352 = vsel %vm2155, %v5228, %v5229
  %v5353 = vsel %vm2155, %v5227, %v5228
  %v5354 = vsel %vm2155, %v5226, %v5227
  %v5355 = vsel %vm2155, %v5225, %v5226
  %v5356 = vsel %vm2155, %v5224, %v5225
  %v5357 = vsel %vm2155, %v5223, %v5224
  %v5358 = vsel %vm2155, %v5222, %v5223
  %v5359 = vsel %vm2155, %v5221, %v5222
  %v5360 = vsel %vm2155, %v5220, %v5221
  %v5361 = vsel %vm2155, %v5219, %v5220
  %v5362 = vsel %vm2155, %v5218, %v5219
  %v5363 = vsel %vm2155, %v5217, %v5218
  %v5364 = vsel %vm2155, %v5216, %v5217
  %v5365 = vsel %vm2155, %v5215, %v5216
  %v5366 = vsel %vm2155, %v5214, %v5215
  %v5367 = vsel %vm2155, %v5213, %v5214
  %v5368 = vsel %vm2155, %v5212, %v5213
  %v5369 = vsel %vm2155, %v5211, %v5212
  %v5370 = vsel %vm2155, %v5210, %v5211
  %v5371 = vsel %vm2155, %v5290, %v5210
  %v5372 = vadd.f32 %v4258, %v5292
  %v5373 = vadd.f32 %v4264, %v5291
  %v5374 = vadd.f32 %v4270, %v5371
  %v5375 = vadd.f32 %v4276, %v5370
  %v5376 = vadd.f32 %v4282, %v5369
  %v5377 = vadd.f32 %v4288, %v5368
  %v5378 = vadd.f32 %v4294, %v5367
  %v5379 = vadd.f32 %v4300, %v5366
  %v5380 = vadd.f32 %v4306, %v5365
  %v5381 = vadd.f32 %v4312, %v5364
  %v5382 = vadd.f32 %v4318, %v5363
  %v5383 = vadd.f32 %v4324, %v5362
  %v5384 = vadd.f32 %v4330, %v5361
  %v5385 = vadd.f32 %v4336, %v5360
  %v5386 = vadd.f32 %v4342, %v5359
  %v5387 = vadd.f32 %v4348, %v5358
  %v5388 = vadd.f32 %v4354, %v5357
  %v5389 = vadd.f32 %v4360, %v5356
  %v5390 = vadd.f32 %v4366, %v5355
  %v5391 = vadd.f32 %v4372, %v5354
  %v5392 = vadd.f32 %v4378, %v5353
  %v5393 = vadd.f32 %v4384, %v5352
  %v5394 = vadd.f32 %v4390, %v5351
  %v5395 = vadd.f32 %v4396, %v5350
  %v5396 = vadd.f32 %v4402, %v5349
  %v5397 = vadd.f32 %v4408, %v5348
  %v5398 = vadd.f32 %v4414, %v5347
  %v5399 = vadd.f32 %v4420, %v5346
  %v5400 = vadd.f32 %v4426, %v5345
  %v5401 = vadd.f32 %v4432, %v5344
  %v5402 = vadd.f32 %v4438, %v5343
  %v5403 = vadd.f32 %v4444, %v5342
  %v5404 = vadd.f32 %v4450, %v5341
  %v5405 = vadd.f32 %v4456, %v5340
  %v5406 = vadd.f32 %v4462, %v5339
  %v5407 = vadd.f32 %v4468, %v5338
  %v5408 = vadd.f32 %v4474, %v5337
  %v5409 = vadd.f32 %v4480, %v5336
  %v5410 = vadd.f32 %v4486, %v5335
  %v5411 = vadd.f32 %v4492, %v5334
  %v5412 = vadd.f32 %v4498, %v5333
  %v5413 = vadd.f32 %v4504, %v5332
  %v5414 = vadd.f32 %v4510, %v5331
  %v5415 = vadd.f32 %v4516, %v5330
  %v5416 = vadd.f32 %v4522, %v5329
  %v5417 = vadd.f32 %v4528, %v5328
  %v5418 = vadd.f32 %v4534, %v5327
  %v5419 = vadd.f32 %v4540, %v5326
  %v5420 = vadd.f32 %v4546, %v5325
  %v5421 = vadd.f32 %v4552, %v5324
  %v5422 = vadd.f32 %v4558, %v5323
  %v5423 = vadd.f32 %v4564, %v5322
  %v5424 = vadd.f32 %v4570, %v5321
  %v5425 = vadd.f32 %v4576, %v5320
  %v5426 = vadd.f32 %v4582, %v5319
  %v5427 = vadd.f32 %v4588, %v5318
  %v5428 = vadd.f32 %v4594, %v5317
  %v5429 = vadd.f32 %v4600, %v5316
  %v5430 = vadd.f32 %v4606, %v5315
  %v5431 = vadd.f32 %v4612, %v5314
  %v5432 = vadd.f32 %v4618, %v5313
  %v5433 = vadd.f32 %v4624, %v5312
  %v5434 = vadd.f32 %v4630, %v5311
  %v5435 = vadd.f32 %v4636, %v5310
  %v5436 = vadd.f32 %v4642, %v5309
  %v5437 = vadd.f32 %v4648, %v5308
  %v5438 = vadd.f32 %v4654, %v5307
  %v5439 = vadd.f32 %v4660, %v5306
  %v5440 = vadd.f32 %v4666, %v5305
  %v5441 = vadd.f32 %v4672, %v5304
  %v5442 = vadd.f32 %v4678, %v5303
  %v5443 = vadd.f32 %v4684, %v5302
  %v5444 = vadd.f32 %v4690, %v5301
  %v5445 = vadd.f32 %v4696, %v5300
  %v5446 = vadd.f32 %v4702, %v5299
  %v5447 = vadd.f32 %v4708, %v5298
  %v5448 = vadd.f32 %v4714, %v5297
  %v5449 = vadd.f32 %v4720, %v5296
  %v5450 = vadd.f32 %v4726, %v5295
  %v5451 = vadd.f32 %v4732, %v5294
  %v5452 = vadd.f32 %v4738, %v5293
  %v5453 = vrot.slane %v4807, 2
  %v5454 = vrot.slane %v4812, 2
  %v5455 = vrot.slane %v4817, 2
  %v5456 = vrot.slane %v4822, 2
  %v5457 = vrot.slane %v4827, 2
  %v5458 = vrot.slane %v4832, 2
  %v5459 = vrot.slane %v4837, 2
  %v5460 = vrot.slane %v4842, 2
  %v5461 = vrot.slane %v4847, 2
  %v5462 = vrot.slane %v4852, 2
  %v5463 = vrot.slane %v4857, 2
  %v5464 = vrot.slane %v4862, 2
  %v5465 = vrot.slane %v4867, 2
  %v5466 = vrot.slane %v4872, 2
  %v5467 = vrot.slane %v4877, 2
  %v5468 = vrot.slane %v4882, 2
  %v5469 = vrot.slane %v4887, 2
  %v5470 = vrot.slane %v4892, 2
  %v5471 = vrot.slane %v4897, 2
  %v5472 = vrot.slane %v4902, 2
  %v5473 = vrot.slane %v4907, 2
  %v5474 = vrot.slane %v4912, 2
  %v5475 = vrot.slane %v4917, 2
  %v5476 = vrot.slane %v4922, 2
  %v5477 = vrot.slane %v4927, 2
  %v5478 = vrot.slane %v4932, 2
  %v5479 = vrot.slane %v4937, 2
  %v5480 = vrot.slane %v4942, 2
  %v5481 = vrot.slane %v4947, 2
  %v5482 = vrot.slane %v4952, 2
  %v5483 = vrot.slane %v4957, 2
  %v5484 = vrot.slane %v4962, 2
  %v5485 = vrot.slane %v4967, 2
  %v5486 = vrot.slane %v4972, 2
  %v5487 = vrot.slane %v4977, 2
  %v5488 = vrot.slane %v4982, 2
  %v5489 = vrot.slane %v4987, 2
  %v5490 = vrot.slane %v4992, 2
  %v5491 = vrot.slane %v4997, 2
  %v5492 = vrot.slane %v5002, 2
  %v5493 = vrot.slane %v5007, 2
  %v5494 = vrot.slane %v5012, 2
  %v5495 = vrot.slane %v5017, 2
  %v5496 = vrot.slane %v5022, 2
  %v5497 = vrot.slane %v5027, 2
  %v5498 = vrot.slane %v5032, 2
  %v5499 = vrot.slane %v5037, 2
  %v5500 = vrot.slane %v5042, 2
  %v5501 = vrot.slane %v5047, 2
  %v5502 = vrot.slane %v5052, 2
  %v5503 = vrot.slane %v5057, 2
  %v5504 = vrot.slane %v5062, 2
  %v5505 = vrot.slane %v5067, 2
  %v5506 = vrot.slane %v5072, 2
  %v5507 = vrot.slane %v5077, 2
  %v5508 = vrot.slane %v5082, 2
  %v5509 = vrot.slane %v5087, 2
  %v5510 = vrot.slane %v5092, 2
  %v5511 = vrot.slane %v5097, 2
  %v5512 = vrot.slane %v5102, 2
  %v5513 = vrot.slane %v5107, 2
  %v5514 = vrot.slane %v5112, 2
  %v5515 = vrot.slane %v5117, 2
  %v5516 = vrot.slane %v5122, 2
  %v5517 = vrot.slane %v5127, 2
  %v5518 = vrot.slane %v5132, 2
  %v5519 = vrot.slane %v5137, 2
  %v5520 = vrot.slane %v5142, 2
  %v5521 = vrot.slane %v5147, 2
  %v5522 = vrot.slane %v5152, 2
  %v5523 = vrot.slane %v5157, 2
  %v5524 = vrot.slane %v5162, 2
  %v5525 = vrot.slane %v5167, 2
  %v5526 = vrot.slane %v5172, 2
  %v5527 = vrot.slane %v5177, 2
  %v5528 = vrot.slane %v5182, 2
  %v5529 = vrot.slane %v5187, 2
  %v5530 = vrot.slane %v5192, 2
  %v5531 = vrot.slane %v5197, 2
  %v5532 = vrot.slane %v5202, 2
  %v5533 = vrot.slane %v5207, 2
  %v5534 = vsel %vm2399, %v5532, %v5533
  %v5535 = vsel %vm2399, %v5531, %v5532
  %v5536 = vsel %vm2399, %v5530, %v5531
  %v5537 = vsel %vm2399, %v5529, %v5530
  %v5538 = vsel %vm2399, %v5528, %v5529
  %v5539 = vsel %vm2399, %v5527, %v5528
  %v5540 = vsel %vm2399, %v5526, %v5527
  %v5541 = vsel %vm2399, %v5525, %v5526
  %v5542 = vsel %vm2399, %v5524, %v5525
  %v5543 = vsel %vm2399, %v5523, %v5524
  %v5544 = vsel %vm2399, %v5522, %v5523
  %v5545 = vsel %vm2399, %v5521, %v5522
  %v5546 = vsel %vm2399, %v5520, %v5521
  %v5547 = vsel %vm2399, %v5519, %v5520
  %v5548 = vsel %vm2399, %v5518, %v5519
  %v5549 = vsel %vm2399, %v5517, %v5518
  %v5550 = vsel %vm2399, %v5516, %v5517
  %v5551 = vsel %vm2399, %v5515, %v5516
  %v5552 = vsel %vm2399, %v5514, %v5515
  %v5553 = vsel %vm2399, %v5513, %v5514
  %v5554 = vsel %vm2399, %v5512, %v5513
  %v5555 = vsel %vm2399, %v5511, %v5512
  %v5556 = vsel %vm2399, %v5510, %v5511
  %v5557 = vsel %vm2399, %v5509, %v5510
  %v5558 = vsel %vm2399, %v5508, %v5509
  %v5559 = vsel %vm2399, %v5507, %v5508
  %v5560 = vsel %vm2399, %v5506, %v5507
  %v5561 = vsel %vm2399, %v5505, %v5506
  %v5562 = vsel %vm2399, %v5504, %v5505
  %v5563 = vsel %vm2399, %v5503, %v5504
  %v5564 = vsel %vm2399, %v5502, %v5503
  %v5565 = vsel %vm2399, %v5501, %v5502
  %v5566 = vsel %vm2399, %v5500, %v5501
  %v5567 = vsel %vm2399, %v5499, %v5500
  %v5568 = vsel %vm2399, %v5498, %v5499
  %v5569 = vsel %vm2399, %v5497, %v5498
  %v5570 = vsel %vm2399, %v5496, %v5497
  %v5571 = vsel %vm2399, %v5495, %v5496
  %v5572 = vsel %vm2399, %v5494, %v5495
  %v5573 = vsel %vm2399, %v5493, %v5494
  %v5574 = vsel %vm2399, %v5492, %v5493
  %v5575 = vsel %vm2399, %v5491, %v5492
  %v5576 = vsel %vm2399, %v5490, %v5491
  %v5577 = vsel %vm2399, %v5489, %v5490
  %v5578 = vsel %vm2399, %v5488, %v5489
  %v5579 = vsel %vm2399, %v5487, %v5488
  %v5580 = vsel %vm2399, %v5486, %v5487
  %v5581 = vsel %vm2399, %v5485, %v5486
  %v5582 = vsel %vm2399, %v5484, %v5485
  %v5583 = vsel %vm2399, %v5483, %v5484
  %v5584 = vsel %vm2399, %v5482, %v5483
  %v5585 = vsel %vm2399, %v5481, %v5482
  %v5586 = vsel %vm2399, %v5480, %v5481
  %v5587 = vsel %vm2399, %v5479, %v5480
  %v5588 = vsel %vm2399, %v5478, %v5479
  %v5589 = vsel %vm2399, %v5477, %v5478
  %v5590 = vsel %vm2399, %v5476, %v5477
  %v5591 = vsel %vm2399, %v5475, %v5476
  %v5592 = vsel %vm2399, %v5474, %v5475
  %v5593 = vsel %vm2399, %v5473, %v5474
  %v5594 = vsel %vm2399, %v5472, %v5473
  %v5595 = vsel %vm2399, %v5471, %v5472
  %v5596 = vsel %vm2399, %v5470, %v5471
  %v5597 = vsel %vm2399, %v5469, %v5470
  %v5598 = vsel %vm2399, %v5468, %v5469
  %v5599 = vsel %vm2399, %v5467, %v5468
  %v5600 = vsel %vm2399, %v5466, %v5467
  %v5601 = vsel %vm2399, %v5465, %v5466
  %v5602 = vsel %vm2399, %v5464, %v5465
  %v5603 = vsel %vm2399, %v5463, %v5464
  %v5604 = vsel %vm2399, %v5462, %v5463
  %v5605 = vsel %vm2399, %v5461, %v5462
  %v5606 = vsel %vm2399, %v5460, %v5461
  %v5607 = vsel %vm2399, %v5459, %v5460
  %v5608 = vsel %vm2399, %v5458, %v5459
  %v5609 = vsel %vm2399, %v5457, %v5458
  %v5610 = vsel %vm2399, %v5456, %v5457
  %v5611 = vsel %vm2399, %v5455, %v5456
  %v5612 = vsel %vm2399, %v5454, %v5455
  %v5613 = vsel %vm2399, %v5453, %v5454
  %v5614 = vsel %vm2399, %v5533, %v5453
  %v5615 = vadd.f32 %v5372, %v5611
  %v5616 = vadd.f32 %v5373, %v5610
  %v5617 = vadd.f32 %v5374, %v5609
  %v5618 = vadd.f32 %v5375, %v5608
  %v5619 = vadd.f32 %v5376, %v5607
  %v5620 = vadd.f32 %v5377, %v5606
  %v5621 = vadd.f32 %v5378, %v5605
  %v5622 = vadd.f32 %v5379, %v5604
  %v5623 = vadd.f32 %v5380, %v5603
  %v5624 = vadd.f32 %v5381, %v5602
  %v5625 = vadd.f32 %v5382, %v5601
  %v5626 = vadd.f32 %v5383, %v5600
  %v5627 = vadd.f32 %v5384, %v5599
  %v5628 = vadd.f32 %v5385, %v5598
  %v5629 = vadd.f32 %v5386, %v5597
  %v5630 = vadd.f32 %v5387, %v5596
  %v5631 = vadd.f32 %v5388, %v5595
  %v5632 = vadd.f32 %v5389, %v5594
  %v5633 = vadd.f32 %v5390, %v5593
  %v5634 = vadd.f32 %v5391, %v5592
  %v5635 = vadd.f32 %v5392, %v5591
  %v5636 = vadd.f32 %v5393, %v5590
  %v5637 = vadd.f32 %v5394, %v5589
  %v5638 = vadd.f32 %v5395, %v5588
  %v5639 = vadd.f32 %v5396, %v5587
  %v5640 = vadd.f32 %v5397, %v5586
  %v5641 = vadd.f32 %v5398, %v5585
  %v5642 = vadd.f32 %v5399, %v5584
  %v5643 = vadd.f32 %v5400, %v5583
  %v5644 = vadd.f32 %v5401, %v5582
  %v5645 = vadd.f32 %v5402, %v5581
  %v5646 = vadd.f32 %v5403, %v5580
  %v5647 = vadd.f32 %v5404, %v5579
  %v5648 = vadd.f32 %v5405, %v5578
  %v5649 = vadd.f32 %v5406, %v5577
  %v5650 = vadd.f32 %v5407, %v5576
  %v5651 = vadd.f32 %v5408, %v5575
  %v5652 = vadd.f32 %v5409, %v5574
  %v5653 = vadd.f32 %v5410, %v5573
  %v5654 = vadd.f32 %v5411, %v5572
  %v5655 = vadd.f32 %v5412, %v5571
  %v5656 = vadd.f32 %v5413, %v5570
  %v5657 = vadd.f32 %v5414, %v5569
  %v5658 = vadd.f32 %v5415, %v5568
  %v5659 = vadd.f32 %v5416, %v5567
  %v5660 = vadd.f32 %v5417, %v5566
  %v5661 = vadd.f32 %v5418, %v5565
  %v5662 = vadd.f32 %v5419, %v5564
  %v5663 = vadd.f32 %v5420, %v5563
  %v5664 = vadd.f32 %v5421, %v5562
  %v5665 = vadd.f32 %v5422, %v5561
  %v5666 = vadd.f32 %v5423, %v5560
  %v5667 = vadd.f32 %v5424, %v5559
  %v5668 = vadd.f32 %v5425, %v5558
  %v5669 = vadd.f32 %v5426, %v5557
  %v5670 = vadd.f32 %v5427, %v5556
  %v5671 = vadd.f32 %v5428, %v5555
  %v5672 = vadd.f32 %v5429, %v5554
  %v5673 = vadd.f32 %v5430, %v5553
  %v5674 = vadd.f32 %v5431, %v5552
  %v5675 = vadd.f32 %v5432, %v5551
  %v5676 = vadd.f32 %v5433, %v5550
  %v5677 = vadd.f32 %v5434, %v5549
  %v5678 = vadd.f32 %v5435, %v5548
  %v5679 = vadd.f32 %v5436, %v5547
  %v5680 = vadd.f32 %v5437, %v5546
  %v5681 = vadd.f32 %v5438, %v5545
  %v5682 = vadd.f32 %v5439, %v5544
  %v5683 = vadd.f32 %v5440, %v5543
  %v5684 = vadd.f32 %v5441, %v5542
  %v5685 = vadd.f32 %v5442, %v5541
  %v5686 = vadd.f32 %v5443, %v5540
  %v5687 = vadd.f32 %v5444, %v5539
  %v5688 = vadd.f32 %v5445, %v5538
  %v5689 = vadd.f32 %v5446, %v5537
  %v5690 = vadd.f32 %v5447, %v5536
  %v5691 = vadd.f32 %v5448, %v5535
  %v5692 = vadd.f32 %v5449, %v5534
  %v5693 = vadd.f32 %v5450, %v5614
  %v5694 = vadd.f32 %v5451, %v5613
  %v5695 = vadd.f32 %v5452, %v5612
  %s5696 = scalar_lea.vmem %s3, 1
  %v5697 = vld [vmem:[%s5696] sm:$0x1]
  %v5699 = vlaneseq
  %v5700 = vshrl.u32 %v5699, 7
  %v5701 = vsub.s32 0, %v5700
  %v5702 = vrot.slane %v5697, %v5701
  %v5704 = vadd.f32 %v5615, %v5702
  %v5705 = vadd.f32 %v5616, %v5702
  %v5706 = vadd.f32 %v5617, %v5702
  %v5707 = vadd.f32 %v5618, %v5702
  %v5708 = vadd.f32 %v5619, %v5702
  %v5709 = vadd.f32 %v5620, %v5702
  %v5710 = vadd.f32 %v5621, %v5702
  %v5711 = vadd.f32 %v5622, %v5702
  %v5712 = vadd.f32 %v5623, %v5702
  %v5713 = vadd.f32 %v5624, %v5702
  %v5714 = vadd.f32 %v5625, %v5702
  %v5715 = vadd.f32 %v5626, %v5702
  %v5716 = vadd.f32 %v5627, %v5702
  %v5717 = vadd.f32 %v5628, %v5702
  %v5718 = vadd.f32 %v5629, %v5702
  %v5719 = vadd.f32 %v5630, %v5702
  %v5720 = vadd.f32 %v5631, %v5702
  %v5721 = vadd.f32 %v5632, %v5702
  %v5722 = vadd.f32 %v5633, %v5702
  %v5723 = vadd.f32 %v5634, %v5702
  %v5724 = vadd.f32 %v5635, %v5702
  %v5725 = vadd.f32 %v5636, %v5702
  %v5726 = vadd.f32 %v5637, %v5702
  %v5727 = vadd.f32 %v5638, %v5702
  %v5728 = vadd.f32 %v5639, %v5702
  %v5729 = vadd.f32 %v5640, %v5702
  %v5730 = vadd.f32 %v5641, %v5702
  %v5731 = vadd.f32 %v5642, %v5702
  %v5732 = vadd.f32 %v5643, %v5702
  %v5733 = vadd.f32 %v5644, %v5702
  %v5734 = vadd.f32 %v5645, %v5702
  %v5735 = vadd.f32 %v5646, %v5702
  %v5736 = vadd.f32 %v5647, %v5702
  %v5737 = vadd.f32 %v5648, %v5702
  %v5738 = vadd.f32 %v5649, %v5702
  %v5739 = vadd.f32 %v5650, %v5702
  %v5740 = vadd.f32 %v5651, %v5702
  %v5741 = vadd.f32 %v5652, %v5702
  %v5742 = vadd.f32 %v5653, %v5702
  %v5743 = vadd.f32 %v5654, %v5702
  %v5744 = vadd.f32 %v5655, %v5702
  %v5745 = vadd.f32 %v5656, %v5702
  %v5746 = vadd.f32 %v5657, %v5702
  %v5747 = vadd.f32 %v5658, %v5702
  %v5748 = vadd.f32 %v5659, %v5702
  %v5749 = vadd.f32 %v5660, %v5702
  %v5750 = vadd.f32 %v5661, %v5702
  %v5751 = vadd.f32 %v5662, %v5702
  %v5752 = vadd.f32 %v5663, %v5702
  %v5753 = vadd.f32 %v5664, %v5702
  %v5754 = vadd.f32 %v5665, %v5702
  %v5755 = vadd.f32 %v5666, %v5702
  %v5756 = vadd.f32 %v5667, %v5702
  %v5757 = vadd.f32 %v5668, %v5702
  %v5758 = vadd.f32 %v5669, %v5702
  %v5759 = vadd.f32 %v5670, %v5702
  %v5760 = vadd.f32 %v5671, %v5702
  %v5761 = vadd.f32 %v5672, %v5702
  %v5762 = vadd.f32 %v5673, %v5702
  %v5763 = vadd.f32 %v5674, %v5702
  %v5764 = vadd.f32 %v5675, %v5702
  %v5765 = vadd.f32 %v5676, %v5702
  %v5766 = vadd.f32 %v5677, %v5702
  %v5767 = vadd.f32 %v5678, %v5702
  %v5768 = vadd.f32 %v5679, %v5702
  %v5769 = vadd.f32 %v5680, %v5702
  %v5770 = vadd.f32 %v5681, %v5702
  %v5771 = vadd.f32 %v5682, %v5702
  %v5772 = vadd.f32 %v5683, %v5702
  %v5773 = vadd.f32 %v5684, %v5702
  %v5774 = vadd.f32 %v5685, %v5702
  %v5775 = vadd.f32 %v5686, %v5702
  %v5776 = vadd.f32 %v5687, %v5702
  %v5777 = vadd.f32 %v5688, %v5702
  %v5778 = vadd.f32 %v5689, %v5702
  %v5779 = vadd.f32 %v5690, %v5702
  %v5780 = vadd.f32 %v5691, %v5702
  %v5781 = vadd.f32 %v5692, %v5702
  %v5782 = vadd.f32 %v5693, %v5702
  %v5783 = vadd.f32 %v5694, %v5702
  %v5784 = vadd.f32 %v5695, %v5702
  %v5785 = vmax.f32 %v5704, 0.0
  %v5786 = vmax.f32 %v5705, 0.0
  %v5787 = vmax.f32 %v5706, 0.0
  %v5788 = vmax.f32 %v5707, 0.0
  %v5789 = vmax.f32 %v5708, 0.0
  %v5790 = vmax.f32 %v5709, 0.0
  %v5791 = vmax.f32 %v5710, 0.0
  %v5792 = vmax.f32 %v5711, 0.0
  %v5793 = vmax.f32 %v5712, 0.0
  %v5794 = vmax.f32 %v5713, 0.0
  %v5795 = vmax.f32 %v5714, 0.0
  %v5796 = vmax.f32 %v5715, 0.0
  %v5797 = vmax.f32 %v5716, 0.0
  %v5798 = vmax.f32 %v5717, 0.0
  %v5799 = vmax.f32 %v5718, 0.0
  %v5800 = vmax.f32 %v5719, 0.0
  %v5801 = vmax.f32 %v5720, 0.0
  %v5802 = vmax.f32 %v5721, 0.0
  %v5803 = vmax.f32 %v5722, 0.0
  %v5804 = vmax.f32 %v5723, 0.0
  %v5805 = vmax.f32 %v5724, 0.0
  %v5806 = vmax.f32 %v5725, 0.0
  %v5807 = vmax.f32 %v5726, 0.0
  %v5808 = vmax.f32 %v5727, 0.0
  %v5809 = vmax.f32 %v5728, 0.0
  %v5810 = vmax.f32 %v5729, 0.0
  %v5811 = vmax.f32 %v5730, 0.0
  %v5812 = vmax.f32 %v5731, 0.0
  %v5813 = vmax.f32 %v5732, 0.0
  %v5814 = vmax.f32 %v5733, 0.0
  %v5815 = vmax.f32 %v5734, 0.0
  %v5816 = vmax.f32 %v5735, 0.0
  %v5817 = vmax.f32 %v5736, 0.0
  %v5818 = vmax.f32 %v5737, 0.0
  %v5819 = vmax.f32 %v5738, 0.0
  %v5820 = vmax.f32 %v5739, 0.0
  %v5821 = vmax.f32 %v5740, 0.0
  %v5822 = vmax.f32 %v5741, 0.0
  %v5823 = vmax.f32 %v5742, 0.0
  %v5824 = vmax.f32 %v5743, 0.0
  %v5825 = vmax.f32 %v5744, 0.0
  %v5826 = vmax.f32 %v5745, 0.0
  %v5827 = vmax.f32 %v5746, 0.0
  %v5828 = vmax.f32 %v5747, 0.0
  %v5829 = vmax.f32 %v5748, 0.0
  %v5830 = vmax.f32 %v5749, 0.0
  %v5831 = vmax.f32 %v5750, 0.0
  %v5832 = vmax.f32 %v5751, 0.0
  %v5833 = vmax.f32 %v5752, 0.0
  %v5834 = vmax.f32 %v5753, 0.0
  %v5835 = vmax.f32 %v5754, 0.0
  %v5836 = vmax.f32 %v5755, 0.0
  %v5837 = vmax.f32 %v5756, 0.0
  %v5838 = vmax.f32 %v5757, 0.0
  %v5839 = vmax.f32 %v5758, 0.0
  %v5840 = vmax.f32 %v5759, 0.0
  %v5841 = vmax.f32 %v5760, 0.0
  %v5842 = vmax.f32 %v5761, 0.0
  %v5843 = vmax.f32 %v5762, 0.0
  %v5844 = vmax.f32 %v5763, 0.0
  %v5845 = vmax.f32 %v5764, 0.0
  %v5846 = vmax.f32 %v5765, 0.0
  %v5847 = vmax.f32 %v5766, 0.0
  %v5848 = vmax.f32 %v5767, 0.0
  %v5849 = vmax.f32 %v5768, 0.0
  %v5850 = vmax.f32 %v5769, 0.0
  %v5851 = vmax.f32 %v5770, 0.0
  %v5852 = vmax.f32 %v5771, 0.0
  %v5853 = vmax.f32 %v5772, 0.0
  %v5854 = vmax.f32 %v5773, 0.0
  %v5855 = vmax.f32 %v5774, 0.0
  %v5856 = vmax.f32 %v5775, 0.0
  %v5857 = vmax.f32 %v5776, 0.0
  %v5858 = vmax.f32 %v5777, 0.0
  %v5859 = vmax.f32 %v5778, 0.0
  %v5860 = vmax.f32 %v5779, 0.0
  %v5861 = vmax.f32 %v5780, 0.0
  %v5862 = vmax.f32 %v5781, 0.0
  %v5863 = vmax.f32 %v5782, 0.0
  %v5864 = vmax.f32 %v5783, 0.0
  %v5865 = vmax.f32 %v5784, 0.0
  %v5866 = vmul.f32 %v5785, %v29
  %v5867 = vmul.f32 %v5786, %v30
  %v5868 = vmul.f32 %v5787, %v31
  %v5869 = vmul.f32 %v5788, %v32
  %v5870 = vmul.f32 %v5789, %v33
  %v5871 = vmul.f32 %v5790, %v34
  %v5872 = vmul.f32 %v5791, %v35
  %v5873 = vmul.f32 %v5792, %v36
  %v5874 = vmul.f32 %v5793, %v37
  %v5875 = vmul.f32 %v5794, %v38
  %v5876 = vmul.f32 %v5795, %v39
  %v5877 = vmul.f32 %v5796, %v40
  %v5878 = vmul.f32 %v5797, %v41
  %v5879 = vmul.f32 %v5798, %v42
  %v5880 = vmul.f32 %v5799, %v43
  %v5881 = vmul.f32 %v5800, %v44
  %v5882 = vmul.f32 %v5801, %v45
  %v5883 = vmul.f32 %v5802, %v46
  %v5884 = vmul.f32 %v5803, %v47
  %v5885 = vmul.f32 %v5804, %v48
  %v5886 = vmul.f32 %v5805, %v49
  %v5887 = vmul.f32 %v5806, %v50
  %v5888 = vmul.f32 %v5807, %v51
  %v5889 = vmul.f32 %v5808, %v52
  %v5890 = vmul.f32 %v5809, %v53
  %v5891 = vmul.f32 %v5810, %v54
  %v5892 = vmul.f32 %v5811, %v55
  %v5893 = vmul.f32 %v5812, %v56
  %v5894 = vmul.f32 %v5813, %v57
  %v5895 = vmul.f32 %v5814, %v58
  %v5896 = vmul.f32 %v5815, %v59
  %v5897 = vmul.f32 %v5816, %v60
  %v5898 = vmul.f32 %v5817, %v61
  %v5899 = vmul.f32 %v5818, %v62
  %v5900 = vmul.f32 %v5819, %v63
  %v5901 = vmul.f32 %v5820, %v64
  %v5902 = vmul.f32 %v5821, %v65
  %v5903 = vmul.f32 %v5822, %v66
  %v5904 = vmul.f32 %v5823, %v67
  %v5905 = vmul.f32 %v5824, %v68
  %v5906 = vmul.f32 %v5825, %v69
  %v5907 = vmul.f32 %v5826, %v70
  %v5908 = vmul.f32 %v5827, %v71
  %v5909 = vmul.f32 %v5828, %v72
  %v5910 = vmul.f32 %v5829, %v73
  %v5911 = vmul.f32 %v5830, %v74
  %v5912 = vmul.f32 %v5831, %v75
  %v5913 = vmul.f32 %v5832, %v76
  %v5914 = vmul.f32 %v5833, %v77
  %v5915 = vmul.f32 %v5834, %v78
  %v5916 = vmul.f32 %v5835, %v79
  %v5917 = vmul.f32 %v5836, %v80
  %v5918 = vmul.f32 %v5837, %v81
  %v5919 = vmul.f32 %v5838, %v82
  %v5920 = vmul.f32 %v5839, %v83
  %v5921 = vmul.f32 %v5840, %v84
  %v5922 = vmul.f32 %v5841, %v85
  %v5923 = vmul.f32 %v5842, %v86
  %v5924 = vmul.f32 %v5843, %v87
  %v5925 = vmul.f32 %v5844, %v88
  %v5926 = vmul.f32 %v5845, %v89
  %v5927 = vmul.f32 %v5846, %v90
  %v5928 = vmul.f32 %v5847, %v91
  %v5929 = vmul.f32 %v5848, %v92
  %v5930 = vmul.f32 %v5849, %v93
  %v5931 = vmul.f32 %v5850, %v94
  %v5932 = vmul.f32 %v5851, %v95
  %v5933 = vmul.f32 %v5852, %v96
  %v5934 = vmul.f32 %v5853, %v97
  %v5935 = vmul.f32 %v5854, %v98
  %v5936 = vmul.f32 %v5855, %v99
  %v5937 = vmul.f32 %v5856, %v100
  %v5938 = vmul.f32 %v5857, %v101
  %v5939 = vmul.f32 %v5858, %v102
  %v5940 = vmul.f32 %v5859, %v103
  %v5941 = vmul.f32 %v5860, %v104
  %v5942 = vmul.f32 %v5861, %v105
  %v5943 = vmul.f32 %v5862, %v106
  %v5944 = vmul.f32 %v5863, %v107
  %v5945 = vmul.f32 %v5864, %v108
  %v5946 = vmul.f32 %v5865, %v109
  %v5947 = vadd.f32 %v5866, %v5867
  %v5948 = vadd.f32 %v5947, %v5868
  %v5949 = vadd.f32 %v5948, %v5869
  %v5950 = vadd.f32 %v5949, %v5870
  %v5951 = vadd.f32 %v5950, %v5871
  %v5952 = vadd.f32 %v5951, %v5872
  %v5953 = vadd.f32 %v5952, %v5873
  %v5954 = vadd.f32 %v5953, %v5874
  %v5955 = vadd.f32 %v5954, %v5875
  %v5956 = vadd.f32 %v5955, %v5876
  %v5957 = vadd.f32 %v5956, %v5877
  %v5958 = vadd.f32 %v5957, %v5878
  %v5959 = vadd.f32 %v5958, %v5879
  %v5960 = vadd.f32 %v5959, %v5880
  %v5961 = vadd.f32 %v5960, %v5881
  %v5962 = vadd.f32 %v5961, %v5882
  %v5963 = vadd.f32 %v5962, %v5883
  %v5964 = vadd.f32 %v5963, %v5884
  %v5965 = vadd.f32 %v5964, %v5885
  %v5966 = vadd.f32 %v5965, %v5886
  %v5967 = vadd.f32 %v5966, %v5887
  %v5968 = vadd.f32 %v5967, %v5888
  %v5969 = vadd.f32 %v5968, %v5889
  %v5970 = vadd.f32 %v5969, %v5890
  %v5971 = vadd.f32 %v5970, %v5891
  %v5972 = vadd.f32 %v5971, %v5892
  %v5973 = vadd.f32 %v5972, %v5893
  %v5974 = vadd.f32 %v5973, %v5894
  %v5975 = vadd.f32 %v5974, %v5895
  %v5976 = vadd.f32 %v5975, %v5896
  %v5977 = vadd.f32 %v5976, %v5897
  %v5978 = vadd.f32 %v5977, %v5898
  %v5979 = vadd.f32 %v5978, %v5899
  %v5980 = vadd.f32 %v5979, %v5900
  %v5981 = vadd.f32 %v5980, %v5901
  %v5982 = vadd.f32 %v5981, %v5902
  %v5983 = vadd.f32 %v5982, %v5903
  %v5984 = vadd.f32 %v5983, %v5904
  %v5985 = vadd.f32 %v5984, %v5905
  %v5986 = vadd.f32 %v5985, %v5906
  %v5987 = vadd.f32 %v5986, %v5907
  %v5988 = vadd.f32 %v5987, %v5908
  %v5989 = vadd.f32 %v5988, %v5909
  %v5990 = vadd.f32 %v5989, %v5910
  %v5991 = vadd.f32 %v5990, %v5911
  %v5992 = vadd.f32 %v5991, %v5912
  %v5993 = vadd.f32 %v5992, %v5913
  %v5994 = vadd.f32 %v5993, %v5914
  %v5995 = vadd.f32 %v5994, %v5915
  %v5996 = vadd.f32 %v5995, %v5916
  %v5997 = vadd.f32 %v5996, %v5917
  %v5998 = vadd.f32 %v5997, %v5918
  %v5999 = vadd.f32 %v5998, %v5919
  %v6000 = vadd.f32 %v5999, %v5920
  %v6001 = vadd.f32 %v6000, %v5921
  %v6002 = vadd.f32 %v6001, %v5922
  %v6003 = vadd.f32 %v6002, %v5923
  %v6004 = vadd.f32 %v6003, %v5924
  %v6005 = vadd.f32 %v6004, %v5925
  %v6006 = vadd.f32 %v6005, %v5926
  %v6007 = vadd.f32 %v6006, %v5927
  %v6008 = vadd.f32 %v6007, %v5928
  %v6009 = vadd.f32 %v6008, %v5929
  %v6010 = vadd.f32 %v6009, %v5930
  %v6011 = vadd.f32 %v6010, %v5931
  %v6012 = vadd.f32 %v6011, %v5932
  %v6013 = vadd.f32 %v6012, %v5933
  %v6014 = vadd.f32 %v6013, %v5934
  %v6015 = vadd.f32 %v6014, %v5935
  %v6016 = vadd.f32 %v6015, %v5936
  %v6017 = vadd.f32 %v6016, %v5937
  %v6018 = vadd.f32 %v6017, %v5938
  %v6019 = vadd.f32 %v6018, %v5939
  %v6020 = vadd.f32 %v6019, %v5940
  %v6021 = vadd.f32 %v6020, %v5941
  %v6022 = vadd.f32 %v6021, %v5942
  %v6023 = vadd.f32 %v6022, %v5943
  %v6024 = vadd.f32 %v6023, %v5944
  %v6025 = vadd.f32 %v6024, %v5945
  %v6026 = vadd.f32 %v6025, %v5946
  %v6027 = vrot.slane %v6026, 4
  %v6028 = vadd.f32 %v6026, %v6027
  %v6029 = vrot.slane %v6028, 2
  %v6030 = vadd.f32 %v6028, %v6029
  %v6031 = vrot.slane %v6030, 1
  %v6032 = vadd.f32 %v6030, %v6031
  %v6033 = vmul.f32 %v5866, %v5866
  %v6034 = vmul.f32 %v5867, %v5867
  %v6035 = vmul.f32 %v5868, %v5868
  %v6036 = vmul.f32 %v5869, %v5869
  %v6037 = vmul.f32 %v5870, %v5870
  %v6038 = vmul.f32 %v5871, %v5871
  %v6039 = vmul.f32 %v5872, %v5872
  %v6040 = vmul.f32 %v5873, %v5873
  %v6041 = vmul.f32 %v5874, %v5874
  %v6042 = vmul.f32 %v5875, %v5875
  %v6043 = vmul.f32 %v5876, %v5876
  %v6044 = vmul.f32 %v5877, %v5877
  %v6045 = vmul.f32 %v5878, %v5878
  %v6046 = vmul.f32 %v5879, %v5879
  %v6047 = vmul.f32 %v5880, %v5880
  %v6048 = vmul.f32 %v5881, %v5881
  %v6049 = vmul.f32 %v5882, %v5882
  %v6050 = vmul.f32 %v5883, %v5883
  %v6051 = vmul.f32 %v5884, %v5884
  %v6052 = vmul.f32 %v5885, %v5885
  %v6053 = vmul.f32 %v5886, %v5886
  %v6054 = vmul.f32 %v5887, %v5887
  %v6055 = vmul.f32 %v5888, %v5888
  %v6056 = vmul.f32 %v5889, %v5889
  %v6057 = vmul.f32 %v5890, %v5890
  %v6058 = vmul.f32 %v5891, %v5891
  %v6059 = vmul.f32 %v5892, %v5892
  %v6060 = vmul.f32 %v5893, %v5893
  %v6061 = vmul.f32 %v5894, %v5894
  %v6062 = vmul.f32 %v5895, %v5895
  %v6063 = vmul.f32 %v5896, %v5896
  %v6064 = vmul.f32 %v5897, %v5897
  %v6065 = vmul.f32 %v5898, %v5898
  %v6066 = vmul.f32 %v5899, %v5899
  %v6067 = vmul.f32 %v5900, %v5900
  %v6068 = vmul.f32 %v5901, %v5901
  %v6069 = vmul.f32 %v5902, %v5902
  %v6070 = vmul.f32 %v5903, %v5903
  %v6071 = vmul.f32 %v5904, %v5904
  %v6072 = vmul.f32 %v5905, %v5905
  %v6073 = vmul.f32 %v5906, %v5906
  %v6074 = vmul.f32 %v5907, %v5907
  %v6075 = vmul.f32 %v5908, %v5908
  %v6076 = vmul.f32 %v5909, %v5909
  %v6077 = vmul.f32 %v5910, %v5910
  %v6078 = vmul.f32 %v5911, %v5911
  %v6079 = vmul.f32 %v5912, %v5912
  %v6080 = vmul.f32 %v5913, %v5913
  %v6081 = vmul.f32 %v5914, %v5914
  %v6082 = vmul.f32 %v5915, %v5915
  %v6083 = vmul.f32 %v5916, %v5916
  %v6084 = vmul.f32 %v5917, %v5917
  %v6085 = vmul.f32 %v5918, %v5918
  %v6086 = vmul.f32 %v5919, %v5919
  %v6087 = vmul.f32 %v5920, %v5920
  %v6088 = vmul.f32 %v5921, %v5921
  %v6089 = vmul.f32 %v5922, %v5922
  %v6090 = vmul.f32 %v5923, %v5923
  %v6091 = vmul.f32 %v5924, %v5924
  %v6092 = vmul.f32 %v5925, %v5925
  %v6093 = vmul.f32 %v5926, %v5926
  %v6094 = vmul.f32 %v5927, %v5927
  %v6095 = vmul.f32 %v5928, %v5928
  %v6096 = vmul.f32 %v5929, %v5929
  %v6097 = vmul.f32 %v5930, %v5930
  %v6098 = vmul.f32 %v5931, %v5931
  %v6099 = vmul.f32 %v5932, %v5932
  %v6100 = vmul.f32 %v5933, %v5933
  %v6101 = vmul.f32 %v5934, %v5934
  %v6102 = vmul.f32 %v5935, %v5935
  %v6103 = vmul.f32 %v5936, %v5936
  %v6104 = vmul.f32 %v5937, %v5937
  %v6105 = vmul.f32 %v5938, %v5938
  %v6106 = vmul.f32 %v5939, %v5939
  %v6107 = vmul.f32 %v5940, %v5940
  %v6108 = vmul.f32 %v5941, %v5941
  %v6109 = vmul.f32 %v5942, %v5942
  %v6110 = vmul.f32 %v5943, %v5943
  %v6111 = vmul.f32 %v5944, %v5944
  %v6112 = vmul.f32 %v5945, %v5945
  %v6113 = vmul.f32 %v5946, %v5946
  %v6114 = vadd.f32 %v6033, %v6034
  %v6115 = vadd.f32 %v6114, %v6035
  %v6116 = vadd.f32 %v6115, %v6036
  %v6117 = vadd.f32 %v6116, %v6037
  %v6118 = vadd.f32 %v6117, %v6038
  %v6119 = vadd.f32 %v6118, %v6039
  %v6120 = vadd.f32 %v6119, %v6040
  %v6121 = vadd.f32 %v6120, %v6041
  %v6122 = vadd.f32 %v6121, %v6042
  %v6123 = vadd.f32 %v6122, %v6043
  %v6124 = vadd.f32 %v6123, %v6044
  %v6125 = vadd.f32 %v6124, %v6045
  %v6126 = vadd.f32 %v6125, %v6046
  %v6127 = vadd.f32 %v6126, %v6047
  %v6128 = vadd.f32 %v6127, %v6048
  %v6129 = vadd.f32 %v6128, %v6049
  %v6130 = vadd.f32 %v6129, %v6050
  %v6131 = vadd.f32 %v6130, %v6051
  %v6132 = vadd.f32 %v6131, %v6052
  %v6133 = vadd.f32 %v6132, %v6053
  %v6134 = vadd.f32 %v6133, %v6054
  %v6135 = vadd.f32 %v6134, %v6055
  %v6136 = vadd.f32 %v6135, %v6056
  %v6137 = vadd.f32 %v6136, %v6057
  %v6138 = vadd.f32 %v6137, %v6058
  %v6139 = vadd.f32 %v6138, %v6059
  %v6140 = vadd.f32 %v6139, %v6060
  %v6141 = vadd.f32 %v6140, %v6061
  %v6142 = vadd.f32 %v6141, %v6062
  %v6143 = vadd.f32 %v6142, %v6063
  %v6144 = vadd.f32 %v6143, %v6064
  %v6145 = vadd.f32 %v6144, %v6065
  %v6146 = vadd.f32 %v6145, %v6066
  %v6147 = vadd.f32 %v6146, %v6067
  %v6148 = vadd.f32 %v6147, %v6068
  %v6149 = vadd.f32 %v6148, %v6069
  %v6150 = vadd.f32 %v6149, %v6070
  %v6151 = vadd.f32 %v6150, %v6071
  %v6152 = vadd.f32 %v6151, %v6072
  %v6153 = vadd.f32 %v6152, %v6073
  %v6154 = vadd.f32 %v6153, %v6074
  %v6155 = vadd.f32 %v6154, %v6075
  %v6156 = vadd.f32 %v6155, %v6076
  %v6157 = vadd.f32 %v6156, %v6077
  %v6158 = vadd.f32 %v6157, %v6078
  %v6159 = vadd.f32 %v6158, %v6079
  %v6160 = vadd.f32 %v6159, %v6080
  %v6161 = vadd.f32 %v6160, %v6081
  %v6162 = vadd.f32 %v6161, %v6082
  %v6163 = vadd.f32 %v6162, %v6083
  %v6164 = vadd.f32 %v6163, %v6084
  %v6165 = vadd.f32 %v6164, %v6085
  %v6166 = vadd.f32 %v6165, %v6086
  %v6167 = vadd.f32 %v6166, %v6087
  %v6168 = vadd.f32 %v6167, %v6088
  %v6169 = vadd.f32 %v6168, %v6089
  %v6170 = vadd.f32 %v6169, %v6090
  %v6171 = vadd.f32 %v6170, %v6091
  %v6172 = vadd.f32 %v6171, %v6092
  %v6173 = vadd.f32 %v6172, %v6093
  %v6174 = vadd.f32 %v6173, %v6094
  %v6175 = vadd.f32 %v6174, %v6095
  %v6176 = vadd.f32 %v6175, %v6096
  %v6177 = vadd.f32 %v6176, %v6097
  %v6178 = vadd.f32 %v6177, %v6098
  %v6179 = vadd.f32 %v6178, %v6099
  %v6180 = vadd.f32 %v6179, %v6100
  %v6181 = vadd.f32 %v6180, %v6101
  %v6182 = vadd.f32 %v6181, %v6102
  %v6183 = vadd.f32 %v6182, %v6103
  %v6184 = vadd.f32 %v6183, %v6104
  %v6185 = vadd.f32 %v6184, %v6105
  %v6186 = vadd.f32 %v6185, %v6106
  %v6187 = vadd.f32 %v6186, %v6107
  %v6188 = vadd.f32 %v6187, %v6108
  %v6189 = vadd.f32 %v6188, %v6109
  %v6190 = vadd.f32 %v6189, %v6110
  %v6191 = vadd.f32 %v6190, %v6111
  %v6192 = vadd.f32 %v6191, %v6112
  %v6193 = vadd.f32 %v6192, %v6113
  %v6194 = vrot.slane %v6193, 4
  %v6195 = vadd.f32 %v6193, %v6194
  %v6196 = vrot.slane %v6195, 2
  %v6197 = vadd.f32 %v6195, %v6196
  %v6198 = vrot.slane %v6197, 1
  %v6199 = vadd.f32 %v6197, %v6198
  %v6200 = vmul.f32 %v6032, 0.001953125
  %v6201 = vmul.f32 %v6199, 0.001953125
  %v6202 = vmul.f32 %v6200, %v6200
  %v6203 = vsub.f32 %v6201, %v6202
  %v6204 = vmax.f32 %v6203, 0.0
  %v6205 = vadd.f32 %v6204, 1e-05
  %v6206 = vrsqrt.pop %v6205
  %s6207 = scalar_lea.vmem %s6, 1
  %v6208 = vld [vmem:[%s6207] sm:$0x1]
  %v6209 = vmul.f32 %v6206, %v6208
  %s6210 = scalar_lea.vmem %s7, 1
  %v6211 = vld [vmem:[%s6210] sm:$0x1]
  %v6212 = vmul.f32 %v6200, %v6209
  %v6213 = vsub.f32 %v6211, %v6212
  %v6214 = vlaneseq
  %v6215 = vshrl.u32 %v6214, 7
  %v6216 = vsub.s32 0, %v6215
  %v6217 = vrot.slane %v6209, %v6216
  %v6218 = vmul.f32 %v5866, %v6217
  %v6219 = vmul.f32 %v5867, %v6217
  %v6220 = vmul.f32 %v5868, %v6217
  %v6221 = vmul.f32 %v5869, %v6217
  %v6222 = vmul.f32 %v5870, %v6217
  %v6223 = vmul.f32 %v5871, %v6217
  %v6224 = vmul.f32 %v5872, %v6217
  %v6225 = vmul.f32 %v5873, %v6217
  %v6226 = vmul.f32 %v5874, %v6217
  %v6227 = vmul.f32 %v5875, %v6217
  %v6228 = vmul.f32 %v5876, %v6217
  %v6229 = vmul.f32 %v5877, %v6217
  %v6230 = vmul.f32 %v5878, %v6217
  %v6231 = vmul.f32 %v5879, %v6217
  %v6232 = vmul.f32 %v5880, %v6217
  %v6233 = vmul.f32 %v5881, %v6217
  %v6234 = vmul.f32 %v5882, %v6217
  %v6235 = vmul.f32 %v5883, %v6217
  %v6236 = vmul.f32 %v5884, %v6217
  %v6237 = vmul.f32 %v5885, %v6217
  %v6238 = vmul.f32 %v5886, %v6217
  %v6239 = vmul.f32 %v5887, %v6217
  %v6240 = vmul.f32 %v5888, %v6217
  %v6241 = vmul.f32 %v5889, %v6217
  %v6242 = vmul.f32 %v5890, %v6217
  %v6243 = vmul.f32 %v5891, %v6217
  %v6244 = vmul.f32 %v5892, %v6217
  %v6245 = vmul.f32 %v5893, %v6217
  %v6246 = vmul.f32 %v5894, %v6217
  %v6247 = vmul.f32 %v5895, %v6217
  %v6248 = vmul.f32 %v5896, %v6217
  %v6249 = vmul.f32 %v5897, %v6217
  %v6250 = vmul.f32 %v5898, %v6217
  %v6251 = vmul.f32 %v5899, %v6217
  %v6252 = vmul.f32 %v5900, %v6217
  %v6253 = vmul.f32 %v5901, %v6217
  %v6254 = vmul.f32 %v5902, %v6217
  %v6255 = vmul.f32 %v5903, %v6217
  %v6256 = vmul.f32 %v5904, %v6217
  %v6257 = vmul.f32 %v5905, %v6217
  %v6258 = vmul.f32 %v5906, %v6217
  %v6259 = vmul.f32 %v5907, %v6217
  %v6260 = vmul.f32 %v5908, %v6217
  %v6261 = vmul.f32 %v5909, %v6217
  %v6262 = vmul.f32 %v5910, %v6217
  %v6263 = vmul.f32 %v5911, %v6217
  %v6264 = vmul.f32 %v5912, %v6217
  %v6265 = vmul.f32 %v5913, %v6217
  %v6266 = vmul.f32 %v5914, %v6217
  %v6267 = vmul.f32 %v5915, %v6217
  %v6268 = vmul.f32 %v5916, %v6217
  %v6269 = vmul.f32 %v5917, %v6217
  %v6270 = vmul.f32 %v5918, %v6217
  %v6271 = vmul.f32 %v5919, %v6217
  %v6272 = vmul.f32 %v5920, %v6217
  %v6273 = vmul.f32 %v5921, %v6217
  %v6274 = vmul.f32 %v5922, %v6217
  %v6275 = vmul.f32 %v5923, %v6217
  %v6276 = vmul.f32 %v5924, %v6217
  %v6277 = vmul.f32 %v5925, %v6217
  %v6278 = vmul.f32 %v5926, %v6217
  %v6279 = vmul.f32 %v5927, %v6217
  %v6280 = vmul.f32 %v5928, %v6217
  %v6281 = vmul.f32 %v5929, %v6217
  %v6282 = vmul.f32 %v5930, %v6217
  %v6283 = vmul.f32 %v5931, %v6217
  %v6284 = vmul.f32 %v5932, %v6217
  %v6285 = vmul.f32 %v5933, %v6217
  %v6286 = vmul.f32 %v5934, %v6217
  %v6287 = vmul.f32 %v5935, %v6217
  %v6288 = vmul.f32 %v5936, %v6217
  %v6289 = vmul.f32 %v5937, %v6217
  %v6290 = vmul.f32 %v5938, %v6217
  %v6291 = vmul.f32 %v5939, %v6217
  %v6292 = vmul.f32 %v5940, %v6217
  %v6293 = vmul.f32 %v5941, %v6217
  %v6294 = vmul.f32 %v5942, %v6217
  %v6295 = vmul.f32 %v5943, %v6217
  %v6296 = vmul.f32 %v5944, %v6217
  %v6297 = vmul.f32 %v5945, %v6217
  %v6298 = vmul.f32 %v5946, %v6217
  %v6300 = vlaneseq
  %v6301 = vshrl.u32 %v6300, 7
  %v6302 = vsub.s32 0, %v6301
  %v6303 = vrot.slane %v6213, %v6302
  %v6305 = vadd.f32 %v6218, %v6303
  %v6306 = vadd.f32 %v6219, %v6303
  %v6307 = vadd.f32 %v6220, %v6303
  %v6308 = vadd.f32 %v6221, %v6303
  %v6309 = vadd.f32 %v6222, %v6303
  %v6310 = vadd.f32 %v6223, %v6303
  %v6311 = vadd.f32 %v6224, %v6303
  %v6312 = vadd.f32 %v6225, %v6303
  %v6313 = vadd.f32 %v6226, %v6303
  %v6314 = vadd.f32 %v6227, %v6303
  %v6315 = vadd.f32 %v6228, %v6303
  %v6316 = vadd.f32 %v6229, %v6303
  %v6317 = vadd.f32 %v6230, %v6303
  %v6318 = vadd.f32 %v6231, %v6303
  %v6319 = vadd.f32 %v6232, %v6303
  %v6320 = vadd.f32 %v6233, %v6303
  %v6321 = vadd.f32 %v6234, %v6303
  %v6322 = vadd.f32 %v6235, %v6303
  %v6323 = vadd.f32 %v6236, %v6303
  %v6324 = vadd.f32 %v6237, %v6303
  %v6325 = vadd.f32 %v6238, %v6303
  %v6326 = vadd.f32 %v6239, %v6303
  %v6327 = vadd.f32 %v6240, %v6303
  %v6328 = vadd.f32 %v6241, %v6303
  %v6329 = vadd.f32 %v6242, %v6303
  %v6330 = vadd.f32 %v6243, %v6303
  %v6331 = vadd.f32 %v6244, %v6303
  %v6332 = vadd.f32 %v6245, %v6303
  %v6333 = vadd.f32 %v6246, %v6303
  %v6334 = vadd.f32 %v6247, %v6303
  %v6335 = vadd.f32 %v6248, %v6303
  %v6336 = vadd.f32 %v6249, %v6303
  %v6337 = vadd.f32 %v6250, %v6303
  %v6338 = vadd.f32 %v6251, %v6303
  %v6339 = vadd.f32 %v6252, %v6303
  %v6340 = vadd.f32 %v6253, %v6303
  %v6341 = vadd.f32 %v6254, %v6303
  %v6342 = vadd.f32 %v6255, %v6303
  %v6343 = vadd.f32 %v6256, %v6303
  %v6344 = vadd.f32 %v6257, %v6303
  %v6345 = vadd.f32 %v6258, %v6303
  %v6346 = vadd.f32 %v6259, %v6303
  %v6347 = vadd.f32 %v6260, %v6303
  %v6348 = vadd.f32 %v6261, %v6303
  %v6349 = vadd.f32 %v6262, %v6303
  %v6350 = vadd.f32 %v6263, %v6303
  %v6351 = vadd.f32 %v6264, %v6303
  %v6352 = vadd.f32 %v6265, %v6303
  %v6353 = vadd.f32 %v6266, %v6303
  %v6354 = vadd.f32 %v6267, %v6303
  %v6355 = vadd.f32 %v6268, %v6303
  %v6356 = vadd.f32 %v6269, %v6303
  %v6357 = vadd.f32 %v6270, %v6303
  %v6358 = vadd.f32 %v6271, %v6303
  %v6359 = vadd.f32 %v6272, %v6303
  %v6360 = vadd.f32 %v6273, %v6303
  %v6361 = vadd.f32 %v6274, %v6303
  %v6362 = vadd.f32 %v6275, %v6303
  %v6363 = vadd.f32 %v6276, %v6303
  %v6364 = vadd.f32 %v6277, %v6303
  %v6365 = vadd.f32 %v6278, %v6303
  %v6366 = vadd.f32 %v6279, %v6303
  %v6367 = vadd.f32 %v6280, %v6303
  %v6368 = vadd.f32 %v6281, %v6303
  %v6369 = vadd.f32 %v6282, %v6303
  %v6370 = vadd.f32 %v6283, %v6303
  %v6371 = vadd.f32 %v6284, %v6303
  %v6372 = vadd.f32 %v6285, %v6303
  %v6373 = vadd.f32 %v6286, %v6303
  %v6374 = vadd.f32 %v6287, %v6303
  %v6375 = vadd.f32 %v6288, %v6303
  %v6376 = vadd.f32 %v6289, %v6303
  %v6377 = vadd.f32 %v6290, %v6303
  %v6378 = vadd.f32 %v6291, %v6303
  %v6379 = vadd.f32 %v6292, %v6303
  %v6380 = vadd.f32 %v6293, %v6303
  %v6381 = vadd.f32 %v6294, %v6303
  %v6382 = vadd.f32 %v6295, %v6303
  %v6383 = vadd.f32 %v6296, %v6303
  %v6384 = vadd.f32 %v6297, %v6303
  %v6385 = vadd.f32 %v6298, %v6303
  %v6386 = vmul.f32 %v6305, %v29
  %v6387 = vmul.f32 %v6306, %v30
  %v6388 = vmul.f32 %v6307, %v31
  %v6389 = vmul.f32 %v6308, %v32
  %v6390 = vmul.f32 %v6309, %v33
  %v6391 = vmul.f32 %v6310, %v34
  %v6392 = vmul.f32 %v6311, %v35
  %v6393 = vmul.f32 %v6312, %v36
  %v6394 = vmul.f32 %v6313, %v37
  %v6395 = vmul.f32 %v6314, %v38
  %v6396 = vmul.f32 %v6315, %v39
  %v6397 = vmul.f32 %v6316, %v40
  %v6398 = vmul.f32 %v6317, %v41
  %v6399 = vmul.f32 %v6318, %v42
  %v6400 = vmul.f32 %v6319, %v43
  %v6401 = vmul.f32 %v6320, %v44
  %v6402 = vmul.f32 %v6321, %v45
  %v6403 = vmul.f32 %v6322, %v46
  %v6404 = vmul.f32 %v6323, %v47
  %v6405 = vmul.f32 %v6324, %v48
  %v6406 = vmul.f32 %v6325, %v49
  %v6407 = vmul.f32 %v6326, %v50
  %v6408 = vmul.f32 %v6327, %v51
  %v6409 = vmul.f32 %v6328, %v52
  %v6410 = vmul.f32 %v6329, %v53
  %v6411 = vmul.f32 %v6330, %v54
  %v6412 = vmul.f32 %v6331, %v55
  %v6413 = vmul.f32 %v6332, %v56
  %v6414 = vmul.f32 %v6333, %v57
  %v6415 = vmul.f32 %v6334, %v58
  %v6416 = vmul.f32 %v6335, %v59
  %v6417 = vmul.f32 %v6336, %v60
  %v6418 = vmul.f32 %v6337, %v61
  %v6419 = vmul.f32 %v6338, %v62
  %v6420 = vmul.f32 %v6339, %v63
  %v6421 = vmul.f32 %v6340, %v64
  %v6422 = vmul.f32 %v6341, %v65
  %v6423 = vmul.f32 %v6342, %v66
  %v6424 = vmul.f32 %v6343, %v67
  %v6425 = vmul.f32 %v6344, %v68
  %v6426 = vmul.f32 %v6345, %v69
  %v6427 = vmul.f32 %v6346, %v70
  %v6428 = vmul.f32 %v6347, %v71
  %v6429 = vmul.f32 %v6348, %v72
  %v6430 = vmul.f32 %v6349, %v73
  %v6431 = vmul.f32 %v6350, %v74
  %v6432 = vmul.f32 %v6351, %v75
  %v6433 = vmul.f32 %v6352, %v76
  %v6434 = vmul.f32 %v6353, %v77
  %v6435 = vmul.f32 %v6354, %v78
  %v6436 = vmul.f32 %v6355, %v79
  %v6437 = vmul.f32 %v6356, %v80
  %v6438 = vmul.f32 %v6357, %v81
  %v6439 = vmul.f32 %v6358, %v82
  %v6440 = vmul.f32 %v6359, %v83
  %v6441 = vmul.f32 %v6360, %v84
  %v6442 = vmul.f32 %v6361, %v85
  %v6443 = vmul.f32 %v6362, %v86
  %v6444 = vmul.f32 %v6363, %v87
  %v6445 = vmul.f32 %v6364, %v88
  %v6446 = vmul.f32 %v6365, %v89
  %v6447 = vmul.f32 %v6366, %v90
  %v6448 = vmul.f32 %v6367, %v91
  %v6449 = vmul.f32 %v6368, %v92
  %v6450 = vmul.f32 %v6369, %v93
  %v6451 = vmul.f32 %v6370, %v94
  %v6452 = vmul.f32 %v6371, %v95
  %v6453 = vmul.f32 %v6372, %v96
  %v6454 = vmul.f32 %v6373, %v97
  %v6455 = vmul.f32 %v6374, %v98
  %v6456 = vmul.f32 %v6375, %v99
  %v6457 = vmul.f32 %v6376, %v100
  %v6458 = vmul.f32 %v6377, %v101
  %v6459 = vmul.f32 %v6378, %v102
  %v6460 = vmul.f32 %v6379, %v103
  %v6461 = vmul.f32 %v6380, %v104
  %v6462 = vmul.f32 %v6381, %v105
  %v6463 = vmul.f32 %v6382, %v106
  %v6464 = vmul.f32 %v6383, %v107
  %v6465 = vmul.f32 %v6384, %v108
  %v6466 = vmul.f32 %v6385, %v109
  %v6467 = vld [vmem:[%s4] sm:$0xff]
  %v6468 = vld [vmem:[%s4 + $0x8] sm:$0xff]
  %v6469 = vld [vmem:[%s4 + $0x10] sm:$0xff]
  %v6470 = vld [vmem:[%s4 + $0x18] sm:$0xff]
  %v6471 = vld [vmem:[%s4 + $0x20] sm:$0xff]
  %v6472 = vld [vmem:[%s4 + $0x28] sm:$0xff]
  %v6473 = vld [vmem:[%s4 + $0x30] sm:$0xff]
  %v6474 = vld [vmem:[%s4 + $0x38] sm:$0xff]
  %v6475 = vld [vmem:[%s4 + $0x40] sm:$0xff]
  %v6476 = vld [vmem:[%s4 + $0x48] sm:$0xff]
  %v6477 = vld [vmem:[%s4 + $0x50] sm:$0xff]
  %v6478 = vld [vmem:[%s4 + $0x58] sm:$0xff]
  %v6479 = vld [vmem:[%s4 + $0x60] sm:$0xff]
  %v6480 = vld [vmem:[%s4 + $0x68] sm:$0xff]
  %v6481 = vld [vmem:[%s4 + $0x70] sm:$0xff]
  %v6482 = vld [vmem:[%s4 + $0x78] sm:$0xff]
  %v6483 = vld [vmem:[%s5] sm:$0x1]
  %v6485 = vlaneseq
  %v6486 = vshrl.u32 %v6485, 7
  %v6487 = vsub.s32 0, %v6486
  %v6488 = vrot.slane %v6483, %v6487
  %6490 = vmatprep.subr.mxu0 0.0
  %6491 = vmatpush1.msra.mxu0 %v6467
  %6492 = vmatprep.subr.mxu0 0.0
  %6493 = vmatpush1.msra.mxu0 %v6468
  %6494 = vmatprep.subr.mxu0 0.0
  %6495 = vmatpush1.msra.mxu0 %v6469
  %6496 = vmatprep.subr.mxu0 0.0
  %6497 = vmatpush1.msra.mxu0 %v6470
  %6498 = vmatprep.subr.mxu0 0.0
  %6499 = vmatpush1.msra.mxu0 %v6471
  %6500 = vmatprep.subr.mxu0 0.0
  %6501 = vmatpush1.msra.mxu0 %v6472
  %6502 = vmatprep.subr.mxu0 0.0
  %6503 = vmatpush1.msra.mxu0 %v6473
  %6504 = vmatprep.subr.mxu0 0.0
  %6505 = vmatpush1.msra.mxu0 %v6474
  %6506 = vmatprep.subr.mxu0 0.0
  %6507 = vmatpush1.msra.mxu0 %v6475
  %6508 = vmatprep.subr.mxu0 0.0
  %6509 = vmatpush1.msra.mxu0 %v6476
  %6510 = vmatprep.subr.mxu0 0.0
  %6511 = vmatpush1.msra.mxu0 %v6477
  %6512 = vmatprep.subr.mxu0 0.0
  %6513 = vmatpush1.msra.mxu0 %v6478
  %6514 = vmatprep.subr.mxu0 0.0
  %6515 = vmatpush1.msra.mxu0 %v6479
  %6516 = vmatprep.subr.mxu0 0.0
  %6517 = vmatpush1.msra.mxu0 %v6480
  %6518 = vmatprep.subr.mxu0 0.0
  %6519 = vmatpush1.msra.mxu0 %v6481
  %6520 = vmatprep.subr.mxu0 0.0
  %6521 = vmatpush1.msra.mxu0 %v6482
  %6522 = vmatprep.subr.mxu0 0.0
  %6523 = vmatpush1.msra.mxu0 0.0
  %6524 = vmatprep.subr.mxu0 0.0
  %6525 = vmatpush1.msra.mxu0 0.0
  %6526 = vmatprep.subr.mxu0 0.0
  %6527 = vmatpush1.msra.mxu0 0.0
  %6528 = vmatprep.subr.mxu0 0.0
  %6529 = vmatpush1.msra.mxu0 0.0
  %6530 = vmatprep.subr.mxu0 0.0
  %6531 = vmatpush1.msra.mxu0 0.0
  %6532 = vmatprep.subr.mxu0 0.0
  %6533 = vmatpush1.msra.mxu0 0.0
  %6534 = vmatprep.subr.mxu0 0.0
  %6535 = vmatpush1.msra.mxu0 0.0
  %6536 = vmatprep.subr.mxu0 0.0
  %6537 = vmatpush1.msra.mxu0 0.0
  %6538 = vmatprep.subr.mxu0 0.0
  %6539 = vmatpush1.msra.mxu0 0.0
  %6540 = vmatprep.subr.mxu0 0.0
  %6541 = vmatpush1.msra.mxu0 0.0
  %6542 = vmatprep.subr.mxu0 0.0
  %6543 = vmatpush1.msra.mxu0 0.0
  %6544 = vmatprep.subr.mxu0 0.0
  %6545 = vmatpush1.msra.mxu0 0.0
  %6546 = vmatprep.subr.mxu0 0.0
  %6547 = vmatpush1.msra.mxu0 0.0
  %6548 = vmatprep.subr.mxu0 0.0
  %6549 = vmatpush1.msra.mxu0 0.0
  %6550 = vmatprep.subr.mxu0 0.0
  %6551 = vmatpush1.msra.mxu0 0.0
  %6552 = vmatprep.subr.mxu0 0.0
  %6553 = vmatpush1.msra.mxu0 0.0
  %6554 = vmatprep.mubr.f32.mxu0 0.0
  %6555 = vmatmul.mubr.f32.gmra.mrb[0].mxu0 %v6386
  %v6556 = vpop.f32.mrb[0].mxu0
  %v6557 = vadd.f32 %v6488, %v6556
  %v6558 = vpop.f32.mrb[0].mxu0
  %6559 = vmatprep.mubr.f32.mxu0 0.0
  %6560 = vmatmul.mubr.f32.gmra.mrb[0].mxu0 %v6387
  %v6561 = vpop.f32.mrb[0].mxu0
  %v6562 = vadd.f32 %v6488, %v6561
  %v6563 = vpop.f32.mrb[0].mxu0
  %6564 = vmatprep.mubr.f32.mxu0 0.0
  %6565 = vmatmul.mubr.f32.gmra.mrb[0].mxu0 %v6388
  %v6566 = vpop.f32.mrb[0].mxu0
  %v6567 = vadd.f32 %v6488, %v6566
  %v6568 = vpop.f32.mrb[0].mxu0
  %6569 = vmatprep.mubr.f32.mxu0 0.0
  %6570 = vmatmul.mubr.f32.gmra.mrb[0].mxu0 %v6389
  %v6571 = vpop.f32.mrb[0].mxu0
  %v6572 = vadd.f32 %v6488, %v6571
  %v6573 = vpop.f32.mrb[0].mxu0
  %6574 = vmatprep.mubr.f32.mxu0 0.0
  %6575 = vmatmul.mubr.f32.gmra.mrb[0].mxu0 %v6390
  %v6576 = vpop.f32.mrb[0].mxu0
  %v6577 = vadd.f32 %v6488, %v6576
  %v6578 = vpop.f32.mrb[0].mxu0
  %6579 = vmatprep.mubr.f32.mxu0 0.0
  %6580 = vmatmul.mubr.f32.gmra.mrb[0].mxu0 %v6391
  %v6581 = vpop.f32.mrb[0].mxu0
  %v6582 = vadd.f32 %v6488, %v6581
  %v6583 = vpop.f32.mrb[0].mxu0
  %6584 = vmatprep.mubr.f32.mxu0 0.0
  %6585 = vmatmul.mubr.f32.gmra.mrb[0].mxu0 %v6392
  %v6586 = vpop.f32.mrb[0].mxu0
  %v6587 = vadd.f32 %v6488, %v6586
  %v6588 = vpop.f32.mrb[0].mxu0
  %6589 = vmatprep.mubr.f32.mxu0 0.0
  %6590 = vmatmul.mubr.f32.gmra.mrb[0].mxu0 %v6393
  %v6591 = vpop.f32.mrb[0].mxu0
  %v6592 = vadd.f32 %v6488, %v6591
  %v6593 = vpop.f32.mrb[0].mxu0
  %6594 = vmatprep.mubr.f32.mxu0 0.0
  %6595 = vmatmul.mubr.f32.gmra.mrb[0].mxu0 %v6394
  %v6596 = vpop.f32.mrb[0].mxu0
  %v6597 = vadd.f32 %v6488, %v6596
  %v6598 = vpop.f32.mrb[0].mxu0
  %6599 = vmatprep.mubr.f32.mxu0 0.0
  %6600 = vmatmul.mubr.f32.gmra.mrb[0].mxu0 %v6395
  %v6601 = vpop.f32.mrb[0].mxu0
  %v6602 = vadd.f32 %v6488, %v6601
  %v6603 = vpop.f32.mrb[0].mxu0
  %6604 = vmatprep.mubr.f32.mxu0 0.0
  %6605 = vmatmul.mubr.f32.gmra.mrb[0].mxu0 %v6396
  %v6606 = vpop.f32.mrb[0].mxu0
  %v6607 = vadd.f32 %v6488, %v6606
  %v6608 = vpop.f32.mrb[0].mxu0
  %6609 = vmatprep.mubr.f32.mxu0 0.0
  %6610 = vmatmul.mubr.f32.gmra.mrb[0].mxu0 %v6397
  %v6611 = vpop.f32.mrb[0].mxu0
  %v6612 = vadd.f32 %v6488, %v6611
  %v6613 = vpop.f32.mrb[0].mxu0
  %6614 = vmatprep.mubr.f32.mxu0 0.0
  %6615 = vmatmul.mubr.f32.gmra.mrb[0].mxu0 %v6398
  %v6616 = vpop.f32.mrb[0].mxu0
  %v6617 = vadd.f32 %v6488, %v6616
  %v6618 = vpop.f32.mrb[0].mxu0
  %6619 = vmatprep.mubr.f32.mxu0 0.0
  %6620 = vmatmul.mubr.f32.gmra.mrb[0].mxu0 %v6399
  %v6621 = vpop.f32.mrb[0].mxu0
  %v6622 = vadd.f32 %v6488, %v6621
  %v6623 = vpop.f32.mrb[0].mxu0
  %6624 = vmatprep.mubr.f32.mxu0 0.0
  %6625 = vmatmul.mubr.f32.gmra.mrb[0].mxu0 %v6400
  %v6626 = vpop.f32.mrb[0].mxu0
  %v6627 = vadd.f32 %v6488, %v6626
  %v6628 = vpop.f32.mrb[0].mxu0
  %6629 = vmatprep.mubr.f32.mxu0 0.0
  %6630 = vmatmul.mubr.f32.gmra.mrb[0].mxu0 %v6401
  %v6631 = vpop.f32.mrb[0].mxu0
  %v6632 = vadd.f32 %v6488, %v6631
  %v6633 = vpop.f32.mrb[0].mxu0
  %6634 = vmatprep.mubr.f32.mxu0 0.0
  %6635 = vmatmul.mubr.f32.gmra.mrb[0].mxu0 %v6402
  %v6636 = vpop.f32.mrb[0].mxu0
  %v6637 = vadd.f32 %v6488, %v6636
  %v6638 = vpop.f32.mrb[0].mxu0
  %6639 = vmatprep.mubr.f32.mxu0 0.0
  %6640 = vmatmul.mubr.f32.gmra.mrb[0].mxu0 %v6403
  %v6641 = vpop.f32.mrb[0].mxu0
  %v6642 = vadd.f32 %v6488, %v6641
  %v6643 = vpop.f32.mrb[0].mxu0
  %6644 = vmatprep.mubr.f32.mxu0 0.0
  %6645 = vmatmul.mubr.f32.gmra.mrb[0].mxu0 %v6404
  %v6646 = vpop.f32.mrb[0].mxu0
  %v6647 = vadd.f32 %v6488, %v6646
  %v6648 = vpop.f32.mrb[0].mxu0
  %6649 = vmatprep.mubr.f32.mxu0 0.0
  %6650 = vmatmul.mubr.f32.gmra.mrb[0].mxu0 %v6405
  %v6651 = vpop.f32.mrb[0].mxu0
  %v6652 = vadd.f32 %v6488, %v6651
  %v6653 = vpop.f32.mrb[0].mxu0
  %6654 = vmatprep.mubr.f32.mxu0 0.0
  %6655 = vmatmul.mubr.f32.gmra.mrb[0].mxu0 %v6406
  %v6656 = vpop.f32.mrb[0].mxu0
  %v6657 = vadd.f32 %v6488, %v6656
  %v6658 = vpop.f32.mrb[0].mxu0
  %6659 = vmatprep.mubr.f32.mxu0 0.0
  %6660 = vmatmul.mubr.f32.gmra.mrb[0].mxu0 %v6407
  %v6661 = vpop.f32.mrb[0].mxu0
  %v6662 = vadd.f32 %v6488, %v6661
  %v6663 = vpop.f32.mrb[0].mxu0
  %6664 = vmatprep.mubr.f32.mxu0 0.0
  %6665 = vmatmul.mubr.f32.gmra.mrb[0].mxu0 %v6408
  %v6666 = vpop.f32.mrb[0].mxu0
  %v6667 = vadd.f32 %v6488, %v6666
  %v6668 = vpop.f32.mrb[0].mxu0
  %6669 = vmatprep.mubr.f32.mxu0 0.0
  %6670 = vmatmul.mubr.f32.gmra.mrb[0].mxu0 %v6409
  %v6671 = vpop.f32.mrb[0].mxu0
  %v6672 = vadd.f32 %v6488, %v6671
  %v6673 = vpop.f32.mrb[0].mxu0
  %6674 = vmatprep.mubr.f32.mxu0 0.0
  %6675 = vmatmul.mubr.f32.gmra.mrb[0].mxu0 %v6410
  %v6676 = vpop.f32.mrb[0].mxu0
  %v6677 = vadd.f32 %v6488, %v6676
  %v6678 = vpop.f32.mrb[0].mxu0
  %6679 = vmatprep.mubr.f32.mxu0 0.0
  %6680 = vmatmul.mubr.f32.gmra.mrb[0].mxu0 %v6411
  %v6681 = vpop.f32.mrb[0].mxu0
  %v6682 = vadd.f32 %v6488, %v6681
  %v6683 = vpop.f32.mrb[0].mxu0
  %6684 = vmatprep.mubr.f32.mxu0 0.0
  %6685 = vmatmul.mubr.f32.gmra.mrb[0].mxu0 %v6412
  %v6686 = vpop.f32.mrb[0].mxu0
  %v6687 = vadd.f32 %v6488, %v6686
  %v6688 = vpop.f32.mrb[0].mxu0
  %6689 = vmatprep.mubr.f32.mxu0 0.0
  %6690 = vmatmul.mubr.f32.gmra.mrb[0].mxu0 %v6413
  %v6691 = vpop.f32.mrb[0].mxu0
  %v6692 = vadd.f32 %v6488, %v6691
  %v6693 = vpop.f32.mrb[0].mxu0
  %6694 = vmatprep.mubr.f32.mxu0 0.0
  %6695 = vmatmul.mubr.f32.gmra.mrb[0].mxu0 %v6414
  %v6696 = vpop.f32.mrb[0].mxu0
  %v6697 = vadd.f32 %v6488, %v6696
  %v6698 = vpop.f32.mrb[0].mxu0
  %6699 = vmatprep.mubr.f32.mxu0 0.0
  %6700 = vmatmul.mubr.f32.gmra.mrb[0].mxu0 %v6415
  %v6701 = vpop.f32.mrb[0].mxu0
  %v6702 = vadd.f32 %v6488, %v6701
  %v6703 = vpop.f32.mrb[0].mxu0
  %6704 = vmatprep.mubr.f32.mxu0 0.0
  %6705 = vmatmul.mubr.f32.gmra.mrb[0].mxu0 %v6416
  %v6706 = vpop.f32.mrb[0].mxu0
  %v6707 = vadd.f32 %v6488, %v6706
  %v6708 = vpop.f32.mrb[0].mxu0
  %6709 = vmatprep.mubr.f32.mxu0 0.0
  %6710 = vmatmul.mubr.f32.gmra.mrb[0].mxu0 %v6417
  %v6711 = vpop.f32.mrb[0].mxu0
  %v6712 = vadd.f32 %v6488, %v6711
  %v6713 = vpop.f32.mrb[0].mxu0
  %6714 = vmatprep.mubr.f32.mxu0 0.0
  %6715 = vmatmul.mubr.f32.gmra.mrb[0].mxu0 %v6418
  %v6716 = vpop.f32.mrb[0].mxu0
  %v6717 = vadd.f32 %v6488, %v6716
  %v6718 = vpop.f32.mrb[0].mxu0
  %6719 = vmatprep.mubr.f32.mxu0 0.0
  %6720 = vmatmul.mubr.f32.gmra.mrb[0].mxu0 %v6419
  %v6721 = vpop.f32.mrb[0].mxu0
  %v6722 = vadd.f32 %v6488, %v6721
  %v6723 = vpop.f32.mrb[0].mxu0
  %6724 = vmatprep.mubr.f32.mxu0 0.0
  %6725 = vmatmul.mubr.f32.gmra.mrb[0].mxu0 %v6420
  %v6726 = vpop.f32.mrb[0].mxu0
  %v6727 = vadd.f32 %v6488, %v6726
  %v6728 = vpop.f32.mrb[0].mxu0
  %6729 = vmatprep.mubr.f32.mxu0 0.0
  %6730 = vmatmul.mubr.f32.gmra.mrb[0].mxu0 %v6421
  %v6731 = vpop.f32.mrb[0].mxu0
  %v6732 = vadd.f32 %v6488, %v6731
  %v6733 = vpop.f32.mrb[0].mxu0
  %6734 = vmatprep.mubr.f32.mxu0 0.0
  %6735 = vmatmul.mubr.f32.gmra.mrb[0].mxu0 %v6422
  %v6736 = vpop.f32.mrb[0].mxu0
  %v6737 = vadd.f32 %v6488, %v6736
  %v6738 = vpop.f32.mrb[0].mxu0
  %6739 = vmatprep.mubr.f32.mxu0 0.0
  %6740 = vmatmul.mubr.f32.gmra.mrb[0].mxu0 %v6423
  %v6741 = vpop.f32.mrb[0].mxu0
  %v6742 = vadd.f32 %v6488, %v6741
  %v6743 = vpop.f32.mrb[0].mxu0
  %6744 = vmatprep.mubr.f32.mxu0 0.0
  %6745 = vmatmul.mubr.f32.gmra.mrb[0].mxu0 %v6424
  %v6746 = vpop.f32.mrb[0].mxu0
  %v6747 = vadd.f32 %v6488, %v6746
  %v6748 = vpop.f32.mrb[0].mxu0
  %6749 = vmatprep.mubr.f32.mxu0 0.0
  %6750 = vmatmul.mubr.f32.gmra.mrb[0].mxu0 %v6425
  %v6751 = vpop.f32.mrb[0].mxu0
  %v6752 = vadd.f32 %v6488, %v6751
  %v6753 = vpop.f32.mrb[0].mxu0
  %6754 = vmatprep.mubr.f32.mxu0 0.0
  %6755 = vmatmul.mubr.f32.gmra.mrb[0].mxu0 %v6426
  %v6756 = vpop.f32.mrb[0].mxu0
  %v6757 = vadd.f32 %v6488, %v6756
  %v6758 = vpop.f32.mrb[0].mxu0
  %6759 = vmatprep.mubr.f32.mxu0 0.0
  %6760 = vmatmul.mubr.f32.gmra.mrb[0].mxu0 %v6427
  %v6761 = vpop.f32.mrb[0].mxu0
  %v6762 = vadd.f32 %v6488, %v6761
  %v6763 = vpop.f32.mrb[0].mxu0
  %6764 = vmatprep.mubr.f32.mxu0 0.0
  %6765 = vmatmul.mubr.f32.gmra.mrb[0].mxu0 %v6428
  %v6766 = vpop.f32.mrb[0].mxu0
  %v6767 = vadd.f32 %v6488, %v6766
  %v6768 = vpop.f32.mrb[0].mxu0
  %6769 = vmatprep.mubr.f32.mxu0 0.0
  %6770 = vmatmul.mubr.f32.gmra.mrb[0].mxu0 %v6429
  %v6771 = vpop.f32.mrb[0].mxu0
  %v6772 = vadd.f32 %v6488, %v6771
  %v6773 = vpop.f32.mrb[0].mxu0
  %6774 = vmatprep.mubr.f32.mxu0 0.0
  %6775 = vmatmul.mubr.f32.gmra.mrb[0].mxu0 %v6430
  %v6776 = vpop.f32.mrb[0].mxu0
  %v6777 = vadd.f32 %v6488, %v6776
  %v6778 = vpop.f32.mrb[0].mxu0
  %6779 = vmatprep.mubr.f32.mxu0 0.0
  %6780 = vmatmul.mubr.f32.gmra.mrb[0].mxu0 %v6431
  %v6781 = vpop.f32.mrb[0].mxu0
  %v6782 = vadd.f32 %v6488, %v6781
  %v6783 = vpop.f32.mrb[0].mxu0
  %6784 = vmatprep.mubr.f32.mxu0 0.0
  %6785 = vmatmul.mubr.f32.gmra.mrb[0].mxu0 %v6432
  %v6786 = vpop.f32.mrb[0].mxu0
  %v6787 = vadd.f32 %v6488, %v6786
  %v6788 = vpop.f32.mrb[0].mxu0
  %6789 = vmatprep.mubr.f32.mxu0 0.0
  %6790 = vmatmul.mubr.f32.gmra.mrb[0].mxu0 %v6433
  %v6791 = vpop.f32.mrb[0].mxu0
  %v6792 = vadd.f32 %v6488, %v6791
  %v6793 = vpop.f32.mrb[0].mxu0
  %6794 = vmatprep.mubr.f32.mxu0 0.0
  %6795 = vmatmul.mubr.f32.gmra.mrb[0].mxu0 %v6434
  %v6796 = vpop.f32.mrb[0].mxu0
  %v6797 = vadd.f32 %v6488, %v6796
  %v6798 = vpop.f32.mrb[0].mxu0
  %6799 = vmatprep.mubr.f32.mxu0 0.0
  %6800 = vmatmul.mubr.f32.gmra.mrb[0].mxu0 %v6435
  %v6801 = vpop.f32.mrb[0].mxu0
  %v6802 = vadd.f32 %v6488, %v6801
  %v6803 = vpop.f32.mrb[0].mxu0
  %6804 = vmatprep.mubr.f32.mxu0 0.0
  %6805 = vmatmul.mubr.f32.gmra.mrb[0].mxu0 %v6436
  %v6806 = vpop.f32.mrb[0].mxu0
  %v6807 = vadd.f32 %v6488, %v6806
  %v6808 = vpop.f32.mrb[0].mxu0
  %6809 = vmatprep.mubr.f32.mxu0 0.0
  %6810 = vmatmul.mubr.f32.gmra.mrb[0].mxu0 %v6437
  %v6811 = vpop.f32.mrb[0].mxu0
  %v6812 = vadd.f32 %v6488, %v6811
  %v6813 = vpop.f32.mrb[0].mxu0
  %6814 = vmatprep.mubr.f32.mxu0 0.0
  %6815 = vmatmul.mubr.f32.gmra.mrb[0].mxu0 %v6438
  %v6816 = vpop.f32.mrb[0].mxu0
  %v6817 = vadd.f32 %v6488, %v6816
  %v6818 = vpop.f32.mrb[0].mxu0
  %6819 = vmatprep.mubr.f32.mxu0 0.0
  %6820 = vmatmul.mubr.f32.gmra.mrb[0].mxu0 %v6439
  %v6821 = vpop.f32.mrb[0].mxu0
  %v6822 = vadd.f32 %v6488, %v6821
  %v6823 = vpop.f32.mrb[0].mxu0
  %6824 = vmatprep.mubr.f32.mxu0 0.0
  %6825 = vmatmul.mubr.f32.gmra.mrb[0].mxu0 %v6440
  %v6826 = vpop.f32.mrb[0].mxu0
  %v6827 = vadd.f32 %v6488, %v6826
  %v6828 = vpop.f32.mrb[0].mxu0
  %6829 = vmatprep.mubr.f32.mxu0 0.0
  %6830 = vmatmul.mubr.f32.gmra.mrb[0].mxu0 %v6441
  %v6831 = vpop.f32.mrb[0].mxu0
  %v6832 = vadd.f32 %v6488, %v6831
  %v6833 = vpop.f32.mrb[0].mxu0
  %6834 = vmatprep.mubr.f32.mxu0 0.0
  %6835 = vmatmul.mubr.f32.gmra.mrb[0].mxu0 %v6442
  %v6836 = vpop.f32.mrb[0].mxu0
  %v6837 = vadd.f32 %v6488, %v6836
  %v6838 = vpop.f32.mrb[0].mxu0
  %6839 = vmatprep.mubr.f32.mxu0 0.0
  %6840 = vmatmul.mubr.f32.gmra.mrb[0].mxu0 %v6443
  %v6841 = vpop.f32.mrb[0].mxu0
  %v6842 = vadd.f32 %v6488, %v6841
  %v6843 = vpop.f32.mrb[0].mxu0
  %6844 = vmatprep.mubr.f32.mxu0 0.0
  %6845 = vmatmul.mubr.f32.gmra.mrb[0].mxu0 %v6444
  %v6846 = vpop.f32.mrb[0].mxu0
  %v6847 = vadd.f32 %v6488, %v6846
  %v6848 = vpop.f32.mrb[0].mxu0
  %6849 = vmatprep.mubr.f32.mxu0 0.0
  %6850 = vmatmul.mubr.f32.gmra.mrb[0].mxu0 %v6445
  %v6851 = vpop.f32.mrb[0].mxu0
  %v6852 = vadd.f32 %v6488, %v6851
  %v6853 = vpop.f32.mrb[0].mxu0
  %6854 = vmatprep.mubr.f32.mxu0 0.0
  %6855 = vmatmul.mubr.f32.gmra.mrb[0].mxu0 %v6446
  %v6856 = vpop.f32.mrb[0].mxu0
  %v6857 = vadd.f32 %v6488, %v6856
  %v6858 = vpop.f32.mrb[0].mxu0
  %6859 = vmatprep.mubr.f32.mxu0 0.0
  %6860 = vmatmul.mubr.f32.gmra.mrb[0].mxu0 %v6447
  %v6861 = vpop.f32.mrb[0].mxu0
  %v6862 = vadd.f32 %v6488, %v6861
  %v6863 = vpop.f32.mrb[0].mxu0
  %6864 = vmatprep.mubr.f32.mxu0 0.0
  %6865 = vmatmul.mubr.f32.gmra.mrb[0].mxu0 %v6448
  %v6866 = vpop.f32.mrb[0].mxu0
  %v6867 = vadd.f32 %v6488, %v6866
  %v6868 = vpop.f32.mrb[0].mxu0
  %6869 = vmatprep.mubr.f32.mxu0 0.0
  %6870 = vmatmul.mubr.f32.gmra.mrb[0].mxu0 %v6449
  %v6871 = vpop.f32.mrb[0].mxu0
  %v6872 = vadd.f32 %v6488, %v6871
  %v6873 = vpop.f32.mrb[0].mxu0
  %6874 = vmatprep.mubr.f32.mxu0 0.0
  %6875 = vmatmul.mubr.f32.gmra.mrb[0].mxu0 %v6450
  %v6876 = vpop.f32.mrb[0].mxu0
  %v6877 = vadd.f32 %v6488, %v6876
  %v6878 = vpop.f32.mrb[0].mxu0
  %6879 = vmatprep.mubr.f32.mxu0 0.0
  %6880 = vmatmul.mubr.f32.gmra.mrb[0].mxu0 %v6451
  %v6881 = vpop.f32.mrb[0].mxu0
  %v6882 = vadd.f32 %v6488, %v6881
  %v6883 = vpop.f32.mrb[0].mxu0
  %6884 = vmatprep.mubr.f32.mxu0 0.0
  %6885 = vmatmul.mubr.f32.gmra.mrb[0].mxu0 %v6452
  %v6886 = vpop.f32.mrb[0].mxu0
  %v6887 = vadd.f32 %v6488, %v6886
  %v6888 = vpop.f32.mrb[0].mxu0
  %6889 = vmatprep.mubr.f32.mxu0 0.0
  %6890 = vmatmul.mubr.f32.gmra.mrb[0].mxu0 %v6453
  %v6891 = vpop.f32.mrb[0].mxu0
  %v6892 = vadd.f32 %v6488, %v6891
  %v6893 = vpop.f32.mrb[0].mxu0
  %6894 = vmatprep.mubr.f32.mxu0 0.0
  %6895 = vmatmul.mubr.f32.gmra.mrb[0].mxu0 %v6454
  %v6896 = vpop.f32.mrb[0].mxu0
  %v6897 = vadd.f32 %v6488, %v6896
  %v6898 = vpop.f32.mrb[0].mxu0
  %6899 = vmatprep.mubr.f32.mxu0 0.0
  %6900 = vmatmul.mubr.f32.gmra.mrb[0].mxu0 %v6455
  %v6901 = vpop.f32.mrb[0].mxu0
  %v6902 = vadd.f32 %v6488, %v6901
  %v6903 = vpop.f32.mrb[0].mxu0
  %6904 = vmatprep.mubr.f32.mxu0 0.0
  %6905 = vmatmul.mubr.f32.gmra.mrb[0].mxu0 %v6456
  %v6906 = vpop.f32.mrb[0].mxu0
  %v6907 = vadd.f32 %v6488, %v6906
  %v6908 = vpop.f32.mrb[0].mxu0
  %6909 = vmatprep.mubr.f32.mxu0 0.0
  %6910 = vmatmul.mubr.f32.gmra.mrb[0].mxu0 %v6457
  %v6911 = vpop.f32.mrb[0].mxu0
  %v6912 = vadd.f32 %v6488, %v6911
  %v6913 = vpop.f32.mrb[0].mxu0
  %6914 = vmatprep.mubr.f32.mxu0 0.0
  %6915 = vmatmul.mubr.f32.gmra.mrb[0].mxu0 %v6458
  %v6916 = vpop.f32.mrb[0].mxu0
  %v6917 = vadd.f32 %v6488, %v6916
  %v6918 = vpop.f32.mrb[0].mxu0
  %6919 = vmatprep.mubr.f32.mxu0 0.0
  %6920 = vmatmul.mubr.f32.gmra.mrb[0].mxu0 %v6459
  %v6921 = vpop.f32.mrb[0].mxu0
  %v6922 = vadd.f32 %v6488, %v6921
  %v6923 = vpop.f32.mrb[0].mxu0
  %6924 = vmatprep.mubr.f32.mxu0 0.0
  %6925 = vmatmul.mubr.f32.gmra.mrb[0].mxu0 %v6460
  %v6926 = vpop.f32.mrb[0].mxu0
  %v6927 = vadd.f32 %v6488, %v6926
  %v6928 = vpop.f32.mrb[0].mxu0
  %6929 = vmatprep.mubr.f32.mxu0 0.0
  %6930 = vmatmul.mubr.f32.gmra.mrb[0].mxu0 %v6461
  %v6931 = vpop.f32.mrb[0].mxu0
  %v6932 = vadd.f32 %v6488, %v6931
  %v6933 = vpop.f32.mrb[0].mxu0
  %6934 = vmatprep.mubr.f32.mxu0 0.0
  %6935 = vmatmul.mubr.f32.gmra.mrb[0].mxu0 %v6462
  %v6936 = vpop.f32.mrb[0].mxu0
  %v6937 = vadd.f32 %v6488, %v6936
  %v6938 = vpop.f32.mrb[0].mxu0
  %6939 = vmatprep.mubr.f32.mxu0 0.0
  %6940 = vmatmul.mubr.f32.gmra.mrb[0].mxu0 %v6463
  %v6941 = vpop.f32.mrb[0].mxu0
  %v6942 = vadd.f32 %v6488, %v6941
  %v6943 = vpop.f32.mrb[0].mxu0
  %6944 = vmatprep.mubr.f32.mxu0 0.0
  %6945 = vmatmul.mubr.f32.gmra.mrb[0].mxu0 %v6464
  %v6946 = vpop.f32.mrb[0].mxu0
  %v6947 = vadd.f32 %v6488, %v6946
  %v6948 = vpop.f32.mrb[0].mxu0
  %6949 = vmatprep.mubr.f32.mxu0 0.0
  %6950 = vmatmul.mubr.f32.gmra.mrb[0].mxu0 %v6465
  %v6951 = vpop.f32.mrb[0].mxu0
  %v6952 = vadd.f32 %v6488, %v6951
  %v6953 = vpop.f32.mrb[0].mxu0
  %6954 = vmatprep.mubr.f32.mxu0 0.0
  %6955 = vmatmul.mubr.f32.gmra.mrb[0].mxu0 %v6466
  %v6956 = vpop.f32.mrb[0].mxu0
  %v6957 = vadd.f32 %v6488, %v6956
  %v6958 = vpop.f32.mrb[0].mxu0
  %6959 = vdwg.mxu0
  %v6960 = vmul.f32 %v6557, %v29
  %v6961 = vmul.f32 %v6562, %v30
  %v6962 = vmul.f32 %v6567, %v31
  %v6963 = vmul.f32 %v6572, %v32
  %v6964 = vmul.f32 %v6577, %v33
  %v6965 = vmul.f32 %v6582, %v34
  %v6966 = vmul.f32 %v6587, %v35
  %v6967 = vmul.f32 %v6592, %v36
  %v6968 = vmul.f32 %v6597, %v37
  %v6969 = vmul.f32 %v6602, %v38
  %v6970 = vmul.f32 %v6607, %v39
  %v6971 = vmul.f32 %v6612, %v40
  %v6972 = vmul.f32 %v6617, %v41
  %v6973 = vmul.f32 %v6622, %v42
  %v6974 = vmul.f32 %v6627, %v43
  %v6975 = vmul.f32 %v6632, %v44
  %v6976 = vmul.f32 %v6637, %v45
  %v6977 = vmul.f32 %v6642, %v46
  %v6978 = vmul.f32 %v6647, %v47
  %v6979 = vmul.f32 %v6652, %v48
  %v6980 = vmul.f32 %v6657, %v49
  %v6981 = vmul.f32 %v6662, %v50
  %v6982 = vmul.f32 %v6667, %v51
  %v6983 = vmul.f32 %v6672, %v52
  %v6984 = vmul.f32 %v6677, %v53
  %v6985 = vmul.f32 %v6682, %v54
  %v6986 = vmul.f32 %v6687, %v55
  %v6987 = vmul.f32 %v6692, %v56
  %v6988 = vmul.f32 %v6697, %v57
  %v6989 = vmul.f32 %v6702, %v58
  %v6990 = vmul.f32 %v6707, %v59
  %v6991 = vmul.f32 %v6712, %v60
  %v6992 = vmul.f32 %v6717, %v61
  %v6993 = vmul.f32 %v6722, %v62
  %v6994 = vmul.f32 %v6727, %v63
  %v6995 = vmul.f32 %v6732, %v64
  %v6996 = vmul.f32 %v6737, %v65
  %v6997 = vmul.f32 %v6742, %v66
  %v6998 = vmul.f32 %v6747, %v67
  %v6999 = vmul.f32 %v6752, %v68
  %v7000 = vmul.f32 %v6757, %v69
  %v7001 = vmul.f32 %v6762, %v70
  %v7002 = vmul.f32 %v6767, %v71
  %v7003 = vmul.f32 %v6772, %v72
  %v7004 = vmul.f32 %v6777, %v73
  %v7005 = vmul.f32 %v6782, %v74
  %v7006 = vmul.f32 %v6787, %v75
  %v7007 = vmul.f32 %v6792, %v76
  %v7008 = vmul.f32 %v6797, %v77
  %v7009 = vmul.f32 %v6802, %v78
  %v7010 = vmul.f32 %v6807, %v79
  %v7011 = vmul.f32 %v6812, %v80
  %v7012 = vmul.f32 %v6817, %v81
  %v7013 = vmul.f32 %v6822, %v82
  %v7014 = vmul.f32 %v6827, %v83
  %v7015 = vmul.f32 %v6832, %v84
  %v7016 = vmul.f32 %v6837, %v85
  %v7017 = vmul.f32 %v6842, %v86
  %v7018 = vmul.f32 %v6847, %v87
  %v7019 = vmul.f32 %v6852, %v88
  %v7020 = vmul.f32 %v6857, %v89
  %v7021 = vmul.f32 %v6862, %v90
  %v7022 = vmul.f32 %v6867, %v91
  %v7023 = vmul.f32 %v6872, %v92
  %v7024 = vmul.f32 %v6877, %v93
  %v7025 = vmul.f32 %v6882, %v94
  %v7026 = vmul.f32 %v6887, %v95
  %v7027 = vmul.f32 %v6892, %v96
  %v7028 = vmul.f32 %v6897, %v97
  %v7029 = vmul.f32 %v6902, %v98
  %v7030 = vmul.f32 %v6907, %v99
  %v7031 = vmul.f32 %v6912, %v100
  %v7032 = vmul.f32 %v6917, %v101
  %v7033 = vmul.f32 %v6922, %v102
  %v7034 = vmul.f32 %v6927, %v103
  %v7035 = vmul.f32 %v6932, %v104
  %v7036 = vmul.f32 %v6937, %v105
  %v7037 = vmul.f32 %v6942, %v106
  %v7038 = vmul.f32 %v6947, %v107
  %v7039 = vmul.f32 %v6952, %v108
  %v7040 = vmul.f32 %v6957, %v109
  %v7041 = vadd.f32 %v6960, %v6961
  %v7042 = vadd.f32 %v7041, %v6962
  %v7043 = vadd.f32 %v7042, %v6963
  %v7044 = vadd.f32 %v7043, %v6964
  %v7045 = vadd.f32 %v7044, %v6965
  %v7046 = vadd.f32 %v7045, %v6966
  %v7047 = vadd.f32 %v7046, %v6967
  %v7048 = vadd.f32 %v7047, %v6968
  %v7049 = vadd.f32 %v7048, %v6969
  %v7050 = vadd.f32 %v7049, %v6970
  %v7051 = vadd.f32 %v7050, %v6971
  %v7052 = vadd.f32 %v7051, %v6972
  %v7053 = vadd.f32 %v7052, %v6973
  %v7054 = vadd.f32 %v7053, %v6974
  %v7055 = vadd.f32 %v7054, %v6975
  %v7056 = vadd.f32 %v7055, %v6976
  %v7057 = vadd.f32 %v7056, %v6977
  %v7058 = vadd.f32 %v7057, %v6978
  %v7059 = vadd.f32 %v7058, %v6979
  %v7060 = vadd.f32 %v7059, %v6980
  %v7061 = vadd.f32 %v7060, %v6981
  %v7062 = vadd.f32 %v7061, %v6982
  %v7063 = vadd.f32 %v7062, %v6983
  %v7064 = vadd.f32 %v7063, %v6984
  %v7065 = vadd.f32 %v7064, %v6985
  %v7066 = vadd.f32 %v7065, %v6986
  %v7067 = vadd.f32 %v7066, %v6987
  %v7068 = vadd.f32 %v7067, %v6988
  %v7069 = vadd.f32 %v7068, %v6989
  %v7070 = vadd.f32 %v7069, %v6990
  %v7071 = vadd.f32 %v7070, %v6991
  %v7072 = vadd.f32 %v7071, %v6992
  %v7073 = vadd.f32 %v7072, %v6993
  %v7074 = vadd.f32 %v7073, %v6994
  %v7075 = vadd.f32 %v7074, %v6995
  %v7076 = vadd.f32 %v7075, %v6996
  %v7077 = vadd.f32 %v7076, %v6997
  %v7078 = vadd.f32 %v7077, %v6998
  %v7079 = vadd.f32 %v7078, %v6999
  %v7080 = vadd.f32 %v7079, %v7000
  %v7081 = vadd.f32 %v7080, %v7001
  %v7082 = vadd.f32 %v7081, %v7002
  %v7083 = vadd.f32 %v7082, %v7003
  %v7084 = vadd.f32 %v7083, %v7004
  %v7085 = vadd.f32 %v7084, %v7005
  %v7086 = vadd.f32 %v7085, %v7006
  %v7087 = vadd.f32 %v7086, %v7007
  %v7088 = vadd.f32 %v7087, %v7008
  %v7089 = vadd.f32 %v7088, %v7009
  %v7090 = vadd.f32 %v7089, %v7010
  %v7091 = vadd.f32 %v7090, %v7011
  %v7092 = vadd.f32 %v7091, %v7012
  %v7093 = vadd.f32 %v7092, %v7013
  %v7094 = vadd.f32 %v7093, %v7014
  %v7095 = vadd.f32 %v7094, %v7015
  %v7096 = vadd.f32 %v7095, %v7016
  %v7097 = vadd.f32 %v7096, %v7017
  %v7098 = vadd.f32 %v7097, %v7018
  %v7099 = vadd.f32 %v7098, %v7019
  %v7100 = vadd.f32 %v7099, %v7020
  %v7101 = vadd.f32 %v7100, %v7021
  %v7102 = vadd.f32 %v7101, %v7022
  %v7103 = vadd.f32 %v7102, %v7023
  %v7104 = vadd.f32 %v7103, %v7024
  %v7105 = vadd.f32 %v7104, %v7025
  %v7106 = vadd.f32 %v7105, %v7026
  %v7107 = vadd.f32 %v7106, %v7027
  %v7108 = vadd.f32 %v7107, %v7028
  %v7109 = vadd.f32 %v7108, %v7029
  %v7110 = vadd.f32 %v7109, %v7030
  %v7111 = vadd.f32 %v7110, %v7031
  %v7112 = vadd.f32 %v7111, %v7032
  %v7113 = vadd.f32 %v7112, %v7033
  %v7114 = vadd.f32 %v7113, %v7034
  %v7115 = vadd.f32 %v7114, %v7035
  %v7116 = vadd.f32 %v7115, %v7036
  %v7117 = vadd.f32 %v7116, %v7037
  %v7118 = vadd.f32 %v7117, %v7038
  %v7119 = vadd.f32 %v7118, %v7039
  %v7120 = vadd.f32 %v7119, %v7040
  %v7121 = vrot.slane %v7120, 4
  %v7122 = vadd.f32 %v7120, %v7121
  %v7123 = vrot.slane %v7122, 2
  %v7124 = vadd.f32 %v7122, %v7123
  %v7125 = vrot.slane %v7124, 1
  %v7126 = vadd.f32 %v7124, %v7125
  %v7127 = vmul.f32 %v6960, %v6960
  %v7128 = vmul.f32 %v6961, %v6961
  %v7129 = vmul.f32 %v6962, %v6962
  %v7130 = vmul.f32 %v6963, %v6963
  %v7131 = vmul.f32 %v6964, %v6964
  %v7132 = vmul.f32 %v6965, %v6965
  %v7133 = vmul.f32 %v6966, %v6966
  %v7134 = vmul.f32 %v6967, %v6967
  %v7135 = vmul.f32 %v6968, %v6968
  %v7136 = vmul.f32 %v6969, %v6969
  %v7137 = vmul.f32 %v6970, %v6970
  %v7138 = vmul.f32 %v6971, %v6971
  %v7139 = vmul.f32 %v6972, %v6972
  %v7140 = vmul.f32 %v6973, %v6973
  %v7141 = vmul.f32 %v6974, %v6974
  %v7142 = vmul.f32 %v6975, %v6975
  %v7143 = vmul.f32 %v6976, %v6976
  %v7144 = vmul.f32 %v6977, %v6977
  %v7145 = vmul.f32 %v6978, %v6978
  %v7146 = vmul.f32 %v6979, %v6979
  %v7147 = vmul.f32 %v6980, %v6980
  %v7148 = vmul.f32 %v6981, %v6981
  %v7149 = vmul.f32 %v6982, %v6982
  %v7150 = vmul.f32 %v6983, %v6983
  %v7151 = vmul.f32 %v6984, %v6984
  %v7152 = vmul.f32 %v6985, %v6985
  %v7153 = vmul.f32 %v6986, %v6986
  %v7154 = vmul.f32 %v6987, %v6987
  %v7155 = vmul.f32 %v6988, %v6988
  %v7156 = vmul.f32 %v6989, %v6989
  %v7157 = vmul.f32 %v6990, %v6990
  %v7158 = vmul.f32 %v6991, %v6991
  %v7159 = vmul.f32 %v6992, %v6992
  %v7160 = vmul.f32 %v6993, %v6993
  %v7161 = vmul.f32 %v6994, %v6994
  %v7162 = vmul.f32 %v6995, %v6995
  %v7163 = vmul.f32 %v6996, %v6996
  %v7164 = vmul.f32 %v6997, %v6997
  %v7165 = vmul.f32 %v6998, %v6998
  %v7166 = vmul.f32 %v6999, %v6999
  %v7167 = vmul.f32 %v7000, %v7000
  %v7168 = vmul.f32 %v7001, %v7001
  %v7169 = vmul.f32 %v7002, %v7002
  %v7170 = vmul.f32 %v7003, %v7003
  %v7171 = vmul.f32 %v7004, %v7004
  %v7172 = vmul.f32 %v7005, %v7005
  %v7173 = vmul.f32 %v7006, %v7006
  %v7174 = vmul.f32 %v7007, %v7007
  %v7175 = vmul.f32 %v7008, %v7008
  %v7176 = vmul.f32 %v7009, %v7009
  %v7177 = vmul.f32 %v7010, %v7010
  %v7178 = vmul.f32 %v7011, %v7011
  %v7179 = vmul.f32 %v7012, %v7012
  %v7180 = vmul.f32 %v7013, %v7013
  %v7181 = vmul.f32 %v7014, %v7014
  %v7182 = vmul.f32 %v7015, %v7015
  %v7183 = vmul.f32 %v7016, %v7016
  %v7184 = vmul.f32 %v7017, %v7017
  %v7185 = vmul.f32 %v7018, %v7018
  %v7186 = vmul.f32 %v7019, %v7019
  %v7187 = vmul.f32 %v7020, %v7020
  %v7188 = vmul.f32 %v7021, %v7021
  %v7189 = vmul.f32 %v7022, %v7022
  %v7190 = vmul.f32 %v7023, %v7023
  %v7191 = vmul.f32 %v7024, %v7024
  %v7192 = vmul.f32 %v7025, %v7025
  %v7193 = vmul.f32 %v7026, %v7026
  %v7194 = vmul.f32 %v7027, %v7027
  %v7195 = vmul.f32 %v7028, %v7028
  %v7196 = vmul.f32 %v7029, %v7029
  %v7197 = vmul.f32 %v7030, %v7030
  %v7198 = vmul.f32 %v7031, %v7031
  %v7199 = vmul.f32 %v7032, %v7032
  %v7200 = vmul.f32 %v7033, %v7033
  %v7201 = vmul.f32 %v7034, %v7034
  %v7202 = vmul.f32 %v7035, %v7035
  %v7203 = vmul.f32 %v7036, %v7036
  %v7204 = vmul.f32 %v7037, %v7037
  %v7205 = vmul.f32 %v7038, %v7038
  %v7206 = vmul.f32 %v7039, %v7039
  %v7207 = vmul.f32 %v7040, %v7040
  %v7208 = vadd.f32 %v7127, %v7128
  %v7209 = vadd.f32 %v7208, %v7129
  %v7210 = vadd.f32 %v7209, %v7130
  %v7211 = vadd.f32 %v7210, %v7131
  %v7212 = vadd.f32 %v7211, %v7132
  %v7213 = vadd.f32 %v7212, %v7133
  %v7214 = vadd.f32 %v7213, %v7134
  %v7215 = vadd.f32 %v7214, %v7135
  %v7216 = vadd.f32 %v7215, %v7136
  %v7217 = vadd.f32 %v7216, %v7137
  %v7218 = vadd.f32 %v7217, %v7138
  %v7219 = vadd.f32 %v7218, %v7139
  %v7220 = vadd.f32 %v7219, %v7140
  %v7221 = vadd.f32 %v7220, %v7141
  %v7222 = vadd.f32 %v7221, %v7142
  %v7223 = vadd.f32 %v7222, %v7143
  %v7224 = vadd.f32 %v7223, %v7144
  %v7225 = vadd.f32 %v7224, %v7145
  %v7226 = vadd.f32 %v7225, %v7146
  %v7227 = vadd.f32 %v7226, %v7147
  %v7228 = vadd.f32 %v7227, %v7148
  %v7229 = vadd.f32 %v7228, %v7149
  %v7230 = vadd.f32 %v7229, %v7150
  %v7231 = vadd.f32 %v7230, %v7151
  %v7232 = vadd.f32 %v7231, %v7152
  %v7233 = vadd.f32 %v7232, %v7153
  %v7234 = vadd.f32 %v7233, %v7154
  %v7235 = vadd.f32 %v7234, %v7155
  %v7236 = vadd.f32 %v7235, %v7156
  %v7237 = vadd.f32 %v7236, %v7157
  %v7238 = vadd.f32 %v7237, %v7158
  %v7239 = vadd.f32 %v7238, %v7159
  %v7240 = vadd.f32 %v7239, %v7160
  %v7241 = vadd.f32 %v7240, %v7161
  %v7242 = vadd.f32 %v7241, %v7162
  %v7243 = vadd.f32 %v7242, %v7163
  %v7244 = vadd.f32 %v7243, %v7164
  %v7245 = vadd.f32 %v7244, %v7165
  %v7246 = vadd.f32 %v7245, %v7166
  %v7247 = vadd.f32 %v7246, %v7167
  %v7248 = vadd.f32 %v7247, %v7168
  %v7249 = vadd.f32 %v7248, %v7169
  %v7250 = vadd.f32 %v7249, %v7170
  %v7251 = vadd.f32 %v7250, %v7171
  %v7252 = vadd.f32 %v7251, %v7172
  %v7253 = vadd.f32 %v7252, %v7173
  %v7254 = vadd.f32 %v7253, %v7174
  %v7255 = vadd.f32 %v7254, %v7175
  %v7256 = vadd.f32 %v7255, %v7176
  %v7257 = vadd.f32 %v7256, %v7177
  %v7258 = vadd.f32 %v7257, %v7178
  %v7259 = vadd.f32 %v7258, %v7179
  %v7260 = vadd.f32 %v7259, %v7180
  %v7261 = vadd.f32 %v7260, %v7181
  %v7262 = vadd.f32 %v7261, %v7182
  %v7263 = vadd.f32 %v7262, %v7183
  %v7264 = vadd.f32 %v7263, %v7184
  %v7265 = vadd.f32 %v7264, %v7185
  %v7266 = vadd.f32 %v7265, %v7186
  %v7267 = vadd.f32 %v7266, %v7187
  %v7268 = vadd.f32 %v7267, %v7188
  %v7269 = vadd.f32 %v7268, %v7189
  %v7270 = vadd.f32 %v7269, %v7190
  %v7271 = vadd.f32 %v7270, %v7191
  %v7272 = vadd.f32 %v7271, %v7192
  %v7273 = vadd.f32 %v7272, %v7193
  %v7274 = vadd.f32 %v7273, %v7194
  %v7275 = vadd.f32 %v7274, %v7195
  %v7276 = vadd.f32 %v7275, %v7196
  %v7277 = vadd.f32 %v7276, %v7197
  %v7278 = vadd.f32 %v7277, %v7198
  %v7279 = vadd.f32 %v7278, %v7199
  %v7280 = vadd.f32 %v7279, %v7200
  %v7281 = vadd.f32 %v7280, %v7201
  %v7282 = vadd.f32 %v7281, %v7202
  %v7283 = vadd.f32 %v7282, %v7203
  %v7284 = vadd.f32 %v7283, %v7204
  %v7285 = vadd.f32 %v7284, %v7205
  %v7286 = vadd.f32 %v7285, %v7206
  %v7287 = vadd.f32 %v7286, %v7207
  %v7288 = vrot.slane %v7287, 4
  %v7289 = vadd.f32 %v7287, %v7288
  %v7290 = vrot.slane %v7289, 2
  %v7291 = vadd.f32 %v7289, %v7290
  %v7292 = vrot.slane %v7291, 1
  %v7293 = vadd.f32 %v7291, %v7292
  %v7294 = vmul.f32 %v7126, 0.001953125
  %v7295 = vmul.f32 %v7293, 0.001953125
  %v7296 = vmul.f32 %v7294, %v7294
  %v7297 = vsub.f32 %v7295, %v7296
  %v7298 = vmax.f32 %v7297, 0.0
  %v7299 = vadd.f32 %v7298, 1e-05
  %v7300 = vrsqrt.pop %v7299
  %s7301 = scalar_lea.vmem %s6, 2
  %v7302 = vld [vmem:[%s7301] sm:$0x1]
  %v7303 = vmul.f32 %v7300, %v7302
  %s7304 = scalar_lea.vmem %s7, 2
  %v7305 = vld [vmem:[%s7304] sm:$0x1]
  %v7306 = vmul.f32 %v7294, %v7303
  %v7307 = vsub.f32 %v7305, %v7306
  %v7308 = vlaneseq
  %v7309 = vshrl.u32 %v7308, 7
  %v7310 = vsub.s32 0, %v7309
  %v7311 = vrot.slane %v7303, %v7310
  %v7312 = vmul.f32 %v6960, %v7311
  %v7313 = vmul.f32 %v6961, %v7311
  %v7314 = vmul.f32 %v6962, %v7311
  %v7315 = vmul.f32 %v6963, %v7311
  %v7316 = vmul.f32 %v6964, %v7311
  %v7317 = vmul.f32 %v6965, %v7311
  %v7318 = vmul.f32 %v6966, %v7311
  %v7319 = vmul.f32 %v6967, %v7311
  %v7320 = vmul.f32 %v6968, %v7311
  %v7321 = vmul.f32 %v6969, %v7311
  %v7322 = vmul.f32 %v6970, %v7311
  %v7323 = vmul.f32 %v6971, %v7311
  %v7324 = vmul.f32 %v6972, %v7311
  %v7325 = vmul.f32 %v6973, %v7311
  %v7326 = vmul.f32 %v6974, %v7311
  %v7327 = vmul.f32 %v6975, %v7311
  %v7328 = vmul.f32 %v6976, %v7311
  %v7329 = vmul.f32 %v6977, %v7311
  %v7330 = vmul.f32 %v6978, %v7311
  %v7331 = vmul.f32 %v6979, %v7311
  %v7332 = vmul.f32 %v6980, %v7311
  %v7333 = vmul.f32 %v6981, %v7311
  %v7334 = vmul.f32 %v6982, %v7311
  %v7335 = vmul.f32 %v6983, %v7311
  %v7336 = vmul.f32 %v6984, %v7311
  %v7337 = vmul.f32 %v6985, %v7311
  %v7338 = vmul.f32 %v6986, %v7311
  %v7339 = vmul.f32 %v6987, %v7311
  %v7340 = vmul.f32 %v6988, %v7311
  %v7341 = vmul.f32 %v6989, %v7311
  %v7342 = vmul.f32 %v6990, %v7311
  %v7343 = vmul.f32 %v6991, %v7311
  %v7344 = vmul.f32 %v6992, %v7311
  %v7345 = vmul.f32 %v6993, %v7311
  %v7346 = vmul.f32 %v6994, %v7311
  %v7347 = vmul.f32 %v6995, %v7311
  %v7348 = vmul.f32 %v6996, %v7311
  %v7349 = vmul.f32 %v6997, %v7311
  %v7350 = vmul.f32 %v6998, %v7311
  %v7351 = vmul.f32 %v6999, %v7311
  %v7352 = vmul.f32 %v7000, %v7311
  %v7353 = vmul.f32 %v7001, %v7311
  %v7354 = vmul.f32 %v7002, %v7311
  %v7355 = vmul.f32 %v7003, %v7311
  %v7356 = vmul.f32 %v7004, %v7311
  %v7357 = vmul.f32 %v7005, %v7311
  %v7358 = vmul.f32 %v7006, %v7311
  %v7359 = vmul.f32 %v7007, %v7311
  %v7360 = vmul.f32 %v7008, %v7311
  %v7361 = vmul.f32 %v7009, %v7311
  %v7362 = vmul.f32 %v7010, %v7311
  %v7363 = vmul.f32 %v7011, %v7311
  %v7364 = vmul.f32 %v7012, %v7311
  %v7365 = vmul.f32 %v7013, %v7311
  %v7366 = vmul.f32 %v7014, %v7311
  %v7367 = vmul.f32 %v7015, %v7311
  %v7368 = vmul.f32 %v7016, %v7311
  %v7369 = vmul.f32 %v7017, %v7311
  %v7370 = vmul.f32 %v7018, %v7311
  %v7371 = vmul.f32 %v7019, %v7311
  %v7372 = vmul.f32 %v7020, %v7311
  %v7373 = vmul.f32 %v7021, %v7311
  %v7374 = vmul.f32 %v7022, %v7311
  %v7375 = vmul.f32 %v7023, %v7311
  %v7376 = vmul.f32 %v7024, %v7311
  %v7377 = vmul.f32 %v7025, %v7311
  %v7378 = vmul.f32 %v7026, %v7311
  %v7379 = vmul.f32 %v7027, %v7311
  %v7380 = vmul.f32 %v7028, %v7311
  %v7381 = vmul.f32 %v7029, %v7311
  %v7382 = vmul.f32 %v7030, %v7311
  %v7383 = vmul.f32 %v7031, %v7311
  %v7384 = vmul.f32 %v7032, %v7311
  %v7385 = vmul.f32 %v7033, %v7311
  %v7386 = vmul.f32 %v7034, %v7311
  %v7387 = vmul.f32 %v7035, %v7311
  %v7388 = vmul.f32 %v7036, %v7311
  %v7389 = vmul.f32 %v7037, %v7311
  %v7390 = vmul.f32 %v7038, %v7311
  %v7391 = vmul.f32 %v7039, %v7311
  %v7392 = vmul.f32 %v7040, %v7311
  %v7394 = vlaneseq
  %v7395 = vshrl.u32 %v7394, 7
  %v7396 = vsub.s32 0, %v7395
  %v7397 = vrot.slane %v7307, %v7396
  %v7399 = vadd.f32 %v7312, %v7397
  %v7400 = vadd.f32 %v7313, %v7397
  %v7401 = vadd.f32 %v7314, %v7397
  %v7402 = vadd.f32 %v7315, %v7397
  %v7403 = vadd.f32 %v7316, %v7397
  %v7404 = vadd.f32 %v7317, %v7397
  %v7405 = vadd.f32 %v7318, %v7397
  %v7406 = vadd.f32 %v7319, %v7397
  %v7407 = vadd.f32 %v7320, %v7397
  %v7408 = vadd.f32 %v7321, %v7397
  %v7409 = vadd.f32 %v7322, %v7397
  %v7410 = vadd.f32 %v7323, %v7397
  %v7411 = vadd.f32 %v7324, %v7397
  %v7412 = vadd.f32 %v7325, %v7397
  %v7413 = vadd.f32 %v7326, %v7397
  %v7414 = vadd.f32 %v7327, %v7397
  %v7415 = vadd.f32 %v7328, %v7397
  %v7416 = vadd.f32 %v7329, %v7397
  %v7417 = vadd.f32 %v7330, %v7397
  %v7418 = vadd.f32 %v7331, %v7397
  %v7419 = vadd.f32 %v7332, %v7397
  %v7420 = vadd.f32 %v7333, %v7397
  %v7421 = vadd.f32 %v7334, %v7397
  %v7422 = vadd.f32 %v7335, %v7397
  %v7423 = vadd.f32 %v7336, %v7397
  %v7424 = vadd.f32 %v7337, %v7397
  %v7425 = vadd.f32 %v7338, %v7397
  %v7426 = vadd.f32 %v7339, %v7397
  %v7427 = vadd.f32 %v7340, %v7397
  %v7428 = vadd.f32 %v7341, %v7397
  %v7429 = vadd.f32 %v7342, %v7397
  %v7430 = vadd.f32 %v7343, %v7397
  %v7431 = vadd.f32 %v7344, %v7397
  %v7432 = vadd.f32 %v7345, %v7397
  %v7433 = vadd.f32 %v7346, %v7397
  %v7434 = vadd.f32 %v7347, %v7397
  %v7435 = vadd.f32 %v7348, %v7397
  %v7436 = vadd.f32 %v7349, %v7397
  %v7437 = vadd.f32 %v7350, %v7397
  %v7438 = vadd.f32 %v7351, %v7397
  %v7439 = vadd.f32 %v7352, %v7397
  %v7440 = vadd.f32 %v7353, %v7397
  %v7441 = vadd.f32 %v7354, %v7397
  %v7442 = vadd.f32 %v7355, %v7397
  %v7443 = vadd.f32 %v7356, %v7397
  %v7444 = vadd.f32 %v7357, %v7397
  %v7445 = vadd.f32 %v7358, %v7397
  %v7446 = vadd.f32 %v7359, %v7397
  %v7447 = vadd.f32 %v7360, %v7397
  %v7448 = vadd.f32 %v7361, %v7397
  %v7449 = vadd.f32 %v7362, %v7397
  %v7450 = vadd.f32 %v7363, %v7397
  %v7451 = vadd.f32 %v7364, %v7397
  %v7452 = vadd.f32 %v7365, %v7397
  %v7453 = vadd.f32 %v7366, %v7397
  %v7454 = vadd.f32 %v7367, %v7397
  %v7455 = vadd.f32 %v7368, %v7397
  %v7456 = vadd.f32 %v7369, %v7397
  %v7457 = vadd.f32 %v7370, %v7397
  %v7458 = vadd.f32 %v7371, %v7397
  %v7459 = vadd.f32 %v7372, %v7397
  %v7460 = vadd.f32 %v7373, %v7397
  %v7461 = vadd.f32 %v7374, %v7397
  %v7462 = vadd.f32 %v7375, %v7397
  %v7463 = vadd.f32 %v7376, %v7397
  %v7464 = vadd.f32 %v7377, %v7397
  %v7465 = vadd.f32 %v7378, %v7397
  %v7466 = vadd.f32 %v7379, %v7397
  %v7467 = vadd.f32 %v7380, %v7397
  %v7468 = vadd.f32 %v7381, %v7397
  %v7469 = vadd.f32 %v7382, %v7397
  %v7470 = vadd.f32 %v7383, %v7397
  %v7471 = vadd.f32 %v7384, %v7397
  %v7472 = vadd.f32 %v7385, %v7397
  %v7473 = vadd.f32 %v7386, %v7397
  %v7474 = vadd.f32 %v7387, %v7397
  %v7475 = vadd.f32 %v7388, %v7397
  %v7476 = vadd.f32 %v7389, %v7397
  %v7477 = vadd.f32 %v7390, %v7397
  %v7478 = vadd.f32 %v7391, %v7397
  %v7479 = vadd.f32 %v7392, %v7397
  %v7480 = vmul.f32 %v7399, %v29
  %v7481 = vmul.f32 %v7400, %v30
  %v7482 = vmul.f32 %v7401, %v31
  %v7483 = vmul.f32 %v7402, %v32
  %v7484 = vmul.f32 %v7403, %v33
  %v7485 = vmul.f32 %v7404, %v34
  %v7486 = vmul.f32 %v7405, %v35
  %v7487 = vmul.f32 %v7406, %v36
  %v7488 = vmul.f32 %v7407, %v37
  %v7489 = vmul.f32 %v7408, %v38
  %v7490 = vmul.f32 %v7409, %v39
  %v7491 = vmul.f32 %v7410, %v40
  %v7492 = vmul.f32 %v7411, %v41
  %v7493 = vmul.f32 %v7412, %v42
  %v7494 = vmul.f32 %v7413, %v43
  %v7495 = vmul.f32 %v7414, %v44
  %v7496 = vmul.f32 %v7415, %v45
  %v7497 = vmul.f32 %v7416, %v46
  %v7498 = vmul.f32 %v7417, %v47
  %v7499 = vmul.f32 %v7418, %v48
  %v7500 = vmul.f32 %v7419, %v49
  %v7501 = vmul.f32 %v7420, %v50
  %v7502 = vmul.f32 %v7421, %v51
  %v7503 = vmul.f32 %v7422, %v52
  %v7504 = vmul.f32 %v7423, %v53
  %v7505 = vmul.f32 %v7424, %v54
  %v7506 = vmul.f32 %v7425, %v55
  %v7507 = vmul.f32 %v7426, %v56
  %v7508 = vmul.f32 %v7427, %v57
  %v7509 = vmul.f32 %v7428, %v58
  %v7510 = vmul.f32 %v7429, %v59
  %v7511 = vmul.f32 %v7430, %v60
  %v7512 = vmul.f32 %v7431, %v61
  %v7513 = vmul.f32 %v7432, %v62
  %v7514 = vmul.f32 %v7433, %v63
  %v7515 = vmul.f32 %v7434, %v64
  %v7516 = vmul.f32 %v7435, %v65
  %v7517 = vmul.f32 %v7436, %v66
  %v7518 = vmul.f32 %v7437, %v67
  %v7519 = vmul.f32 %v7438, %v68
  %v7520 = vmul.f32 %v7439, %v69
  %v7521 = vmul.f32 %v7440, %v70
  %v7522 = vmul.f32 %v7441, %v71
  %v7523 = vmul.f32 %v7442, %v72
  %v7524 = vmul.f32 %v7443, %v73
  %v7525 = vmul.f32 %v7444, %v74
  %v7526 = vmul.f32 %v7445, %v75
  %v7527 = vmul.f32 %v7446, %v76
  %v7528 = vmul.f32 %v7447, %v77
  %v7529 = vmul.f32 %v7448, %v78
  %v7530 = vmul.f32 %v7449, %v79
  %v7531 = vmul.f32 %v7450, %v80
  %v7532 = vmul.f32 %v7451, %v81
  %v7533 = vmul.f32 %v7452, %v82
  %v7534 = vmul.f32 %v7453, %v83
  %v7535 = vmul.f32 %v7454, %v84
  %v7536 = vmul.f32 %v7455, %v85
  %v7537 = vmul.f32 %v7456, %v86
  %v7538 = vmul.f32 %v7457, %v87
  %v7539 = vmul.f32 %v7458, %v88
  %v7540 = vmul.f32 %v7459, %v89
  %v7541 = vmul.f32 %v7460, %v90
  %v7542 = vmul.f32 %v7461, %v91
  %v7543 = vmul.f32 %v7462, %v92
  %v7544 = vmul.f32 %v7463, %v93
  %v7545 = vmul.f32 %v7464, %v94
  %v7546 = vmul.f32 %v7465, %v95
  %v7547 = vmul.f32 %v7466, %v96
  %v7548 = vmul.f32 %v7467, %v97
  %v7549 = vmul.f32 %v7468, %v98
  %v7550 = vmul.f32 %v7469, %v99
  %v7551 = vmul.f32 %v7470, %v100
  %v7552 = vmul.f32 %v7471, %v101
  %v7553 = vmul.f32 %v7472, %v102
  %v7554 = vmul.f32 %v7473, %v103
  %v7555 = vmul.f32 %v7474, %v104
  %v7556 = vmul.f32 %v7475, %v105
  %v7557 = vmul.f32 %v7476, %v106
  %v7558 = vmul.f32 %v7477, %v107
  %v7559 = vmul.f32 %v7478, %v108
  %v7560 = vmul.f32 %v7479, %v109
  %7561 = vst [vmem:[%s8] sm:$0xff] %v7480
  %7562 = vst [vmem:[%s8 + $0x8] sm:$0xff] %v7481
  %7563 = vst [vmem:[%s8 + $0x10] sm:$0xff] %v7482
  %7564 = vst [vmem:[%s8 + $0x18] sm:$0xff] %v7483
  %7565 = vst [vmem:[%s8 + $0x20] sm:$0xff] %v7484
  %7566 = vst [vmem:[%s8 + $0x28] sm:$0xff] %v7485
  %7567 = vst [vmem:[%s8 + $0x30] sm:$0xff] %v7486
  %7568 = vst [vmem:[%s8 + $0x38] sm:$0xff] %v7487
  %7569 = vst [vmem:[%s8 + $0x40] sm:$0xff] %v7488
  %7570 = vst [vmem:[%s8 + $0x48] sm:$0xff] %v7489
  %7571 = vst [vmem:[%s8 + $0x50] sm:$0xff] %v7490
  %7572 = vst [vmem:[%s8 + $0x58] sm:$0xff] %v7491
  %7573 = vst [vmem:[%s8 + $0x60] sm:$0xff] %v7492
  %7574 = vst [vmem:[%s8 + $0x68] sm:$0xff] %v7493
  %7575 = vst [vmem:[%s8 + $0x70] sm:$0xff] %v7494
  %7576 = vst [vmem:[%s8 + $0x78] sm:$0xff] %v7495
  %7577 = vst [vmem:[%s8 + $0x80] sm:$0xff] %v7496
  %7578 = vst [vmem:[%s8 + $0x88] sm:$0xff] %v7497
  %7579 = vst [vmem:[%s8 + $0x90] sm:$0xff] %v7498
  %7580 = vst [vmem:[%s8 + $0x98] sm:$0xff] %v7499
  %7581 = vst [vmem:[%s8 + $0xa0] sm:$0xff] %v7500
  %7582 = vst [vmem:[%s8 + $0xa8] sm:$0xff] %v7501
  %7583 = vst [vmem:[%s8 + $0xb0] sm:$0xff] %v7502
  %7584 = vst [vmem:[%s8 + $0xb8] sm:$0xff] %v7503
  %7585 = vst [vmem:[%s8 + $0xc0] sm:$0xff] %v7504
  %7586 = vst [vmem:[%s8 + $0xc8] sm:$0xff] %v7505
  %7587 = vst [vmem:[%s8 + $0xd0] sm:$0xff] %v7506
  %7588 = vst [vmem:[%s8 + $0xd8] sm:$0xff] %v7507
  %7589 = vst [vmem:[%s8 + $0xe0] sm:$0xff] %v7508
  %7590 = vst [vmem:[%s8 + $0xe8] sm:$0xff] %v7509
  %7591 = vst [vmem:[%s8 + $0xf0] sm:$0xff] %v7510
  %7592 = vst [vmem:[%s8 + $0xf8] sm:$0xff] %v7511
  %7593 = vst [vmem:[%s8 + $0x100] sm:$0xff] %v7512
  %7594 = vst [vmem:[%s8 + $0x108] sm:$0xff] %v7513
  %7595 = vst [vmem:[%s8 + $0x110] sm:$0xff] %v7514
  %7596 = vst [vmem:[%s8 + $0x118] sm:$0xff] %v7515
  %7597 = vst [vmem:[%s8 + $0x120] sm:$0xff] %v7516
  %7598 = vst [vmem:[%s8 + $0x128] sm:$0xff] %v7517
  %7599 = vst [vmem:[%s8 + $0x130] sm:$0xff] %v7518
  %7600 = vst [vmem:[%s8 + $0x138] sm:$0xff] %v7519
  %7601 = vst [vmem:[%s8 + $0x140] sm:$0xff] %v7520
  %7602 = vst [vmem:[%s8 + $0x148] sm:$0xff] %v7521
  %7603 = vst [vmem:[%s8 + $0x150] sm:$0xff] %v7522
  %7604 = vst [vmem:[%s8 + $0x158] sm:$0xff] %v7523
  %7605 = vst [vmem:[%s8 + $0x160] sm:$0xff] %v7524
  %7606 = vst [vmem:[%s8 + $0x168] sm:$0xff] %v7525
  %7607 = vst [vmem:[%s8 + $0x170] sm:$0xff] %v7526
  %7608 = vst [vmem:[%s8 + $0x178] sm:$0xff] %v7527
  %7609 = vst [vmem:[%s8 + $0x180] sm:$0xff] %v7528
  %7610 = vst [vmem:[%s8 + $0x188] sm:$0xff] %v7529
  %7611 = vst [vmem:[%s8 + $0x190] sm:$0xff] %v7530
  %7612 = vst [vmem:[%s8 + $0x198] sm:$0xff] %v7531
  %7613 = vst [vmem:[%s8 + $0x1a0] sm:$0xff] %v7532
  %7614 = vst [vmem:[%s8 + $0x1a8] sm:$0xff] %v7533
  %7615 = vst [vmem:[%s8 + $0x1b0] sm:$0xff] %v7534
  %7616 = vst [vmem:[%s8 + $0x1b8] sm:$0xff] %v7535
  %7617 = vst [vmem:[%s8 + $0x1c0] sm:$0xff] %v7536
  %7618 = vst [vmem:[%s8 + $0x1c8] sm:$0xff] %v7537
  %7619 = vst [vmem:[%s8 + $0x1d0] sm:$0xff] %v7538
  %7620 = vst [vmem:[%s8 + $0x1d8] sm:$0xff] %v7539
  %7621 = vst [vmem:[%s8 + $0x1e0] sm:$0xff] %v7540
  %7622 = vst [vmem:[%s8 + $0x1e8] sm:$0xff] %v7541
  %7623 = vst [vmem:[%s8 + $0x1f0] sm:$0xff] %v7542
  %7624 = vst [vmem:[%s8 + $0x1f8] sm:$0xff] %v7543
  %7625 = vst [vmem:[%s8 + $0x200] sm:$0xff] %v7544
  %7626 = vst [vmem:[%s8 + $0x208] sm:$0xff] %v7545
  %7627 = vst [vmem:[%s8 + $0x210] sm:$0xff] %v7546
  %7628 = vst [vmem:[%s8 + $0x218] sm:$0xff] %v7547
  %7629 = vst [vmem:[%s8 + $0x220] sm:$0xff] %v7548
  %7630 = vst [vmem:[%s8 + $0x228] sm:$0xff] %v7549
  %7631 = vst [vmem:[%s8 + $0x230] sm:$0xff] %v7550
  %7632 = vst [vmem:[%s8 + $0x238] sm:$0xff] %v7551
  %7633 = vst [vmem:[%s8 + $0x240] sm:$0xff] %v7552
  %7634 = vst [vmem:[%s8 + $0x248] sm:$0xff] %v7553
  %7635 = vst [vmem:[%s8 + $0x250] sm:$0xff] %v7554
  %7636 = vst [vmem:[%s8 + $0x258] sm:$0xff] %v7555
  %7637 = vst [vmem:[%s8 + $0x260] sm:$0xff] %v7556
  %7638 = vst [vmem:[%s8 + $0x268] sm:$0xff] %v7557
  %7639 = vst [vmem:[%s8 + $0x270] sm:$0xff] %v7558
  %7640 = vst [vmem:[%s8 + $0x278] sm:$0xff] %v7559
  %7641 = vst [vmem:[%s8 + $0x280] sm:$0xff] %v7560
  // Predicated region
  $region34: #{mynet_forward.1} parent=0 // pred_check
    _
  $region35: #{mynet_forward.1} parent=0 // pred_check_branch
    %7643 = sbr.rel (0) target = $region37
  $region36: #{mynet_forward.1} parent=0 // pred_region
    _
  $region37: #{mynet_forward.1} parent=0 // pred_fallthru
    _
  // Predicated region
  $region38: #{mynet_forward.1} parent=0 // pred_check
    _
  $region39: #{mynet_forward.1} parent=0 // pred_check_branch
    %7645 = sbr.rel (0) target = $region41
  $region40: #{mynet_forward.1} parent=0 // pred_region
    _
  $region41: #{mynet_forward.1} parent=0 // pred_fallthru
    _

</llo_original>
